<compile_context>
chip_gen: v7x
topology: tpu7x:2x2x1
jax: 0.10.0
libtpu: 0.0.40
codegen_flags: <defaults>
</compile_context>

<pallas_src>
import functools

import numpy as np
import jax
import jax.numpy as jnp
from jax import lax
from jax.experimental import pallas as pl
from jax.experimental.pallas import tpu as pltpu

_EPS = 1e-5     # nn.InstanceNorm2d default eps
_SLOPE = 0.01   # nn.LeakyReLU default negative_slope


# ---------------------------------------------------------------------------
# One-time weight preparation (all layout work happens here, never per forward).
# ---------------------------------------------------------------------------
def _band_conv_weight(w_oihw, W_in, Wo, sw, pw):
    """Banded GEMM weights with the W zero-padding folded in.

    wb[ki, z*Cin+ci, wo*Cout+co] = w[co, ci, ki, kj] with z = sw*wo + kj - pw;
    taps with z outside [0, W_in) are dropped (they only multiply padding zeros).
    """
    w = np.asarray(w_oihw, np.float32)
    Cout, Cin, kh, kw = w.shape
    wb = np.zeros((kh, W_in * Cin, Wo * Cout), np.float32)
    for ki in range(kh):
        for kj in range(kw):
            blk = w[:, :, ki, kj].T                               # (Cin, Cout)
            for wo in range(Wo):
                z = sw * wo + kj - pw
                if 0 <= z < W_in:
                    wb[ki, z * Cin:(z + 1) * Cin,
                       wo * Cout:(wo + 1) * Cout] = blk
    return wb


def _tconv_phase_weight(w_iohw, W_in):
    """ConvTranspose2d(k=4, s=2, p=1) as 4 banded GEMMs (row phase ph x row tap a).

    Column phase pw / column tap b, the W zero-padding and the output-lane interleave
    (wout = 2*wo + pw) are all folded into the weight, so the kernel only performs
    4 dense dots plus a 2-matmul row interleave.
    """
    w = np.asarray(w_iohw, np.float32)                            # (Cin, Cout, 4, 4)
    Cin, Cout = int(w.shape[0]), int(w.shape[1])
    W_out = 2 * W_in
    wt = np.zeros((4, W_in * Cin, W_out * Cout), np.float32)      # index = ph*2 + a
    for ph in range(2):
        for a in range(2):
            ky = 3 - ph - 2 * a
            for pw in range(2):
                for b in range(2):
                    kx = 3 - pw - 2 * b
                    blk = w[:, :, ky, kx]                         # (Cin, Cout)
                    for wo in range(W_in):
                        z = wo + pw + b - 1
                        if 0 <= z < W_in:
                            col = (2 * wo + pw) * Cout
                            wt[ph * 2 + a, z * Cin:(z + 1) * Cin,
                               col:col + Cout] += blk
    return wt


def _chan_mean_proj(Wo, C, count):
    """(Wo*C, Wo*C) projection: per-channel mean (incl. 1/count) broadcast to lanes."""
    idx = np.arange(Wo * C) % C
    return (idx[:, None] == idx[None, :]).astype(np.float32) / float(count)


def _lane_affine(vec, Wo):
    return np.tile(np.asarray(vec, np.float32), Wo)[None, :]      # (1, Wo*C)


# ---------------------------------------------------------------------------
# The single fused kernel.  Grid = (batch,), one sample per program.
# Activation layout: (rows, W*C) with lane index = w*C + c.
# ---------------------------------------------------------------------------
def _generator_kernel(layers, n_w, x_ref, bias_ref, *refs):
    wr = refs[:n_w]
    o_ref = refs[n_w]
    xscr = refs[n_w + 1]
    scr_lanes = xscr.shape[1]
    f32 = jnp.float32

    def dot(a, b):
        return jnp.dot(a, b, preferred_element_type=f32)

    def leaky(v):
        return jnp.where(v > 0, v, _SLOPE * v)

    def select_rows(mat, n_out, mult, off):
        # gather: out[i] = mat[mult*i + off]   (out-of-range -> zero row)
        n_in = mat.shape[0]
        ri = lax.broadcasted_iota(jnp.int32, (n_out, n_in), 0)
        ci = lax.broadcasted_iota(jnp.int32, (n_out, n_in), 1)
        s = jnp.where(ci == mult * ri + off, 1.0, 0.0).astype(f32)
        return dot(s, mat)

    def scatter_rows(mat, n_out, mult, off):
        # scatter: out[mult*j + off] = mat[j]  (other rows -> zero)
        n_in = mat.shape[0]
        ri = lax.broadcasted_iota(jnp.int32, (n_out, n_in), 0)
        ci = lax.broadcasted_iota(jnp.int32, (n_out, n_in), 1)
        s = jnp.where(ri == mult * ci + off, 1.0, 0.0).astype(f32)
        return dot(s, mat)

    def inst_norm(acc, L):
        pm = wr[L['pm']][...]
        mean = dot(jnp.sum(acc, axis=0, keepdims=True), pm)
        d = acc - mean
        var = dot(jnp.sum(d * d, axis=0, keepdims=True), pm)      # two-pass variance
        return d * lax.rsqrt(var + _EPS) * wr[L['g']][...] + wr[L['b']][...]

    def to_scratch(y, ph):
        # realise the H zero-pad: zero-fill the shared scratch, store the interior.
        rows, lanes = y.shape
        xscr[...] = jnp.zeros_like(xscr)
        if lanes == scr_lanes:
            xscr[ph:ph + rows, :] = y
        else:
            xscr[ph:ph + rows, 0:lanes] = y

    def band_read(ki, rows, lanes):
        if lanes == scr_lanes:
            return xscr[ki:ki + rows, :]
        return xscr[ki:ki + rows, 0:lanes]

    y = x_ref[0].astype(f32)                    # (H, W) spectrogram, Cin = 1
    saved = None

    for L in layers:
        if L.get('save_input'):                 # ResidualBlock input
            saved = y

        kind = L['kind']
        if kind == 'stem':
            # x is only (H, W): keep it in registers; the H halo is a row-shift
            # matmul per kernel row instead of a scratch round trip.
            wb = wr[L['wb']]
            acc = None
            for ki in range(L['kh']):
                part = select_rows(dot(y, wb[ki]), L['Ho'], 1, ki - L['ph'])
                acc = part if acc is None else acc + part
            acc = acc + bias_ref[0]             # precomputed emotion-conditioning bias
            out = leaky(inst_norm(acc, L))

        elif kind == 'conv':
            to_scratch(y, L['ph'])
            wb = wr[L['wb']]
            acc = None
            for ki in range(L['kh']):
                part = dot(band_read(ki, L['acc_rows'], L['K']), wb[ki])
                acc = part if acc is None else acc + part
            if L['stride'] == 2:                # keep rows 0,2,4,... of the
                acc = select_rows(acc, L['Ho'], 2, 0)   # full-stride accumulator
            out = acc
            if L['norm']:
                out = inst_norm(out, L)
            if L['act']:
                out = leaky(out)
            if L.get('residual'):
                out = saved + out               # ResidualBlock: x + main(x)

        else:                                   # 'up': ConvTranspose2d(4, 2, 1)
            to_scratch(y, 1)
            wt = wr[L['wb']]
            Hin, K = L['H'], L['K']
            even = dot(band_read(0, Hin, K), wt[0]) + dot(band_read(1, Hin, K), wt[1])
            odd = dot(band_read(1, Hin, K), wt[2]) + dot(band_read(2, Hin, K), wt[3])
            acc = scatter_rows(even, L['Ho'], 2, 0) + scatter_rows(odd, L['Ho'], 2, 1)
            out = leaky(inst_norm(acc, L))

        y = out

    o_ref[0] = y                                # head output (Ho, Wo), Cout = 1


# ---------------------------------------------------------------------------
# Parameters (deterministic synthetic init, PyTorch layouts) + one-time prepare.
# ---------------------------------------------------------------------------
def init_params(key, conv_dim=8, num_emotions=5, repeat_num=2):
    c_dim = num_emotions
    keys = iter(jax.random.split(key, 64))
    p = {}

    def w(shape, scale=0.05):
        return scale * jax.random.normal(next(keys), shape, jnp.float32)

    def g(c):
        return 1.0 + 0.1 * jax.random.normal(next(keys), (c,), jnp.float32)

    def b(c):
        return 0.1 * jax.random.normal(next(keys), (c,), jnp.float32)

    p['w0'] = w((conv_dim, 1 + c_dim, 3, 9))
    p['g0'], p['b0'] = g(conv_dim), b(conv_dim)
    curr = conv_dim
    for i in range(2):                                   # downsampling
        p[f'dw{i}'] = w((curr * 2, curr, 4, 8))
        p[f'dg{i}'], p[f'db{i}'] = g(curr * 2), b(curr * 2)
        curr *= 2
    for i in range(repeat_num):                          # residual blocks
        p[f'r{i}_w1'] = w((curr, curr, 3, 3))
        p[f'r{i}_g1'], p[f'r{i}_b1'] = g(curr), b(curr)
        p[f'r{i}_w2'] = w((curr, curr, 3, 3))
        p[f'r{i}_g2'], p[f'r{i}_b2'] = g(curr), b(curr)
    for i in range(2):                                   # upsampling (ConvTranspose)
        p[f'uw{i}'] = w((curr, curr // 2, 4, 4))         # (Cin, Cout, kh, kw)
        p[f'ug{i}'], p[f'ub{i}'] = g(curr // 2), b(curr // 2)
        curr //= 2
    p['wf'] = w((1, curr, 7, 7))
    return p


def prepare_generator(params, H, W, conv_dim=8, num_emotions=5, repeat_num=2):
    """Build static layer configs + pre-transformed device arrays (done once)."""
    c_dim = num_emotions
    arrays = []

    def add(a):
        arrays.append(jnp.asarray(a, jnp.float32))
        return len(arrays) - 1

    pm_cache = {}

    def pm_idx(Wo, C, count):
        key = (Wo, C, count)
        if key not in pm_cache:
            pm_cache[key] = add(_chan_mean_proj(Wo, C, count))
        return pm_cache[key]

    layers = []

    def add_conv(kind, w_oihw, gamma, beta, Hin, Win, stride, pad, *,
                 norm=True, act=True, save_input=False, residual=False):
        w = np.asarray(w_oihw, np.float32)
        Cout, Cin, kh, kw = w.shape
        sh, sw = stride
        ph, pw = pad
        Hp = Hin + 2 * ph
        Ho = (Hp - kh) // sh + 1
        Wo = (Win + 2 * pw - kw) // sw + 1
        L = dict(kind=kind, H=Hin, K=Win * Cin, Hp=Hp, kh=kh, ph=ph, stride=sh,
                 Ho=Ho, Wo=Wo, Cout=Cout, acc_rows=Hp - kh + 1,
                 norm=norm, act=act, save_input=save_input, residual=residual,
                 wb=add(_band_conv_weight(w, Win, Wo, sw, pw)))
        if norm:
            L['pm'] = pm_idx(Wo, Cout, Ho * Wo)
            L['g'] = add(_lane_affine(gamma, Wo))
            L['b'] = add(_lane_affine(beta, Wo))
        layers.append(L)
        return Ho, Wo, Cout

    def add_up(w_iohw, gamma, beta, Hin, Win):
        w = np.asarray(w_iohw, np.float32)
        Cin, Cout = int(w.shape[0]), int(w.shape[1])
        Hout, Wout = 2 * Hin, 2 * Win
        L = dict(kind='up', H=Hin, K=Win * Cin, Hp=Hin + 2,
                 Ho=Hout, Wo=Wout, Cout=Cout,
                 norm=True, act=True, save_input=False, residual=False,
                 wb=add(_tconv_phase_weight(w, Win)),
                 pm=pm_idx(Wout, Cout, Hout * Wout),
                 g=add(_lane_affine(gamma, Wout)),
                 b=add(_lane_affine(beta, Wout)))
        layers.append(L)
        return Hout, Wout, Cout

    # stem: conv over the single x channel; emotion conditioning becomes a bias table
    w0 = np.asarray(params['w0'], np.float32)            # (conv_dim, 1+c_dim, 3, 9)
    curH, curW, curC = add_conv('stem', w0[:, :1], params['g0'], params['b0'],
                                H, W, (1, 1), (1, 4))
    planes = np.zeros((c_dim, H, W, 1 + c_dim), np.float32)
    for e in range(c_dim):
        planes[e, :, :, 1 + e] = 1.0
    emo = _conv_ref(jnp.asarray(planes), params['w0'], (1, 1), (1, 4))
    emo_table = jnp.asarray(emo, jnp.float32).reshape(c_dim, curH, curW * curC)

    for i in range(2):                                   # downsampling
        curH, curW, curC = add_conv('conv', params[f'dw{i}'], params[f'dg{i}'],
                                    params[f'db{i}'], curH, curW, (2, 2), (1, 3))
    for i in range(repeat_num):                          # residual blocks
        add_conv('conv', params[f'r{i}_w1'], params[f'r{i}_g1'], params[f'r{i}_b1'],
                 curH, curW, (1, 1), (1, 1), save_input=True)
        add_conv('conv', params[f'r{i}_w2'], params[f'r{i}_g2'], params[f'r{i}_b2'],
                 curH, curW, (1, 1), (1, 1), act=False, residual=True)
    for i in range(2):                                   # upsampling (ConvTranspose)
        curH, curW, curC = add_up(params[f'uw{i}'], params[f'ug{i}'],
                                  params[f'ub{i}'], curH, curW)
    out_Ho, out_Wo, _ = add_conv('conv', params['wf'], None, None,
                                 curH, curW, (1, 1), (3, 3), norm=False, act=False)

    scr_rows = max(L['Hp'] for L in layers if L['kind'] != 'stem')
    scr_rows = ((scr_rows + 7) // 8) * 8
    scr_lanes = max(L['K'] for L in layers if L['kind'] != 'stem')
    scr_lanes = ((scr_lanes + 127) // 128) * 128

    cfg = dict(layers=layers, H=H, W=W, out_H=out_Ho, out_W=out_Wo,
               stem_H=layers[0]['Ho'],
               stem_WoC=layers[0]['Wo'] * layers[0]['Cout'],
               scr_shape=(scr_rows, scr_lanes))
    arrs = dict(weights=arrays, emo=emo_table)
    return cfg, arrs


# ---------------------------------------------------------------------------
# Forward pass: ONE pallas_call for the entire generator.
# ---------------------------------------------------------------------------
def _const_idx(rank):
    return lambda n: (0,) * rank


def generator_forward(cfg, arrs, x_nchw, c):
    N = x_nchw.shape[0]
    H, W = cfg['H'], cfg['W']
    layers = cfg['layers']
    weights = list(arrs['weights'])
    n_w = len(weights)

    x = x_nchw.astype(jnp.float32).reshape(N, H, W)      # single input channel
    # Emotion conditioning folded into an exact precomputed stem bias (incl. halo);
    # replaces the broadcast_to + concat + 6-channel stem of the PyTorch code.
    stem_bias = jnp.einsum('ne,ehl->nhl', c.astype(jnp.float32), arrs['emo'])

    in_specs = [pl.BlockSpec((1, H, W), lambda n: (n, 0, 0)),
                pl.BlockSpec((1, cfg['stem_H'], cfg['stem_WoC']),
                             lambda n: (n, 0, 0))]
    in_specs += [pl.BlockSpec(a.shape, _const_idx(a.ndim)) for a in weights]

    out_H, out_W = cfg['out_H'], cfg['out_W']
    out = pl.pallas_call(
        functools.partial(_generator_kernel, layers, n_w),
        out_shape=jax.ShapeDtypeStruct((N, out_H, out_W), jnp.float32),
        grid_spec=pltpu.PrefetchScalarGridSpec(
            num_scalar_prefetch=0, grid=(N,),
            in_specs=in_specs,
            out_specs=pl.BlockSpec((1, out_H, out_W), lambda n: (n, 0, 0)),
            scratch_shapes=[pltpu.VMEM(cfg['scr_shape'], jnp.float32)]),
        # TODO(synk): on v7x the batch axis could be pltpu.CORE_PARALLEL / core_map to
        # engage both TensorCores; "parallel" is kept for portability to v5e/v6e.
        compiler_params=pltpu.CompilerParams(dimension_semantics=("parallel",)),
    )(x, stem_bias, *weights)

    return out.reshape(N, 1, out_H, out_W)
    # TODO(synk): InstanceNorm running-stats bookkeeping (track_running_stats) is not
    # modeled; it does not affect the train-mode forward output reproduced here.


# ---------------------------------------------------------------------------
# Pure-JAX reference (numerical self-check of the Pallas path).
# ---------------------------------------------------------------------------
def _conv_ref(x, w_oihw, stride, pad):
    return lax.conv_general_dilated(
        x, jnp.transpose(w_oihw, (2, 3, 1, 0)), window_strides=stride,
        padding=[(pad[0], pad[0]), (pad[1], pad[1])],
        dimension_numbers=('NHWC', 'HWIO', 'NHWC'))


def _tconv_ref(x, w_iohw):
    w = jnp.transpose(jnp.flip(w_iohw, axis=(2, 3)), (2, 3, 0, 1))
    return lax.conv_general_dilated(
        x, w, window_strides=(1, 1), padding=[(2, 2), (2, 2)],
        lhs_dilation=(2, 2), dimension_numbers=('NHWC', 'HWIO', 'NHWC'))


def _in_ref(x, gamma, beta):
    mean = jnp.mean(x, axis=(1, 2), keepdims=True)
    var = jnp.mean(jnp.square(x - mean), axis=(1, 2), keepdims=True)
    y = (x - mean) * lax.rsqrt(var + _EPS)
    return y * gamma.reshape(1, 1, 1, -1) + beta.reshape(1, 1, 1, -1)


def _lrelu(x):
    return jnp.where(x > 0, x, _SLOPE * x)


def generator_reference(params, x_nchw, c, repeat_num=2):
    N, _, H, W = x_nchw.shape
    x = jnp.transpose(x_nchw, (0, 2, 3, 1)).astype(jnp.float32)
    cmap = jnp.broadcast_to(c[:, None, None, :].astype(jnp.float32),
                            (N, H, W, c.shape[-1]))
    x = jnp.concatenate([x, cmap], axis=-1)
    x = _lrelu(_in_ref(_conv_ref(x, params['w0'], (1, 1), (1, 4)),
                       params['g0'], params['b0']))
    for i in range(2):
        x = _lrelu(_in_ref(_conv_ref(x, params[f'dw{i}'], (2, 2), (1, 3)),
                           params[f'dg{i}'], params[f'db{i}']))
    for i in range(repeat_num):
        h = _lrelu(_in_ref(_conv_ref(x, params[f'r{i}_w1'], (1, 1), (1, 1)),
                           params[f'r{i}_g1'], params[f'r{i}_b1']))
        h = _in_ref(_conv_ref(h, params[f'r{i}_w2'], (1, 1), (1, 1)),
                    params[f'r{i}_g2'], params[f'r{i}_b2'])
        x = x + h
    for i in range(2):
        x = _lrelu(_in_ref(_tconv_ref(x, params[f'uw{i}']),
                           params[f'ug{i}'], params[f'ub{i}']))
    x = _conv_ref(x, params['wf'], (1, 1), (3, 3))
    return jnp.transpose(x, (0, 3, 1, 2))


if __name__ == "__main__":
    conv_dim, num_emotions, repeat_num = 8, 5, 2      # small config, same architecture
    key = jax.random.PRNGKey(0)
    kp, kx, kc = jax.random.split(key, 3)

    N, H, W = 2, 8, 16
    params = init_params(kp, conv_dim, num_emotions, repeat_num)
    x = jax.random.normal(kx, (N, 1, H, W), jnp.float32)             # NCHW, 1 channel
    c = jax.nn.one_hot(jax.random.randint(kc, (N,), 0, num_emotions),
                       num_emotions, dtype=jnp.float32)              # emotion one-hots

    cfg, arrs = prepare_generator(params, H, W, conv_dim, num_emotions, repeat_num)
    fwd = jax.jit(functools.partial(generator_forward, cfg))
    out = fwd(arrs, x, c)
    jax.block_until_ready(out)
    assert out.shape == (N, 1, H, W) and out.dtype == jnp.float32

    ref = jax.jit(functools.partial(generator_reference,
                                    repeat_num=repeat_num))(params, x, c)
    jax.block_until_ready(ref)
    err = float(jnp.max(jnp.abs(out - ref)))
    assert jnp.allclose(out, ref, atol=2e-3, rtol=2e-3), err
    print("KERNEL_OK")
</pallas_src>

<mosaic_0001>
module attributes {stable_mosaic.version = 11 : i64} {
  func.func @_generator_kernel(%arg0: i32, %arg1: memref<1x8x16xf32, #tpu.memory_space<vmem>>, %arg2: memref<1x8x128xf32, #tpu.memory_space<vmem>>, %arg3: memref<3x16x128xf32, #tpu.memory_space<vmem>>, %arg4: memref<128x128xf32, #tpu.memory_space<vmem>>, %arg5: memref<1x128xf32, #tpu.memory_space<vmem>>, %arg6: memref<1x128xf32, #tpu.memory_space<vmem>>, %arg7: memref<4x128x128xf32, #tpu.memory_space<vmem>>, %arg8: memref<128x128xf32, #tpu.memory_space<vmem>>, %arg9: memref<1x128xf32, #tpu.memory_space<vmem>>, %arg10: memref<1x128xf32, #tpu.memory_space<vmem>>, %arg11: memref<4x128x128xf32, #tpu.memory_space<vmem>>, %arg12: memref<128x128xf32, #tpu.memory_space<vmem>>, %arg13: memref<1x128xf32, #tpu.memory_space<vmem>>, %arg14: memref<1x128xf32, #tpu.memory_space<vmem>>, %arg15: memref<3x128x128xf32, #tpu.memory_space<vmem>>, %arg16: memref<1x128xf32, #tpu.memory_space<vmem>>, %arg17: memref<1x128xf32, #tpu.memory_space<vmem>>, %arg18: memref<3x128x128xf32, #tpu.memory_space<vmem>>, %arg19: memref<1x128xf32, #tpu.memory_space<vmem>>, %arg20: memref<1x128xf32, #tpu.memory_space<vmem>>, %arg21: memref<3x128x128xf32, #tpu.memory_space<vmem>>, %arg22: memref<1x128xf32, #tpu.memory_space<vmem>>, %arg23: memref<1x128xf32, #tpu.memory_space<vmem>>, %arg24: memref<3x128x128xf32, #tpu.memory_space<vmem>>, %arg25: memref<1x128xf32, #tpu.memory_space<vmem>>, %arg26: memref<1x128xf32, #tpu.memory_space<vmem>>, %arg27: memref<4x128x128xf32, #tpu.memory_space<vmem>>, %arg28: memref<1x128xf32, #tpu.memory_space<vmem>>, %arg29: memref<1x128xf32, #tpu.memory_space<vmem>>, %arg30: memref<4x128x128xf32, #tpu.memory_space<vmem>>, %arg31: memref<1x128xf32, #tpu.memory_space<vmem>>, %arg32: memref<1x128xf32, #tpu.memory_space<vmem>>, %arg33: memref<7x128x16xf32, #tpu.memory_space<vmem>>, %arg34: memref<1x8x16xf32, #tpu.memory_space<vmem>>, %arg35: memref<16x128xf32, #tpu.memory_space<vmem>>) attributes {dimension_semantics = [#tpu.dimension_semantics<parallel>], iteration_bounds = array<i64: 2>, scalar_prefetch = 0 : i64, scratch_operands = 1 : i64, tpu.core_type = #tpu.core_type<tc>, window_params = [{transform_indices = @transform_0, window_bounds = array<i64: 1, 8, 16>}, {transform_indices = @transform_1, window_bounds = array<i64: 1, 8, 128>}, {pipeline_mode = #tpu.pipeline_mode<synchronous>, transform_indices = @transform_2, window_bounds = array<i64: 3, 16, 128>}, {pipeline_mode = #tpu.pipeline_mode<synchronous>, transform_indices = @transform_3, window_bounds = array<i64: 128, 128>}, {pipeline_mode = #tpu.pipeline_mode<synchronous>, transform_indices = @transform_4, window_bounds = array<i64: 1, 128>}, {pipeline_mode = #tpu.pipeline_mode<synchronous>, transform_indices = @transform_5, window_bounds = array<i64: 1, 128>}, {pipeline_mode = #tpu.pipeline_mode<synchronous>, transform_indices = @transform_6, window_bounds = array<i64: 4, 128, 128>}, {pipeline_mode = #tpu.pipeline_mode<synchronous>, transform_indices = @transform_7, window_bounds = array<i64: 128, 128>}, {pipeline_mode = #tpu.pipeline_mode<synchronous>, transform_indices = @transform_8, window_bounds = array<i64: 1, 128>}, {pipeline_mode = #tpu.pipeline_mode<synchronous>, transform_indices = @transform_9, window_bounds = array<i64: 1, 128>}, {pipeline_mode = #tpu.pipeline_mode<synchronous>, transform_indices = @transform_10, window_bounds = array<i64: 4, 128, 128>}, {pipeline_mode = #tpu.pipeline_mode<synchronous>, transform_indices = @transform_11, window_bounds = array<i64: 128, 128>}, {pipeline_mode = #tpu.pipeline_mode<synchronous>, transform_indices = @transform_12, window_bounds = array<i64: 1, 128>}, {pipeline_mode = #tpu.pipeline_mode<synchronous>, transform_indices = @transform_13, window_bounds = array<i64: 1, 128>}, {pipeline_mode = #tpu.pipeline_mode<synchronous>, transform_indices = @transform_14, window_bounds = array<i64: 3, 128, 128>}, {pipeline_mode = #tpu.pipeline_mode<synchronous>, transform_indices = @transform_15, window_bounds = array<i64: 1, 128>}, {pipeline_mode = #tpu.pipeline_mode<synchronous>, transform_indices = @transform_16, window_bounds = array<i64: 1, 128>}, {pipeline_mode = #tpu.pipeline_mode<synchronous>, transform_indices = @transform_17, window_bounds = array<i64: 3, 128, 128>}, {pipeline_mode = #tpu.pipeline_mode<synchronous>, transform_indices = @transform_18, window_bounds = array<i64: 1, 128>}, {pipeline_mode = #tpu.pipeline_mode<synchronous>, transform_indices = @transform_19, window_bounds = array<i64: 1, 128>}, {pipeline_mode = #tpu.pipeline_mode<synchronous>, transform_indices = @transform_20, window_bounds = array<i64: 3, 128, 128>}, {pipeline_mode = #tpu.pipeline_mode<synchronous>, transform_indices = @transform_21, window_bounds = array<i64: 1, 128>}, {pipeline_mode = #tpu.pipeline_mode<synchronous>, transform_indices = @transform_22, window_bounds = array<i64: 1, 128>}, {pipeline_mode = #tpu.pipeline_mode<synchronous>, transform_indices = @transform_23, window_bounds = array<i64: 3, 128, 128>}, {pipeline_mode = #tpu.pipeline_mode<synchronous>, transform_indices = @transform_24, window_bounds = array<i64: 1, 128>}, {pipeline_mode = #tpu.pipeline_mode<synchronous>, transform_indices = @transform_25, window_bounds = array<i64: 1, 128>}, {pipeline_mode = #tpu.pipeline_mode<synchronous>, transform_indices = @transform_26, window_bounds = array<i64: 4, 128, 128>}, {pipeline_mode = #tpu.pipeline_mode<synchronous>, transform_indices = @transform_27, window_bounds = array<i64: 1, 128>}, {pipeline_mode = #tpu.pipeline_mode<synchronous>, transform_indices = @transform_28, window_bounds = array<i64: 1, 128>}, {pipeline_mode = #tpu.pipeline_mode<synchronous>, transform_indices = @transform_29, window_bounds = array<i64: 4, 128, 128>}, {pipeline_mode = #tpu.pipeline_mode<synchronous>, transform_indices = @transform_30, window_bounds = array<i64: 1, 128>}, {pipeline_mode = #tpu.pipeline_mode<synchronous>, transform_indices = @transform_31, window_bounds = array<i64: 1, 128>}, {pipeline_mode = #tpu.pipeline_mode<synchronous>, transform_indices = @transform_32, window_bounds = array<i64: 7, 128, 16>}, {transform_indices = @transform_33, window_bounds = array<i64: 1, 8, 16>}]} {
    %c0 = arith.constant 0 : index
    %c0_0 = arith.constant 0 : index
    %c0_1 = arith.constant 0 : index
    %0 = vector.load %arg1[%c0, %c0_0, %c0_1] : memref<1x8x16xf32, #tpu.memory_space<vmem>>, vector<1x8x16xf32>
    %1 = vector.shape_cast %0 : vector<1x8x16xf32> to vector<8x16xf32>
    %c0_2 = arith.constant 0 : index
    %c0_3 = arith.constant 0 : index
    %c0_4 = arith.constant 0 : index
    %2 = vector.load %arg3[%c0_2, %c0_3, %c0_4] : memref<3x16x128xf32, #tpu.memory_space<vmem>>, vector<1x16x128xf32>
    %3 = vector.shape_cast %2 : vector<1x16x128xf32> to vector<16x128xf32>
    %cst = arith.constant dense<0.000000e+00> : vector<8x128xf32>
    %4 = tpu.matmul %1, %3, %cst {dimension_numbers = #tpu.dot_dimension_numbers<[1], [0], [0], [1], [0, 0, 1, 1], [], []>} : vector<8x16xf32>, vector<16x128xf32>, vector<8x128xf32> -> vector<8x128xf32>
    %5 = tpu.iota {dimensions = array<i32: 0>} : vector<8x8xi32>
    %6 = tpu.iota {dimensions = array<i32: 1>} : vector<8x8xi32>
    %c1_i32 = arith.constant 1 : i32
    %7 = vector.broadcast %c1_i32 : i32 to vector<8x8xi32>
    %8 = arith.muli %7, %5 : vector<8x8xi32>
    %c-1_i32 = arith.constant -1 : i32
    %9 = vector.broadcast %c-1_i32 : i32 to vector<8x8xi32>
    %10 = arith.addi %8, %9 : vector<8x8xi32>
    %11 = arith.cmpi eq, %6, %10 : vector<8x8xi32>
    %cst_5 = arith.constant 1.000000e+00 : f32
    %cst_6 = arith.constant 0.000000e+00 : f32
    %12 = vector.broadcast %cst_5 : f32 to vector<8x8xf32>
    %13 = vector.broadcast %cst_6 : f32 to vector<8x8xf32>
    %14 = arith.select %11, %12, %13 : vector<8x8xi1>, vector<8x8xf32>
    %cst_7 = arith.constant dense<0.000000e+00> : vector<8x128xf32>
    %15 = tpu.matmul %14, %4, %cst_7 {dimension_numbers = #tpu.dot_dimension_numbers<[1], [0], [0], [1], [0, 0, 1, 1], [], []>} : vector<8x8xf32>, vector<8x128xf32>, vector<8x128xf32> -> vector<8x128xf32>
    %c1 = arith.constant 1 : index
    %c0_8 = arith.constant 0 : index
    %c0_9 = arith.constant 0 : index
    %16 = vector.load %arg3[%c1, %c0_8, %c0_9] : memref<3x16x128xf32, #tpu.memory_space<vmem>>, vector<1x16x128xf32>
    %17 = vector.shape_cast %16 : vector<1x16x128xf32> to vector<16x128xf32>
    %cst_10 = arith.constant dense<0.000000e+00> : vector<8x128xf32>
    %18 = tpu.matmul %1, %17, %cst_10 {dimension_numbers = #tpu.dot_dimension_numbers<[1], [0], [0], [1], [0, 0, 1, 1], [], []>} : vector<8x16xf32>, vector<16x128xf32>, vector<8x128xf32> -> vector<8x128xf32>
    %19 = tpu.iota {dimensions = array<i32: 0>} : vector<8x8xi32>
    %20 = tpu.iota {dimensions = array<i32: 1>} : vector<8x8xi32>
    %c1_i32_11 = arith.constant 1 : i32
    %21 = vector.broadcast %c1_i32_11 : i32 to vector<8x8xi32>
    %22 = arith.muli %21, %19 : vector<8x8xi32>
    %c0_i32 = arith.constant 0 : i32
    %23 = vector.broadcast %c0_i32 : i32 to vector<8x8xi32>
    %24 = arith.addi %22, %23 : vector<8x8xi32>
    %25 = arith.cmpi eq, %20, %24 : vector<8x8xi32>
    %cst_12 = arith.constant 1.000000e+00 : f32
    %cst_13 = arith.constant 0.000000e+00 : f32
    %26 = vector.broadcast %cst_12 : f32 to vector<8x8xf32>
    %27 = vector.broadcast %cst_13 : f32 to vector<8x8xf32>
    %28 = arith.select %25, %26, %27 : vector<8x8xi1>, vector<8x8xf32>
    %cst_14 = arith.constant dense<0.000000e+00> : vector<8x128xf32>
    %29 = tpu.matmul %28, %18, %cst_14 {dimension_numbers = #tpu.dot_dimension_numbers<[1], [0], [0], [1], [0, 0, 1, 1], [], []>} : vector<8x8xf32>, vector<8x128xf32>, vector<8x128xf32> -> vector<8x128xf32>
    %30 = arith.addf %15, %29 : vector<8x128xf32>
    %c2 = arith.constant 2 : index
    %c0_15 = arith.constant 0 : index
    %c0_16 = arith.constant 0 : index
    %31 = vector.load %arg3[%c2, %c0_15, %c0_16] : memref<3x16x128xf32, #tpu.memory_space<vmem>>, vector<1x16x128xf32>
    %32 = vector.shape_cast %31 : vector<1x16x128xf32> to vector<16x128xf32>
    %cst_17 = arith.constant dense<0.000000e+00> : vector<8x128xf32>
    %33 = tpu.matmul %1, %32, %cst_17 {dimension_numbers = #tpu.dot_dimension_numbers<[1], [0], [0], [1], [0, 0, 1, 1], [], []>} : vector<8x16xf32>, vector<16x128xf32>, vector<8x128xf32> -> vector<8x128xf32>
    %34 = tpu.iota {dimensions = array<i32: 0>} : vector<8x8xi32>
    %35 = tpu.iota {dimensions = array<i32: 1>} : vector<8x8xi32>
    %c1_i32_18 = arith.constant 1 : i32
    %36 = vector.broadcast %c1_i32_18 : i32 to vector<8x8xi32>
    %37 = arith.muli %36, %34 : vector<8x8xi32>
    %c1_i32_19 = arith.constant 1 : i32
    %38 = vector.broadcast %c1_i32_19 : i32 to vector<8x8xi32>
    %39 = arith.addi %37, %38 : vector<8x8xi32>
    %40 = arith.cmpi eq, %35, %39 : vector<8x8xi32>
    %cst_20 = arith.constant 1.000000e+00 : f32
    %cst_21 = arith.constant 0.000000e+00 : f32
    %41 = vector.broadcast %cst_20 : f32 to vector<8x8xf32>
    %42 = vector.broadcast %cst_21 : f32 to vector<8x8xf32>
    %43 = arith.select %40, %41, %42 : vector<8x8xi1>, vector<8x8xf32>
    %cst_22 = arith.constant dense<0.000000e+00> : vector<8x128xf32>
    %44 = tpu.matmul %43, %33, %cst_22 {dimension_numbers = #tpu.dot_dimension_numbers<[1], [0], [0], [1], [0, 0, 1, 1], [], []>} : vector<8x8xf32>, vector<8x128xf32>, vector<8x128xf32> -> vector<8x128xf32>
    %45 = arith.addf %30, %44 : vector<8x128xf32>
    %c0_23 = arith.constant 0 : index
    %c0_24 = arith.constant 0 : index
    %c0_25 = arith.constant 0 : index
    %46 = vector.load %arg2[%c0_23, %c0_24, %c0_25] : memref<1x8x128xf32, #tpu.memory_space<vmem>>, vector<1x8x128xf32>
    %47 = vector.shape_cast %46 : vector<1x8x128xf32> to vector<8x128xf32>
    %48 = arith.addf %45, %47 : vector<8x128xf32>
    %c0_26 = arith.constant 0 : index
    %c0_27 = arith.constant 0 : index
    %49 = vector.load %arg4[%c0_26, %c0_27] : memref<128x128xf32, #tpu.memory_space<vmem>>, vector<128x128xf32>
    %cst_28 = arith.constant dense<0.000000e+00> : vector<128xf32>
    %50 = vector.multi_reduction <add>, %48, %cst_28 [0] : vector<8x128xf32> to vector<128xf32>
    %51 = vector.shape_cast %50 : vector<128xf32> to vector<1x128xf32>
    %cst_29 = arith.constant dense<0.000000e+00> : vector<1x128xf32>
    %52 = tpu.matmul %51, %49, %cst_29 {dimension_numbers = #tpu.dot_dimension_numbers<[1], [0], [0], [1], [0, 0, 1, 1], [], []>} : vector<1x128xf32>, vector<128x128xf32>, vector<1x128xf32> -> vector<1x128xf32>
    %53 = vector.broadcast %52 : vector<1x128xf32> to vector<8x128xf32>
    %54 = arith.subf %48, %53 : vector<8x128xf32>
    %55 = arith.mulf %54, %54 : vector<8x128xf32>
    %cst_30 = arith.constant dense<0.000000e+00> : vector<128xf32>
    %56 = vector.multi_reduction <add>, %55, %cst_30 [0] : vector<8x128xf32> to vector<128xf32>
    %57 = vector.shape_cast %56 : vector<128xf32> to vector<1x128xf32>
    %cst_31 = arith.constant dense<0.000000e+00> : vector<1x128xf32>
    %58 = tpu.matmul %57, %49, %cst_31 {dimension_numbers = #tpu.dot_dimension_numbers<[1], [0], [0], [1], [0, 0, 1, 1], [], []>} : vector<1x128xf32>, vector<128x128xf32>, vector<1x128xf32> -> vector<1x128xf32>
    %cst_32 = arith.constant 9.99999974E-6 : f32
    %59 = vector.broadcast %cst_32 : f32 to vector<1x128xf32>
    %60 = arith.addf %58, %59 : vector<1x128xf32>
    %61 = math.rsqrt %60 : vector<1x128xf32>
    %62 = vector.broadcast %61 : vector<1x128xf32> to vector<8x128xf32>
    %63 = arith.mulf %54, %62 : vector<8x128xf32>
    %c0_33 = arith.constant 0 : index
    %c0_34 = arith.constant 0 : index
    %64 = vector.load %arg5[%c0_33, %c0_34] : memref<1x128xf32, #tpu.memory_space<vmem>>, vector<1x128xf32>
    %65 = vector.broadcast %64 : vector<1x128xf32> to vector<8x128xf32>
    %66 = arith.mulf %63, %65 : vector<8x128xf32>
    %c0_35 = arith.constant 0 : index
    %c0_36 = arith.constant 0 : index
    %67 = vector.load %arg6[%c0_35, %c0_36] : memref<1x128xf32, #tpu.memory_space<vmem>>, vector<1x128xf32>
    %68 = vector.broadcast %67 : vector<1x128xf32> to vector<8x128xf32>
    %69 = arith.addf %66, %68 : vector<8x128xf32>
    %cst_37 = arith.constant 0.000000e+00 : f32
    %70 = vector.broadcast %cst_37 : f32 to vector<8x128xf32>
    %71 = arith.cmpf ogt, %69, %70 : vector<8x128xf32>
    %cst_38 = arith.constant 0.00999999977 : f32
    %72 = vector.broadcast %cst_38 : f32 to vector<8x128xf32>
    %73 = arith.mulf %72, %69 : vector<8x128xf32>
    %74 = arith.select %71, %69, %73 : vector<8x128xi1>, vector<8x128xf32>
    %cst_39 = arith.constant 0.000000e+00 : f32
    %75 = vector.broadcast %cst_39 : f32 to vector<16x128xf32>
    %c0_40 = arith.constant 0 : index
    %c0_41 = arith.constant 0 : index
    %76 = vector.load %arg35[%c0_40, %c0_41] : memref<16x128xf32, #tpu.memory_space<vmem>>, vector<16x128xf32>
    tpu.vector_store %arg35[%c0_40, %c0_41], %75 {strides = array<i32>} : memref<16x128xf32, #tpu.memory_space<vmem>>, vector<16x128xf32>,
    %c1_42 = arith.constant 1 : index
    %c0_43 = arith.constant 0 : index
    %77 = vector.load %arg35[%c1_42, %c0_43] : memref<16x128xf32, #tpu.memory_space<vmem>>, vector<8x128xf32>
    tpu.vector_store %arg35[%c1_42, %c0_43], %74 {strides = array<i32>} : memref<16x128xf32, #tpu.memory_space<vmem>>, vector<8x128xf32>,
    %c0_44 = arith.constant 0 : index
    %c0_45 = arith.constant 0 : index
    %78 = vector.load %arg35[%c0_44, %c0_45] : memref<16x128xf32, #tpu.memory_space<vmem>>, vector<7x128xf32>
    %c0_46 = arith.constant 0 : index
    %c0_47 = arith.constant 0 : index
    %c0_48 = arith.constant 0 : index
    %79 = vector.load %arg7[%c0_46, %c0_47, %c0_48] : memref<4x128x128xf32, #tpu.memory_space<vmem>>, vector<1x128x128xf32>
    %80 = vector.shape_cast %79 : vector<1x128x128xf32> to vector<128x128xf32>
    %cst_49 = arith.constant dense<0.000000e+00> : vector<7x128xf32>
    %81 = tpu.matmul %78, %80, %cst_49 {dimension_numbers = #tpu.dot_dimension_numbers<[1], [0], [0], [1], [0, 0, 1, 1], [], []>} : vector<7x128xf32>, vector<128x128xf32>, vector<7x128xf32> -> vector<7x128xf32>
    %c1_50 = arith.constant 1 : index
    %c0_51 = arith.constant 0 : index
    %82 = vector.load %arg35[%c1_50, %c0_51] : memref<16x128xf32, #tpu.memory_space<vmem>>, vector<7x128xf32>
    %c1_52 = arith.constant 1 : index
    %c0_53 = arith.constant 0 : index
    %c0_54 = arith.constant 0 : index
    %83 = vector.load %arg7[%c1_52, %c0_53, %c0_54] : memref<4x128x128xf32, #tpu.memory_space<vmem>>, vector<1x128x128xf32>
    %84 = vector.shape_cast %83 : vector<1x128x128xf32> to vector<128x128xf32>
    %cst_55 = arith.constant dense<0.000000e+00> : vector<7x128xf32>
    %85 = tpu.matmul %82, %84, %cst_55 {dimension_numbers = #tpu.dot_dimension_numbers<[1], [0], [0], [1], [0, 0, 1, 1], [], []>} : vector<7x128xf32>, vector<128x128xf32>, vector<7x128xf32> -> vector<7x128xf32>
    %86 = arith.addf %81, %85 : vector<7x128xf32>
    %c2_56 = arith.constant 2 : index
    %c0_57 = arith.constant 0 : index
    %87 = vector.load %arg35[%c2_56, %c0_57] : memref<16x128xf32, #tpu.memory_space<vmem>>, vector<7x128xf32>
    %c2_58 = arith.constant 2 : index
    %c0_59 = arith.constant 0 : index
    %c0_60 = arith.constant 0 : index
    %88 = vector.load %arg7[%c2_58, %c0_59, %c0_60] : memref<4x128x128xf32, #tpu.memory_space<vmem>>, vector<1x128x128xf32>
    %89 = vector.shape_cast %88 : vector<1x128x128xf32> to vector<128x128xf32>
    %cst_61 = arith.constant dense<0.000000e+00> : vector<7x128xf32>
    %90 = tpu.matmul %87, %89, %cst_61 {dimension_numbers = #tpu.dot_dimension_numbers<[1], [0], [0], [1], [0, 0, 1, 1], [], []>} : vector<7x128xf32>, vector<128x128xf32>, vector<7x128xf32> -> vector<7x128xf32>
    %91 = arith.addf %86, %90 : vector<7x128xf32>
    %c3 = arith.constant 3 : index
    %c0_62 = arith.constant 0 : index
    %92 = vector.load %arg35[%c3, %c0_62] : memref<16x128xf32, #tpu.memory_space<vmem>>, vector<7x128xf32>
    %c3_63 = arith.constant 3 : index
    %c0_64 = arith.constant 0 : index
    %c0_65 = arith.constant 0 : index
    %93 = vector.load %arg7[%c3_63, %c0_64, %c0_65] : memref<4x128x128xf32, #tpu.memory_space<vmem>>, vector<1x128x128xf32>
    %94 = vector.shape_cast %93 : vector<1x128x128xf32> to vector<128x128xf32>
    %cst_66 = arith.constant dense<0.000000e+00> : vector<7x128xf32>
    %95 = tpu.matmul %92, %94, %cst_66 {dimension_numbers = #tpu.dot_dimension_numbers<[1], [0], [0], [1], [0, 0, 1, 1], [], []>} : vector<7x128xf32>, vector<128x128xf32>, vector<7x128xf32> -> vector<7x128xf32>
    %96 = arith.addf %91, %95 : vector<7x128xf32>
    %97 = tpu.iota {dimensions = array<i32: 0>} : vector<4x7xi32>
    %98 = tpu.iota {dimensions = array<i32: 1>} : vector<4x7xi32>
    %c2_i32 = arith.constant 2 : i32
    %99 = vector.broadcast %c2_i32 : i32 to vector<4x7xi32>
    %100 = arith.muli %99, %97 : vector<4x7xi32>
    %c0_i32_67 = arith.constant 0 : i32
    %101 = vector.broadcast %c0_i32_67 : i32 to vector<4x7xi32>
    %102 = arith.addi %100, %101 : vector<4x7xi32>
    %103 = arith.cmpi eq, %98, %102 : vector<4x7xi32>
    %cst_68 = arith.constant 1.000000e+00 : f32
    %cst_69 = arith.constant 0.000000e+00 : f32
    %104 = vector.broadcast %cst_68 : f32 to vector<4x7xf32>
    %105 = vector.broadcast %cst_69 : f32 to vector<4x7xf32>
    %106 = arith.select %103, %104, %105 : vector<4x7xi1>, vector<4x7xf32>
    %cst_70 = arith.constant dense<0.000000e+00> : vector<4x128xf32>
    %107 = tpu.matmul %106, %96, %cst_70 {dimension_numbers = #tpu.dot_dimension_numbers<[1], [0], [0], [1], [0, 0, 1, 1], [], []>} : vector<4x7xf32>, vector<7x128xf32>, vector<4x128xf32> -> vector<4x128xf32>
    %c0_71 = arith.constant 0 : index
    %c0_72 = arith.constant 0 : index
    %108 = vector.load %arg8[%c0_71, %c0_72] : memref<128x128xf32, #tpu.memory_space<vmem>>, vector<128x128xf32>
    %cst_73 = arith.constant dense<0.000000e+00> : vector<128xf32>
    %109 = vector.multi_reduction <add>, %107, %cst_73 [0] : vector<4x128xf32> to vector<128xf32>
    %110 = vector.shape_cast %109 : vector<128xf32> to vector<1x128xf32>
    %cst_74 = arith.constant dense<0.000000e+00> : vector<1x128xf32>
    %111 = tpu.matmul %110, %108, %cst_74 {dimension_numbers = #tpu.dot_dimension_numbers<[1], [0], [0], [1], [0, 0, 1, 1], [], []>} : vector<1x128xf32>, vector<128x128xf32>, vector<1x128xf32> -> vector<1x128xf32>
    %112 = vector.broadcast %111 : vector<1x128xf32> to vector<4x128xf32>
    %113 = arith.subf %107, %112 : vector<4x128xf32>
    %114 = arith.mulf %113, %113 : vector<4x128xf32>
    %cst_75 = arith.constant dense<0.000000e+00> : vector<128xf32>
    %115 = vector.multi_reduction <add>, %114, %cst_75 [0] : vector<4x128xf32> to vector<128xf32>
    %116 = vector.shape_cast %115 : vector<128xf32> to vector<1x128xf32>
    %cst_76 = arith.constant dense<0.000000e+00> : vector<1x128xf32>
    %117 = tpu.matmul %116, %108, %cst_76 {dimension_numbers = #tpu.dot_dimension_numbers<[1], [0], [0], [1], [0, 0, 1, 1], [], []>} : vector<1x128xf32>, vector<128x128xf32>, vector<1x128xf32> -> vector<1x128xf32>
    %cst_77 = arith.constant 9.99999974E-6 : f32
    %118 = vector.broadcast %cst_77 : f32 to vector<1x128xf32>
    %119 = arith.addf %117, %118 : vector<1x128xf32>
    %120 = math.rsqrt %119 : vector<1x128xf32>
    %121 = vector.broadcast %120 : vector<1x128xf32> to vector<4x128xf32>
    %122 = arith.mulf %113, %121 : vector<4x128xf32>
    %c0_78 = arith.constant 0 : index
    %c0_79 = arith.constant 0 : index
    %123 = vector.load %arg9[%c0_78, %c0_79] : memref<1x128xf32, #tpu.memory_space<vmem>>, vector<1x128xf32>
    %124 = vector.broadcast %123 : vector<1x128xf32> to vector<4x128xf32>
    %125 = arith.mulf %122, %124 : vector<4x128xf32>
    %c0_80 = arith.constant 0 : index
    %c0_81 = arith.constant 0 : index
    %126 = vector.load %arg10[%c0_80, %c0_81] : memref<1x128xf32, #tpu.memory_space<vmem>>, vector<1x128xf32>
    %127 = vector.broadcast %126 : vector<1x128xf32> to vector<4x128xf32>
    %128 = arith.addf %125, %127 : vector<4x128xf32>
    %cst_82 = arith.constant 0.000000e+00 : f32
    %129 = vector.broadcast %cst_82 : f32 to vector<4x128xf32>
    %130 = arith.cmpf ogt, %128, %129 : vector<4x128xf32>
    %cst_83 = arith.constant 0.00999999977 : f32
    %131 = vector.broadcast %cst_83 : f32 to vector<4x128xf32>
    %132 = arith.mulf %131, %128 : vector<4x128xf32>
    %133 = arith.select %130, %128, %132 : vector<4x128xi1>, vector<4x128xf32>
    %cst_84 = arith.constant 0.000000e+00 : f32
    %134 = vector.broadcast %cst_84 : f32 to vector<16x128xf32>
    %c0_85 = arith.constant 0 : index
    %c0_86 = arith.constant 0 : index
    %135 = vector.load %arg35[%c0_85, %c0_86] : memref<16x128xf32, #tpu.memory_space<vmem>>, vector<16x128xf32>
    tpu.vector_store %arg35[%c0_85, %c0_86], %134 {strides = array<i32>} : memref<16x128xf32, #tpu.memory_space<vmem>>, vector<16x128xf32>,
    %c1_87 = arith.constant 1 : index
    %c0_88 = arith.constant 0 : index
    %136 = vector.load %arg35[%c1_87, %c0_88] : memref<16x128xf32, #tpu.memory_space<vmem>>, vector<4x128xf32>
    tpu.vector_store %arg35[%c1_87, %c0_88], %133 {strides = array<i32>} : memref<16x128xf32, #tpu.memory_space<vmem>>, vector<4x128xf32>,
    %c0_89 = arith.constant 0 : index
    %c0_90 = arith.constant 0 : index
    %137 = vector.load %arg35[%c0_89, %c0_90] : memref<16x128xf32, #tpu.memory_space<vmem>>, vector<3x128xf32>
    %c0_91 = arith.constant 0 : index
    %c0_92 = arith.constant 0 : index
    %c0_93 = arith.constant 0 : index
    %138 = vector.load %arg11[%c0_91, %c0_92, %c0_93] : memref<4x128x128xf32, #tpu.memory_space<vmem>>, vector<1x128x128xf32>
    %139 = vector.shape_cast %138 : vector<1x128x128xf32> to vector<128x128xf32>
    %cst_94 = arith.constant dense<0.000000e+00> : vector<3x128xf32>
    %140 = tpu.matmul %137, %139, %cst_94 {dimension_numbers = #tpu.dot_dimension_numbers<[1], [0], [0], [1], [0, 0, 1, 1], [], []>} : vector<3x128xf32>, vector<128x128xf32>, vector<3x128xf32> -> vector<3x128xf32>
    %c1_95 = arith.constant 1 : index
    %c0_96 = arith.constant 0 : index
    %141 = vector.load %arg35[%c1_95, %c0_96] : memref<16x128xf32, #tpu.memory_space<vmem>>, vector<3x128xf32>
    %c1_97 = arith.constant 1 : index
    %c0_98 = arith.constant 0 : index
    %c0_99 = arith.constant 0 : index
    %142 = vector.load %arg11[%c1_97, %c0_98, %c0_99] : memref<4x128x128xf32, #tpu.memory_space<vmem>>, vector<1x128x128xf32>
    %143 = vector.shape_cast %142 : vector<1x128x128xf32> to vector<128x128xf32>
    %cst_100 = arith.constant dense<0.000000e+00> : vector<3x128xf32>
    %144 = tpu.matmul %141, %143, %cst_100 {dimension_numbers = #tpu.dot_dimension_numbers<[1], [0], [0], [1], [0, 0, 1, 1], [], []>} : vector<3x128xf32>, vector<128x128xf32>, vector<3x128xf32> -> vector<3x128xf32>
    %145 = arith.addf %140, %144 : vector<3x128xf32>
    %c2_101 = arith.constant 2 : index
    %c0_102 = arith.constant 0 : index
    %146 = vector.load %arg35[%c2_101, %c0_102] : memref<16x128xf32, #tpu.memory_space<vmem>>, vector<3x128xf32>
    %c2_103 = arith.constant 2 : index
    %c0_104 = arith.constant 0 : index
    %c0_105 = arith.constant 0 : index
    %147 = vector.load %arg11[%c2_103, %c0_104, %c0_105] : memref<4x128x128xf32, #tpu.memory_space<vmem>>, vector<1x128x128xf32>
    %148 = vector.shape_cast %147 : vector<1x128x128xf32> to vector<128x128xf32>
    %cst_106 = arith.constant dense<0.000000e+00> : vector<3x128xf32>
    %149 = tpu.matmul %146, %148, %cst_106 {dimension_numbers = #tpu.dot_dimension_numbers<[1], [0], [0], [1], [0, 0, 1, 1], [], []>} : vector<3x128xf32>, vector<128x128xf32>, vector<3x128xf32> -> vector<3x128xf32>
    %150 = arith.addf %145, %149 : vector<3x128xf32>
    %c3_107 = arith.constant 3 : index
    %c0_108 = arith.constant 0 : index
    %151 = vector.load %arg35[%c3_107, %c0_108] : memref<16x128xf32, #tpu.memory_space<vmem>>, vector<3x128xf32>
    %c3_109 = arith.constant 3 : index
    %c0_110 = arith.constant 0 : index
    %c0_111 = arith.constant 0 : index
    %152 = vector.load %arg11[%c3_109, %c0_110, %c0_111] : memref<4x128x128xf32, #tpu.memory_space<vmem>>, vector<1x128x128xf32>
    %153 = vector.shape_cast %152 : vector<1x128x128xf32> to vector<128x128xf32>
    %cst_112 = arith.constant dense<0.000000e+00> : vector<3x128xf32>
    %154 = tpu.matmul %151, %153, %cst_112 {dimension_numbers = #tpu.dot_dimension_numbers<[1], [0], [0], [1], [0, 0, 1, 1], [], []>} : vector<3x128xf32>, vector<128x128xf32>, vector<3x128xf32> -> vector<3x128xf32>
    %155 = arith.addf %150, %154 : vector<3x128xf32>
    %156 = tpu.iota {dimensions = array<i32: 0>} : vector<2x3xi32>
    %157 = tpu.iota {dimensions = array<i32: 1>} : vector<2x3xi32>
    %c2_i32_113 = arith.constant 2 : i32
    %158 = vector.broadcast %c2_i32_113 : i32 to vector<2x3xi32>
    %159 = arith.muli %158, %156 : vector<2x3xi32>
    %c0_i32_114 = arith.constant 0 : i32
    %160 = vector.broadcast %c0_i32_114 : i32 to vector<2x3xi32>
    %161 = arith.addi %159, %160 : vector<2x3xi32>
    %162 = arith.cmpi eq, %157, %161 : vector<2x3xi32>
    %cst_115 = arith.constant 1.000000e+00 : f32
    %cst_116 = arith.constant 0.000000e+00 : f32
    %163 = vector.broadcast %cst_115 : f32 to vector<2x3xf32>
    %164 = vector.broadcast %cst_116 : f32 to vector<2x3xf32>
    %165 = arith.select %162, %163, %164 : vector<2x3xi1>, vector<2x3xf32>
    %cst_117 = arith.constant dense<0.000000e+00> : vector<2x128xf32>
    %166 = tpu.matmul %165, %155, %cst_117 {dimension_numbers = #tpu.dot_dimension_numbers<[1], [0], [0], [1], [0, 0, 1, 1], [], []>} : vector<2x3xf32>, vector<3x128xf32>, vector<2x128xf32> -> vector<2x128xf32>
    %c0_118 = arith.constant 0 : index
    %c0_119 = arith.constant 0 : index
    %167 = vector.load %arg12[%c0_118, %c0_119] : memref<128x128xf32, #tpu.memory_space<vmem>>, vector<128x128xf32>
    %cst_120 = arith.constant dense<0.000000e+00> : vector<128xf32>
    %168 = vector.multi_reduction <add>, %166, %cst_120 [0] : vector<2x128xf32> to vector<128xf32>
    %169 = vector.shape_cast %168 : vector<128xf32> to vector<1x128xf32>
    %cst_121 = arith.constant dense<0.000000e+00> : vector<1x128xf32>
    %170 = tpu.matmul %169, %167, %cst_121 {dimension_numbers = #tpu.dot_dimension_numbers<[1], [0], [0], [1], [0, 0, 1, 1], [], []>} : vector<1x128xf32>, vector<128x128xf32>, vector<1x128xf32> -> vector<1x128xf32>
    %171 = vector.broadcast %170 : vector<1x128xf32> to vector<2x128xf32>
    %172 = arith.subf %166, %171 : vector<2x128xf32>
    %173 = arith.mulf %172, %172 : vector<2x128xf32>
    %cst_122 = arith.constant dense<0.000000e+00> : vector<128xf32>
    %174 = vector.multi_reduction <add>, %173, %cst_122 [0] : vector<2x128xf32> to vector<128xf32>
    %175 = vector.shape_cast %174 : vector<128xf32> to vector<1x128xf32>
    %cst_123 = arith.constant dense<0.000000e+00> : vector<1x128xf32>
    %176 = tpu.matmul %175, %167, %cst_123 {dimension_numbers = #tpu.dot_dimension_numbers<[1], [0], [0], [1], [0, 0, 1, 1], [], []>} : vector<1x128xf32>, vector<128x128xf32>, vector<1x128xf32> -> vector<1x128xf32>
    %cst_124 = arith.constant 9.99999974E-6 : f32
    %177 = vector.broadcast %cst_124 : f32 to vector<1x128xf32>
    %178 = arith.addf %176, %177 : vector<1x128xf32>
    %179 = math.rsqrt %178 : vector<1x128xf32>
    %180 = vector.broadcast %179 : vector<1x128xf32> to vector<2x128xf32>
    %181 = arith.mulf %172, %180 : vector<2x128xf32>
    %c0_125 = arith.constant 0 : index
    %c0_126 = arith.constant 0 : index
    %182 = vector.load %arg13[%c0_125, %c0_126] : memref<1x128xf32, #tpu.memory_space<vmem>>, vector<1x128xf32>
    %183 = vector.broadcast %182 : vector<1x128xf32> to vector<2x128xf32>
    %184 = arith.mulf %181, %183 : vector<2x128xf32>
    %c0_127 = arith.constant 0 : index
    %c0_128 = arith.constant 0 : index
    %185 = vector.load %arg14[%c0_127, %c0_128] : memref<1x128xf32, #tpu.memory_space<vmem>>, vector<1x128xf32>
    %186 = vector.broadcast %185 : vector<1x128xf32> to vector<2x128xf32>
    %187 = arith.addf %184, %186 : vector<2x128xf32>
    %cst_129 = arith.constant 0.000000e+00 : f32
    %188 = vector.broadcast %cst_129 : f32 to vector<2x128xf32>
    %189 = arith.cmpf ogt, %187, %188 : vector<2x128xf32>
    %cst_130 = arith.constant 0.00999999977 : f32
    %190 = vector.broadcast %cst_130 : f32 to vector<2x128xf32>
    %191 = arith.mulf %190, %187 : vector<2x128xf32>
    %192 = arith.select %189, %187, %191 : vector<2x128xi1>, vector<2x128xf32>
    %cst_131 = arith.constant 0.000000e+00 : f32
    %193 = vector.broadcast %cst_131 : f32 to vector<16x128xf32>
    %c0_132 = arith.constant 0 : index
    %c0_133 = arith.constant 0 : index
    %194 = vector.load %arg35[%c0_132, %c0_133] : memref<16x128xf32, #tpu.memory_space<vmem>>, vector<16x128xf32>
    tpu.vector_store %arg35[%c0_132, %c0_133], %193 {strides = array<i32>} : memref<16x128xf32, #tpu.memory_space<vmem>>, vector<16x128xf32>,
    %c1_134 = arith.constant 1 : index
    %c0_135 = arith.constant 0 : index
    %195 = vector.load %arg35[%c1_134, %c0_135] : memref<16x128xf32, #tpu.memory_space<vmem>>, vector<2x128xf32>
    tpu.vector_store %arg35[%c1_134, %c0_135], %192 {strides = array<i32>} : memref<16x128xf32, #tpu.memory_space<vmem>>, vector<2x128xf32>,
    %c0_136 = arith.constant 0 : index
    %c0_137 = arith.constant 0 : index
    %196 = vector.load %arg35[%c0_136, %c0_137] : memref<16x128xf32, #tpu.memory_space<vmem>>, vector<2x128xf32>
    %c0_138 = arith.constant 0 : index
    %c0_139 = arith.constant 0 : index
    %c0_140 = arith.constant 0 : index
    %197 = vector.load %arg15[%c0_138, %c0_139, %c0_140] : memref<3x128x128xf32, #tpu.memory_space<vmem>>, vector<1x128x128xf32>
    %198 = vector.shape_cast %197 : vector<1x128x128xf32> to vector<128x128xf32>
    %cst_141 = arith.constant dense<0.000000e+00> : vector<2x128xf32>
    %199 = tpu.matmul %196, %198, %cst_141 {dimension_numbers = #tpu.dot_dimension_numbers<[1], [0], [0], [1], [0, 0, 1, 1], [], []>} : vector<2x128xf32>, vector<128x128xf32>, vector<2x128xf32> -> vector<2x128xf32>
    %c1_142 = arith.constant 1 : index
    %c0_143 = arith.constant 0 : index
    %200 = vector.load %arg35[%c1_142, %c0_143] : memref<16x128xf32, #tpu.memory_space<vmem>>, vector<2x128xf32>
    %c1_144 = arith.constant 1 : index
    %c0_145 = arith.constant 0 : index
    %c0_146 = arith.constant 0 : index
    %201 = vector.load %arg15[%c1_144, %c0_145, %c0_146] : memref<3x128x128xf32, #tpu.memory_space<vmem>>, vector<1x128x128xf32>
    %202 = vector.shape_cast %201 : vector<1x128x128xf32> to vector<128x128xf32>
    %cst_147 = arith.constant dense<0.000000e+00> : vector<2x128xf32>
    %203 = tpu.matmul %200, %202, %cst_147 {dimension_numbers = #tpu.dot_dimension_numbers<[1], [0], [0], [1], [0, 0, 1, 1], [], []>} : vector<2x128xf32>, vector<128x128xf32>, vector<2x128xf32> -> vector<2x128xf32>
    %204 = arith.addf %199, %203 : vector<2x128xf32>
    %c2_148 = arith.constant 2 : index
    %c0_149 = arith.constant 0 : index
    %205 = vector.load %arg35[%c2_148, %c0_149] : memref<16x128xf32, #tpu.memory_space<vmem>>, vector<2x128xf32>
    %c2_150 = arith.constant 2 : index
    %c0_151 = arith.constant 0 : index
    %c0_152 = arith.constant 0 : index
    %206 = vector.load %arg15[%c2_150, %c0_151, %c0_152] : memref<3x128x128xf32, #tpu.memory_space<vmem>>, vector<1x128x128xf32>
    %207 = vector.shape_cast %206 : vector<1x128x128xf32> to vector<128x128xf32>
    %cst_153 = arith.constant dense<0.000000e+00> : vector<2x128xf32>
    %208 = tpu.matmul %205, %207, %cst_153 {dimension_numbers = #tpu.dot_dimension_numbers<[1], [0], [0], [1], [0, 0, 1, 1], [], []>} : vector<2x128xf32>, vector<128x128xf32>, vector<2x128xf32> -> vector<2x128xf32>
    %209 = arith.addf %204, %208 : vector<2x128xf32>
    %c0_154 = arith.constant 0 : index
    %c0_155 = arith.constant 0 : index
    %210 = vector.load %arg12[%c0_154, %c0_155] : memref<128x128xf32, #tpu.memory_space<vmem>>, vector<128x128xf32>
    %cst_156 = arith.constant dense<0.000000e+00> : vector<128xf32>
    %211 = vector.multi_reduction <add>, %209, %cst_156 [0] : vector<2x128xf32> to vector<128xf32>
    %212 = vector.shape_cast %211 : vector<128xf32> to vector<1x128xf32>
    %cst_157 = arith.constant dense<0.000000e+00> : vector<1x128xf32>
    %213 = tpu.matmul %212, %210, %cst_157 {dimension_numbers = #tpu.dot_dimension_numbers<[1], [0], [0], [1], [0, 0, 1, 1], [], []>} : vector<1x128xf32>, vector<128x128xf32>, vector<1x128xf32> -> vector<1x128xf32>
    %214 = vector.broadcast %213 : vector<1x128xf32> to vector<2x128xf32>
    %215 = arith.subf %209, %214 : vector<2x128xf32>
    %216 = arith.mulf %215, %215 : vector<2x128xf32>
    %cst_158 = arith.constant dense<0.000000e+00> : vector<128xf32>
    %217 = vector.multi_reduction <add>, %216, %cst_158 [0] : vector<2x128xf32> to vector<128xf32>
    %218 = vector.shape_cast %217 : vector<128xf32> to vector<1x128xf32>
    %cst_159 = arith.constant dense<0.000000e+00> : vector<1x128xf32>
    %219 = tpu.matmul %218, %210, %cst_159 {dimension_numbers = #tpu.dot_dimension_numbers<[1], [0], [0], [1], [0, 0, 1, 1], [], []>} : vector<1x128xf32>, vector<128x128xf32>, vector<1x128xf32> -> vector<1x128xf32>
    %cst_160 = arith.constant 9.99999974E-6 : f32
    %220 = vector.broadcast %cst_160 : f32 to vector<1x128xf32>
    %221 = arith.addf %219, %220 : vector<1x128xf32>
    %222 = math.rsqrt %221 : vector<1x128xf32>
    %223 = vector.broadcast %222 : vector<1x128xf32> to vector<2x128xf32>
    %224 = arith.mulf %215, %223 : vector<2x128xf32>
    %c0_161 = arith.constant 0 : index
    %c0_162 = arith.constant 0 : index
    %225 = vector.load %arg16[%c0_161, %c0_162] : memref<1x128xf32, #tpu.memory_space<vmem>>, vector<1x128xf32>
    %226 = vector.broadcast %225 : vector<1x128xf32> to vector<2x128xf32>
    %227 = arith.mulf %224, %226 : vector<2x128xf32>
    %c0_163 = arith.constant 0 : index
    %c0_164 = arith.constant 0 : index
    %228 = vector.load %arg17[%c0_163, %c0_164] : memref<1x128xf32, #tpu.memory_space<vmem>>, vector<1x128xf32>
    %229 = vector.broadcast %228 : vector<1x128xf32> to vector<2x128xf32>
    %230 = arith.addf %227, %229 : vector<2x128xf32>
    %cst_165 = arith.constant 0.000000e+00 : f32
    %231 = vector.broadcast %cst_165 : f32 to vector<2x128xf32>
    %232 = arith.cmpf ogt, %230, %231 : vector<2x128xf32>
    %cst_166 = arith.constant 0.00999999977 : f32
    %233 = vector.broadcast %cst_166 : f32 to vector<2x128xf32>
    %234 = arith.mulf %233, %230 : vector<2x128xf32>
    %235 = arith.select %232, %230, %234 : vector<2x128xi1>, vector<2x128xf32>
    %cst_167 = arith.constant 0.000000e+00 : f32
    %236 = vector.broadcast %cst_167 : f32 to vector<16x128xf32>
    %c0_168 = arith.constant 0 : index
    %c0_169 = arith.constant 0 : index
    %237 = vector.load %arg35[%c0_168, %c0_169] : memref<16x128xf32, #tpu.memory_space<vmem>>, vector<16x128xf32>
    tpu.vector_store %arg35[%c0_168, %c0_169], %236 {strides = array<i32>} : memref<16x128xf32, #tpu.memory_space<vmem>>, vector<16x128xf32>,
    %c1_170 = arith.constant 1 : index
    %c0_171 = arith.constant 0 : index
    %238 = vector.load %arg35[%c1_170, %c0_171] : memref<16x128xf32, #tpu.memory_space<vmem>>, vector<2x128xf32>
    tpu.vector_store %arg35[%c1_170, %c0_171], %235 {strides = array<i32>} : memref<16x128xf32, #tpu.memory_space<vmem>>, vector<2x128xf32>,
    %c0_172 = arith.constant 0 : index
    %c0_173 = arith.constant 0 : index
    %239 = vector.load %arg35[%c0_172, %c0_173] : memref<16x128xf32, #tpu.memory_space<vmem>>, vector<2x128xf32>
    %c0_174 = arith.constant 0 : index
    %c0_175 = arith.constant 0 : index
    %c0_176 = arith.constant 0 : index
    %240 = vector.load %arg18[%c0_174, %c0_175, %c0_176] : memref<3x128x128xf32, #tpu.memory_space<vmem>>, vector<1x128x128xf32>
    %241 = vector.shape_cast %240 : vector<1x128x128xf32> to vector<128x128xf32>
    %cst_177 = arith.constant dense<0.000000e+00> : vector<2x128xf32>
    %242 = tpu.matmul %239, %241, %cst_177 {dimension_numbers = #tpu.dot_dimension_numbers<[1], [0], [0], [1], [0, 0, 1, 1], [], []>} : vector<2x128xf32>, vector<128x128xf32>, vector<2x128xf32> -> vector<2x128xf32>
    %c1_178 = arith.constant 1 : index
    %c0_179 = arith.constant 0 : index
    %243 = vector.load %arg35[%c1_178, %c0_179] : memref<16x128xf32, #tpu.memory_space<vmem>>, vector<2x128xf32>
    %c1_180 = arith.constant 1 : index
    %c0_181 = arith.constant 0 : index
    %c0_182 = arith.constant 0 : index
    %244 = vector.load %arg18[%c1_180, %c0_181, %c0_182] : memref<3x128x128xf32, #tpu.memory_space<vmem>>, vector<1x128x128xf32>
    %245 = vector.shape_cast %244 : vector<1x128x128xf32> to vector<128x128xf32>
    %cst_183 = arith.constant dense<0.000000e+00> : vector<2x128xf32>
    %246 = tpu.matmul %243, %245, %cst_183 {dimension_numbers = #tpu.dot_dimension_numbers<[1], [0], [0], [1], [0, 0, 1, 1], [], []>} : vector<2x128xf32>, vector<128x128xf32>, vector<2x128xf32> -> vector<2x128xf32>
    %247 = arith.addf %242, %246 : vector<2x128xf32>
    %c2_184 = arith.constant 2 : index
    %c0_185 = arith.constant 0 : index
    %248 = vector.load %arg35[%c2_184, %c0_185] : memref<16x128xf32, #tpu.memory_space<vmem>>, vector<2x128xf32>
    %c2_186 = arith.constant 2 : index
    %c0_187 = arith.constant 0 : index
    %c0_188 = arith.constant 0 : index
    %249 = vector.load %arg18[%c2_186, %c0_187, %c0_188] : memref<3x128x128xf32, #tpu.memory_space<vmem>>, vector<1x128x128xf32>
    %250 = vector.shape_cast %249 : vector<1x128x128xf32> to vector<128x128xf32>
    %cst_189 = arith.constant dense<0.000000e+00> : vector<2x128xf32>
    %251 = tpu.matmul %248, %250, %cst_189 {dimension_numbers = #tpu.dot_dimension_numbers<[1], [0], [0], [1], [0, 0, 1, 1], [], []>} : vector<2x128xf32>, vector<128x128xf32>, vector<2x128xf32> -> vector<2x128xf32>
    %252 = arith.addf %247, %251 : vector<2x128xf32>
    %c0_190 = arith.constant 0 : index
    %c0_191 = arith.constant 0 : index
    %253 = vector.load %arg12[%c0_190, %c0_191] : memref<128x128xf32, #tpu.memory_space<vmem>>, vector<128x128xf32>
    %cst_192 = arith.constant dense<0.000000e+00> : vector<128xf32>
    %254 = vector.multi_reduction <add>, %252, %cst_192 [0] : vector<2x128xf32> to vector<128xf32>
    %255 = vector.shape_cast %254 : vector<128xf32> to vector<1x128xf32>
    %cst_193 = arith.constant dense<0.000000e+00> : vector<1x128xf32>
    %256 = tpu.matmul %255, %253, %cst_193 {dimension_numbers = #tpu.dot_dimension_numbers<[1], [0], [0], [1], [0, 0, 1, 1], [], []>} : vector<1x128xf32>, vector<128x128xf32>, vector<1x128xf32> -> vector<1x128xf32>
    %257 = vector.broadcast %256 : vector<1x128xf32> to vector<2x128xf32>
    %258 = arith.subf %252, %257 : vector<2x128xf32>
    %259 = arith.mulf %258, %258 : vector<2x128xf32>
    %cst_194 = arith.constant dense<0.000000e+00> : vector<128xf32>
    %260 = vector.multi_reduction <add>, %259, %cst_194 [0] : vector<2x128xf32> to vector<128xf32>
    %261 = vector.shape_cast %260 : vector<128xf32> to vector<1x128xf32>
    %cst_195 = arith.constant dense<0.000000e+00> : vector<1x128xf32>
    %262 = tpu.matmul %261, %253, %cst_195 {dimension_numbers = #tpu.dot_dimension_numbers<[1], [0], [0], [1], [0, 0, 1, 1], [], []>} : vector<1x128xf32>, vector<128x128xf32>, vector<1x128xf32> -> vector<1x128xf32>
    %cst_196 = arith.constant 9.99999974E-6 : f32
    %263 = vector.broadcast %cst_196 : f32 to vector<1x128xf32>
    %264 = arith.addf %262, %263 : vector<1x128xf32>
    %265 = math.rsqrt %264 : vector<1x128xf32>
    %266 = vector.broadcast %265 : vector<1x128xf32> to vector<2x128xf32>
    %267 = arith.mulf %258, %266 : vector<2x128xf32>
    %c0_197 = arith.constant 0 : index
    %c0_198 = arith.constant 0 : index
    %268 = vector.load %arg19[%c0_197, %c0_198] : memref<1x128xf32, #tpu.memory_space<vmem>>, vector<1x128xf32>
    %269 = vector.broadcast %268 : vector<1x128xf32> to vector<2x128xf32>
    %270 = arith.mulf %267, %269 : vector<2x128xf32>
    %c0_199 = arith.constant 0 : index
    %c0_200 = arith.constant 0 : index
    %271 = vector.load %arg20[%c0_199, %c0_200] : memref<1x128xf32, #tpu.memory_space<vmem>>, vector<1x128xf32>
    %272 = vector.broadcast %271 : vector<1x128xf32> to vector<2x128xf32>
    %273 = arith.addf %270, %272 : vector<2x128xf32>
    %274 = arith.addf %192, %273 : vector<2x128xf32>
    %cst_201 = arith.constant 0.000000e+00 : f32
    %275 = vector.broadcast %cst_201 : f32 to vector<16x128xf32>
    %c0_202 = arith.constant 0 : index
    %c0_203 = arith.constant 0 : index
    %276 = vector.load %arg35[%c0_202, %c0_203] : memref<16x128xf32, #tpu.memory_space<vmem>>, vector<16x128xf32>
    tpu.vector_store %arg35[%c0_202, %c0_203], %275 {strides = array<i32>} : memref<16x128xf32, #tpu.memory_space<vmem>>, vector<16x128xf32>,
    %c1_204 = arith.constant 1 : index
    %c0_205 = arith.constant 0 : index
    %277 = vector.load %arg35[%c1_204, %c0_205] : memref<16x128xf32, #tpu.memory_space<vmem>>, vector<2x128xf32>
    tpu.vector_store %arg35[%c1_204, %c0_205], %274 {strides = array<i32>} : memref<16x128xf32, #tpu.memory_space<vmem>>, vector<2x128xf32>,
    %c0_206 = arith.constant 0 : index
    %c0_207 = arith.constant 0 : index
    %278 = vector.load %arg35[%c0_206, %c0_207] : memref<16x128xf32, #tpu.memory_space<vmem>>, vector<2x128xf32>
    %c0_208 = arith.constant 0 : index
    %c0_209 = arith.constant 0 : index
    %c0_210 = arith.constant 0 : index
    %279 = vector.load %arg21[%c0_208, %c0_209, %c0_210] : memref<3x128x128xf32, #tpu.memory_space<vmem>>, vector<1x128x128xf32>
    %280 = vector.shape_cast %279 : vector<1x128x128xf32> to vector<128x128xf32>
    %cst_211 = arith.constant dense<0.000000e+00> : vector<2x128xf32>
    %281 = tpu.matmul %278, %280, %cst_211 {dimension_numbers = #tpu.dot_dimension_numbers<[1], [0], [0], [1], [0, 0, 1, 1], [], []>} : vector<2x128xf32>, vector<128x128xf32>, vector<2x128xf32> -> vector<2x128xf32>
    %c1_212 = arith.constant 1 : index
    %c0_213 = arith.constant 0 : index
    %282 = vector.load %arg35[%c1_212, %c0_213] : memref<16x128xf32, #tpu.memory_space<vmem>>, vector<2x128xf32>
    %c1_214 = arith.constant 1 : index
    %c0_215 = arith.constant 0 : index
    %c0_216 = arith.constant 0 : index
    %283 = vector.load %arg21[%c1_214, %c0_215, %c0_216] : memref<3x128x128xf32, #tpu.memory_space<vmem>>, vector<1x128x128xf32>
    %284 = vector.shape_cast %283 : vector<1x128x128xf32> to vector<128x128xf32>
    %cst_217 = arith.constant dense<0.000000e+00> : vector<2x128xf32>
    %285 = tpu.matmul %282, %284, %cst_217 {dimension_numbers = #tpu.dot_dimension_numbers<[1], [0], [0], [1], [0, 0, 1, 1], [], []>} : vector<2x128xf32>, vector<128x128xf32>, vector<2x128xf32> -> vector<2x128xf32>
    %286 = arith.addf %281, %285 : vector<2x128xf32>
    %c2_218 = arith.constant 2 : index
    %c0_219 = arith.constant 0 : index
    %287 = vector.load %arg35[%c2_218, %c0_219] : memref<16x128xf32, #tpu.memory_space<vmem>>, vector<2x128xf32>
    %c2_220 = arith.constant 2 : index
    %c0_221 = arith.constant 0 : index
    %c0_222 = arith.constant 0 : index
    %288 = vector.load %arg21[%c2_220, %c0_221, %c0_222] : memref<3x128x128xf32, #tpu.memory_space<vmem>>, vector<1x128x128xf32>
    %289 = vector.shape_cast %288 : vector<1x128x128xf32> to vector<128x128xf32>
    %cst_223 = arith.constant dense<0.000000e+00> : vector<2x128xf32>
    %290 = tpu.matmul %287, %289, %cst_223 {dimension_numbers = #tpu.dot_dimension_numbers<[1], [0], [0], [1], [0, 0, 1, 1], [], []>} : vector<2x128xf32>, vector<128x128xf32>, vector<2x128xf32> -> vector<2x128xf32>
    %291 = arith.addf %286, %290 : vector<2x128xf32>
    %c0_224 = arith.constant 0 : index
    %c0_225 = arith.constant 0 : index
    %292 = vector.load %arg12[%c0_224, %c0_225] : memref<128x128xf32, #tpu.memory_space<vmem>>, vector<128x128xf32>
    %cst_226 = arith.constant dense<0.000000e+00> : vector<128xf32>
    %293 = vector.multi_reduction <add>, %291, %cst_226 [0] : vector<2x128xf32> to vector<128xf32>
    %294 = vector.shape_cast %293 : vector<128xf32> to vector<1x128xf32>
    %cst_227 = arith.constant dense<0.000000e+00> : vector<1x128xf32>
    %295 = tpu.matmul %294, %292, %cst_227 {dimension_numbers = #tpu.dot_dimension_numbers<[1], [0], [0], [1], [0, 0, 1, 1], [], []>} : vector<1x128xf32>, vector<128x128xf32>, vector<1x128xf32> -> vector<1x128xf32>
    %296 = vector.broadcast %295 : vector<1x128xf32> to vector<2x128xf32>
    %297 = arith.subf %291, %296 : vector<2x128xf32>
    %298 = arith.mulf %297, %297 : vector<2x128xf32>
    %cst_228 = arith.constant dense<0.000000e+00> : vector<128xf32>
    %299 = vector.multi_reduction <add>, %298, %cst_228 [0] : vector<2x128xf32> to vector<128xf32>
    %300 = vector.shape_cast %299 : vector<128xf32> to vector<1x128xf32>
    %cst_229 = arith.constant dense<0.000000e+00> : vector<1x128xf32>
    %301 = tpu.matmul %300, %292, %cst_229 {dimension_numbers = #tpu.dot_dimension_numbers<[1], [0], [0], [1], [0, 0, 1, 1], [], []>} : vector<1x128xf32>, vector<128x128xf32>, vector<1x128xf32> -> vector<1x128xf32>
    %cst_230 = arith.constant 9.99999974E-6 : f32
    %302 = vector.broadcast %cst_230 : f32 to vector<1x128xf32>
    %303 = arith.addf %301, %302 : vector<1x128xf32>
    %304 = math.rsqrt %303 : vector<1x128xf32>
    %305 = vector.broadcast %304 : vector<1x128xf32> to vector<2x128xf32>
    %306 = arith.mulf %297, %305 : vector<2x128xf32>
    %c0_231 = arith.constant 0 : index
    %c0_232 = arith.constant 0 : index
    %307 = vector.load %arg22[%c0_231, %c0_232] : memref<1x128xf32, #tpu.memory_space<vmem>>, vector<1x128xf32>
    %308 = vector.broadcast %307 : vector<1x128xf32> to vector<2x128xf32>
    %309 = arith.mulf %306, %308 : vector<2x128xf32>
    %c0_233 = arith.constant 0 : index
    %c0_234 = arith.constant 0 : index
    %310 = vector.load %arg23[%c0_233, %c0_234] : memref<1x128xf32, #tpu.memory_space<vmem>>, vector<1x128xf32>
    %311 = vector.broadcast %310 : vector<1x128xf32> to vector<2x128xf32>
    %312 = arith.addf %309, %311 : vector<2x128xf32>
    %cst_235 = arith.constant 0.000000e+00 : f32
    %313 = vector.broadcast %cst_235 : f32 to vector<2x128xf32>
    %314 = arith.cmpf ogt, %312, %313 : vector<2x128xf32>
    %cst_236 = arith.constant 0.00999999977 : f32
    %315 = vector.broadcast %cst_236 : f32 to vector<2x128xf32>
    %316 = arith.mulf %315, %312 : vector<2x128xf32>
    %317 = arith.select %314, %312, %316 : vector<2x128xi1>, vector<2x128xf32>
    %cst_237 = arith.constant 0.000000e+00 : f32
    %318 = vector.broadcast %cst_237 : f32 to vector<16x128xf32>
    %c0_238 = arith.constant 0 : index
    %c0_239 = arith.constant 0 : index
    %319 = vector.load %arg35[%c0_238, %c0_239] : memref<16x128xf32, #tpu.memory_space<vmem>>, vector<16x128xf32>
    tpu.vector_store %arg35[%c0_238, %c0_239], %318 {strides = array<i32>} : memref<16x128xf32, #tpu.memory_space<vmem>>, vector<16x128xf32>,
    %c1_240 = arith.constant 1 : index
    %c0_241 = arith.constant 0 : index
    %320 = vector.load %arg35[%c1_240, %c0_241] : memref<16x128xf32, #tpu.memory_space<vmem>>, vector<2x128xf32>
    tpu.vector_store %arg35[%c1_240, %c0_241], %317 {strides = array<i32>} : memref<16x128xf32, #tpu.memory_space<vmem>>, vector<2x128xf32>,
    %c0_242 = arith.constant 0 : index
    %c0_243 = arith.constant 0 : index
    %321 = vector.load %arg35[%c0_242, %c0_243] : memref<16x128xf32, #tpu.memory_space<vmem>>, vector<2x128xf32>
    %c0_244 = arith.constant 0 : index
    %c0_245 = arith.constant 0 : index
    %c0_246 = arith.constant 0 : index
    %322 = vector.load %arg24[%c0_244, %c0_245, %c0_246] : memref<3x128x128xf32, #tpu.memory_space<vmem>>, vector<1x128x128xf32>
    %323 = vector.shape_cast %322 : vector<1x128x128xf32> to vector<128x128xf32>
    %cst_247 = arith.constant dense<0.000000e+00> : vector<2x128xf32>
    %324 = tpu.matmul %321, %323, %cst_247 {dimension_numbers = #tpu.dot_dimension_numbers<[1], [0], [0], [1], [0, 0, 1, 1], [], []>} : vector<2x128xf32>, vector<128x128xf32>, vector<2x128xf32> -> vector<2x128xf32>
    %c1_248 = arith.constant 1 : index
    %c0_249 = arith.constant 0 : index
    %325 = vector.load %arg35[%c1_248, %c0_249] : memref<16x128xf32, #tpu.memory_space<vmem>>, vector<2x128xf32>
    %c1_250 = arith.constant 1 : index
    %c0_251 = arith.constant 0 : index
    %c0_252 = arith.constant 0 : index
    %326 = vector.load %arg24[%c1_250, %c0_251, %c0_252] : memref<3x128x128xf32, #tpu.memory_space<vmem>>, vector<1x128x128xf32>
    %327 = vector.shape_cast %326 : vector<1x128x128xf32> to vector<128x128xf32>
    %cst_253 = arith.constant dense<0.000000e+00> : vector<2x128xf32>
    %328 = tpu.matmul %325, %327, %cst_253 {dimension_numbers = #tpu.dot_dimension_numbers<[1], [0], [0], [1], [0, 0, 1, 1], [], []>} : vector<2x128xf32>, vector<128x128xf32>, vector<2x128xf32> -> vector<2x128xf32>
    %329 = arith.addf %324, %328 : vector<2x128xf32>
    %c2_254 = arith.constant 2 : index
    %c0_255 = arith.constant 0 : index
    %330 = vector.load %arg35[%c2_254, %c0_255] : memref<16x128xf32, #tpu.memory_space<vmem>>, vector<2x128xf32>
    %c2_256 = arith.constant 2 : index
    %c0_257 = arith.constant 0 : index
    %c0_258 = arith.constant 0 : index
    %331 = vector.load %arg24[%c2_256, %c0_257, %c0_258] : memref<3x128x128xf32, #tpu.memory_space<vmem>>, vector<1x128x128xf32>
    %332 = vector.shape_cast %331 : vector<1x128x128xf32> to vector<128x128xf32>
    %cst_259 = arith.constant dense<0.000000e+00> : vector<2x128xf32>
    %333 = tpu.matmul %330, %332, %cst_259 {dimension_numbers = #tpu.dot_dimension_numbers<[1], [0], [0], [1], [0, 0, 1, 1], [], []>} : vector<2x128xf32>, vector<128x128xf32>, vector<2x128xf32> -> vector<2x128xf32>
    %334 = arith.addf %329, %333 : vector<2x128xf32>
    %c0_260 = arith.constant 0 : index
    %c0_261 = arith.constant 0 : index
    %335 = vector.load %arg12[%c0_260, %c0_261] : memref<128x128xf32, #tpu.memory_space<vmem>>, vector<128x128xf32>
    %cst_262 = arith.constant dense<0.000000e+00> : vector<128xf32>
    %336 = vector.multi_reduction <add>, %334, %cst_262 [0] : vector<2x128xf32> to vector<128xf32>
    %337 = vector.shape_cast %336 : vector<128xf32> to vector<1x128xf32>
    %cst_263 = arith.constant dense<0.000000e+00> : vector<1x128xf32>
    %338 = tpu.matmul %337, %335, %cst_263 {dimension_numbers = #tpu.dot_dimension_numbers<[1], [0], [0], [1], [0, 0, 1, 1], [], []>} : vector<1x128xf32>, vector<128x128xf32>, vector<1x128xf32> -> vector<1x128xf32>
    %339 = vector.broadcast %338 : vector<1x128xf32> to vector<2x128xf32>
    %340 = arith.subf %334, %339 : vector<2x128xf32>
    %341 = arith.mulf %340, %340 : vector<2x128xf32>
    %cst_264 = arith.constant dense<0.000000e+00> : vector<128xf32>
    %342 = vector.multi_reduction <add>, %341, %cst_264 [0] : vector<2x128xf32> to vector<128xf32>
    %343 = vector.shape_cast %342 : vector<128xf32> to vector<1x128xf32>
    %cst_265 = arith.constant dense<0.000000e+00> : vector<1x128xf32>
    %344 = tpu.matmul %343, %335, %cst_265 {dimension_numbers = #tpu.dot_dimension_numbers<[1], [0], [0], [1], [0, 0, 1, 1], [], []>} : vector<1x128xf32>, vector<128x128xf32>, vector<1x128xf32> -> vector<1x128xf32>
    %cst_266 = arith.constant 9.99999974E-6 : f32
    %345 = vector.broadcast %cst_266 : f32 to vector<1x128xf32>
    %346 = arith.addf %344, %345 : vector<1x128xf32>
    %347 = math.rsqrt %346 : vector<1x128xf32>
    %348 = vector.broadcast %347 : vector<1x128xf32> to vector<2x128xf32>
    %349 = arith.mulf %340, %348 : vector<2x128xf32>
    %c0_267 = arith.constant 0 : index
    %c0_268 = arith.constant 0 : index
    %350 = vector.load %arg25[%c0_267, %c0_268] : memref<1x128xf32, #tpu.memory_space<vmem>>, vector<1x128xf32>
    %351 = vector.broadcast %350 : vector<1x128xf32> to vector<2x128xf32>
    %352 = arith.mulf %349, %351 : vector<2x128xf32>
    %c0_269 = arith.constant 0 : index
    %c0_270 = arith.constant 0 : index
    %353 = vector.load %arg26[%c0_269, %c0_270] : memref<1x128xf32, #tpu.memory_space<vmem>>, vector<1x128xf32>
    %354 = vector.broadcast %353 : vector<1x128xf32> to vector<2x128xf32>
    %355 = arith.addf %352, %354 : vector<2x128xf32>
    %356 = arith.addf %274, %355 : vector<2x128xf32>
    %cst_271 = arith.constant 0.000000e+00 : f32
    %357 = vector.broadcast %cst_271 : f32 to vector<16x128xf32>
    %c0_272 = arith.constant 0 : index
    %c0_273 = arith.constant 0 : index
    %358 = vector.load %arg35[%c0_272, %c0_273] : memref<16x128xf32, #tpu.memory_space<vmem>>, vector<16x128xf32>
    tpu.vector_store %arg35[%c0_272, %c0_273], %357 {strides = array<i32>} : memref<16x128xf32, #tpu.memory_space<vmem>>, vector<16x128xf32>,
    %c1_274 = arith.constant 1 : index
    %c0_275 = arith.constant 0 : index
    %359 = vector.load %arg35[%c1_274, %c0_275] : memref<16x128xf32, #tpu.memory_space<vmem>>, vector<2x128xf32>
    tpu.vector_store %arg35[%c1_274, %c0_275], %356 {strides = array<i32>} : memref<16x128xf32, #tpu.memory_space<vmem>>, vector<2x128xf32>,
    %c0_276 = arith.constant 0 : index
    %c0_277 = arith.constant 0 : index
    %360 = vector.load %arg35[%c0_276, %c0_277] : memref<16x128xf32, #tpu.memory_space<vmem>>, vector<2x128xf32>
    %c0_278 = arith.constant 0 : index
    %c0_279 = arith.constant 0 : index
    %c0_280 = arith.constant 0 : index
    %361 = vector.load %arg27[%c0_278, %c0_279, %c0_280] : memref<4x128x128xf32, #tpu.memory_space<vmem>>, vector<1x128x128xf32>
    %362 = vector.shape_cast %361 : vector<1x128x128xf32> to vector<128x128xf32>
    %cst_281 = arith.constant dense<0.000000e+00> : vector<2x128xf32>
    %363 = tpu.matmul %360, %362, %cst_281 {dimension_numbers = #tpu.dot_dimension_numbers<[1], [0], [0], [1], [0, 0, 1, 1], [], []>} : vector<2x128xf32>, vector<128x128xf32>, vector<2x128xf32> -> vector<2x128xf32>
    %c1_282 = arith.constant 1 : index
    %c0_283 = arith.constant 0 : index
    %364 = vector.load %arg35[%c1_282, %c0_283] : memref<16x128xf32, #tpu.memory_space<vmem>>, vector<2x128xf32>
    %c1_284 = arith.constant 1 : index
    %c0_285 = arith.constant 0 : index
    %c0_286 = arith.constant 0 : index
    %365 = vector.load %arg27[%c1_284, %c0_285, %c0_286] : memref<4x128x128xf32, #tpu.memory_space<vmem>>, vector<1x128x128xf32>
    %366 = vector.shape_cast %365 : vector<1x128x128xf32> to vector<128x128xf32>
    %cst_287 = arith.constant dense<0.000000e+00> : vector<2x128xf32>
    %367 = tpu.matmul %364, %366, %cst_287 {dimension_numbers = #tpu.dot_dimension_numbers<[1], [0], [0], [1], [0, 0, 1, 1], [], []>} : vector<2x128xf32>, vector<128x128xf32>, vector<2x128xf32> -> vector<2x128xf32>
    %368 = arith.addf %363, %367 : vector<2x128xf32>
    %c1_288 = arith.constant 1 : index
    %c0_289 = arith.constant 0 : index
    %369 = vector.load %arg35[%c1_288, %c0_289] : memref<16x128xf32, #tpu.memory_space<vmem>>, vector<2x128xf32>
    %c2_290 = arith.constant 2 : index
    %c0_291 = arith.constant 0 : index
    %c0_292 = arith.constant 0 : index
    %370 = vector.load %arg27[%c2_290, %c0_291, %c0_292] : memref<4x128x128xf32, #tpu.memory_space<vmem>>, vector<1x128x128xf32>
    %371 = vector.shape_cast %370 : vector<1x128x128xf32> to vector<128x128xf32>
    %cst_293 = arith.constant dense<0.000000e+00> : vector<2x128xf32>
    %372 = tpu.matmul %369, %371, %cst_293 {dimension_numbers = #tpu.dot_dimension_numbers<[1], [0], [0], [1], [0, 0, 1, 1], [], []>} : vector<2x128xf32>, vector<128x128xf32>, vector<2x128xf32> -> vector<2x128xf32>
    %c2_294 = arith.constant 2 : index
    %c0_295 = arith.constant 0 : index
    %373 = vector.load %arg35[%c2_294, %c0_295] : memref<16x128xf32, #tpu.memory_space<vmem>>, vector<2x128xf32>
    %c3_296 = arith.constant 3 : index
    %c0_297 = arith.constant 0 : index
    %c0_298 = arith.constant 0 : index
    %374 = vector.load %arg27[%c3_296, %c0_297, %c0_298] : memref<4x128x128xf32, #tpu.memory_space<vmem>>, vector<1x128x128xf32>
    %375 = vector.shape_cast %374 : vector<1x128x128xf32> to vector<128x128xf32>
    %cst_299 = arith.constant dense<0.000000e+00> : vector<2x128xf32>
    %376 = tpu.matmul %373, %375, %cst_299 {dimension_numbers = #tpu.dot_dimension_numbers<[1], [0], [0], [1], [0, 0, 1, 1], [], []>} : vector<2x128xf32>, vector<128x128xf32>, vector<2x128xf32> -> vector<2x128xf32>
    %377 = arith.addf %372, %376 : vector<2x128xf32>
    %378 = tpu.iota {dimensions = array<i32: 0>} : vector<4x2xi32>
    %379 = tpu.iota {dimensions = array<i32: 1>} : vector<4x2xi32>
    %c2_i32_300 = arith.constant 2 : i32
    %380 = vector.broadcast %c2_i32_300 : i32 to vector<4x2xi32>
    %381 = arith.muli %380, %379 : vector<4x2xi32>
    %c0_i32_301 = arith.constant 0 : i32
    %382 = vector.broadcast %c0_i32_301 : i32 to vector<4x2xi32>
    %383 = arith.addi %381, %382 : vector<4x2xi32>
    %384 = arith.cmpi eq, %378, %383 : vector<4x2xi32>
    %cst_302 = arith.constant 1.000000e+00 : f32
    %cst_303 = arith.constant 0.000000e+00 : f32
    %385 = vector.broadcast %cst_302 : f32 to vector<4x2xf32>
    %386 = vector.broadcast %cst_303 : f32 to vector<4x2xf32>
    %387 = arith.select %384, %385, %386 : vector<4x2xi1>, vector<4x2xf32>
    %cst_304 = arith.constant dense<0.000000e+00> : vector<4x128xf32>
    %388 = tpu.matmul %387, %368, %cst_304 {dimension_numbers = #tpu.dot_dimension_numbers<[1], [0], [0], [1], [0, 0, 1, 1], [], []>} : vector<4x2xf32>, vector<2x128xf32>, vector<4x128xf32> -> vector<4x128xf32>
    %389 = tpu.iota {dimensions = array<i32: 0>} : vector<4x2xi32>
    %390 = tpu.iota {dimensions = array<i32: 1>} : vector<4x2xi32>
    %c2_i32_305 = arith.constant 2 : i32
    %391 = vector.broadcast %c2_i32_305 : i32 to vector<4x2xi32>
    %392 = arith.muli %391, %390 : vector<4x2xi32>
    %c1_i32_306 = arith.constant 1 : i32
    %393 = vector.broadcast %c1_i32_306 : i32 to vector<4x2xi32>
    %394 = arith.addi %392, %393 : vector<4x2xi32>
    %395 = arith.cmpi eq, %389, %394 : vector<4x2xi32>
    %cst_307 = arith.constant 1.000000e+00 : f32
    %cst_308 = arith.constant 0.000000e+00 : f32
    %396 = vector.broadcast %cst_307 : f32 to vector<4x2xf32>
    %397 = vector.broadcast %cst_308 : f32 to vector<4x2xf32>
    %398 = arith.select %395, %396, %397 : vector<4x2xi1>, vector<4x2xf32>
    %cst_309 = arith.constant dense<0.000000e+00> : vector<4x128xf32>
    %399 = tpu.matmul %398, %377, %cst_309 {dimension_numbers = #tpu.dot_dimension_numbers<[1], [0], [0], [1], [0, 0, 1, 1], [], []>} : vector<4x2xf32>, vector<2x128xf32>, vector<4x128xf32> -> vector<4x128xf32>
    %400 = arith.addf %388, %399 : vector<4x128xf32>
    %c0_310 = arith.constant 0 : index
    %c0_311 = arith.constant 0 : index
    %401 = vector.load %arg8[%c0_310, %c0_311] : memref<128x128xf32, #tpu.memory_space<vmem>>, vector<128x128xf32>
    %cst_312 = arith.constant dense<0.000000e+00> : vector<128xf32>
    %402 = vector.multi_reduction <add>, %400, %cst_312 [0] : vector<4x128xf32> to vector<128xf32>
    %403 = vector.shape_cast %402 : vector<128xf32> to vector<1x128xf32>
    %cst_313 = arith.constant dense<0.000000e+00> : vector<1x128xf32>
    %404 = tpu.matmul %403, %401, %cst_313 {dimension_numbers = #tpu.dot_dimension_numbers<[1], [0], [0], [1], [0, 0, 1, 1], [], []>} : vector<1x128xf32>, vector<128x128xf32>, vector<1x128xf32> -> vector<1x128xf32>
    %405 = vector.broadcast %404 : vector<1x128xf32> to vector<4x128xf32>
    %406 = arith.subf %400, %405 : vector<4x128xf32>
    %407 = arith.mulf %406, %406 : vector<4x128xf32>
    %cst_314 = arith.constant dense<0.000000e+00> : vector<128xf32>
    %408 = vector.multi_reduction <add>, %407, %cst_314 [0] : vector<4x128xf32> to vector<128xf32>
    %409 = vector.shape_cast %408 : vector<128xf32> to vector<1x128xf32>
    %cst_315 = arith.constant dense<0.000000e+00> : vector<1x128xf32>
    %410 = tpu.matmul %409, %401, %cst_315 {dimension_numbers = #tpu.dot_dimension_numbers<[1], [0], [0], [1], [0, 0, 1, 1], [], []>} : vector<1x128xf32>, vector<128x128xf32>, vector<1x128xf32> -> vector<1x128xf32>
    %cst_316 = arith.constant 9.99999974E-6 : f32
    %411 = vector.broadcast %cst_316 : f32 to vector<1x128xf32>
    %412 = arith.addf %410, %411 : vector<1x128xf32>
    %413 = math.rsqrt %412 : vector<1x128xf32>
    %414 = vector.broadcast %413 : vector<1x128xf32> to vector<4x128xf32>
    %415 = arith.mulf %406, %414 : vector<4x128xf32>
    %c0_317 = arith.constant 0 : index
    %c0_318 = arith.constant 0 : index
    %416 = vector.load %arg28[%c0_317, %c0_318] : memref<1x128xf32, #tpu.memory_space<vmem>>, vector<1x128xf32>
    %417 = vector.broadcast %416 : vector<1x128xf32> to vector<4x128xf32>
    %418 = arith.mulf %415, %417 : vector<4x128xf32>
    %c0_319 = arith.constant 0 : index
    %c0_320 = arith.constant 0 : index
    %419 = vector.load %arg29[%c0_319, %c0_320] : memref<1x128xf32, #tpu.memory_space<vmem>>, vector<1x128xf32>
    %420 = vector.broadcast %419 : vector<1x128xf32> to vector<4x128xf32>
    %421 = arith.addf %418, %420 : vector<4x128xf32>
    %cst_321 = arith.constant 0.000000e+00 : f32
    %422 = vector.broadcast %cst_321 : f32 to vector<4x128xf32>
    %423 = arith.cmpf ogt, %421, %422 : vector<4x128xf32>
    %cst_322 = arith.constant 0.00999999977 : f32
    %424 = vector.broadcast %cst_322 : f32 to vector<4x128xf32>
    %425 = arith.mulf %424, %421 : vector<4x128xf32>
    %426 = arith.select %423, %421, %425 : vector<4x128xi1>, vector<4x128xf32>
    %cst_323 = arith.constant 0.000000e+00 : f32
    %427 = vector.broadcast %cst_323 : f32 to vector<16x128xf32>
    %c0_324 = arith.constant 0 : index
    %c0_325 = arith.constant 0 : index
    %428 = vector.load %arg35[%c0_324, %c0_325] : memref<16x128xf32, #tpu.memory_space<vmem>>, vector<16x128xf32>
    tpu.vector_store %arg35[%c0_324, %c0_325], %427 {strides = array<i32>} : memref<16x128xf32, #tpu.memory_space<vmem>>, vector<16x128xf32>,
    %c1_326 = arith.constant 1 : index
    %c0_327 = arith.constant 0 : index
    %429 = vector.load %arg35[%c1_326, %c0_327] : memref<16x128xf32, #tpu.memory_space<vmem>>, vector<4x128xf32>
    tpu.vector_store %arg35[%c1_326, %c0_327], %426 {strides = array<i32>} : memref<16x128xf32, #tpu.memory_space<vmem>>, vector<4x128xf32>,
    %c0_328 = arith.constant 0 : index
    %c0_329 = arith.constant 0 : index
    %430 = vector.load %arg35[%c0_328, %c0_329] : memref<16x128xf32, #tpu.memory_space<vmem>>, vector<4x128xf32>
    %c0_330 = arith.constant 0 : index
    %c0_331 = arith.constant 0 : index
    %c0_332 = arith.constant 0 : index
    %431 = vector.load %arg30[%c0_330, %c0_331, %c0_332] : memref<4x128x128xf32, #tpu.memory_space<vmem>>, vector<1x128x128xf32>
    %432 = vector.shape_cast %431 : vector<1x128x128xf32> to vector<128x128xf32>
    %cst_333 = arith.constant dense<0.000000e+00> : vector<4x128xf32>
    %433 = tpu.matmul %430, %432, %cst_333 {dimension_numbers = #tpu.dot_dimension_numbers<[1], [0], [0], [1], [0, 0, 1, 1], [], []>} : vector<4x128xf32>, vector<128x128xf32>, vector<4x128xf32> -> vector<4x128xf32>
    %c1_334 = arith.constant 1 : index
    %c0_335 = arith.constant 0 : index
    %434 = vector.load %arg35[%c1_334, %c0_335] : memref<16x128xf32, #tpu.memory_space<vmem>>, vector<4x128xf32>
    %c1_336 = arith.constant 1 : index
    %c0_337 = arith.constant 0 : index
    %c0_338 = arith.constant 0 : index
    %435 = vector.load %arg30[%c1_336, %c0_337, %c0_338] : memref<4x128x128xf32, #tpu.memory_space<vmem>>, vector<1x128x128xf32>
    %436 = vector.shape_cast %435 : vector<1x128x128xf32> to vector<128x128xf32>
    %cst_339 = arith.constant dense<0.000000e+00> : vector<4x128xf32>
    %437 = tpu.matmul %434, %436, %cst_339 {dimension_numbers = #tpu.dot_dimension_numbers<[1], [0], [0], [1], [0, 0, 1, 1], [], []>} : vector<4x128xf32>, vector<128x128xf32>, vector<4x128xf32> -> vector<4x128xf32>
    %438 = arith.addf %433, %437 : vector<4x128xf32>
    %c1_340 = arith.constant 1 : index
    %c0_341 = arith.constant 0 : index
    %439 = vector.load %arg35[%c1_340, %c0_341] : memref<16x128xf32, #tpu.memory_space<vmem>>, vector<4x128xf32>
    %c2_342 = arith.constant 2 : index
    %c0_343 = arith.constant 0 : index
    %c0_344 = arith.constant 0 : index
    %440 = vector.load %arg30[%c2_342, %c0_343, %c0_344] : memref<4x128x128xf32, #tpu.memory_space<vmem>>, vector<1x128x128xf32>
    %441 = vector.shape_cast %440 : vector<1x128x128xf32> to vector<128x128xf32>
    %cst_345 = arith.constant dense<0.000000e+00> : vector<4x128xf32>
    %442 = tpu.matmul %439, %441, %cst_345 {dimension_numbers = #tpu.dot_dimension_numbers<[1], [0], [0], [1], [0, 0, 1, 1], [], []>} : vector<4x128xf32>, vector<128x128xf32>, vector<4x128xf32> -> vector<4x128xf32>
    %c2_346 = arith.constant 2 : index
    %c0_347 = arith.constant 0 : index
    %443 = vector.load %arg35[%c2_346, %c0_347] : memref<16x128xf32, #tpu.memory_space<vmem>>, vector<4x128xf32>
    %c3_348 = arith.constant 3 : index
    %c0_349 = arith.constant 0 : index
    %c0_350 = arith.constant 0 : index
    %444 = vector.load %arg30[%c3_348, %c0_349, %c0_350] : memref<4x128x128xf32, #tpu.memory_space<vmem>>, vector<1x128x128xf32>
    %445 = vector.shape_cast %444 : vector<1x128x128xf32> to vector<128x128xf32>
    %cst_351 = arith.constant dense<0.000000e+00> : vector<4x128xf32>
    %446 = tpu.matmul %443, %445, %cst_351 {dimension_numbers = #tpu.dot_dimension_numbers<[1], [0], [0], [1], [0, 0, 1, 1], [], []>} : vector<4x128xf32>, vector<128x128xf32>, vector<4x128xf32> -> vector<4x128xf32>
    %447 = arith.addf %442, %446 : vector<4x128xf32>
    %448 = tpu.iota {dimensions = array<i32: 0>} : vector<8x4xi32>
    %449 = tpu.iota {dimensions = array<i32: 1>} : vector<8x4xi32>
    %c2_i32_352 = arith.constant 2 : i32
    %450 = vector.broadcast %c2_i32_352 : i32 to vector<8x4xi32>
    %451 = arith.muli %450, %449 : vector<8x4xi32>
    %c0_i32_353 = arith.constant 0 : i32
    %452 = vector.broadcast %c0_i32_353 : i32 to vector<8x4xi32>
    %453 = arith.addi %451, %452 : vector<8x4xi32>
    %454 = arith.cmpi eq, %448, %453 : vector<8x4xi32>
    %cst_354 = arith.constant 1.000000e+00 : f32
    %cst_355 = arith.constant 0.000000e+00 : f32
    %455 = vector.broadcast %cst_354 : f32 to vector<8x4xf32>
    %456 = vector.broadcast %cst_355 : f32 to vector<8x4xf32>
    %457 = arith.select %454, %455, %456 : vector<8x4xi1>, vector<8x4xf32>
    %cst_356 = arith.constant dense<0.000000e+00> : vector<8x128xf32>
    %458 = tpu.matmul %457, %438, %cst_356 {dimension_numbers = #tpu.dot_dimension_numbers<[1], [0], [0], [1], [0, 0, 1, 1], [], []>} : vector<8x4xf32>, vector<4x128xf32>, vector<8x128xf32> -> vector<8x128xf32>
    %459 = tpu.iota {dimensions = array<i32: 0>} : vector<8x4xi32>
    %460 = tpu.iota {dimensions = array<i32: 1>} : vector<8x4xi32>
    %c2_i32_357 = arith.constant 2 : i32
    %461 = vector.broadcast %c2_i32_357 : i32 to vector<8x4xi32>
    %462 = arith.muli %461, %460 : vector<8x4xi32>
    %c1_i32_358 = arith.constant 1 : i32
    %463 = vector.broadcast %c1_i32_358 : i32 to vector<8x4xi32>
    %464 = arith.addi %462, %463 : vector<8x4xi32>
    %465 = arith.cmpi eq, %459, %464 : vector<8x4xi32>
    %cst_359 = arith.constant 1.000000e+00 : f32
    %cst_360 = arith.constant 0.000000e+00 : f32
    %466 = vector.broadcast %cst_359 : f32 to vector<8x4xf32>
    %467 = vector.broadcast %cst_360 : f32 to vector<8x4xf32>
    %468 = arith.select %465, %466, %467 : vector<8x4xi1>, vector<8x4xf32>
    %cst_361 = arith.constant dense<0.000000e+00> : vector<8x128xf32>
    %469 = tpu.matmul %468, %447, %cst_361 {dimension_numbers = #tpu.dot_dimension_numbers<[1], [0], [0], [1], [0, 0, 1, 1], [], []>} : vector<8x4xf32>, vector<4x128xf32>, vector<8x128xf32> -> vector<8x128xf32>
    %470 = arith.addf %458, %469 : vector<8x128xf32>
    %c0_362 = arith.constant 0 : index
    %c0_363 = arith.constant 0 : index
    %471 = vector.load %arg4[%c0_362, %c0_363] : memref<128x128xf32, #tpu.memory_space<vmem>>, vector<128x128xf32>
    %cst_364 = arith.constant dense<0.000000e+00> : vector<128xf32>
    %472 = vector.multi_reduction <add>, %470, %cst_364 [0] : vector<8x128xf32> to vector<128xf32>
    %473 = vector.shape_cast %472 : vector<128xf32> to vector<1x128xf32>
    %cst_365 = arith.constant dense<0.000000e+00> : vector<1x128xf32>
    %474 = tpu.matmul %473, %471, %cst_365 {dimension_numbers = #tpu.dot_dimension_numbers<[1], [0], [0], [1], [0, 0, 1, 1], [], []>} : vector<1x128xf32>, vector<128x128xf32>, vector<1x128xf32> -> vector<1x128xf32>
    %475 = vector.broadcast %474 : vector<1x128xf32> to vector<8x128xf32>
    %476 = arith.subf %470, %475 : vector<8x128xf32>
    %477 = arith.mulf %476, %476 : vector<8x128xf32>
    %cst_366 = arith.constant dense<0.000000e+00> : vector<128xf32>
    %478 = vector.multi_reduction <add>, %477, %cst_366 [0] : vector<8x128xf32> to vector<128xf32>
    %479 = vector.shape_cast %478 : vector<128xf32> to vector<1x128xf32>
    %cst_367 = arith.constant dense<0.000000e+00> : vector<1x128xf32>
    %480 = tpu.matmul %479, %471, %cst_367 {dimension_numbers = #tpu.dot_dimension_numbers<[1], [0], [0], [1], [0, 0, 1, 1], [], []>} : vector<1x128xf32>, vector<128x128xf32>, vector<1x128xf32> -> vector<1x128xf32>
    %cst_368 = arith.constant 9.99999974E-6 : f32
    %481 = vector.broadcast %cst_368 : f32 to vector<1x128xf32>
    %482 = arith.addf %480, %481 : vector<1x128xf32>
    %483 = math.rsqrt %482 : vector<1x128xf32>
    %484 = vector.broadcast %483 : vector<1x128xf32> to vector<8x128xf32>
    %485 = arith.mulf %476, %484 : vector<8x128xf32>
    %c0_369 = arith.constant 0 : index
    %c0_370 = arith.constant 0 : index
    %486 = vector.load %arg31[%c0_369, %c0_370] : memref<1x128xf32, #tpu.memory_space<vmem>>, vector<1x128xf32>
    %487 = vector.broadcast %486 : vector<1x128xf32> to vector<8x128xf32>
    %488 = arith.mulf %485, %487 : vector<8x128xf32>
    %c0_371 = arith.constant 0 : index
    %c0_372 = arith.constant 0 : index
    %489 = vector.load %arg32[%c0_371, %c0_372] : memref<1x128xf32, #tpu.memory_space<vmem>>, vector<1x128xf32>
    %490 = vector.broadcast %489 : vector<1x128xf32> to vector<8x128xf32>
    %491 = arith.addf %488, %490 : vector<8x128xf32>
    %cst_373 = arith.constant 0.000000e+00 : f32
    %492 = vector.broadcast %cst_373 : f32 to vector<8x128xf32>
    %493 = arith.cmpf ogt, %491, %492 : vector<8x128xf32>
    %cst_374 = arith.constant 0.00999999977 : f32
    %494 = vector.broadcast %cst_374 : f32 to vector<8x128xf32>
    %495 = arith.mulf %494, %491 : vector<8x128xf32>
    %496 = arith.select %493, %491, %495 : vector<8x128xi1>, vector<8x128xf32>
    %cst_375 = arith.constant 0.000000e+00 : f32
    %497 = vector.broadcast %cst_375 : f32 to vector<16x128xf32>
    %c0_376 = arith.constant 0 : index
    %c0_377 = arith.constant 0 : index
    %498 = vector.load %arg35[%c0_376, %c0_377] : memref<16x128xf32, #tpu.memory_space<vmem>>, vector<16x128xf32>
    tpu.vector_store %arg35[%c0_376, %c0_377], %497 {strides = array<i32>} : memref<16x128xf32, #tpu.memory_space<vmem>>, vector<16x128xf32>,
    %c3_378 = arith.constant 3 : index
    %c0_379 = arith.constant 0 : index
    %499 = vector.load %arg35[%c3_378, %c0_379] : memref<16x128xf32, #tpu.memory_space<vmem>>, vector<8x128xf32>
    tpu.vector_store %arg35[%c3_378, %c0_379], %496 {strides = array<i32>} : memref<16x128xf32, #tpu.memory_space<vmem>>, vector<8x128xf32>,
    %c0_380 = arith.constant 0 : index
    %c0_381 = arith.constant 0 : index
    %500 = vector.load %arg35[%c0_380, %c0_381] : memref<16x128xf32, #tpu.memory_space<vmem>>, vector<8x128xf32>
    %c0_382 = arith.constant 0 : index
    %c0_383 = arith.constant 0 : index
    %c0_384 = arith.constant 0 : index
    %501 = vector.load %arg33[%c0_382, %c0_383, %c0_384] : memref<7x128x16xf32, #tpu.memory_space<vmem>>, vector<1x128x16xf32>
    %502 = vector.shape_cast %501 : vector<1x128x16xf32> to vector<128x16xf32>
    %cst_385 = arith.constant dense<0.000000e+00> : vector<8x16xf32>
    %503 = tpu.matmul %500, %502, %cst_385 {dimension_numbers = #tpu.dot_dimension_numbers<[1], [0], [0], [1], [0, 0, 1, 1], [], []>} : vector<8x128xf32>, vector<128x16xf32>, vector<8x16xf32> -> vector<8x16xf32>
    %c1_386 = arith.constant 1 : index
    %c0_387 = arith.constant 0 : index
    %504 = vector.load %arg35[%c1_386, %c0_387] : memref<16x128xf32, #tpu.memory_space<vmem>>, vector<8x128xf32>
    %c1_388 = arith.constant 1 : index
    %c0_389 = arith.constant 0 : index
    %c0_390 = arith.constant 0 : index
    %505 = vector.load %arg33[%c1_388, %c0_389, %c0_390] : memref<7x128x16xf32, #tpu.memory_space<vmem>>, vector<1x128x16xf32>
    %506 = vector.shape_cast %505 : vector<1x128x16xf32> to vector<128x16xf32>
    %cst_391 = arith.constant dense<0.000000e+00> : vector<8x16xf32>
    %507 = tpu.matmul %504, %506, %cst_391 {dimension_numbers = #tpu.dot_dimension_numbers<[1], [0], [0], [1], [0, 0, 1, 1], [], []>} : vector<8x128xf32>, vector<128x16xf32>, vector<8x16xf32> -> vector<8x16xf32>
    %508 = arith.addf %503, %507 : vector<8x16xf32>
    %c2_392 = arith.constant 2 : index
    %c0_393 = arith.constant 0 : index
    %509 = vector.load %arg35[%c2_392, %c0_393] : memref<16x128xf32, #tpu.memory_space<vmem>>, vector<8x128xf32>
    %c2_394 = arith.constant 2 : index
    %c0_395 = arith.constant 0 : index
    %c0_396 = arith.constant 0 : index
    %510 = vector.load %arg33[%c2_394, %c0_395, %c0_396] : memref<7x128x16xf32, #tpu.memory_space<vmem>>, vector<1x128x16xf32>
    %511 = vector.shape_cast %510 : vector<1x128x16xf32> to vector<128x16xf32>
    %cst_397 = arith.constant dense<0.000000e+00> : vector<8x16xf32>
    %512 = tpu.matmul %509, %511, %cst_397 {dimension_numbers = #tpu.dot_dimension_numbers<[1], [0], [0], [1], [0, 0, 1, 1], [], []>} : vector<8x128xf32>, vector<128x16xf32>, vector<8x16xf32> -> vector<8x16xf32>
    %513 = arith.addf %508, %512 : vector<8x16xf32>
    %c3_398 = arith.constant 3 : index
    %c0_399 = arith.constant 0 : index
    %514 = vector.load %arg35[%c3_398, %c0_399] : memref<16x128xf32, #tpu.memory_space<vmem>>, vector<8x128xf32>
    %c3_400 = arith.constant 3 : index
    %c0_401 = arith.constant 0 : index
    %c0_402 = arith.constant 0 : index
    %515 = vector.load %arg33[%c3_400, %c0_401, %c0_402] : memref<7x128x16xf32, #tpu.memory_space<vmem>>, vector<1x128x16xf32>
    %516 = vector.shape_cast %515 : vector<1x128x16xf32> to vector<128x16xf32>
    %cst_403 = arith.constant dense<0.000000e+00> : vector<8x16xf32>
    %517 = tpu.matmul %514, %516, %cst_403 {dimension_numbers = #tpu.dot_dimension_numbers<[1], [0], [0], [1], [0, 0, 1, 1], [], []>} : vector<8x128xf32>, vector<128x16xf32>, vector<8x16xf32> -> vector<8x16xf32>
    %518 = arith.addf %513, %517 : vector<8x16xf32>
    %c4 = arith.constant 4 : index
    %c0_404 = arith.constant 0 : index
    %519 = vector.load %arg35[%c4, %c0_404] : memref<16x128xf32, #tpu.memory_space<vmem>>, vector<8x128xf32>
    %c4_405 = arith.constant 4 : index
    %c0_406 = arith.constant 0 : index
    %c0_407 = arith.constant 0 : index
    %520 = vector.load %arg33[%c4_405, %c0_406, %c0_407] : memref<7x128x16xf32, #tpu.memory_space<vmem>>, vector<1x128x16xf32>
    %521 = vector.shape_cast %520 : vector<1x128x16xf32> to vector<128x16xf32>
    %cst_408 = arith.constant dense<0.000000e+00> : vector<8x16xf32>
    %522 = tpu.matmul %519, %521, %cst_408 {dimension_numbers = #tpu.dot_dimension_numbers<[1], [0], [0], [1], [0, 0, 1, 1], [], []>} : vector<8x128xf32>, vector<128x16xf32>, vector<8x16xf32> -> vector<8x16xf32>
    %523 = arith.addf %518, %522 : vector<8x16xf32>
    %c5 = arith.constant 5 : index
    %c0_409 = arith.constant 0 : index
    %524 = vector.load %arg35[%c5, %c0_409] : memref<16x128xf32, #tpu.memory_space<vmem>>, vector<8x128xf32>
    %c5_410 = arith.constant 5 : index
    %c0_411 = arith.constant 0 : index
    %c0_412 = arith.constant 0 : index
    %525 = vector.load %arg33[%c5_410, %c0_411, %c0_412] : memref<7x128x16xf32, #tpu.memory_space<vmem>>, vector<1x128x16xf32>
    %526 = vector.shape_cast %525 : vector<1x128x16xf32> to vector<128x16xf32>
    %cst_413 = arith.constant dense<0.000000e+00> : vector<8x16xf32>
    %527 = tpu.matmul %524, %526, %cst_413 {dimension_numbers = #tpu.dot_dimension_numbers<[1], [0], [0], [1], [0, 0, 1, 1], [], []>} : vector<8x128xf32>, vector<128x16xf32>, vector<8x16xf32> -> vector<8x16xf32>
    %528 = arith.addf %523, %527 : vector<8x16xf32>
    %c6 = arith.constant 6 : index
    %c0_414 = arith.constant 0 : index
    %529 = vector.load %arg35[%c6, %c0_414] : memref<16x128xf32, #tpu.memory_space<vmem>>, vector<8x128xf32>
    %c6_415 = arith.constant 6 : index
    %c0_416 = arith.constant 0 : index
    %c0_417 = arith.constant 0 : index
    %530 = vector.load %arg33[%c6_415, %c0_416, %c0_417] : memref<7x128x16xf32, #tpu.memory_space<vmem>>, vector<1x128x16xf32>
    %531 = vector.shape_cast %530 : vector<1x128x16xf32> to vector<128x16xf32>
    %cst_418 = arith.constant dense<0.000000e+00> : vector<8x16xf32>
    %532 = tpu.matmul %529, %531, %cst_418 {dimension_numbers = #tpu.dot_dimension_numbers<[1], [0], [0], [1], [0, 0, 1, 1], [], []>} : vector<8x128xf32>, vector<128x16xf32>, vector<8x16xf32> -> vector<8x16xf32>
    %533 = arith.addf %528, %532 : vector<8x16xf32>
    %c0_419 = arith.constant 0 : index
    %c0_420 = arith.constant 0 : index
    %c0_421 = arith.constant 0 : index
    %534 = vector.load %arg34[%c0_419, %c0_420, %c0_421] : memref<1x8x16xf32, #tpu.memory_space<vmem>>, vector<1x8x16xf32>
    %535 = vector.shape_cast %534 : vector<1x8x16xf32> to vector<8x16xf32>
    %536 = vector.shape_cast %533 : vector<8x16xf32> to vector<1x8x16xf32>
    tpu.vector_store %arg34[%c0_419, %c0_420, %c0_421], %536 {strides = array<i32>} : memref<1x8x16xf32, #tpu.memory_space<vmem>>, vector<1x8x16xf32>,
    return
  }
  func.func @transform_0(%arg0: i32) -> (i32, i32, i32) {
    %c0_i32 = arith.constant 0 : i32
    %c0_i32_0 = arith.constant 0 : i32
    %c0_i32_1 = arith.constant 0 : i32
    return %arg0, %c0_i32, %c0_i32_0 : i32, i32, i32
  }
  func.func @transform_1(%arg0: i32) -> (i32, i32, i32) {
    %c0_i32 = arith.constant 0 : i32
    %c0_i32_0 = arith.constant 0 : i32
    %c0_i32_1 = arith.constant 0 : i32
    return %arg0, %c0_i32, %c0_i32_0 : i32, i32, i32
  }
  func.func @transform_2(%arg0: i32) -> (i32, i32, i32) {
    %c0_i32 = arith.constant 0 : i32
    %c0_i32_0 = arith.constant 0 : i32
    %c0_i32_1 = arith.constant 0 : i32
    %c0_i32_2 = arith.constant 0 : i32
    return %c0_i32, %c0_i32_0, %c0_i32_1 : i32, i32, i32
  }
  func.func @transform_3(%arg0: i32) -> (i32, i32) {
    %c0_i32 = arith.constant 0 : i32
    %c0_i32_0 = arith.constant 0 : i32
    %c0_i32_1 = arith.constant 0 : i32
    return %c0_i32, %c0_i32_0 : i32, i32
  }
  func.func @transform_4(%arg0: i32) -> (i32, i32) {
    %c0_i32 = arith.constant 0 : i32
    %c0_i32_0 = arith.constant 0 : i32
    %c0_i32_1 = arith.constant 0 : i32
    return %c0_i32, %c0_i32_0 : i32, i32
  }
  func.func @transform_5(%arg0: i32) -> (i32, i32) {
    %c0_i32 = arith.constant 0 : i32
    %c0_i32_0 = arith.constant 0 : i32
    %c0_i32_1 = arith.constant 0 : i32
    return %c0_i32, %c0_i32_0 : i32, i32
  }
  func.func @transform_6(%arg0: i32) -> (i32, i32, i32) {
    %c0_i32 = arith.constant 0 : i32
    %c0_i32_0 = arith.constant 0 : i32
    %c0_i32_1 = arith.constant 0 : i32
    %c0_i32_2 = arith.constant 0 : i32
    return %c0_i32, %c0_i32_0, %c0_i32_1 : i32, i32, i32
  }
  func.func @transform_7(%arg0: i32) -> (i32, i32) {
    %c0_i32 = arith.constant 0 : i32
    %c0_i32_0 = arith.constant 0 : i32
    %c0_i32_1 = arith.constant 0 : i32
    return %c0_i32, %c0_i32_0 : i32, i32
  }
  func.func @transform_8(%arg0: i32) -> (i32, i32) {
    %c0_i32 = arith.constant 0 : i32
    %c0_i32_0 = arith.constant 0 : i32
    %c0_i32_1 = arith.constant 0 : i32
    return %c0_i32, %c0_i32_0 : i32, i32
  }
  func.func @transform_9(%arg0: i32) -> (i32, i32) {
    %c0_i32 = arith.constant 0 : i32
    %c0_i32_0 = arith.constant 0 : i32
    %c0_i32_1 = arith.constant 0 : i32
    return %c0_i32, %c0_i32_0 : i32, i32
  }
  func.func @transform_10(%arg0: i32) -> (i32, i32, i32) {
    %c0_i32 = arith.constant 0 : i32
    %c0_i32_0 = arith.constant 0 : i32
    %c0_i32_1 = arith.constant 0 : i32
    %c0_i32_2 = arith.constant 0 : i32
    return %c0_i32, %c0_i32_0, %c0_i32_1 : i32, i32, i32
  }
  func.func @transform_11(%arg0: i32) -> (i32, i32) {
    %c0_i32 = arith.constant 0 : i32
    %c0_i32_0 = arith.constant 0 : i32
    %c0_i32_1 = arith.constant 0 : i32
    return %c0_i32, %c0_i32_0 : i32, i32
  }
  func.func @transform_12(%arg0: i32) -> (i32, i32) {
    %c0_i32 = arith.constant 0 : i32
    %c0_i32_0 = arith.constant 0 : i32
    %c0_i32_1 = arith.constant 0 : i32
    return %c0_i32, %c0_i32_0 : i32, i32
  }
  func.func @transform_13(%arg0: i32) -> (i32, i32) {
    %c0_i32 = arith.constant 0 : i32
    %c0_i32_0 = arith.constant 0 : i32
    %c0_i32_1 = arith.constant 0 : i32
    return %c0_i32, %c0_i32_0 : i32, i32
  }
  func.func @transform_14(%arg0: i32) -> (i32, i32, i32) {
    %c0_i32 = arith.constant 0 : i32
    %c0_i32_0 = arith.constant 0 : i32
    %c0_i32_1 = arith.constant 0 : i32
    %c0_i32_2 = arith.constant 0 : i32
    return %c0_i32, %c0_i32_0, %c0_i32_1 : i32, i32, i32
  }
  func.func @transform_15(%arg0: i32) -> (i32, i32) {
    %c0_i32 = arith.constant 0 : i32
    %c0_i32_0 = arith.constant 0 : i32
    %c0_i32_1 = arith.constant 0 : i32
    return %c0_i32, %c0_i32_0 : i32, i32
  }
  func.func @transform_16(%arg0: i32) -> (i32, i32) {
    %c0_i32 = arith.constant 0 : i32
    %c0_i32_0 = arith.constant 0 : i32
    %c0_i32_1 = arith.constant 0 : i32
    return %c0_i32, %c0_i32_0 : i32, i32
  }
  func.func @transform_17(%arg0: i32) -> (i32, i32, i32) {
    %c0_i32 = arith.constant 0 : i32
    %c0_i32_0 = arith.constant 0 : i32
    %c0_i32_1 = arith.constant 0 : i32
    %c0_i32_2 = arith.constant 0 : i32
    return %c0_i32, %c0_i32_0, %c0_i32_1 : i32, i32, i32
  }
  func.func @transform_18(%arg0: i32) -> (i32, i32) {
    %c0_i32 = arith.constant 0 : i32
    %c0_i32_0 = arith.constant 0 : i32
    %c0_i32_1 = arith.constant 0 : i32
    return %c0_i32, %c0_i32_0 : i32, i32
  }
  func.func @transform_19(%arg0: i32) -> (i32, i32) {
    %c0_i32 = arith.constant 0 : i32
    %c0_i32_0 = arith.constant 0 : i32
    %c0_i32_1 = arith.constant 0 : i32
    return %c0_i32, %c0_i32_0 : i32, i32
  }
  func.func @transform_20(%arg0: i32) -> (i32, i32, i32) {
    %c0_i32 = arith.constant 0 : i32
    %c0_i32_0 = arith.constant 0 : i32
    %c0_i32_1 = arith.constant 0 : i32
    %c0_i32_2 = arith.constant 0 : i32
    return %c0_i32, %c0_i32_0, %c0_i32_1 : i32, i32, i32
  }
  func.func @transform_21(%arg0: i32) -> (i32, i32) {
    %c0_i32 = arith.constant 0 : i32
    %c0_i32_0 = arith.constant 0 : i32
    %c0_i32_1 = arith.constant 0 : i32
    return %c0_i32, %c0_i32_0 : i32, i32
  }
  func.func @transform_22(%arg0: i32) -> (i32, i32) {
    %c0_i32 = arith.constant 0 : i32
    %c0_i32_0 = arith.constant 0 : i32
    %c0_i32_1 = arith.constant 0 : i32
    return %c0_i32, %c0_i32_0 : i32, i32
  }
  func.func @transform_23(%arg0: i32) -> (i32, i32, i32) {
    %c0_i32 = arith.constant 0 : i32
    %c0_i32_0 = arith.constant 0 : i32
    %c0_i32_1 = arith.constant 0 : i32
    %c0_i32_2 = arith.constant 0 : i32
    return %c0_i32, %c0_i32_0, %c0_i32_1 : i32, i32, i32
  }
  func.func @transform_24(%arg0: i32) -> (i32, i32) {
    %c0_i32 = arith.constant 0 : i32
    %c0_i32_0 = arith.constant 0 : i32
    %c0_i32_1 = arith.constant 0 : i32
    return %c0_i32, %c0_i32_0 : i32, i32
  }
  func.func @transform_25(%arg0: i32) -> (i32, i32) {
    %c0_i32 = arith.constant 0 : i32
    %c0_i32_0 = arith.constant 0 : i32
    %c0_i32_1 = arith.constant 0 : i32
    return %c0_i32, %c0_i32_0 : i32, i32
  }
  func.func @transform_26(%arg0: i32) -> (i32, i32, i32) {
    %c0_i32 = arith.constant 0 : i32
    %c0_i32_0 = arith.constant 0 : i32
    %c0_i32_1 = arith.constant 0 : i32
    %c0_i32_2 = arith.constant 0 : i32
    return %c0_i32, %c0_i32_0, %c0_i32_1 : i32, i32, i32
  }
  func.func @transform_27(%arg0: i32) -> (i32, i32) {
    %c0_i32 = arith.constant 0 : i32
    %c0_i32_0 = arith.constant 0 : i32
    %c0_i32_1 = arith.constant 0 : i32
    return %c0_i32, %c0_i32_0 : i32, i32
  }
  func.func @transform_28(%arg0: i32) -> (i32, i32) {
    %c0_i32 = arith.constant 0 : i32
    %c0_i32_0 = arith.constant 0 : i32
    %c0_i32_1 = arith.constant 0 : i32
    return %c0_i32, %c0_i32_0 : i32, i32
  }
  func.func @transform_29(%arg0: i32) -> (i32, i32, i32) {
    %c0_i32 = arith.constant 0 : i32
    %c0_i32_0 = arith.constant 0 : i32
    %c0_i32_1 = arith.constant 0 : i32
    %c0_i32_2 = arith.constant 0 : i32
    return %c0_i32, %c0_i32_0, %c0_i32_1 : i32, i32, i32
  }
  func.func @transform_30(%arg0: i32) -> (i32, i32) {
    %c0_i32 = arith.constant 0 : i32
    %c0_i32_0 = arith.constant 0 : i32
    %c0_i32_1 = arith.constant 0 : i32
    return %c0_i32, %c0_i32_0 : i32, i32
  }
  func.func @transform_31(%arg0: i32) -> (i32, i32) {
    %c0_i32 = arith.constant 0 : i32
    %c0_i32_0 = arith.constant 0 : i32
    %c0_i32_1 = arith.constant 0 : i32
    return %c0_i32, %c0_i32_0 : i32, i32
  }
  func.func @transform_32(%arg0: i32) -> (i32, i32, i32) {
    %c0_i32 = arith.constant 0 : i32
    %c0_i32_0 = arith.constant 0 : i32
    %c0_i32_1 = arith.constant 0 : i32
    %c0_i32_2 = arith.constant 0 : i32
    return %c0_i32, %c0_i32_0, %c0_i32_1 : i32, i32, i32
  }
  func.func @transform_33(%arg0: i32) -> (i32, i32, i32) {
    %c0_i32 = arith.constant 0 : i32
    %c0_i32_0 = arith.constant 0 : i32
    %c0_i32_1 = arith.constant 0 : i32
    return %arg0, %c0_i32, %c0_i32_0 : i32, i32, i32
  }
}

</mosaic_0001>

<llo_original>
// kernel: generator_forward.1
$region0: #{generator_forward.1}
  #allocation0 [shape = 'u32[]', space=smem, size = 0x4, offset = 0x4, fixed_abs, tag = 'smem constant byte address 0x4 - core index']
  #allocation1 [shape = 'u32[144,128]{1,0:T(1,128)}', space=vmem, size = 0x12000, scoped, tag = 'internal scratch']
  #allocation2 [shape = 'f32[16,128]{1,0:T(8,128)}', space=vmem, size = 0x2000, scoped, tag = 'scratch operand']
  %s0 = inlined_call_operand.smem [shape: u32[34], index: -1, kind: input, shape index: {}]
  %s1 = sld [smem:[%s0]]
  %s2 = scalar_lea.smem %s0, 1
  %s3 = sld [smem:[%s2]]
  %s4 = scalar_lea.smem %s0, 2
  %s5 = sld [smem:[%s4]]
  %s6 = scalar_lea.smem %s0, 3
  %s7 = sld [smem:[%s6]]
  %s8 = scalar_lea.smem %s0, 4
  %s9 = sld [smem:[%s8]]
  %s10 = scalar_lea.smem %s0, 5
  %s11 = sld [smem:[%s10]]
  %s12 = scalar_lea.smem %s0, 6
  %s13 = sld [smem:[%s12]]
  %s14 = scalar_lea.smem %s0, 7
  %s15 = sld [smem:[%s14]]
  %s16 = scalar_lea.smem %s0, 8
  %s17 = sld [smem:[%s16]]
  %s18 = scalar_lea.smem %s0, 9
  %s19 = sld [smem:[%s18]]
  %s20 = scalar_lea.smem %s0, 10
  %s21 = sld [smem:[%s20]]
  %s22 = scalar_lea.smem %s0, 11
  %s23 = sld [smem:[%s22]]
  %s24 = scalar_lea.smem %s0, 12
  %s25 = sld [smem:[%s24]]
  %s26 = scalar_lea.smem %s0, 13
  %s27 = sld [smem:[%s26]]
  %s28 = scalar_lea.smem %s0, 14
  %s29 = sld [smem:[%s28]]
  %s30 = scalar_lea.smem %s0, 15
  %s31 = sld [smem:[%s30]]
  %s32 = scalar_lea.smem %s0, 16
  %s33 = sld [smem:[%s32]]
  %s34 = scalar_lea.smem %s0, 17
  %s35 = sld [smem:[%s34]]
  %s36 = scalar_lea.smem %s0, 18
  %s37 = sld [smem:[%s36]]
  %s38 = scalar_lea.smem %s0, 19
  %s39 = sld [smem:[%s38]]
  %s40 = scalar_lea.smem %s0, 20
  %s41 = sld [smem:[%s40]]
  %s42 = scalar_lea.smem %s0, 21
  %s43 = sld [smem:[%s42]]
  %s44 = scalar_lea.smem %s0, 22
  %s45 = sld [smem:[%s44]]
  %s46 = scalar_lea.smem %s0, 23
  %s47 = sld [smem:[%s46]]
  %s48 = scalar_lea.smem %s0, 24
  %s49 = sld [smem:[%s48]]
  %s50 = scalar_lea.smem %s0, 25
  %s51 = sld [smem:[%s50]]
  %s52 = scalar_lea.smem %s0, 26
  %s53 = sld [smem:[%s52]]
  %s54 = scalar_lea.smem %s0, 27
  %s55 = sld [smem:[%s54]]
  %s56 = scalar_lea.smem %s0, 28
  %s57 = sld [smem:[%s56]]
  %s58 = scalar_lea.smem %s0, 29
  %s59 = sld [smem:[%s58]]
  %s60 = scalar_lea.smem %s0, 30
  %s61 = sld [smem:[%s60]]
  %s62 = scalar_lea.smem %s0, 31
  %s63 = sld [smem:[%s62]]
  %s64 = scalar_lea.smem %s0, 32
  %s65 = sld [smem:[%s64]]
  %s66 = scalar_lea.smem %s0, 33
  %s67 = sld [smem:[%s66]]
  %s68 = sld [smem:[#allocation0]]
  $region237: #{generator_forward.1} parent=0
    _
  %s70 = ssub.s32 1, %s68
  %s71 = scalar_select 0, %s70, %s68
  $region1: #{generator_forward.1} parent=0
    #allocation3 [shape = 'u8[65536]{0}', space=vmem, size = 0x10000, scoped, tag = 'input window, operand 3, single buffered']
    #allocation4 [shape = 's32[2]{0}', space=sflag, size = 0x8, scoped, tag = 'scoped memory for generator_forward.1']
    #allocation5 [shape = 's32[2]{0}', space=sflag, size = 0x8, scoped, tag = 'scoped memory for generator_forward.1']
    #allocation6 [shape = 'u8[65536]{0}', space=vmem, size = 0x10000, scoped, tag = 'input window, operand 7, single buffered']
    #allocation7 [shape = 's32[1]{0}', space=sflag, size = 0x4, scoped, tag = 'scoped memory for generator_forward.1']
    #allocation8 [shape = 'u8[65536]{0}', space=vmem, size = 0x10000, scoped, tag = 'input window, operand 11, single buffered']
    #allocation9 [shape = 'u8[196608]{0}', space=vmem, size = 0x30000, scoped, tag = 'input window, operand 14, single buffered']
    #allocation10 [shape = 's32[1]{0}', space=sflag, size = 0x4, scoped, tag = 'scoped memory for generator_forward.1']
    #allocation11 [shape = 'u8[196608]{0}', space=vmem, size = 0x30000, scoped, tag = 'input window, operand 17, single buffered']
    #allocation12 [shape = 'u8[512]{0}', space=vmem, size = 0x400, scoped, tag = 'input window, operand 19, single buffered']
    #allocation13 [shape = 's32[1]{0}', space=sflag, size = 0x4, scoped, tag = 'scoped memory for generator_forward.1']
    #allocation14 [shape = 'u8[196608]{0}', space=vmem, size = 0x30000, scoped, tag = 'input window, operand 20, single buffered']
    #allocation15 [shape = 'u8[512]{0}', space=vmem, size = 0x400, scoped, tag = 'input window, operand 21, single buffered']
    #allocation16 [shape = 's32[1]{0}', space=sflag, size = 0x4, scoped, tag = 'scoped memory for generator_forward.1']
    #allocation17 [shape = 'u8[512]{0}', space=vmem, size = 0x400, scoped, tag = 'input window, operand 22, single buffered']
    #allocation18 [shape = 'u8[196608]{0}', space=vmem, size = 0x30000, scoped, tag = 'input window, operand 23, single buffered']
    #allocation19 [shape = 's32[1]{0}', space=sflag, size = 0x4, scoped, tag = 'scoped memory for generator_forward.1']
    #allocation20 [shape = 'u8[512]{0}', space=vmem, size = 0x400, scoped, tag = 'input window, operand 24, single buffered']
    #allocation21 [shape = 'u8[512]{0}', space=vmem, size = 0x400, scoped, tag = 'input window, operand 25, single buffered']
    #allocation22 [shape = 's32[1]{0}', space=sflag, size = 0x4, scoped, tag = 'scoped memory for generator_forward.1']
    #allocation23 [shape = 'u8[262144]{0}', space=vmem, size = 0x40000, scoped, tag = 'input window, operand 26, single buffered']
    #allocation24 [shape = 'u8[512]{0}', space=vmem, size = 0x400, scoped, tag = 'input window, operand 27, single buffered']
    #allocation25 [shape = 's32[1]{0}', space=sflag, size = 0x4, scoped, tag = 'scoped memory for generator_forward.1']
    #allocation26 [shape = 'u8[512]{0}', space=vmem, size = 0x400, scoped, tag = 'input window, operand 28, single buffered']
    #allocation27 [shape = 'u8[262144]{0}', space=vmem, size = 0x40000, scoped, tag = 'input window, operand 29, single buffered']
    #allocation28 [shape = 's32[1]{0}', space=sflag, size = 0x4, scoped, tag = 'scoped memory for generator_forward.1']
    #allocation29 [shape = 'u8[512]{0}', space=vmem, size = 0x400, scoped, tag = 'input window, operand 30, single buffered']
    #allocation30 [shape = 'u8[512]{0}', space=vmem, size = 0x400, scoped, tag = 'input window, operand 31, single buffered']
    #allocation31 [shape = 's32[1]{0}', space=sflag, size = 0x4, scoped, tag = 'scoped memory for generator_forward.1']
    #allocation32 [shape = 'u8[8192]{0}', space=vmem, size = 0x2000, scoped, tag = 'output window, operand 0']
    %72 = vsyncpa [#allocation4], 0
    %73 = vsyncpa [#allocation7], 0
    %74 = vsyncpa [#allocation10], 0
    %75 = vsyncpa [#allocation13], 0
    %76 = vsyncpa [#allocation16], 0
    %77 = vsyncpa [#allocation19], 0
    %78 = vsyncpa [#allocation22], 0
    %79 = vsyncpa [#allocation25], 0
    %80 = vsyncpa [#allocation28], 0
    %81 = vsyncpa [#allocation31], 0
    %82 = vsyncpa [#allocation5], 0
    %s83 = scalar_lea.sflag [#allocation5], 1
    %84 = vsyncpa %s83, 0
    loop: start=0, step=1, limit=4
    $region2: #{generator_forward.1} parent=1 // loop_pre_header
      _
    $region3: #{generator_forward.1} parent=1 // loop_header
      %s86 = sphi 0, %s90
      %p87 = scmp.ge.s32.totalorder %s86, 4
      %s96 = sphi 0, %s98
      %s99 = sphi 0, %s96
      %s100 = sphi 0, %s99
      %s116 = sphi 0, %s100
      %s122 = sphi 0, %s124
      %s125 = sphi 0, %s122
      %s126 = sphi 0, %s125
      %s142 = sphi 0, %s126
      %s146 = sphi 0, %s146
      %s148 = sphi 0, %s146
      %s149 = sphi 0, %s148
      %s163 = sphi 0, %s149
      %s167 = sphi 0, %s167
      %s169 = sphi 0, %s167
      %s170 = sphi 0, %s169
      %s184 = sphi 0, %s170
      %s188 = sphi 0, %s188
      %s190 = sphi 0, %s188
      %s191 = sphi 0, %s190
      %s205 = sphi 0, %s191
      %s209 = sphi 0, %s209
      %s211 = sphi 0, %s209
      %s212 = sphi 0, %s211
      %s226 = sphi 0, %s212
      %s230 = sphi 0, %s230
      %s232 = sphi 0, %s230
      %s233 = sphi 0, %s232
      %s247 = sphi 0, %s233
      %s251 = sphi 0, %s251
      %s253 = sphi 0, %s251
      %s254 = sphi 0, %s253
      %s268 = sphi 0, %s254
      %s272 = sphi 0, %s272
      %s274 = sphi 0, %s272
      %s275 = sphi 0, %s274
      %s289 = sphi 0, %s275
      %s293 = sphi 0, %s293
      %s295 = sphi 0, %s293
      %s296 = sphi 0, %s295
      %s310 = sphi 0, %s296
      %s314 = sphi 0, %s314
      %s316 = sphi 0, %s314
      %s317 = sphi 0, %s316
      %s331 = sphi 0, %s317
      %s335 = sphi 0, %s335
      %s337 = sphi 0, %s335
      %s338 = sphi 0, %s337
      %s352 = sphi 0, %s338
      %s356 = sphi 0, %s356
      %s358 = sphi 0, %s356
      %s359 = sphi 0, %s358
      %s373 = sphi 0, %s359
      %s377 = sphi 0, %s377
      %s379 = sphi 0, %s377
      %s380 = sphi 0, %s379
      %s394 = sphi 0, %s380
      %s398 = sphi 0, %s398
      %s400 = sphi 0, %s398
      %s401 = sphi 0, %s400
      %s415 = sphi 0, %s401
      %s419 = sphi 0, %s419
      %s421 = sphi 0, %s419
      %s422 = sphi 0, %s421
      %s436 = sphi 0, %s422
      %s440 = sphi 0, %s440
      %s442 = sphi 0, %s440
      %s443 = sphi 0, %s442
      %s457 = sphi 0, %s443
      %s461 = sphi 0, %s461
      %s463 = sphi 0, %s461
      %s464 = sphi 0, %s463
      %s478 = sphi 0, %s464
      %s482 = sphi 0, %s482
      %s484 = sphi 0, %s482
      %s485 = sphi 0, %s484
      %s499 = sphi 0, %s485
      %s503 = sphi 0, %s503
      %s505 = sphi 0, %s503
      %s506 = sphi 0, %s505
      %s520 = sphi 0, %s506
      %s524 = sphi 0, %s524
      %s526 = sphi 0, %s524
      %s527 = sphi 0, %s526
      %s541 = sphi 0, %s527
      %s545 = sphi 0, %s545
      %s547 = sphi 0, %s545
      %s548 = sphi 0, %s547
      %s562 = sphi 0, %s548
      %s566 = sphi 0, %s566
      %s568 = sphi 0, %s566
      %s569 = sphi 0, %s568
      %s583 = sphi 0, %s569
      %s587 = sphi 0, %s587
      %s589 = sphi 0, %s587
      %s590 = sphi 0, %s589
      %s604 = sphi 0, %s590
      %s608 = sphi 0, %s608
      %s610 = sphi 0, %s608
      %s611 = sphi 0, %s610
      %s625 = sphi 0, %s611
      %s629 = sphi 0, %s629
      %s631 = sphi 0, %s629
      %s632 = sphi 0, %s631
      %s646 = sphi 0, %s632
      %s650 = sphi 0, %s650
      %s652 = sphi 0, %s650
      %s653 = sphi 0, %s652
      %s667 = sphi 0, %s653
      %s671 = sphi 0, %s671
      %s673 = sphi 0, %s671
      %s674 = sphi 0, %s673
      %s688 = sphi 0, %s674
      %s692 = sphi 0, %s692
      %s694 = sphi 0, %s692
      %s695 = sphi 0, %s694
      %s709 = sphi 0, %s695
      %s713 = sphi 0, %s713
      %s715 = sphi 0, %s713
      %s716 = sphi 0, %s715
      %s730 = sphi 0, %s716
      %s734 = sphi 0, %s734
      %s736 = sphi 0, %s734
      %s737 = sphi 0, %s736
      %s751 = sphi 0, %s737
      %s755 = sphi 0, %s755
      %s757 = sphi 0, %s755
      %s758 = sphi 0, %s757
      %s772 = sphi 0, %s758
      %s776 = sphi 0, %s776
      %s778 = sphi 0, %s776
      %s779 = sphi 0, %s778
      %s793 = sphi 0, %s779
      %s799 = sphi 0, %s801
      %s802 = sphi 0, %s799
      %s803 = sphi 0, %s802
      %s819 = sphi 0, %s803
    $region4: #{generator_forward.1} parent=1 // loop_header_branch
      %89 = sbr.rel (%p87) target = $region8
    $region5: #{generator_forward.1} parent=1 // loop_body
      %s91 = ssub.s32 %s86, 1
      %s92 = ssub.s32 %s86, 2
      %s93 = sadd.s32 %s86, 1
      %s94 = ssub.s32 %s86, %s93
      %p95 = scmp.eq.s32.totalorder %s94, 0
      %s97 = sadd.s32 %s96, 1
      %s98 = scalar_select %p95, %s96, %s97
      %p101 = pneg %p95
      %p102 = scmp.eq.s32.totalorder %s86, 1
      %p103 = por %p101, %p102
      %p104 = scmp.ne.s32.totalorder %s96, %s99
      %p105 = scmp.eq.s32.totalorder %s86, 0
      %p106 = por %p104, %p105
      %p107 = scmp.ne.s32.totalorder %s96, %s99
      %p108 = scmp.eq.s32.totalorder %s91, 1
      %p109 = por %p107, %p108
      %p110 = scmp.ne.s32.totalorder %s99, %s100
      %p111 = scmp.eq.s32.totalorder %s91, 0
      %p112 = por %p110, %p111
      %p113 = scmp.ne.s32.totalorder %s99, %s100
      %p114 = scmp.eq.s32.totalorder %s92, 1
      %p115 = por %p113, %p114
      %p117 = scmp.ne.s32.totalorder %s100, %s116
      %p118 = scmp.eq.s32.totalorder %s92, 0
      %p119 = por %p117, %p118
      %s120 = ssub.s32 %s86, %s93
      %p121 = scmp.eq.s32.totalorder %s120, 0
      %s123 = sadd.s32 %s122, 1
      %s124 = scalar_select %p121, %s122, %s123
      %p127 = pneg %p121
      %p128 = scmp.eq.s32.totalorder %s86, 1
      %p129 = por %p127, %p128
      %p130 = scmp.ne.s32.totalorder %s122, %s125
      %p131 = scmp.eq.s32.totalorder %s86, 0
      %p132 = por %p130, %p131
      %p133 = scmp.ne.s32.totalorder %s122, %s125
      %p134 = scmp.eq.s32.totalorder %s91, 1
      %p135 = por %p133, %p134
      %p136 = scmp.ne.s32.totalorder %s125, %s126
      %p137 = scmp.eq.s32.totalorder %s91, 0
      %p138 = por %p136, %p137
      %p139 = scmp.ne.s32.totalorder %s125, %s126
      %p140 = scmp.eq.s32.totalorder %s92, 1
      %p141 = por %p139, %p140
      %p143 = scmp.ne.s32.totalorder %s126, %s142
      %p144 = scmp.eq.s32.totalorder %s92, 0
      %p145 = por %p143, %p144
      %s147 = sadd.s32 %s146, 1
      %p150 = scmp.eq.s32.totalorder %s86, 1
      %p151 = scmp.ne.s32.totalorder %s146, %s148
      %p152 = scmp.eq.s32.totalorder %s86, 0
      %p153 = por %p151, %p152
      %p154 = scmp.ne.s32.totalorder %s146, %s148
      %p155 = scmp.eq.s32.totalorder %s91, 1
      %p156 = por %p154, %p155
      %p157 = scmp.ne.s32.totalorder %s148, %s149
      %p158 = scmp.eq.s32.totalorder %s91, 0
      %p159 = por %p157, %p158
      %p160 = scmp.ne.s32.totalorder %s148, %s149
      %p161 = scmp.eq.s32.totalorder %s92, 1
      %p162 = por %p160, %p161
      %p164 = scmp.ne.s32.totalorder %s149, %s163
      %p165 = scmp.eq.s32.totalorder %s92, 0
      %p166 = por %p164, %p165
      %s168 = sadd.s32 %s167, 1
      %p171 = scmp.eq.s32.totalorder %s86, 1
      %p172 = scmp.ne.s32.totalorder %s167, %s169
      %p173 = scmp.eq.s32.totalorder %s86, 0
      %p174 = por %p172, %p173
      %p175 = scmp.ne.s32.totalorder %s167, %s169
      %p176 = scmp.eq.s32.totalorder %s91, 1
      %p177 = por %p175, %p176
      %p178 = scmp.ne.s32.totalorder %s169, %s170
      %p179 = scmp.eq.s32.totalorder %s91, 0
      %p180 = por %p178, %p179
      %p181 = scmp.ne.s32.totalorder %s169, %s170
      %p182 = scmp.eq.s32.totalorder %s92, 1
      %p183 = por %p181, %p182
      %p185 = scmp.ne.s32.totalorder %s170, %s184
      %p186 = scmp.eq.s32.totalorder %s92, 0
      %p187 = por %p185, %p186
      %s189 = sadd.s32 %s188, 1
      %p192 = scmp.eq.s32.totalorder %s86, 1
      %p193 = scmp.ne.s32.totalorder %s188, %s190
      %p194 = scmp.eq.s32.totalorder %s86, 0
      %p195 = por %p193, %p194
      %p196 = scmp.ne.s32.totalorder %s188, %s190
      %p197 = scmp.eq.s32.totalorder %s91, 1
      %p198 = por %p196, %p197
      %p199 = scmp.ne.s32.totalorder %s190, %s191
      %p200 = scmp.eq.s32.totalorder %s91, 0
      %p201 = por %p199, %p200
      %p202 = scmp.ne.s32.totalorder %s190, %s191
      %p203 = scmp.eq.s32.totalorder %s92, 1
      %p204 = por %p202, %p203
      %p206 = scmp.ne.s32.totalorder %s191, %s205
      %p207 = scmp.eq.s32.totalorder %s92, 0
      %p208 = por %p206, %p207
      %s210 = sadd.s32 %s209, 1
      %p213 = scmp.eq.s32.totalorder %s86, 1
      %p214 = scmp.ne.s32.totalorder %s209, %s211
      %p215 = scmp.eq.s32.totalorder %s86, 0
      %p216 = por %p214, %p215
      %p217 = scmp.ne.s32.totalorder %s209, %s211
      %p218 = scmp.eq.s32.totalorder %s91, 1
      %p219 = por %p217, %p218
      %p220 = scmp.ne.s32.totalorder %s211, %s212
      %p221 = scmp.eq.s32.totalorder %s91, 0
      %p222 = por %p220, %p221
      %p223 = scmp.ne.s32.totalorder %s211, %s212
      %p224 = scmp.eq.s32.totalorder %s92, 1
      %p225 = por %p223, %p224
      %p227 = scmp.ne.s32.totalorder %s212, %s226
      %p228 = scmp.eq.s32.totalorder %s92, 0
      %p229 = por %p227, %p228
      %s231 = sadd.s32 %s230, 1
      %p234 = scmp.eq.s32.totalorder %s86, 1
      %p235 = scmp.ne.s32.totalorder %s230, %s232
      %p236 = scmp.eq.s32.totalorder %s86, 0
      %p237 = por %p235, %p236
      %p238 = scmp.ne.s32.totalorder %s230, %s232
      %p239 = scmp.eq.s32.totalorder %s91, 1
      %p240 = por %p238, %p239
      %p241 = scmp.ne.s32.totalorder %s232, %s233
      %p242 = scmp.eq.s32.totalorder %s91, 0
      %p243 = por %p241, %p242
      %p244 = scmp.ne.s32.totalorder %s232, %s233
      %p245 = scmp.eq.s32.totalorder %s92, 1
      %p246 = por %p244, %p245
      %p248 = scmp.ne.s32.totalorder %s233, %s247
      %p249 = scmp.eq.s32.totalorder %s92, 0
      %p250 = por %p248, %p249
      %s252 = sadd.s32 %s251, 1
      %p255 = scmp.eq.s32.totalorder %s86, 1
      %p256 = scmp.ne.s32.totalorder %s251, %s253
      %p257 = scmp.eq.s32.totalorder %s86, 0
      %p258 = por %p256, %p257
      %p259 = scmp.ne.s32.totalorder %s251, %s253
      %p260 = scmp.eq.s32.totalorder %s91, 1
      %p261 = por %p259, %p260
      %p262 = scmp.ne.s32.totalorder %s253, %s254
      %p263 = scmp.eq.s32.totalorder %s91, 0
      %p264 = por %p262, %p263
      %p265 = scmp.ne.s32.totalorder %s253, %s254
      %p266 = scmp.eq.s32.totalorder %s92, 1
      %p267 = por %p265, %p266
      %p269 = scmp.ne.s32.totalorder %s254, %s268
      %p270 = scmp.eq.s32.totalorder %s92, 0
      %p271 = por %p269, %p270
      %s273 = sadd.s32 %s272, 1
      %p276 = scmp.eq.s32.totalorder %s86, 1
      %p277 = scmp.ne.s32.totalorder %s272, %s274
      %p278 = scmp.eq.s32.totalorder %s86, 0
      %p279 = por %p277, %p278
      %p280 = scmp.ne.s32.totalorder %s272, %s274
      %p281 = scmp.eq.s32.totalorder %s91, 1
      %p282 = por %p280, %p281
      %p283 = scmp.ne.s32.totalorder %s274, %s275
      %p284 = scmp.eq.s32.totalorder %s91, 0
      %p285 = por %p283, %p284
      %p286 = scmp.ne.s32.totalorder %s274, %s275
      %p287 = scmp.eq.s32.totalorder %s92, 1
      %p288 = por %p286, %p287
      %p290 = scmp.ne.s32.totalorder %s275, %s289
      %p291 = scmp.eq.s32.totalorder %s92, 0
      %p292 = por %p290, %p291
      %s294 = sadd.s32 %s293, 1
      %p297 = scmp.eq.s32.totalorder %s86, 1
      %p298 = scmp.ne.s32.totalorder %s293, %s295
      %p299 = scmp.eq.s32.totalorder %s86, 0
      %p300 = por %p298, %p299
      %p301 = scmp.ne.s32.totalorder %s293, %s295
      %p302 = scmp.eq.s32.totalorder %s91, 1
      %p303 = por %p301, %p302
      %p304 = scmp.ne.s32.totalorder %s295, %s296
      %p305 = scmp.eq.s32.totalorder %s91, 0
      %p306 = por %p304, %p305
      %p307 = scmp.ne.s32.totalorder %s295, %s296
      %p308 = scmp.eq.s32.totalorder %s92, 1
      %p309 = por %p307, %p308
      %p311 = scmp.ne.s32.totalorder %s296, %s310
      %p312 = scmp.eq.s32.totalorder %s92, 0
      %p313 = por %p311, %p312
      %s315 = sadd.s32 %s314, 1
      %p318 = scmp.eq.s32.totalorder %s86, 1
      %p319 = scmp.ne.s32.totalorder %s314, %s316
      %p320 = scmp.eq.s32.totalorder %s86, 0
      %p321 = por %p319, %p320
      %p322 = scmp.ne.s32.totalorder %s314, %s316
      %p323 = scmp.eq.s32.totalorder %s91, 1
      %p324 = por %p322, %p323
      %p325 = scmp.ne.s32.totalorder %s316, %s317
      %p326 = scmp.eq.s32.totalorder %s91, 0
      %p327 = por %p325, %p326
      %p328 = scmp.ne.s32.totalorder %s316, %s317
      %p329 = scmp.eq.s32.totalorder %s92, 1
      %p330 = por %p328, %p329
      %p332 = scmp.ne.s32.totalorder %s317, %s331
      %p333 = scmp.eq.s32.totalorder %s92, 0
      %p334 = por %p332, %p333
      %s336 = sadd.s32 %s335, 1
      %p339 = scmp.eq.s32.totalorder %s86, 1
      %p340 = scmp.ne.s32.totalorder %s335, %s337
      %p341 = scmp.eq.s32.totalorder %s86, 0
      %p342 = por %p340, %p341
      %p343 = scmp.ne.s32.totalorder %s335, %s337
      %p344 = scmp.eq.s32.totalorder %s91, 1
      %p345 = por %p343, %p344
      %p346 = scmp.ne.s32.totalorder %s337, %s338
      %p347 = scmp.eq.s32.totalorder %s91, 0
      %p348 = por %p346, %p347
      %p349 = scmp.ne.s32.totalorder %s337, %s338
      %p350 = scmp.eq.s32.totalorder %s92, 1
      %p351 = por %p349, %p350
      %p353 = scmp.ne.s32.totalorder %s338, %s352
      %p354 = scmp.eq.s32.totalorder %s92, 0
      %p355 = por %p353, %p354
      %s357 = sadd.s32 %s356, 1
      %p360 = scmp.eq.s32.totalorder %s86, 1
      %p361 = scmp.ne.s32.totalorder %s356, %s358
      %p362 = scmp.eq.s32.totalorder %s86, 0
      %p363 = por %p361, %p362
      %p364 = scmp.ne.s32.totalorder %s356, %s358
      %p365 = scmp.eq.s32.totalorder %s91, 1
      %p366 = por %p364, %p365
      %p367 = scmp.ne.s32.totalorder %s358, %s359
      %p368 = scmp.eq.s32.totalorder %s91, 0
      %p369 = por %p367, %p368
      %p370 = scmp.ne.s32.totalorder %s358, %s359
      %p371 = scmp.eq.s32.totalorder %s92, 1
      %p372 = por %p370, %p371
      %p374 = scmp.ne.s32.totalorder %s359, %s373
      %p375 = scmp.eq.s32.totalorder %s92, 0
      %p376 = por %p374, %p375
      %s378 = sadd.s32 %s377, 1
      %p381 = scmp.eq.s32.totalorder %s86, 1
      %p382 = scmp.ne.s32.totalorder %s377, %s379
      %p383 = scmp.eq.s32.totalorder %s86, 0
      %p384 = por %p382, %p383
      %p385 = scmp.ne.s32.totalorder %s377, %s379
      %p386 = scmp.eq.s32.totalorder %s91, 1
      %p387 = por %p385, %p386
      %p388 = scmp.ne.s32.totalorder %s379, %s380
      %p389 = scmp.eq.s32.totalorder %s91, 0
      %p390 = por %p388, %p389
      %p391 = scmp.ne.s32.totalorder %s379, %s380
      %p392 = scmp.eq.s32.totalorder %s92, 1
      %p393 = por %p391, %p392
      %p395 = scmp.ne.s32.totalorder %s380, %s394
      %p396 = scmp.eq.s32.totalorder %s92, 0
      %p397 = por %p395, %p396
      %s399 = sadd.s32 %s398, 1
      %p402 = scmp.eq.s32.totalorder %s86, 1
      %p403 = scmp.ne.s32.totalorder %s398, %s400
      %p404 = scmp.eq.s32.totalorder %s86, 0
      %p405 = por %p403, %p404
      %p406 = scmp.ne.s32.totalorder %s398, %s400
      %p407 = scmp.eq.s32.totalorder %s91, 1
      %p408 = por %p406, %p407
      %p409 = scmp.ne.s32.totalorder %s400, %s401
      %p410 = scmp.eq.s32.totalorder %s91, 0
      %p411 = por %p409, %p410
      %p412 = scmp.ne.s32.totalorder %s400, %s401
      %p413 = scmp.eq.s32.totalorder %s92, 1
      %p414 = por %p412, %p413
      %p416 = scmp.ne.s32.totalorder %s401, %s415
      %p417 = scmp.eq.s32.totalorder %s92, 0
      %p418 = por %p416, %p417
      %s420 = sadd.s32 %s419, 1
      %p423 = scmp.eq.s32.totalorder %s86, 1
      %p424 = scmp.ne.s32.totalorder %s419, %s421
      %p425 = scmp.eq.s32.totalorder %s86, 0
      %p426 = por %p424, %p425
      %p427 = scmp.ne.s32.totalorder %s419, %s421
      %p428 = scmp.eq.s32.totalorder %s91, 1
      %p429 = por %p427, %p428
      %p430 = scmp.ne.s32.totalorder %s421, %s422
      %p431 = scmp.eq.s32.totalorder %s91, 0
      %p432 = por %p430, %p431
      %p433 = scmp.ne.s32.totalorder %s421, %s422
      %p434 = scmp.eq.s32.totalorder %s92, 1
      %p435 = por %p433, %p434
      %p437 = scmp.ne.s32.totalorder %s422, %s436
      %p438 = scmp.eq.s32.totalorder %s92, 0
      %p439 = por %p437, %p438
      %s441 = sadd.s32 %s440, 1
      %p444 = scmp.eq.s32.totalorder %s86, 1
      %p445 = scmp.ne.s32.totalorder %s440, %s442
      %p446 = scmp.eq.s32.totalorder %s86, 0
      %p447 = por %p445, %p446
      %p448 = scmp.ne.s32.totalorder %s440, %s442
      %p449 = scmp.eq.s32.totalorder %s91, 1
      %p450 = por %p448, %p449
      %p451 = scmp.ne.s32.totalorder %s442, %s443
      %p452 = scmp.eq.s32.totalorder %s91, 0
      %p453 = por %p451, %p452
      %p454 = scmp.ne.s32.totalorder %s442, %s443
      %p455 = scmp.eq.s32.totalorder %s92, 1
      %p456 = por %p454, %p455
      %p458 = scmp.ne.s32.totalorder %s443, %s457
      %p459 = scmp.eq.s32.totalorder %s92, 0
      %p460 = por %p458, %p459
      %s462 = sadd.s32 %s461, 1
      %p465 = scmp.eq.s32.totalorder %s86, 1
      %p466 = scmp.ne.s32.totalorder %s461, %s463
      %p467 = scmp.eq.s32.totalorder %s86, 0
      %p468 = por %p466, %p467
      %p469 = scmp.ne.s32.totalorder %s461, %s463
      %p470 = scmp.eq.s32.totalorder %s91, 1
      %p471 = por %p469, %p470
      %p472 = scmp.ne.s32.totalorder %s463, %s464
      %p473 = scmp.eq.s32.totalorder %s91, 0
      %p474 = por %p472, %p473
      %p475 = scmp.ne.s32.totalorder %s463, %s464
      %p476 = scmp.eq.s32.totalorder %s92, 1
      %p477 = por %p475, %p476
      %p479 = scmp.ne.s32.totalorder %s464, %s478
      %p480 = scmp.eq.s32.totalorder %s92, 0
      %p481 = por %p479, %p480
      %s483 = sadd.s32 %s482, 1
      %p486 = scmp.eq.s32.totalorder %s86, 1
      %p487 = scmp.ne.s32.totalorder %s482, %s484
      %p488 = scmp.eq.s32.totalorder %s86, 0
      %p489 = por %p487, %p488
      %p490 = scmp.ne.s32.totalorder %s482, %s484
      %p491 = scmp.eq.s32.totalorder %s91, 1
      %p492 = por %p490, %p491
      %p493 = scmp.ne.s32.totalorder %s484, %s485
      %p494 = scmp.eq.s32.totalorder %s91, 0
      %p495 = por %p493, %p494
      %p496 = scmp.ne.s32.totalorder %s484, %s485
      %p497 = scmp.eq.s32.totalorder %s92, 1
      %p498 = por %p496, %p497
      %p500 = scmp.ne.s32.totalorder %s485, %s499
      %p501 = scmp.eq.s32.totalorder %s92, 0
      %p502 = por %p500, %p501
      %s504 = sadd.s32 %s503, 1
      %p507 = scmp.eq.s32.totalorder %s86, 1
      %p508 = scmp.ne.s32.totalorder %s503, %s505
      %p509 = scmp.eq.s32.totalorder %s86, 0
      %p510 = por %p508, %p509
      %p511 = scmp.ne.s32.totalorder %s503, %s505
      %p512 = scmp.eq.s32.totalorder %s91, 1
      %p513 = por %p511, %p512
      %p514 = scmp.ne.s32.totalorder %s505, %s506
      %p515 = scmp.eq.s32.totalorder %s91, 0
      %p516 = por %p514, %p515
      %p517 = scmp.ne.s32.totalorder %s505, %s506
      %p518 = scmp.eq.s32.totalorder %s92, 1
      %p519 = por %p517, %p518
      %p521 = scmp.ne.s32.totalorder %s506, %s520
      %p522 = scmp.eq.s32.totalorder %s92, 0
      %p523 = por %p521, %p522
      %s525 = sadd.s32 %s524, 1
      %p528 = scmp.eq.s32.totalorder %s86, 1
      %p529 = scmp.ne.s32.totalorder %s524, %s526
      %p530 = scmp.eq.s32.totalorder %s86, 0
      %p531 = por %p529, %p530
      %p532 = scmp.ne.s32.totalorder %s524, %s526
      %p533 = scmp.eq.s32.totalorder %s91, 1
      %p534 = por %p532, %p533
      %p535 = scmp.ne.s32.totalorder %s526, %s527
      %p536 = scmp.eq.s32.totalorder %s91, 0
      %p537 = por %p535, %p536
      %p538 = scmp.ne.s32.totalorder %s526, %s527
      %p539 = scmp.eq.s32.totalorder %s92, 1
      %p540 = por %p538, %p539
      %p542 = scmp.ne.s32.totalorder %s527, %s541
      %p543 = scmp.eq.s32.totalorder %s92, 0
      %p544 = por %p542, %p543
      %s546 = sadd.s32 %s545, 1
      %p549 = scmp.eq.s32.totalorder %s86, 1
      %p550 = scmp.ne.s32.totalorder %s545, %s547
      %p551 = scmp.eq.s32.totalorder %s86, 0
      %p552 = por %p550, %p551
      %p553 = scmp.ne.s32.totalorder %s545, %s547
      %p554 = scmp.eq.s32.totalorder %s91, 1
      %p555 = por %p553, %p554
      %p556 = scmp.ne.s32.totalorder %s547, %s548
      %p557 = scmp.eq.s32.totalorder %s91, 0
      %p558 = por %p556, %p557
      %p559 = scmp.ne.s32.totalorder %s547, %s548
      %p560 = scmp.eq.s32.totalorder %s92, 1
      %p561 = por %p559, %p560
      %p563 = scmp.ne.s32.totalorder %s548, %s562
      %p564 = scmp.eq.s32.totalorder %s92, 0
      %p565 = por %p563, %p564
      %s567 = sadd.s32 %s566, 1
      %p570 = scmp.eq.s32.totalorder %s86, 1
      %p571 = scmp.ne.s32.totalorder %s566, %s568
      %p572 = scmp.eq.s32.totalorder %s86, 0
      %p573 = por %p571, %p572
      %p574 = scmp.ne.s32.totalorder %s566, %s568
      %p575 = scmp.eq.s32.totalorder %s91, 1
      %p576 = por %p574, %p575
      %p577 = scmp.ne.s32.totalorder %s568, %s569
      %p578 = scmp.eq.s32.totalorder %s91, 0
      %p579 = por %p577, %p578
      %p580 = scmp.ne.s32.totalorder %s568, %s569
      %p581 = scmp.eq.s32.totalorder %s92, 1
      %p582 = por %p580, %p581
      %p584 = scmp.ne.s32.totalorder %s569, %s583
      %p585 = scmp.eq.s32.totalorder %s92, 0
      %p586 = por %p584, %p585
      %s588 = sadd.s32 %s587, 1
      %p591 = scmp.eq.s32.totalorder %s86, 1
      %p592 = scmp.ne.s32.totalorder %s587, %s589
      %p593 = scmp.eq.s32.totalorder %s86, 0
      %p594 = por %p592, %p593
      %p595 = scmp.ne.s32.totalorder %s587, %s589
      %p596 = scmp.eq.s32.totalorder %s91, 1
      %p597 = por %p595, %p596
      %p598 = scmp.ne.s32.totalorder %s589, %s590
      %p599 = scmp.eq.s32.totalorder %s91, 0
      %p600 = por %p598, %p599
      %p601 = scmp.ne.s32.totalorder %s589, %s590
      %p602 = scmp.eq.s32.totalorder %s92, 1
      %p603 = por %p601, %p602
      %p605 = scmp.ne.s32.totalorder %s590, %s604
      %p606 = scmp.eq.s32.totalorder %s92, 0
      %p607 = por %p605, %p606
      %s609 = sadd.s32 %s608, 1
      %p612 = scmp.eq.s32.totalorder %s86, 1
      %p613 = scmp.ne.s32.totalorder %s608, %s610
      %p614 = scmp.eq.s32.totalorder %s86, 0
      %p615 = por %p613, %p614
      %p616 = scmp.ne.s32.totalorder %s608, %s610
      %p617 = scmp.eq.s32.totalorder %s91, 1
      %p618 = por %p616, %p617
      %p619 = scmp.ne.s32.totalorder %s610, %s611
      %p620 = scmp.eq.s32.totalorder %s91, 0
      %p621 = por %p619, %p620
      %p622 = scmp.ne.s32.totalorder %s610, %s611
      %p623 = scmp.eq.s32.totalorder %s92, 1
      %p624 = por %p622, %p623
      %p626 = scmp.ne.s32.totalorder %s611, %s625
      %p627 = scmp.eq.s32.totalorder %s92, 0
      %p628 = por %p626, %p627
      %s630 = sadd.s32 %s629, 1
      %p633 = scmp.eq.s32.totalorder %s86, 1
      %p634 = scmp.ne.s32.totalorder %s629, %s631
      %p635 = scmp.eq.s32.totalorder %s86, 0
      %p636 = por %p634, %p635
      %p637 = scmp.ne.s32.totalorder %s629, %s631
      %p638 = scmp.eq.s32.totalorder %s91, 1
      %p639 = por %p637, %p638
      %p640 = scmp.ne.s32.totalorder %s631, %s632
      %p641 = scmp.eq.s32.totalorder %s91, 0
      %p642 = por %p640, %p641
      %p643 = scmp.ne.s32.totalorder %s631, %s632
      %p644 = scmp.eq.s32.totalorder %s92, 1
      %p645 = por %p643, %p644
      %p647 = scmp.ne.s32.totalorder %s632, %s646
      %p648 = scmp.eq.s32.totalorder %s92, 0
      %p649 = por %p647, %p648
      %s651 = sadd.s32 %s650, 1
      %p654 = scmp.eq.s32.totalorder %s86, 1
      %p655 = scmp.ne.s32.totalorder %s650, %s652
      %p656 = scmp.eq.s32.totalorder %s86, 0
      %p657 = por %p655, %p656
      %p658 = scmp.ne.s32.totalorder %s650, %s652
      %p659 = scmp.eq.s32.totalorder %s91, 1
      %p660 = por %p658, %p659
      %p661 = scmp.ne.s32.totalorder %s652, %s653
      %p662 = scmp.eq.s32.totalorder %s91, 0
      %p663 = por %p661, %p662
      %p664 = scmp.ne.s32.totalorder %s652, %s653
      %p665 = scmp.eq.s32.totalorder %s92, 1
      %p666 = por %p664, %p665
      %p668 = scmp.ne.s32.totalorder %s653, %s667
      %p669 = scmp.eq.s32.totalorder %s92, 0
      %p670 = por %p668, %p669
      %s672 = sadd.s32 %s671, 1
      %p675 = scmp.eq.s32.totalorder %s86, 1
      %p676 = scmp.ne.s32.totalorder %s671, %s673
      %p677 = scmp.eq.s32.totalorder %s86, 0
      %p678 = por %p676, %p677
      %p679 = scmp.ne.s32.totalorder %s671, %s673
      %p680 = scmp.eq.s32.totalorder %s91, 1
      %p681 = por %p679, %p680
      %p682 = scmp.ne.s32.totalorder %s673, %s674
      %p683 = scmp.eq.s32.totalorder %s91, 0
      %p684 = por %p682, %p683
      %p685 = scmp.ne.s32.totalorder %s673, %s674
      %p686 = scmp.eq.s32.totalorder %s92, 1
      %p687 = por %p685, %p686
      %p689 = scmp.ne.s32.totalorder %s674, %s688
      %p690 = scmp.eq.s32.totalorder %s92, 0
      %p691 = por %p689, %p690
      %s693 = sadd.s32 %s692, 1
      %p696 = scmp.eq.s32.totalorder %s86, 1
      %p697 = scmp.ne.s32.totalorder %s692, %s694
      %p698 = scmp.eq.s32.totalorder %s86, 0
      %p699 = por %p697, %p698
      %p700 = scmp.ne.s32.totalorder %s692, %s694
      %p701 = scmp.eq.s32.totalorder %s91, 1
      %p702 = por %p700, %p701
      %p703 = scmp.ne.s32.totalorder %s694, %s695
      %p704 = scmp.eq.s32.totalorder %s91, 0
      %p705 = por %p703, %p704
      %p706 = scmp.ne.s32.totalorder %s694, %s695
      %p707 = scmp.eq.s32.totalorder %s92, 1
      %p708 = por %p706, %p707
      %p710 = scmp.ne.s32.totalorder %s695, %s709
      %p711 = scmp.eq.s32.totalorder %s92, 0
      %p712 = por %p710, %p711
      %s714 = sadd.s32 %s713, 1
      %p717 = scmp.eq.s32.totalorder %s86, 1
      %p718 = scmp.ne.s32.totalorder %s713, %s715
      %p719 = scmp.eq.s32.totalorder %s86, 0
      %p720 = por %p718, %p719
      %p721 = scmp.ne.s32.totalorder %s713, %s715
      %p722 = scmp.eq.s32.totalorder %s91, 1
      %p723 = por %p721, %p722
      %p724 = scmp.ne.s32.totalorder %s715, %s716
      %p725 = scmp.eq.s32.totalorder %s91, 0
      %p726 = por %p724, %p725
      %p727 = scmp.ne.s32.totalorder %s715, %s716
      %p728 = scmp.eq.s32.totalorder %s92, 1
      %p729 = por %p727, %p728
      %p731 = scmp.ne.s32.totalorder %s716, %s730
      %p732 = scmp.eq.s32.totalorder %s92, 0
      %p733 = por %p731, %p732
      %s735 = sadd.s32 %s734, 1
      %p738 = scmp.eq.s32.totalorder %s86, 1
      %p739 = scmp.ne.s32.totalorder %s734, %s736
      %p740 = scmp.eq.s32.totalorder %s86, 0
      %p741 = por %p739, %p740
      %p742 = scmp.ne.s32.totalorder %s734, %s736
      %p743 = scmp.eq.s32.totalorder %s91, 1
      %p744 = por %p742, %p743
      %p745 = scmp.ne.s32.totalorder %s736, %s737
      %p746 = scmp.eq.s32.totalorder %s91, 0
      %p747 = por %p745, %p746
      %p748 = scmp.ne.s32.totalorder %s736, %s737
      %p749 = scmp.eq.s32.totalorder %s92, 1
      %p750 = por %p748, %p749
      %p752 = scmp.ne.s32.totalorder %s737, %s751
      %p753 = scmp.eq.s32.totalorder %s92, 0
      %p754 = por %p752, %p753
      %s756 = sadd.s32 %s755, 1
      %p759 = scmp.eq.s32.totalorder %s86, 1
      %p760 = scmp.ne.s32.totalorder %s755, %s757
      %p761 = scmp.eq.s32.totalorder %s86, 0
      %p762 = por %p760, %p761
      %p763 = scmp.ne.s32.totalorder %s755, %s757
      %p764 = scmp.eq.s32.totalorder %s91, 1
      %p765 = por %p763, %p764
      %p766 = scmp.ne.s32.totalorder %s757, %s758
      %p767 = scmp.eq.s32.totalorder %s91, 0
      %p768 = por %p766, %p767
      %p769 = scmp.ne.s32.totalorder %s757, %s758
      %p770 = scmp.eq.s32.totalorder %s92, 1
      %p771 = por %p769, %p770
      %p773 = scmp.ne.s32.totalorder %s758, %s772
      %p774 = scmp.eq.s32.totalorder %s92, 0
      %p775 = por %p773, %p774
      %s777 = sadd.s32 %s776, 1
      %p780 = scmp.eq.s32.totalorder %s86, 1
      %p781 = scmp.ne.s32.totalorder %s776, %s778
      %p782 = scmp.eq.s32.totalorder %s86, 0
      %p783 = por %p781, %p782
      %p784 = scmp.ne.s32.totalorder %s776, %s778
      %p785 = scmp.eq.s32.totalorder %s91, 1
      %p786 = por %p784, %p785
      %p787 = scmp.ne.s32.totalorder %s778, %s779
      %p788 = scmp.eq.s32.totalorder %s91, 0
      %p789 = por %p787, %p788
      %p790 = scmp.ne.s32.totalorder %s778, %s779
      %p791 = scmp.eq.s32.totalorder %s92, 1
      %p792 = por %p790, %p791
      %p794 = scmp.ne.s32.totalorder %s779, %s793
      %p795 = scmp.eq.s32.totalorder %s92, 0
      %p796 = por %p794, %p795
      %s797 = ssub.s32 %s86, %s93
      %p798 = scmp.eq.s32.totalorder %s797, 0
      %s800 = sadd.s32 %s799, 1
      %s801 = scalar_select %p798, %s799, %s800
      %p804 = pneg %p798
      %p805 = scmp.eq.s32.totalorder %s86, 1
      %p806 = por %p804, %p805
      %p807 = scmp.ne.s32.totalorder %s799, %s802
      %p808 = scmp.eq.s32.totalorder %s86, 0
      %p809 = por %p807, %p808
      %p810 = scmp.ne.s32.totalorder %s799, %s802
      %p811 = scmp.eq.s32.totalorder %s91, 1
      %p812 = por %p810, %p811
      %p813 = scmp.ne.s32.totalorder %s802, %s803
      %p814 = scmp.eq.s32.totalorder %s91, 0
      %p815 = por %p813, %p814
      %p816 = scmp.ne.s32.totalorder %s802, %s803
      %p817 = scmp.eq.s32.totalorder %s92, 1
      %p818 = por %p816, %p817
      %p820 = scmp.ne.s32.totalorder %s803, %s819
      %p821 = scmp.eq.s32.totalorder %s92, 0
      %p822 = por %p820, %p821
      %p823 = scmp.le.s32.totalorder 1, %s86
      %p824 = scmp.lt.s32.totalorder %s86, 3
      %p825 = pnand %p823, %p824
      %p826 = pneg %p825
      // Predicated region
      $region9: #{generator_forward.1} parent=5 // pred_check
        _
      $region10: #{generator_forward.1} parent=5 // pred_check_branch
        %828 = sbr.rel (%p825) target = $region12
      $region11: #{generator_forward.1} parent=5 // pred_region
        %s829 = ssub.s32 %s86, 1
        // Predicated region
        $region13: #{generator_forward.1} parent=11 // pred_check
          %p830 = pneg %p159
        $region14: #{generator_forward.1} parent=11 // pred_check_branch
          %832 = sbr.rel (%p830) target = $region16
        $region15: #{generator_forward.1} parent=11 // pred_region
          _
        $region16: #{generator_forward.1} parent=11 // pred_fallthru
          _
        // Predicated region
        $region17: #{generator_forward.1} parent=11 // pred_check
          %p833 = pneg %p180
        $region18: #{generator_forward.1} parent=11 // pred_check_branch
          %835 = sbr.rel (%p833) target = $region20
        $region19: #{generator_forward.1} parent=11 // pred_region
          %s837 = ssub.s32 2048, 2048
          %838 = vsyncadd [#allocation4], %s837
          %s839 = sshll.u32 [#allocation3], 4
          %s840 = int_to_ptr.vmem [resolvable:$true] %s839
          %845 = dma.hbm_to_vmem [thread:$0]  %s7, 2048, %s840, [#allocation4], 128, 128, 8
        $region20: #{generator_forward.1} parent=11 // pred_fallthru
          _
        // Predicated region
        $region21: #{generator_forward.1} parent=11 // pred_check
          %p846 = pneg %p201
        $region22: #{generator_forward.1} parent=11 // pred_check_branch
          %848 = sbr.rel (%p846) target = $region24
        $region23: #{generator_forward.1} parent=11 // pred_region
          _
        $region24: #{generator_forward.1} parent=11 // pred_fallthru
          _
        // Predicated region
        $region25: #{generator_forward.1} parent=11 // pred_check
          %p849 = pneg %p222
        $region26: #{generator_forward.1} parent=11 // pred_check_branch
          %851 = sbr.rel (%p849) target = $region28
        $region27: #{generator_forward.1} parent=11 // pred_region
          _
        $region28: #{generator_forward.1} parent=11 // pred_fallthru
          _
        // Predicated region
        $region29: #{generator_forward.1} parent=11 // pred_check
          %p852 = pneg %p243
        $region30: #{generator_forward.1} parent=11 // pred_check_branch
          %854 = sbr.rel (%p852) target = $region32
        $region31: #{generator_forward.1} parent=11 // pred_region
          _
        $region32: #{generator_forward.1} parent=11 // pred_fallthru
          _
        // Predicated region
        $region33: #{generator_forward.1} parent=11 // pred_check
          %p855 = pneg %p264
        $region34: #{generator_forward.1} parent=11 // pred_check_branch
          %857 = sbr.rel (%p855) target = $region36
        $region35: #{generator_forward.1} parent=11 // pred_region
          %s859 = ssub.s32 2048, 2048
          %860 = vsyncadd [#allocation7], %s859
          %s861 = sshll.u32 [#allocation6], 4
          %s862 = int_to_ptr.vmem [resolvable:$true] %s861
          %867 = dma.hbm_to_vmem [thread:$0]  %s15, 2048, %s862, [#allocation7], 128, 128, 8
        $region36: #{generator_forward.1} parent=11 // pred_fallthru
          _
        // Predicated region
        $region37: #{generator_forward.1} parent=11 // pred_check
          %p868 = pneg %p285
        $region38: #{generator_forward.1} parent=11 // pred_check_branch
          %870 = sbr.rel (%p868) target = $region40
        $region39: #{generator_forward.1} parent=11 // pred_region
          _
        $region40: #{generator_forward.1} parent=11 // pred_fallthru
          _
        // Predicated region
        $region41: #{generator_forward.1} parent=11 // pred_check
          %p871 = pneg %p306
        $region42: #{generator_forward.1} parent=11 // pred_check_branch
          %873 = sbr.rel (%p871) target = $region44
        $region43: #{generator_forward.1} parent=11 // pred_region
          _
        $region44: #{generator_forward.1} parent=11 // pred_fallthru
          _
        // Predicated region
        $region45: #{generator_forward.1} parent=11 // pred_check
          %p874 = pneg %p327
        $region46: #{generator_forward.1} parent=11 // pred_check_branch
          %876 = sbr.rel (%p874) target = $region48
        $region47: #{generator_forward.1} parent=11 // pred_region
          _
        $region48: #{generator_forward.1} parent=11 // pred_fallthru
          _
        // Predicated region
        $region49: #{generator_forward.1} parent=11 // pred_check
          %p877 = pneg %p348
        $region50: #{generator_forward.1} parent=11 // pred_check_branch
          %879 = sbr.rel (%p877) target = $region52
        $region51: #{generator_forward.1} parent=11 // pred_region
          %s881 = ssub.s32 2048, 2048
          %882 = vsyncadd [#allocation7], %s881
          %s883 = sshll.u32 [#allocation8], 4
          %s884 = int_to_ptr.vmem [resolvable:$true] %s883
          %889 = dma.hbm_to_vmem [thread:$0]  %s23, 2048, %s884, [#allocation7], 128, 128, 8
        $region52: #{generator_forward.1} parent=11 // pred_fallthru
          _
        // Predicated region
        $region53: #{generator_forward.1} parent=11 // pred_check
          %p890 = pneg %p369
        $region54: #{generator_forward.1} parent=11 // pred_check_branch
          %892 = sbr.rel (%p890) target = $region56
        $region55: #{generator_forward.1} parent=11 // pred_region
          _
        $region56: #{generator_forward.1} parent=11 // pred_fallthru
          _
        // Predicated region
        $region57: #{generator_forward.1} parent=11 // pred_check
          %p893 = pneg %p390
        $region58: #{generator_forward.1} parent=11 // pred_check_branch
          %895 = sbr.rel (%p893) target = $region60
        $region59: #{generator_forward.1} parent=11 // pred_region
          _
        $region60: #{generator_forward.1} parent=11 // pred_fallthru
          _
        // Predicated region
        $region61: #{generator_forward.1} parent=11 // pred_check
          %p896 = pneg %p411
        $region62: #{generator_forward.1} parent=11 // pred_check_branch
          %898 = sbr.rel (%p896) target = $region64
        $region63: #{generator_forward.1} parent=11 // pred_region
          %s900 = ssub.s32 6144, 6144
          %901 = vsyncadd [#allocation10], %s900
          %s902 = sshll.u32 [#allocation9], 4
          %s903 = int_to_ptr.vmem [resolvable:$true] %s902
          %908 = dma.hbm_to_vmem [thread:$0]  %s29, 6144, %s903, [#allocation10], 128, 128, 8
        $region64: #{generator_forward.1} parent=11 // pred_fallthru
          _
        // Predicated region
        $region65: #{generator_forward.1} parent=11 // pred_check
          %p909 = pneg %p432
        $region66: #{generator_forward.1} parent=11 // pred_check_branch
          %911 = sbr.rel (%p909) target = $region68
        $region67: #{generator_forward.1} parent=11 // pred_region
          _
        $region68: #{generator_forward.1} parent=11 // pred_fallthru
          _
        // Predicated region
        $region69: #{generator_forward.1} parent=11 // pred_check
          %p912 = pneg %p453
        $region70: #{generator_forward.1} parent=11 // pred_check_branch
          %914 = sbr.rel (%p912) target = $region72
        $region71: #{generator_forward.1} parent=11 // pred_region
          _
        $region72: #{generator_forward.1} parent=11 // pred_fallthru
          _
        // Predicated region
        $region73: #{generator_forward.1} parent=11 // pred_check
          %p915 = pneg %p474
        $region74: #{generator_forward.1} parent=11 // pred_check_branch
          %917 = sbr.rel (%p915) target = $region76
        $region75: #{generator_forward.1} parent=11 // pred_region
          %s919 = ssub.s32 6144, 6144
          %920 = vsyncadd [#allocation10], %s919
          %s921 = sshll.u32 [#allocation11], 4
          %s922 = int_to_ptr.vmem [resolvable:$true] %s921
          %927 = dma.hbm_to_vmem [thread:$0]  %s35, 6144, %s922, [#allocation10], 128, 128, 8
        $region76: #{generator_forward.1} parent=11 // pred_fallthru
          _
        // Predicated region
        $region77: #{generator_forward.1} parent=11 // pred_check
          %p928 = pneg %p495
        $region78: #{generator_forward.1} parent=11 // pred_check_branch
          %930 = sbr.rel (%p928) target = $region80
        $region79: #{generator_forward.1} parent=11 // pred_region
          _
        $region80: #{generator_forward.1} parent=11 // pred_fallthru
          _
        // Predicated region
        $region81: #{generator_forward.1} parent=11 // pred_check
          %p931 = pneg %p516
        $region82: #{generator_forward.1} parent=11 // pred_check_branch
          %933 = sbr.rel (%p931) target = $region84
        $region83: #{generator_forward.1} parent=11 // pred_region
          %s935 = ssub.s32 16, 16
          %936 = vsyncadd [#allocation13], %s935
          %s938 = sshll.u32 [#allocation12], 4
          %s939 = int_to_ptr.vmem [resolvable:$true] %s938
          %941 = dma.hbm_to_vmem [thread:$0]  %s39, 16, %s939, [#allocation13]
        $region84: #{generator_forward.1} parent=11 // pred_fallthru
          _
        // Predicated region
        $region85: #{generator_forward.1} parent=11 // pred_check
          %p942 = pneg %p537
        $region86: #{generator_forward.1} parent=11 // pred_check_branch
          %944 = sbr.rel (%p942) target = $region88
        $region87: #{generator_forward.1} parent=11 // pred_region
          %s946 = ssub.s32 6144, 6144
          %947 = vsyncadd [#allocation13], %s946
          %s948 = sshll.u32 [#allocation14], 4
          %s949 = int_to_ptr.vmem [resolvable:$true] %s948
          %954 = dma.hbm_to_vmem [thread:$0]  %s41, 6144, %s949, [#allocation13], 128, 128, 8
        $region88: #{generator_forward.1} parent=11 // pred_fallthru
          _
        // Predicated region
        $region89: #{generator_forward.1} parent=11 // pred_check
          %p955 = pneg %p558
        $region90: #{generator_forward.1} parent=11 // pred_check_branch
          %957 = sbr.rel (%p955) target = $region92
        $region91: #{generator_forward.1} parent=11 // pred_region
          %s959 = ssub.s32 16, 16
          %960 = vsyncadd [#allocation16], %s959
          %s962 = sshll.u32 [#allocation15], 4
          %s963 = int_to_ptr.vmem [resolvable:$true] %s962
          %965 = dma.hbm_to_vmem [thread:$0]  %s43, 16, %s963, [#allocation16]
        $region92: #{generator_forward.1} parent=11 // pred_fallthru
          _
        // Predicated region
        $region93: #{generator_forward.1} parent=11 // pred_check
          %p966 = pneg %p579
        $region94: #{generator_forward.1} parent=11 // pred_check_branch
          %968 = sbr.rel (%p966) target = $region96
        $region95: #{generator_forward.1} parent=11 // pred_region
          %s970 = ssub.s32 16, 16
          %971 = vsyncadd [#allocation16], %s970
          %s973 = sshll.u32 [#allocation17], 4
          %s974 = int_to_ptr.vmem [resolvable:$true] %s973
          %976 = dma.hbm_to_vmem [thread:$0]  %s45, 16, %s974, [#allocation16]
        $region96: #{generator_forward.1} parent=11 // pred_fallthru
          _
        // Predicated region
        $region97: #{generator_forward.1} parent=11 // pred_check
          %p977 = pneg %p600
        $region98: #{generator_forward.1} parent=11 // pred_check_branch
          %979 = sbr.rel (%p977) target = $region100
        $region99: #{generator_forward.1} parent=11 // pred_region
          %s981 = ssub.s32 6144, 6144
          %982 = vsyncadd [#allocation19], %s981
          %s983 = sshll.u32 [#allocation18], 4
          %s984 = int_to_ptr.vmem [resolvable:$true] %s983
          %989 = dma.hbm_to_vmem [thread:$0]  %s47, 6144, %s984, [#allocation19], 128, 128, 8
        $region100: #{generator_forward.1} parent=11 // pred_fallthru
          _
        // Predicated region
        $region101: #{generator_forward.1} parent=11 // pred_check
          %p990 = pneg %p621
        $region102: #{generator_forward.1} parent=11 // pred_check_branch
          %992 = sbr.rel (%p990) target = $region104
        $region103: #{generator_forward.1} parent=11 // pred_region
          %s994 = ssub.s32 16, 16
          %995 = vsyncadd [#allocation19], %s994
          %s997 = sshll.u32 [#allocation20], 4
          %s998 = int_to_ptr.vmem [resolvable:$true] %s997
          %1000 = dma.hbm_to_vmem [thread:$0]  %s49, 16, %s998, [#allocation19]
        $region104: #{generator_forward.1} parent=11 // pred_fallthru
          _
        // Predicated region
        $region105: #{generator_forward.1} parent=11 // pred_check
          %p1001 = pneg %p642
        $region106: #{generator_forward.1} parent=11 // pred_check_branch
          %1003 = sbr.rel (%p1001) target = $region108
        $region107: #{generator_forward.1} parent=11 // pred_region
          %s1005 = ssub.s32 16, 16
          %1006 = vsyncadd [#allocation22], %s1005
          %s1008 = sshll.u32 [#allocation21], 4
          %s1009 = int_to_ptr.vmem [resolvable:$true] %s1008
          %1011 = dma.hbm_to_vmem [thread:$0]  %s51, 16, %s1009, [#allocation22]
        $region108: #{generator_forward.1} parent=11 // pred_fallthru
          _
        // Predicated region
        $region109: #{generator_forward.1} parent=11 // pred_check
          %p1012 = pneg %p663
        $region110: #{generator_forward.1} parent=11 // pred_check_branch
          %1014 = sbr.rel (%p1012) target = $region112
        $region111: #{generator_forward.1} parent=11 // pred_region
          %s1016 = ssub.s32 8192, 8192
          %1017 = vsyncadd [#allocation22], %s1016
          %s1018 = sshll.u32 [#allocation23], 4
          %s1019 = int_to_ptr.vmem [resolvable:$true] %s1018
          %1024 = dma.hbm_to_vmem [thread:$0]  %s53, 8192, %s1019, [#allocation22], 128, 128, 8
        $region112: #{generator_forward.1} parent=11 // pred_fallthru
          _
        // Predicated region
        $region113: #{generator_forward.1} parent=11 // pred_check
          %p1025 = pneg %p684
        $region114: #{generator_forward.1} parent=11 // pred_check_branch
          %1027 = sbr.rel (%p1025) target = $region116
        $region115: #{generator_forward.1} parent=11 // pred_region
          %s1029 = ssub.s32 16, 16
          %1030 = vsyncadd [#allocation25], %s1029
          %s1032 = sshll.u32 [#allocation24], 4
          %s1033 = int_to_ptr.vmem [resolvable:$true] %s1032
          %1035 = dma.hbm_to_vmem [thread:$0]  %s55, 16, %s1033, [#allocation25]
        $region116: #{generator_forward.1} parent=11 // pred_fallthru
          _
        // Predicated region
        $region117: #{generator_forward.1} parent=11 // pred_check
          %p1036 = pneg %p705
        $region118: #{generator_forward.1} parent=11 // pred_check_branch
          %1038 = sbr.rel (%p1036) target = $region120
        $region119: #{generator_forward.1} parent=11 // pred_region
          %s1040 = ssub.s32 16, 16
          %1041 = vsyncadd [#allocation25], %s1040
          %s1043 = sshll.u32 [#allocation26], 4
          %s1044 = int_to_ptr.vmem [resolvable:$true] %s1043
          %1046 = dma.hbm_to_vmem [thread:$0]  %s57, 16, %s1044, [#allocation25]
        $region120: #{generator_forward.1} parent=11 // pred_fallthru
          _
        // Predicated region
        $region121: #{generator_forward.1} parent=11 // pred_check
          %p1047 = pneg %p726
        $region122: #{generator_forward.1} parent=11 // pred_check_branch
          %1049 = sbr.rel (%p1047) target = $region124
        $region123: #{generator_forward.1} parent=11 // pred_region
          %s1051 = ssub.s32 8192, 8192
          %1052 = vsyncadd [#allocation28], %s1051
          %s1053 = sshll.u32 [#allocation27], 4
          %s1054 = int_to_ptr.vmem [resolvable:$true] %s1053
          %1059 = dma.hbm_to_vmem [thread:$0]  %s59, 8192, %s1054, [#allocation28], 128, 128, 8
        $region124: #{generator_forward.1} parent=11 // pred_fallthru
          _
        // Predicated region
        $region125: #{generator_forward.1} parent=11 // pred_check
          %p1060 = pneg %p747
        $region126: #{generator_forward.1} parent=11 // pred_check_branch
          %1062 = sbr.rel (%p1060) target = $region128
        $region127: #{generator_forward.1} parent=11 // pred_region
          %s1064 = ssub.s32 16, 16
          %1065 = vsyncadd [#allocation28], %s1064
          %s1067 = sshll.u32 [#allocation29], 4
          %s1068 = int_to_ptr.vmem [resolvable:$true] %s1067
          %1070 = dma.hbm_to_vmem [thread:$0]  %s61, 16, %s1068, [#allocation28]
        $region128: #{generator_forward.1} parent=11 // pred_fallthru
          _
        // Predicated region
        $region129: #{generator_forward.1} parent=11 // pred_check
          %p1071 = pneg %p768
        $region130: #{generator_forward.1} parent=11 // pred_check_branch
          %1073 = sbr.rel (%p1071) target = $region132
        $region131: #{generator_forward.1} parent=11 // pred_region
          %s1075 = ssub.s32 16, 16
          %1076 = vsyncadd [#allocation31], %s1075
          %s1078 = sshll.u32 [#allocation30], 4
          %s1079 = int_to_ptr.vmem [resolvable:$true] %s1078
          %1081 = dma.hbm_to_vmem [thread:$0]  %s63, 16, %s1079, [#allocation31]
        $region132: #{generator_forward.1} parent=11 // pred_fallthru
          _
        // Predicated region
        $region133: #{generator_forward.1} parent=11 // pred_check
          %p1082 = pneg %p789
        $region134: #{generator_forward.1} parent=11 // pred_check_branch
          %1084 = sbr.rel (%p1082) target = $region136
        $region135: #{generator_forward.1} parent=11 // pred_region
          _
        $region136: #{generator_forward.1} parent=11 // pred_fallthru
          _
      $region12: #{generator_forward.1} parent=5 // pred_fallthru
        _
      %p1085 = scmp.lt.s32.totalorder %s86, 2
      // Predicated region
      $region137: #{generator_forward.1} parent=5 // pred_check
        %p1086 = pneg %p1085
      $region138: #{generator_forward.1} parent=5 // pred_check_branch
        %1088 = sbr.rel (%p1086) target = $region140
      $region139: #{generator_forward.1} parent=5 // pred_region
        // Predicated region
        $region141: #{generator_forward.1} parent=139 // pred_check
          %p1089 = pneg %p106
        $region142: #{generator_forward.1} parent=139 // pred_check_branch
          %1091 = sbr.rel (%p1089) target = $region144
        $region143: #{generator_forward.1} parent=139 // pred_region
          %p1092 = scmp.lt.s32.totalorder %s86, 1
          %s1093 = scalar_select %p1092, %s86, 1
          %s1094 = smul.addr %s1093, 8
          %s1095 = scalar_lea.vmem %s1, %s1094
        $region144: #{generator_forward.1} parent=139 // pred_fallthru
          _
        // Predicated region
        $region145: #{generator_forward.1} parent=139 // pred_check
          %p1096 = pneg %p132
        $region146: #{generator_forward.1} parent=139 // pred_check_branch
          %1098 = sbr.rel (%p1096) target = $region148
        $region147: #{generator_forward.1} parent=139 // pred_region
          %p1099 = scmp.lt.s32.totalorder %s86, 1
          %s1100 = scalar_select %p1099, %s86, 1
          %s1101 = smul.addr %s1100, 8
          %s1102 = scalar_lea.vmem %s3, %s1101
        $region148: #{generator_forward.1} parent=139 // pred_fallthru
          _
      $region140: #{generator_forward.1} parent=5 // pred_fallthru
        _
      %p1103 = scmp.le.s32.totalorder 1, %s86
      %p1104 = scmp.lt.s32.totalorder %s86, 3
      %p1105 = pnand %p1103, %p1104
      %p1106 = pneg %p1105
      // Predicated region
      $region149: #{generator_forward.1} parent=5 // pred_check
        _
      $region150: #{generator_forward.1} parent=5 // pred_check_branch
        %1108 = sbr.rel (%p1105) target = $region152
      $region151: #{generator_forward.1} parent=5 // pred_region
        %s1109 = ssub.s32 %s86, 1
        // Predicated region
        $region153: #{generator_forward.1} parent=151 // pred_check
          %p1110 = pneg %p180
        $region154: #{generator_forward.1} parent=151 // pred_check_branch
          %1112 = sbr.rel (%p1110) target = $region156
        $region155: #{generator_forward.1} parent=151 // pred_region
          %1113 = dma.done [#allocation4], 2048
        $region156: #{generator_forward.1} parent=151 // pred_fallthru
          _
        // Predicated region
        $region157: #{generator_forward.1} parent=151 // pred_check
          %p1114 = pneg %p264
        $region158: #{generator_forward.1} parent=151 // pred_check_branch
          %1116 = sbr.rel (%p1114) target = $region160
        $region159: #{generator_forward.1} parent=151 // pred_region
          %1117 = dma.done [#allocation7], 2048
        $region160: #{generator_forward.1} parent=151 // pred_fallthru
          _
        // Predicated region
        $region161: #{generator_forward.1} parent=151 // pred_check
          %p1118 = pneg %p348
        $region162: #{generator_forward.1} parent=151 // pred_check_branch
          %1120 = sbr.rel (%p1118) target = $region164
        $region163: #{generator_forward.1} parent=151 // pred_region
          %1121 = dma.done [#allocation7], 2048
        $region164: #{generator_forward.1} parent=151 // pred_fallthru
          _
        // Predicated region
        $region165: #{generator_forward.1} parent=151 // pred_check
          %p1122 = pneg %p411
        $region166: #{generator_forward.1} parent=151 // pred_check_branch
          %1124 = sbr.rel (%p1122) target = $region168
        $region167: #{generator_forward.1} parent=151 // pred_region
          %1125 = dma.done [#allocation10], 6144
        $region168: #{generator_forward.1} parent=151 // pred_fallthru
          _
        // Predicated region
        $region169: #{generator_forward.1} parent=151 // pred_check
          %p1126 = pneg %p474
        $region170: #{generator_forward.1} parent=151 // pred_check_branch
          %1128 = sbr.rel (%p1126) target = $region172
        $region171: #{generator_forward.1} parent=151 // pred_region
          %1129 = dma.done [#allocation10], 6144
        $region172: #{generator_forward.1} parent=151 // pred_fallthru
          _
        // Predicated region
        $region173: #{generator_forward.1} parent=151 // pred_check
          %p1130 = pneg %p516
        $region174: #{generator_forward.1} parent=151 // pred_check_branch
          %1132 = sbr.rel (%p1130) target = $region176
        $region175: #{generator_forward.1} parent=151 // pred_region
          %1133 = dma.done [#allocation13], 16
        $region176: #{generator_forward.1} parent=151 // pred_fallthru
          _
        // Predicated region
        $region177: #{generator_forward.1} parent=151 // pred_check
          %p1134 = pneg %p537
        $region178: #{generator_forward.1} parent=151 // pred_check_branch
          %1136 = sbr.rel (%p1134) target = $region180
        $region179: #{generator_forward.1} parent=151 // pred_region
          %1137 = dma.done [#allocation13], 6144
        $region180: #{generator_forward.1} parent=151 // pred_fallthru
          _
        // Predicated region
        $region181: #{generator_forward.1} parent=151 // pred_check
          %p1138 = pneg %p558
        $region182: #{generator_forward.1} parent=151 // pred_check_branch
          %1140 = sbr.rel (%p1138) target = $region184
        $region183: #{generator_forward.1} parent=151 // pred_region
          %1141 = dma.done [#allocation16], 16
        $region184: #{generator_forward.1} parent=151 // pred_fallthru
          _
        // Predicated region
        $region185: #{generator_forward.1} parent=151 // pred_check
          %p1142 = pneg %p579
        $region186: #{generator_forward.1} parent=151 // pred_check_branch
          %1144 = sbr.rel (%p1142) target = $region188
        $region187: #{generator_forward.1} parent=151 // pred_region
          %1145 = dma.done [#allocation16], 16
        $region188: #{generator_forward.1} parent=151 // pred_fallthru
          _
        // Predicated region
        $region189: #{generator_forward.1} parent=151 // pred_check
          %p1146 = pneg %p600
        $region190: #{generator_forward.1} parent=151 // pred_check_branch
          %1148 = sbr.rel (%p1146) target = $region192
        $region191: #{generator_forward.1} parent=151 // pred_region
          %1149 = dma.done [#allocation19], 6144
        $region192: #{generator_forward.1} parent=151 // pred_fallthru
          _
        // Predicated region
        $region193: #{generator_forward.1} parent=151 // pred_check
          %p1150 = pneg %p621
        $region194: #{generator_forward.1} parent=151 // pred_check_branch
          %1152 = sbr.rel (%p1150) target = $region196
        $region195: #{generator_forward.1} parent=151 // pred_region
          %1153 = dma.done [#allocation19], 16
        $region196: #{generator_forward.1} parent=151 // pred_fallthru
          _
        // Predicated region
        $region197: #{generator_forward.1} parent=151 // pred_check
          %p1154 = pneg %p642
        $region198: #{generator_forward.1} parent=151 // pred_check_branch
          %1156 = sbr.rel (%p1154) target = $region200
        $region199: #{generator_forward.1} parent=151 // pred_region
          %1157 = dma.done [#allocation22], 16
        $region200: #{generator_forward.1} parent=151 // pred_fallthru
          _
        // Predicated region
        $region201: #{generator_forward.1} parent=151 // pred_check
          %p1158 = pneg %p663
        $region202: #{generator_forward.1} parent=151 // pred_check_branch
          %1160 = sbr.rel (%p1158) target = $region204
        $region203: #{generator_forward.1} parent=151 // pred_region
          %1161 = dma.done [#allocation22], 8192
        $region204: #{generator_forward.1} parent=151 // pred_fallthru
          _
        // Predicated region
        $region205: #{generator_forward.1} parent=151 // pred_check
          %p1162 = pneg %p684
        $region206: #{generator_forward.1} parent=151 // pred_check_branch
          %1164 = sbr.rel (%p1162) target = $region208
        $region207: #{generator_forward.1} parent=151 // pred_region
          %1165 = dma.done [#allocation25], 16
        $region208: #{generator_forward.1} parent=151 // pred_fallthru
          _
        // Predicated region
        $region209: #{generator_forward.1} parent=151 // pred_check
          %p1166 = pneg %p705
        $region210: #{generator_forward.1} parent=151 // pred_check_branch
          %1168 = sbr.rel (%p1166) target = $region212
        $region211: #{generator_forward.1} parent=151 // pred_region
          %1169 = dma.done [#allocation25], 16
        $region212: #{generator_forward.1} parent=151 // pred_fallthru
          _
        // Predicated region
        $region213: #{generator_forward.1} parent=151 // pred_check
          %p1170 = pneg %p726
        $region214: #{generator_forward.1} parent=151 // pred_check_branch
          %1172 = sbr.rel (%p1170) target = $region216
        $region215: #{generator_forward.1} parent=151 // pred_region
          %1173 = dma.done [#allocation28], 8192
        $region216: #{generator_forward.1} parent=151 // pred_fallthru
          _
        // Predicated region
        $region217: #{generator_forward.1} parent=151 // pred_check
          %p1174 = pneg %p747
        $region218: #{generator_forward.1} parent=151 // pred_check_branch
          %1176 = sbr.rel (%p1174) target = $region220
        $region219: #{generator_forward.1} parent=151 // pred_region
          %1177 = dma.done [#allocation28], 16
        $region220: #{generator_forward.1} parent=151 // pred_fallthru
          _
        // Predicated region
        $region221: #{generator_forward.1} parent=151 // pred_check
          %p1178 = pneg %p768
        $region222: #{generator_forward.1} parent=151 // pred_check_branch
          %1180 = sbr.rel (%p1178) target = $region224
        $region223: #{generator_forward.1} parent=151 // pred_region
          %1181 = dma.done [#allocation31], 16
        $region224: #{generator_forward.1} parent=151 // pred_fallthru
          _
        %p1182 = scmp.lt.s32.totalorder %s91, 1
        %s1183 = scalar_select %p1182, %s91, 1
        %s1184 = smul.addr %s1183, 8
        %s1185 = scalar_lea.vmem %s1, %s1184
        %p1186 = pneg %p112
        %p1187 = pneg %p109
        %p1188 = scmp.lt.s32.totalorder %s91, 1
        %s1189 = scalar_select %p1188, %s91, 1
        %s1190 = smul.addr %s1189, 8
        %s1191 = scalar_lea.vmem %s3, %s1190
        %p1192 = pneg %p138
        %p1193 = pneg %p135
        %p1194 = pneg %p159
        %p1195 = pneg %p156
        %p1196 = pneg %p180
        %p1197 = pneg %p177
        %p1198 = pneg %p201
        %p1199 = pneg %p198
        %p1200 = pneg %p222
        %p1201 = pneg %p219
        %p1202 = pneg %p243
        %p1203 = pneg %p240
        %p1204 = pneg %p264
        %p1205 = pneg %p261
        %p1206 = pneg %p285
        %p1207 = pneg %p282
        %p1208 = pneg %p306
        %p1209 = pneg %p303
        %p1210 = pneg %p327
        %p1211 = pneg %p324
        %p1212 = pneg %p348
        %p1213 = pneg %p345
        %p1214 = pneg %p369
        %p1215 = pneg %p366
        %p1216 = pneg %p390
        %p1217 = pneg %p387
        %p1218 = pneg %p411
        %p1219 = pneg %p408
        %p1220 = pneg %p432
        %p1221 = pneg %p429
        %p1222 = pneg %p453
        %p1223 = pneg %p450
        %p1224 = pneg %p474
        %p1225 = pneg %p471
        %p1226 = pneg %p495
        %p1227 = pneg %p492
        %p1228 = pneg %p516
        %p1229 = pneg %p513
        %p1230 = pneg %p537
        %p1231 = pneg %p534
        %p1232 = pneg %p558
        %p1233 = pneg %p555
        %p1234 = pneg %p579
        %p1235 = pneg %p576
        %p1236 = pneg %p600
        %p1237 = pneg %p597
        %p1238 = pneg %p621
        %p1239 = pneg %p618
        %p1240 = pneg %p642
        %p1241 = pneg %p639
        %p1242 = pneg %p663
        %p1243 = pneg %p660
        %p1244 = pneg %p684
        %p1245 = pneg %p681
        %p1246 = pneg %p705
        %p1247 = pneg %p702
        %p1248 = pneg %p726
        %p1249 = pneg %p723
        %p1250 = pneg %p747
        %p1251 = pneg %p744
        %p1252 = pneg %p768
        %p1253 = pneg %p765
        %p1254 = pneg %p789
        %p1255 = pneg %p786
        %p1256 = pneg %p815
        %p1257 = pneg %p812
        %s1258 = sand.u32 %s802, 1
        %s1259 = scalar_lea.sflag [#allocation5], %s1258
        %s1260 = sand.u32 %s802, 1
        %s1261 = smul.addr %s1260, 8
        %s1262 = scalar_lea.vmem [#allocation32], %s1261
        %p1263 = scmp.lt.s32.totalorder %s91, 1
        %s1264 = scalar_select %p1263, %s91, 1
        %s1265 = smul.addr %s1264, 8
        %s1266 = scalar_lea.vmem %s1, %s1265
        %p1267 = scmp.lt.s32.totalorder %s91, 1
        %s1268 = scalar_select %p1267, %s91, 1
        %s1269 = smul.addr %s1268, 8
        %s1270 = scalar_lea.vmem %s3, %s1269
        %v1271 = vld [vmem:[%s1266] sm:$0xff]
        %v1272 = vld [vmem:[%s5] sm:$0xff]
        %v1273 = vld [vmem:[%s5 + $0x8] sm:$0xff]
        %vm1274 = vcmask 130048
        %v1276 = vsel %vm1274, %v1271, 0
        %1278 = vmatprep.subr.mxu0 0.0
        %1279 = vmatpush1.msra.mxu0 %v1272
        %1280 = vmatprep.subr.mxu0 0.0
        %1281 = vmatpush1.msra.mxu0 %v1273
        %1282 = vmatprep.subr.mxu0 0.0
        %1283 = vmatpush1.msra.mxu0 0.0
        %1284 = vmatprep.subr.mxu0 0.0
        %1285 = vmatpush1.msra.mxu0 0.0
        %1286 = vmatprep.subr.mxu0 0.0
        %1287 = vmatpush1.msra.mxu0 0.0
        %1288 = vmatprep.subr.mxu0 0.0
        %1289 = vmatpush1.msra.mxu0 0.0
        %1290 = vmatprep.subr.mxu0 0.0
        %1291 = vmatpush1.msra.mxu0 0.0
        %1292 = vmatprep.subr.mxu0 0.0
        %1293 = vmatpush1.msra.mxu0 0.0
        %1294 = vmatprep.subr.mxu0 0.0
        %1295 = vmatpush1.msra.mxu0 0.0
        %1296 = vmatprep.subr.mxu0 0.0
        %1297 = vmatpush1.msra.mxu0 0.0
        %1298 = vmatprep.subr.mxu0 0.0
        %1299 = vmatpush1.msra.mxu0 0.0
        %1300 = vmatprep.subr.mxu0 0.0
        %1301 = vmatpush1.msra.mxu0 0.0
        %1302 = vmatprep.subr.mxu0 0.0
        %1303 = vmatpush1.msra.mxu0 0.0
        %1304 = vmatprep.subr.mxu0 0.0
        %1305 = vmatpush1.msra.mxu0 0.0
        %1306 = vmatprep.subr.mxu0 0.0
        %1307 = vmatpush1.msra.mxu0 0.0
        %1308 = vmatprep.subr.mxu0 0.0
        %1309 = vmatpush1.msra.mxu0 0.0
        %1310 = vmatprep.subr.mxu0 0.0
        %1311 = vmatpush1.msra.mxu0 0.0
        %1312 = vmatprep.subr.mxu0 0.0
        %1313 = vmatpush1.msra.mxu0 0.0
        %1314 = vmatprep.subr.mxu0 0.0
        %1315 = vmatpush1.msra.mxu0 0.0
        %1316 = vmatprep.subr.mxu0 0.0
        %1317 = vmatpush1.msra.mxu0 0.0
        %1318 = vmatprep.subr.mxu0 0.0
        %1319 = vmatpush1.msra.mxu0 0.0
        %1320 = vmatprep.subr.mxu0 0.0
        %1321 = vmatpush1.msra.mxu0 0.0
        %1322 = vmatprep.subr.mxu0 0.0
        %1323 = vmatpush1.msra.mxu0 0.0
        %1324 = vmatprep.subr.mxu0 0.0
        %1325 = vmatpush1.msra.mxu0 0.0
        %1326 = vmatprep.subr.mxu0 0.0
        %1327 = vmatpush1.msra.mxu0 0.0
        %1328 = vmatprep.subr.mxu0 0.0
        %1329 = vmatpush1.msra.mxu0 0.0
        %1330 = vmatprep.subr.mxu0 0.0
        %1331 = vmatpush1.msra.mxu0 0.0
        %1332 = vmatprep.subr.mxu0 0.0
        %1333 = vmatpush1.msra.mxu0 0.0
        %1334 = vmatprep.subr.mxu0 0.0
        %1335 = vmatpush1.msra.mxu0 0.0
        %1336 = vmatprep.subr.mxu0 0.0
        %1337 = vmatpush1.msra.mxu0 0.0
        %1338 = vmatprep.subr.mxu0 0.0
        %1339 = vmatpush1.msra.mxu0 0.0
        %1340 = vmatprep.subr.mxu0 0.0
        %1341 = vmatpush1.msra.mxu0 0.0
        %1342 = vmatprep.mubr.f32.mxu0 0.0
        %1343 = vmatmul.mubr.f32.gmra.mrb[0].mxu0 %v1276
        %v1344 = vpop.f32.mrb[0].mxu0
        %v1345 = vadd.f32 0.0, %v1344
        %v1346 = vpop.f32.mrb[0].mxu0
        %1347 = vdwg.mxu0
        %v1348 = vlaneseq
        %v1349 = vshrl.u32 %v1348, 7
        %v1350 = vlaneseq
        %v1351 = vand.u32 %v1350, 127
        %v1352 = vadd.s32 %v1349, 4294967295
        %vm1353 = vcmp.eq.s32.totalorder %v1351, %v1352
        %v1354 = vsel %vm1353, 1.0, 0.0
        %s1355 = scalar_lea.vmem %s5, 16
        %v1356 = vld [vmem:[%s1355] sm:$0xff]
        %v1357 = vld [vmem:[%s1355 + $0x8] sm:$0xff]
        %1358 = vmatprep.subr.mxu0 0.0
        %1359 = vmatpush1.msra.mxu0 %v1356
        %1360 = vmatprep.subr.mxu0 0.0
        %1361 = vmatpush1.msra.mxu0 %v1357
        %1362 = vmatprep.subr.mxu0 0.0
        %1363 = vmatpush1.msra.mxu0 0.0
        %1364 = vmatprep.subr.mxu0 0.0
        %1365 = vmatpush1.msra.mxu0 0.0
        %1366 = vmatprep.subr.mxu0 0.0
        %1367 = vmatpush1.msra.mxu0 0.0
        %1368 = vmatprep.subr.mxu0 0.0
        %1369 = vmatpush1.msra.mxu0 0.0
        %1370 = vmatprep.subr.mxu0 0.0
        %1371 = vmatpush1.msra.mxu0 0.0
        %1372 = vmatprep.subr.mxu0 0.0
        %1373 = vmatpush1.msra.mxu0 0.0
        %1374 = vmatprep.subr.mxu0 0.0
        %1375 = vmatpush1.msra.mxu0 0.0
        %1376 = vmatprep.subr.mxu0 0.0
        %1377 = vmatpush1.msra.mxu0 0.0
        %1378 = vmatprep.subr.mxu0 0.0
        %1379 = vmatpush1.msra.mxu0 0.0
        %1380 = vmatprep.subr.mxu0 0.0
        %1381 = vmatpush1.msra.mxu0 0.0
        %1382 = vmatprep.subr.mxu0 0.0
        %1383 = vmatpush1.msra.mxu0 0.0
        %1384 = vmatprep.subr.mxu0 0.0
        %1385 = vmatpush1.msra.mxu0 0.0
        %1386 = vmatprep.subr.mxu0 0.0
        %1387 = vmatpush1.msra.mxu0 0.0
        %1388 = vmatprep.subr.mxu0 0.0
        %1389 = vmatpush1.msra.mxu0 0.0
        %1390 = vmatprep.subr.mxu0 0.0
        %1391 = vmatpush1.msra.mxu0 0.0
        %1392 = vmatprep.subr.mxu0 0.0
        %1393 = vmatpush1.msra.mxu0 0.0
        %1394 = vmatprep.subr.mxu0 0.0
        %1395 = vmatpush1.msra.mxu0 0.0
        %1396 = vmatprep.subr.mxu0 0.0
        %1397 = vmatpush1.msra.mxu0 0.0
        %1398 = vmatprep.subr.mxu0 0.0
        %1399 = vmatpush1.msra.mxu0 0.0
        %1400 = vmatprep.subr.mxu0 0.0
        %1401 = vmatpush1.msra.mxu0 0.0
        %1402 = vmatprep.subr.mxu0 0.0
        %1403 = vmatpush1.msra.mxu0 0.0
        %1404 = vmatprep.subr.mxu0 0.0
        %1405 = vmatpush1.msra.mxu0 0.0
        %1406 = vmatprep.subr.mxu0 0.0
        %1407 = vmatpush1.msra.mxu0 0.0
        %1408 = vmatprep.subr.mxu0 0.0
        %1409 = vmatpush1.msra.mxu0 0.0
        %1410 = vmatprep.subr.mxu0 0.0
        %1411 = vmatpush1.msra.mxu0 0.0
        %1412 = vmatprep.subr.mxu0 0.0
        %1413 = vmatpush1.msra.mxu0 0.0
        %1414 = vmatprep.subr.mxu0 0.0
        %1415 = vmatpush1.msra.mxu0 0.0
        %1416 = vmatprep.subr.mxu0 0.0
        %1417 = vmatpush1.msra.mxu0 0.0
        %1418 = vmatprep.subr.mxu0 0.0
        %1419 = vmatpush1.msra.mxu0 0.0
        %1420 = vmatprep.subr.mxu0 0.0
        %1421 = vmatpush1.msra.mxu0 0.0
        %1422 = vmatprep.mubr.f32.mxu0 0.0
        %1423 = vmatmul.mubr.f32.gmra.mrb[0].mxu0 %v1276
        %v1424 = vpop.f32.mrb[0].mxu0
        %v1425 = vadd.f32 0.0, %v1424
        %v1426 = vpop.f32.mrb[0].mxu0
        %1427 = vdwg.mxu0
        %vm1428 = vcmp.eq.s32.totalorder %v1351, %v1349
        %v1429 = vsel %vm1428, 1.0, 0.0
        %vm1430 = vcmask 64512
        %v1432 = vsel %vm1430, %v1429, 0
        %1434 = vmatprep.subr.mxu0 0.0
        %1435 = vmatpush1.msra.mxu0 %v1425
        %1436 = vmatprep.subr.mxu0 0.0
        %1437 = vmatpush1.msra.mxu0 0.0
        %1438 = vmatprep.subr.mxu0 0.0
        %1439 = vmatpush1.msra.mxu0 0.0
        %1440 = vmatprep.subr.mxu0 0.0
        %1441 = vmatpush1.msra.mxu0 0.0
        %1442 = vmatprep.subr.mxu0 0.0
        %1443 = vmatpush1.msra.mxu0 0.0
        %1444 = vmatprep.subr.mxu0 0.0
        %1445 = vmatpush1.msra.mxu0 0.0
        %1446 = vmatprep.subr.mxu0 0.0
        %1447 = vmatpush1.msra.mxu0 0.0
        %1448 = vmatprep.subr.mxu0 0.0
        %1449 = vmatpush1.msra.mxu0 0.0
        %1450 = vmatprep.subr.mxu0 0.0
        %1451 = vmatpush1.msra.mxu0 0.0
        %1452 = vmatprep.subr.mxu0 0.0
        %1453 = vmatpush1.msra.mxu0 0.0
        %1454 = vmatprep.subr.mxu0 0.0
        %1455 = vmatpush1.msra.mxu0 0.0
        %1456 = vmatprep.subr.mxu0 0.0
        %1457 = vmatpush1.msra.mxu0 0.0
        %1458 = vmatprep.subr.mxu0 0.0
        %1459 = vmatpush1.msra.mxu0 0.0
        %1460 = vmatprep.subr.mxu0 0.0
        %1461 = vmatpush1.msra.mxu0 0.0
        %1462 = vmatprep.subr.mxu0 0.0
        %1463 = vmatpush1.msra.mxu0 0.0
        %1464 = vmatprep.subr.mxu0 0.0
        %1465 = vmatpush1.msra.mxu0 0.0
        %1466 = vmatprep.subr.mxu0 0.0
        %1467 = vmatpush1.msra.mxu0 0.0
        %1468 = vmatprep.subr.mxu0 0.0
        %1469 = vmatpush1.msra.mxu0 0.0
        %1470 = vmatprep.subr.mxu0 0.0
        %1471 = vmatpush1.msra.mxu0 0.0
        %1472 = vmatprep.subr.mxu0 0.0
        %1473 = vmatpush1.msra.mxu0 0.0
        %1474 = vmatprep.subr.mxu0 0.0
        %1475 = vmatpush1.msra.mxu0 0.0
        %1476 = vmatprep.subr.mxu0 0.0
        %1477 = vmatpush1.msra.mxu0 0.0
        %1478 = vmatprep.subr.mxu0 0.0
        %1479 = vmatpush1.msra.mxu0 0.0
        %1480 = vmatprep.subr.mxu0 0.0
        %1481 = vmatpush1.msra.mxu0 0.0
        %1482 = vmatprep.subr.mxu0 0.0
        %1483 = vmatpush1.msra.mxu0 0.0
        %1484 = vmatprep.subr.mxu0 0.0
        %1485 = vmatpush1.msra.mxu0 0.0
        %1486 = vmatprep.subr.mxu0 0.0
        %1487 = vmatpush1.msra.mxu0 0.0
        %1488 = vmatprep.subr.mxu0 0.0
        %1489 = vmatpush1.msra.mxu0 0.0
        %1490 = vmatprep.subr.mxu0 0.0
        %1491 = vmatpush1.msra.mxu0 0.0
        %1492 = vmatprep.subr.mxu0 0.0
        %1493 = vmatpush1.msra.mxu0 0.0
        %1494 = vmatprep.subr.mxu0 0.0
        %1495 = vmatpush1.msra.mxu0 0.0
        %1496 = vmatprep.subr.mxu0 0.0
        %1497 = vmatpush1.msra.mxu0 0.0
        %1498 = vmatprep.mubr.f32.mxu0 0.0
        %1499 = vmatmul.mubr.f32.gmra.mrb[0].mxu0 %v1432
        %v1500 = vpop.f32.mrb[0].mxu0
        %v1501 = vadd.f32 0.0, %v1500
        %v1502 = vpop.f32.mrb[0].mxu0
        %1503 = vdwg.mxu0
        %v1505 = vsel %vm1430, %v1354, 0
        %1507 = vmatprep.subr.mxu0 0.0
        %1508 = vmatpush1.msra.mxu0 %v1345
        %1509 = vmatprep.subr.mxu0 0.0
        %1510 = vmatpush1.msra.mxu0 0.0
        %1511 = vmatprep.subr.mxu0 0.0
        %1512 = vmatpush1.msra.mxu0 0.0
        %1513 = vmatprep.subr.mxu0 0.0
        %1514 = vmatpush1.msra.mxu0 0.0
        %1515 = vmatprep.subr.mxu0 0.0
        %1516 = vmatpush1.msra.mxu0 0.0
        %1517 = vmatprep.subr.mxu0 0.0
        %1518 = vmatpush1.msra.mxu0 0.0
        %1519 = vmatprep.subr.mxu0 0.0
        %1520 = vmatpush1.msra.mxu0 0.0
        %1521 = vmatprep.subr.mxu0 0.0
        %1522 = vmatpush1.msra.mxu0 0.0
        %1523 = vmatprep.subr.mxu0 0.0
        %1524 = vmatpush1.msra.mxu0 0.0
        %1525 = vmatprep.subr.mxu0 0.0
        %1526 = vmatpush1.msra.mxu0 0.0
        %1527 = vmatprep.subr.mxu0 0.0
        %1528 = vmatpush1.msra.mxu0 0.0
        %1529 = vmatprep.subr.mxu0 0.0
        %1530 = vmatpush1.msra.mxu0 0.0
        %1531 = vmatprep.subr.mxu0 0.0
        %1532 = vmatpush1.msra.mxu0 0.0
        %1533 = vmatprep.subr.mxu0 0.0
        %1534 = vmatpush1.msra.mxu0 0.0
        %1535 = vmatprep.subr.mxu0 0.0
        %1536 = vmatpush1.msra.mxu0 0.0
        %1537 = vmatprep.subr.mxu0 0.0
        %1538 = vmatpush1.msra.mxu0 0.0
        %1539 = vmatprep.subr.mxu0 0.0
        %1540 = vmatpush1.msra.mxu0 0.0
        %1541 = vmatprep.subr.mxu0 0.0
        %1542 = vmatpush1.msra.mxu0 0.0
        %1543 = vmatprep.subr.mxu0 0.0
        %1544 = vmatpush1.msra.mxu0 0.0
        %1545 = vmatprep.subr.mxu0 0.0
        %1546 = vmatpush1.msra.mxu0 0.0
        %1547 = vmatprep.subr.mxu0 0.0
        %1548 = vmatpush1.msra.mxu0 0.0
        %1549 = vmatprep.subr.mxu0 0.0
        %1550 = vmatpush1.msra.mxu0 0.0
        %1551 = vmatprep.subr.mxu0 0.0
        %1552 = vmatpush1.msra.mxu0 0.0
        %1553 = vmatprep.subr.mxu0 0.0
        %1554 = vmatpush1.msra.mxu0 0.0
        %1555 = vmatprep.subr.mxu0 0.0
        %1556 = vmatpush1.msra.mxu0 0.0
        %1557 = vmatprep.subr.mxu0 0.0
        %1558 = vmatpush1.msra.mxu0 0.0
        %1559 = vmatprep.subr.mxu0 0.0
        %1560 = vmatpush1.msra.mxu0 0.0
        %1561 = vmatprep.subr.mxu0 0.0
        %1562 = vmatpush1.msra.mxu0 0.0
        %1563 = vmatprep.subr.mxu0 0.0
        %1564 = vmatpush1.msra.mxu0 0.0
        %1565 = vmatprep.subr.mxu0 0.0
        %1566 = vmatpush1.msra.mxu0 0.0
        %1567 = vmatprep.subr.mxu0 0.0
        %1568 = vmatpush1.msra.mxu0 0.0
        %1569 = vmatprep.subr.mxu0 0.0
        %1570 = vmatpush1.msra.mxu0 0.0
        %1571 = vmatprep.mubr.f32.mxu0 0.0
        %1572 = vmatmul.mubr.f32.gmra.mrb[0].mxu0 %v1505
        %v1573 = vpop.f32.mrb[0].mxu0
        %v1574 = vadd.f32 %v1501, %v1573
        %v1575 = vpop.f32.mrb[0].mxu0
        %1576 = vdwg.mxu0
        %s1577 = scalar_lea.vmem %s5, 32
        %v1578 = vld [vmem:[%s1577] sm:$0xff]
        %v1579 = vld [vmem:[%s1577 + $0x8] sm:$0xff]
        %1580 = vmatprep.subr.mxu0 0.0
        %1581 = vmatpush1.msra.mxu0 %v1578
        %1582 = vmatprep.subr.mxu0 0.0
        %1583 = vmatpush1.msra.mxu0 %v1579
        %1584 = vmatprep.subr.mxu0 0.0
        %1585 = vmatpush1.msra.mxu0 0.0
        %1586 = vmatprep.subr.mxu0 0.0
        %1587 = vmatpush1.msra.mxu0 0.0
        %1588 = vmatprep.subr.mxu0 0.0
        %1589 = vmatpush1.msra.mxu0 0.0
        %1590 = vmatprep.subr.mxu0 0.0
        %1591 = vmatpush1.msra.mxu0 0.0
        %1592 = vmatprep.subr.mxu0 0.0
        %1593 = vmatpush1.msra.mxu0 0.0
        %1594 = vmatprep.subr.mxu0 0.0
        %1595 = vmatpush1.msra.mxu0 0.0
        %1596 = vmatprep.subr.mxu0 0.0
        %1597 = vmatpush1.msra.mxu0 0.0
        %1598 = vmatprep.subr.mxu0 0.0
        %1599 = vmatpush1.msra.mxu0 0.0
        %1600 = vmatprep.subr.mxu0 0.0
        %1601 = vmatpush1.msra.mxu0 0.0
        %1602 = vmatprep.subr.mxu0 0.0
        %1603 = vmatpush1.msra.mxu0 0.0
        %1604 = vmatprep.subr.mxu0 0.0
        %1605 = vmatpush1.msra.mxu0 0.0
        %1606 = vmatprep.subr.mxu0 0.0
        %1607 = vmatpush1.msra.mxu0 0.0
        %1608 = vmatprep.subr.mxu0 0.0
        %1609 = vmatpush1.msra.mxu0 0.0
        %1610 = vmatprep.subr.mxu0 0.0
        %1611 = vmatpush1.msra.mxu0 0.0
        %1612 = vmatprep.subr.mxu0 0.0
        %1613 = vmatpush1.msra.mxu0 0.0
        %1614 = vmatprep.subr.mxu0 0.0
        %1615 = vmatpush1.msra.mxu0 0.0
        %1616 = vmatprep.subr.mxu0 0.0
        %1617 = vmatpush1.msra.mxu0 0.0
        %1618 = vmatprep.subr.mxu0 0.0
        %1619 = vmatpush1.msra.mxu0 0.0
        %1620 = vmatprep.subr.mxu0 0.0
        %1621 = vmatpush1.msra.mxu0 0.0
        %1622 = vmatprep.subr.mxu0 0.0
        %1623 = vmatpush1.msra.mxu0 0.0
        %1624 = vmatprep.subr.mxu0 0.0
        %1625 = vmatpush1.msra.mxu0 0.0
        %1626 = vmatprep.subr.mxu0 0.0
        %1627 = vmatpush1.msra.mxu0 0.0
        %1628 = vmatprep.subr.mxu0 0.0
        %1629 = vmatpush1.msra.mxu0 0.0
        %1630 = vmatprep.subr.mxu0 0.0
        %1631 = vmatpush1.msra.mxu0 0.0
        %1632 = vmatprep.subr.mxu0 0.0
        %1633 = vmatpush1.msra.mxu0 0.0
        %1634 = vmatprep.subr.mxu0 0.0
        %1635 = vmatpush1.msra.mxu0 0.0
        %1636 = vmatprep.subr.mxu0 0.0
        %1637 = vmatpush1.msra.mxu0 0.0
        %1638 = vmatprep.subr.mxu0 0.0
        %1639 = vmatpush1.msra.mxu0 0.0
        %1640 = vmatprep.subr.mxu0 0.0
        %1641 = vmatpush1.msra.mxu0 0.0
        %1642 = vmatprep.subr.mxu0 0.0
        %1643 = vmatpush1.msra.mxu0 0.0
        %1644 = vmatprep.mubr.f32.mxu0 0.0
        %1645 = vmatmul.mubr.f32.gmra.mrb[0].mxu0 %v1276
        %v1646 = vpop.f32.mrb[0].mxu0
        %v1647 = vadd.f32 0.0, %v1646
        %v1648 = vpop.f32.mrb[0].mxu0
        %1649 = vdwg.mxu0
        %v1650 = vadd.s32 %v1349, 1
        %vm1651 = vcmp.eq.s32.totalorder %v1351, %v1650
        %v1652 = vsel %vm1651, 1.0, 0.0
        %v1654 = vsel %vm1430, %v1652, 0
        %1656 = vmatprep.subr.mxu0 0.0
        %1657 = vmatpush1.msra.mxu0 %v1647
        %1658 = vmatprep.subr.mxu0 0.0
        %1659 = vmatpush1.msra.mxu0 0.0
        %1660 = vmatprep.subr.mxu0 0.0
        %1661 = vmatpush1.msra.mxu0 0.0
        %1662 = vmatprep.subr.mxu0 0.0
        %1663 = vmatpush1.msra.mxu0 0.0
        %1664 = vmatprep.subr.mxu0 0.0
        %1665 = vmatpush1.msra.mxu0 0.0
        %1666 = vmatprep.subr.mxu0 0.0
        %1667 = vmatpush1.msra.mxu0 0.0
        %1668 = vmatprep.subr.mxu0 0.0
        %1669 = vmatpush1.msra.mxu0 0.0
        %1670 = vmatprep.subr.mxu0 0.0
        %1671 = vmatpush1.msra.mxu0 0.0
        %1672 = vmatprep.subr.mxu0 0.0
        %1673 = vmatpush1.msra.mxu0 0.0
        %1674 = vmatprep.subr.mxu0 0.0
        %1675 = vmatpush1.msra.mxu0 0.0
        %1676 = vmatprep.subr.mxu0 0.0
        %1677 = vmatpush1.msra.mxu0 0.0
        %1678 = vmatprep.subr.mxu0 0.0
        %1679 = vmatpush1.msra.mxu0 0.0
        %1680 = vmatprep.subr.mxu0 0.0
        %1681 = vmatpush1.msra.mxu0 0.0
        %1682 = vmatprep.subr.mxu0 0.0
        %1683 = vmatpush1.msra.mxu0 0.0
        %1684 = vmatprep.subr.mxu0 0.0
        %1685 = vmatpush1.msra.mxu0 0.0
        %1686 = vmatprep.subr.mxu0 0.0
        %1687 = vmatpush1.msra.mxu0 0.0
        %1688 = vmatprep.subr.mxu0 0.0
        %1689 = vmatpush1.msra.mxu0 0.0
        %1690 = vmatprep.subr.mxu0 0.0
        %1691 = vmatpush1.msra.mxu0 0.0
        %1692 = vmatprep.subr.mxu0 0.0
        %1693 = vmatpush1.msra.mxu0 0.0
        %1694 = vmatprep.subr.mxu0 0.0
        %1695 = vmatpush1.msra.mxu0 0.0
        %1696 = vmatprep.subr.mxu0 0.0
        %1697 = vmatpush1.msra.mxu0 0.0
        %1698 = vmatprep.subr.mxu0 0.0
        %1699 = vmatpush1.msra.mxu0 0.0
        %1700 = vmatprep.subr.mxu0 0.0
        %1701 = vmatpush1.msra.mxu0 0.0
        %1702 = vmatprep.subr.mxu0 0.0
        %1703 = vmatpush1.msra.mxu0 0.0
        %1704 = vmatprep.subr.mxu0 0.0
        %1705 = vmatpush1.msra.mxu0 0.0
        %1706 = vmatprep.subr.mxu0 0.0
        %1707 = vmatpush1.msra.mxu0 0.0
        %1708 = vmatprep.subr.mxu0 0.0
        %1709 = vmatpush1.msra.mxu0 0.0
        %1710 = vmatprep.subr.mxu0 0.0
        %1711 = vmatpush1.msra.mxu0 0.0
        %1712 = vmatprep.subr.mxu0 0.0
        %1713 = vmatpush1.msra.mxu0 0.0
        %1714 = vmatprep.subr.mxu0 0.0
        %1715 = vmatpush1.msra.mxu0 0.0
        %1716 = vmatprep.subr.mxu0 0.0
        %1717 = vmatpush1.msra.mxu0 0.0
        %1718 = vmatprep.subr.mxu0 0.0
        %1719 = vmatpush1.msra.mxu0 0.0
        %1720 = vmatprep.mubr.f32.mxu0 0.0
        %1721 = vmatmul.mubr.f32.gmra.mrb[0].mxu0 %v1654
        %v1722 = vpop.f32.mrb[0].mxu0
        %v1723 = vadd.f32 0.0, %v1722
        %v1724 = vpop.f32.mrb[0].mxu0
        %1725 = vdwg.mxu0
        %v1726 = vadd.f32 %v1574, %v1723
        %v1727 = vld [vmem:[%s1270] sm:$0xff]
        %v1728 = vadd.f32 %v1726, %v1727
        %v1729 = vld [vmem:[#allocation3] sm:$0xff]
        %v1730 = vld [vmem:[#allocation3 + $0x8] sm:$0xff]
        %v1731 = vld [vmem:[#allocation3 + $0x10] sm:$0xff]
        %v1732 = vld [vmem:[#allocation3 + $0x18] sm:$0xff]
        %v1733 = vld [vmem:[#allocation3 + $0x20] sm:$0xff]
        %v1734 = vld [vmem:[#allocation3 + $0x28] sm:$0xff]
        %v1735 = vld [vmem:[#allocation3 + $0x30] sm:$0xff]
        %v1736 = vld [vmem:[#allocation3 + $0x38] sm:$0xff]
        %v1737 = vld [vmem:[#allocation3 + $0x40] sm:$0xff]
        %v1738 = vld [vmem:[#allocation3 + $0x48] sm:$0xff]
        %v1739 = vld [vmem:[#allocation3 + $0x50] sm:$0xff]
        %v1740 = vld [vmem:[#allocation3 + $0x58] sm:$0xff]
        %v1741 = vld [vmem:[#allocation3 + $0x60] sm:$0xff]
        %v1742 = vld [vmem:[#allocation3 + $0x68] sm:$0xff]
        %v1743 = vld [vmem:[#allocation3 + $0x70] sm:$0xff]
        %v1744 = vld [vmem:[#allocation3 + $0x78] sm:$0xff]
        %v1745 = vrot.slane %v1728, 4
        %v1746 = vadd.f32 %v1728, %v1745
        %v1747 = vrot.slane %v1746, 2
        %v1748 = vadd.f32 %v1746, %v1747
        %v1749 = vrot.slane %v1748, 1
        %v1750 = vadd.f32 %v1748, %v1749
        %1751 = vmatprep.subr.mxu0 0.0
        %1752 = vmatpush1.msra.mxu0 %v1729
        %1753 = vmatprep.subr.mxu0 0.0
        %1754 = vmatpush1.msra.mxu0 %v1730
        %1755 = vmatprep.subr.mxu0 0.0
        %1756 = vmatpush1.msra.mxu0 %v1731
        %1757 = vmatprep.subr.mxu0 0.0
        %1758 = vmatpush1.msra.mxu0 %v1732
        %1759 = vmatprep.subr.mxu0 0.0
        %1760 = vmatpush1.msra.mxu0 %v1733
        %1761 = vmatprep.subr.mxu0 0.0
        %1762 = vmatpush1.msra.mxu0 %v1734
        %1763 = vmatprep.subr.mxu0 0.0
        %1764 = vmatpush1.msra.mxu0 %v1735
        %1765 = vmatprep.subr.mxu0 0.0
        %1766 = vmatpush1.msra.mxu0 %v1736
        %1767 = vmatprep.subr.mxu0 0.0
        %1768 = vmatpush1.msra.mxu0 %v1737
        %1769 = vmatprep.subr.mxu0 0.0
        %1770 = vmatpush1.msra.mxu0 %v1738
        %1771 = vmatprep.subr.mxu0 0.0
        %1772 = vmatpush1.msra.mxu0 %v1739
        %1773 = vmatprep.subr.mxu0 0.0
        %1774 = vmatpush1.msra.mxu0 %v1740
        %1775 = vmatprep.subr.mxu0 0.0
        %1776 = vmatpush1.msra.mxu0 %v1741
        %1777 = vmatprep.subr.mxu0 0.0
        %1778 = vmatpush1.msra.mxu0 %v1742
        %1779 = vmatprep.subr.mxu0 0.0
        %1780 = vmatpush1.msra.mxu0 %v1743
        %1781 = vmatprep.subr.mxu0 0.0
        %1782 = vmatpush1.msra.mxu0 %v1744
        %1783 = vmatprep.subr.mxu0 0.0
        %1784 = vmatpush1.msra.mxu0 0.0
        %1785 = vmatprep.subr.mxu0 0.0
        %1786 = vmatpush1.msra.mxu0 0.0
        %1787 = vmatprep.subr.mxu0 0.0
        %1788 = vmatpush1.msra.mxu0 0.0
        %1789 = vmatprep.subr.mxu0 0.0
        %1790 = vmatpush1.msra.mxu0 0.0
        %1791 = vmatprep.subr.mxu0 0.0
        %1792 = vmatpush1.msra.mxu0 0.0
        %1793 = vmatprep.subr.mxu0 0.0
        %1794 = vmatpush1.msra.mxu0 0.0
        %1795 = vmatprep.subr.mxu0 0.0
        %1796 = vmatpush1.msra.mxu0 0.0
        %1797 = vmatprep.subr.mxu0 0.0
        %1798 = vmatpush1.msra.mxu0 0.0
        %1799 = vmatprep.subr.mxu0 0.0
        %1800 = vmatpush1.msra.mxu0 0.0
        %1801 = vmatprep.subr.mxu0 0.0
        %1802 = vmatpush1.msra.mxu0 0.0
        %1803 = vmatprep.subr.mxu0 0.0
        %1804 = vmatpush1.msra.mxu0 0.0
        %1805 = vmatprep.subr.mxu0 0.0
        %1806 = vmatpush1.msra.mxu0 0.0
        %1807 = vmatprep.subr.mxu0 0.0
        %1808 = vmatpush1.msra.mxu0 0.0
        %1809 = vmatprep.subr.mxu0 0.0
        %1810 = vmatpush1.msra.mxu0 0.0
        %1811 = vmatprep.subr.mxu0 0.0
        %1812 = vmatpush1.msra.mxu0 0.0
        %1813 = vmatprep.subr.mxu0 0.0
        %1814 = vmatpush1.msra.mxu0 0.0
        %1815 = vmatprep.mubr.f32.mxu0 0.0
        %1816 = vmatmul.mubr.f32.gmra.mrb[0].mxu0 %v1750
        %v1817 = vpop.f32.mrb[0].mxu0
        %v1818 = vadd.f32 0.0, %v1817
        %v1819 = vpop.f32.mrb[0].mxu0
        %1820 = vdwg.mxu0
        %v1821 = vlaneseq
        %v1822 = vshrl.u32 %v1821, 7
        %v1823 = vsub.s32 0, %v1822
        %v1824 = vrot.slane %v1818, %v1823
        %v1825 = vsub.f32 %v1728, %v1824
        %v1826 = vmul.f32 %v1825, %v1825
        %v1827 = vrot.slane %v1826, 4
        %v1828 = vadd.f32 %v1826, %v1827
        %v1829 = vrot.slane %v1828, 2
        %v1830 = vadd.f32 %v1828, %v1829
        %v1831 = vrot.slane %v1830, 1
        %v1832 = vadd.f32 %v1830, %v1831
        %1833 = vmatprep.subr.mxu0 0.0
        %1834 = vmatpush1.msra.mxu0 %v1729
        %1835 = vmatprep.subr.mxu0 0.0
        %1836 = vmatpush1.msra.mxu0 %v1730
        %1837 = vmatprep.subr.mxu0 0.0
        %1838 = vmatpush1.msra.mxu0 %v1731
        %1839 = vmatprep.subr.mxu0 0.0
        %1840 = vmatpush1.msra.mxu0 %v1732
        %1841 = vmatprep.subr.mxu0 0.0
        %1842 = vmatpush1.msra.mxu0 %v1733
        %1843 = vmatprep.subr.mxu0 0.0
        %1844 = vmatpush1.msra.mxu0 %v1734
        %1845 = vmatprep.subr.mxu0 0.0
        %1846 = vmatpush1.msra.mxu0 %v1735
        %1847 = vmatprep.subr.mxu0 0.0
        %1848 = vmatpush1.msra.mxu0 %v1736
        %1849 = vmatprep.subr.mxu0 0.0
        %1850 = vmatpush1.msra.mxu0 %v1737
        %1851 = vmatprep.subr.mxu0 0.0
        %1852 = vmatpush1.msra.mxu0 %v1738
        %1853 = vmatprep.subr.mxu0 0.0
        %1854 = vmatpush1.msra.mxu0 %v1739
        %1855 = vmatprep.subr.mxu0 0.0
        %1856 = vmatpush1.msra.mxu0 %v1740
        %1857 = vmatprep.subr.mxu0 0.0
        %1858 = vmatpush1.msra.mxu0 %v1741
        %1859 = vmatprep.subr.mxu0 0.0
        %1860 = vmatpush1.msra.mxu0 %v1742
        %1861 = vmatprep.subr.mxu0 0.0
        %1862 = vmatpush1.msra.mxu0 %v1743
        %1863 = vmatprep.subr.mxu0 0.0
        %1864 = vmatpush1.msra.mxu0 %v1744
        %1865 = vmatprep.subr.mxu0 0.0
        %1866 = vmatpush1.msra.mxu0 0.0
        %1867 = vmatprep.subr.mxu0 0.0
        %1868 = vmatpush1.msra.mxu0 0.0
        %1869 = vmatprep.subr.mxu0 0.0
        %1870 = vmatpush1.msra.mxu0 0.0
        %1871 = vmatprep.subr.mxu0 0.0
        %1872 = vmatpush1.msra.mxu0 0.0
        %1873 = vmatprep.subr.mxu0 0.0
        %1874 = vmatpush1.msra.mxu0 0.0
        %1875 = vmatprep.subr.mxu0 0.0
        %1876 = vmatpush1.msra.mxu0 0.0
        %1877 = vmatprep.subr.mxu0 0.0
        %1878 = vmatpush1.msra.mxu0 0.0
        %1879 = vmatprep.subr.mxu0 0.0
        %1880 = vmatpush1.msra.mxu0 0.0
        %1881 = vmatprep.subr.mxu0 0.0
        %1882 = vmatpush1.msra.mxu0 0.0
        %1883 = vmatprep.subr.mxu0 0.0
        %1884 = vmatpush1.msra.mxu0 0.0
        %1885 = vmatprep.subr.mxu0 0.0
        %1886 = vmatpush1.msra.mxu0 0.0
        %1887 = vmatprep.subr.mxu0 0.0
        %1888 = vmatpush1.msra.mxu0 0.0
        %1889 = vmatprep.subr.mxu0 0.0
        %1890 = vmatpush1.msra.mxu0 0.0
        %1891 = vmatprep.subr.mxu0 0.0
        %1892 = vmatpush1.msra.mxu0 0.0
        %1893 = vmatprep.subr.mxu0 0.0
        %1894 = vmatpush1.msra.mxu0 0.0
        %1895 = vmatprep.subr.mxu0 0.0
        %1896 = vmatpush1.msra.mxu0 0.0
        %1897 = vmatprep.mubr.f32.mxu0 0.0
        %1898 = vmatmul.mubr.f32.gmra.mrb[0].mxu0 %v1832
        %v1899 = vpop.f32.mrb[0].mxu0
        %v1900 = vadd.f32 1e-05, %v1899
        %v1901 = vpop.f32.mrb[0].mxu0
        %1902 = vdwg.mxu0
        %v1903 = vrsqrt.pop %v1900
        %v1904 = vlaneseq
        %v1905 = vshrl.u32 %v1904, 7
        %v1906 = vsub.s32 0, %v1905
        %v1907 = vrot.slane %v1903, %v1906
        %v1908 = vmul.f32 %v1825, %v1907
        %v1909 = vld [vmem:[%s9] sm:$0x1]
        %v1911 = vlaneseq
        %v1912 = vshrl.u32 %v1911, 7
        %v1913 = vsub.s32 0, %v1912
        %v1914 = vrot.slane %v1909, %v1913
        %v1916 = vmul.f32 %v1908, %v1914
        %v1917 = vld [vmem:[%s11] sm:$0x1]
        %v1919 = vlaneseq
        %v1920 = vshrl.u32 %v1919, 7
        %v1921 = vsub.s32 0, %v1920
        %v1922 = vrot.slane %v1917, %v1921
        %v1924 = vadd.f32 %v1916, %v1922
        %vm1925 = vcmp.gt.f32.partialorder %v1924, 0.0
        %v1926 = vmul.f32 %v1924, 0.01
        %v1927 = vsel %vm1925, %v1924, %v1926
        %1928 = vst [vmem:[#allocation2] sm:$0xff] 0.0
        %1929 = vst [vmem:[#allocation2 + $0x8] sm:$0xff] 0.0
        %1930 = vst [vmem:[#allocation2 + $0x1] sm:$0xff] %v1927
        %v1931 = vld [vmem:[#allocation2] sm:$0x7f]
        %v1932 = vld [vmem:[%s13] sm:$0xff]
        %v1933 = vld [vmem:[%s13 + $0x8] sm:$0xff]
        %v1934 = vld [vmem:[%s13 + $0x10] sm:$0xff]
        %v1935 = vld [vmem:[%s13 + $0x18] sm:$0xff]
        %v1936 = vld [vmem:[%s13 + $0x20] sm:$0xff]
        %v1937 = vld [vmem:[%s13 + $0x28] sm:$0xff]
        %v1938 = vld [vmem:[%s13 + $0x30] sm:$0xff]
        %v1939 = vld [vmem:[%s13 + $0x38] sm:$0xff]
        %v1940 = vld [vmem:[%s13 + $0x40] sm:$0xff]
        %v1941 = vld [vmem:[%s13 + $0x48] sm:$0xff]
        %v1942 = vld [vmem:[%s13 + $0x50] sm:$0xff]
        %v1943 = vld [vmem:[%s13 + $0x58] sm:$0xff]
        %v1944 = vld [vmem:[%s13 + $0x60] sm:$0xff]
        %v1945 = vld [vmem:[%s13 + $0x68] sm:$0xff]
        %v1946 = vld [vmem:[%s13 + $0x70] sm:$0xff]
        %v1947 = vld [vmem:[%s13 + $0x78] sm:$0xff]
        %v1948 = vld [vmem:[#allocation2 + $0x1] sm:$0x7f]
        %s1949 = scalar_lea.vmem %s13, 128
        %v1950 = vld [vmem:[%s1949] sm:$0xff]
        %v1951 = vld [vmem:[%s1949 + $0x8] sm:$0xff]
        %v1952 = vld [vmem:[%s1949 + $0x10] sm:$0xff]
        %v1953 = vld [vmem:[%s1949 + $0x18] sm:$0xff]
        %v1954 = vld [vmem:[%s1949 + $0x20] sm:$0xff]
        %v1955 = vld [vmem:[%s1949 + $0x28] sm:$0xff]
        %v1956 = vld [vmem:[%s1949 + $0x30] sm:$0xff]
        %v1957 = vld [vmem:[%s1949 + $0x38] sm:$0xff]
        %v1958 = vld [vmem:[%s1949 + $0x40] sm:$0xff]
        %v1959 = vld [vmem:[%s1949 + $0x48] sm:$0xff]
        %v1960 = vld [vmem:[%s1949 + $0x50] sm:$0xff]
        %v1961 = vld [vmem:[%s1949 + $0x58] sm:$0xff]
        %v1962 = vld [vmem:[%s1949 + $0x60] sm:$0xff]
        %v1963 = vld [vmem:[%s1949 + $0x68] sm:$0xff]
        %v1964 = vld [vmem:[%s1949 + $0x70] sm:$0xff]
        %v1965 = vld [vmem:[%s1949 + $0x78] sm:$0xff]
        %1966 = vmatprep.subr.mxu0 0.0
        %1967 = vmatpush1.msra.mxu0 %v1950
        %1968 = vmatprep.subr.mxu0 0.0
        %1969 = vmatpush1.msra.mxu0 %v1951
        %1970 = vmatprep.subr.mxu0 0.0
        %1971 = vmatpush1.msra.mxu0 %v1952
        %1972 = vmatprep.subr.mxu0 0.0
        %1973 = vmatpush1.msra.mxu0 %v1953
        %1974 = vmatprep.subr.mxu0 0.0
        %1975 = vmatpush1.msra.mxu0 %v1954
        %1976 = vmatprep.subr.mxu0 0.0
        %1977 = vmatpush1.msra.mxu0 %v1955
        %1978 = vmatprep.subr.mxu0 0.0
        %1979 = vmatpush1.msra.mxu0 %v1956
        %1980 = vmatprep.subr.mxu0 0.0
        %1981 = vmatpush1.msra.mxu0 %v1957
        %1982 = vmatprep.subr.mxu0 0.0
        %1983 = vmatpush1.msra.mxu0 %v1958
        %1984 = vmatprep.subr.mxu0 0.0
        %1985 = vmatpush1.msra.mxu0 %v1959
        %1986 = vmatprep.subr.mxu0 0.0
        %1987 = vmatpush1.msra.mxu0 %v1960
        %1988 = vmatprep.subr.mxu0 0.0
        %1989 = vmatpush1.msra.mxu0 %v1961
        %1990 = vmatprep.subr.mxu0 0.0
        %1991 = vmatpush1.msra.mxu0 %v1962
        %1992 = vmatprep.subr.mxu0 0.0
        %1993 = vmatpush1.msra.mxu0 %v1963
        %1994 = vmatprep.subr.mxu0 0.0
        %1995 = vmatpush1.msra.mxu0 %v1964
        %1996 = vmatprep.subr.mxu0 0.0
        %1997 = vmatpush1.msra.mxu0 %v1965
        %1998 = vmatprep.subr.mxu0 0.0
        %1999 = vmatpush1.msra.mxu0 0.0
        %2000 = vmatprep.subr.mxu0 0.0
        %2001 = vmatpush1.msra.mxu0 0.0
        %2002 = vmatprep.subr.mxu0 0.0
        %2003 = vmatpush1.msra.mxu0 0.0
        %2004 = vmatprep.subr.mxu0 0.0
        %2005 = vmatpush1.msra.mxu0 0.0
        %2006 = vmatprep.subr.mxu0 0.0
        %2007 = vmatpush1.msra.mxu0 0.0
        %2008 = vmatprep.subr.mxu0 0.0
        %2009 = vmatpush1.msra.mxu0 0.0
        %2010 = vmatprep.subr.mxu0 0.0
        %2011 = vmatpush1.msra.mxu0 0.0
        %2012 = vmatprep.subr.mxu0 0.0
        %2013 = vmatpush1.msra.mxu0 0.0
        %2014 = vmatprep.subr.mxu0 0.0
        %2015 = vmatpush1.msra.mxu0 0.0
        %2016 = vmatprep.subr.mxu0 0.0
        %2017 = vmatpush1.msra.mxu0 0.0
        %2018 = vmatprep.subr.mxu0 0.0
        %2019 = vmatpush1.msra.mxu0 0.0
        %2020 = vmatprep.subr.mxu0 0.0
        %2021 = vmatpush1.msra.mxu0 0.0
        %2022 = vmatprep.subr.mxu0 0.0
        %2023 = vmatpush1.msra.mxu0 0.0
        %2024 = vmatprep.subr.mxu0 0.0
        %2025 = vmatpush1.msra.mxu0 0.0
        %2026 = vmatprep.subr.mxu0 0.0
        %2027 = vmatpush1.msra.mxu0 0.0
        %2028 = vmatprep.subr.mxu0 0.0
        %2029 = vmatpush1.msra.mxu0 0.0
        %2030 = vmatprep.mubr.f32.mxu0 0.0
        %2031 = vmatmul.mubr.f32.gmra.mrb[0].mxu0 %v1948
        %v2032 = vpop.f32.mrb[0].mxu0
        %v2033 = vadd.f32 0.0, %v2032
        %v2034 = vpop.f32.mrb[0].mxu0
        %2035 = vdwg.mxu0
        %2036 = vmatprep.subr.mxu0 0.0
        %2037 = vmatpush1.msra.mxu0 %v1932
        %2038 = vmatprep.subr.mxu0 0.0
        %2039 = vmatpush1.msra.mxu0 %v1933
        %2040 = vmatprep.subr.mxu0 0.0
        %2041 = vmatpush1.msra.mxu0 %v1934
        %2042 = vmatprep.subr.mxu0 0.0
        %2043 = vmatpush1.msra.mxu0 %v1935
        %2044 = vmatprep.subr.mxu0 0.0
        %2045 = vmatpush1.msra.mxu0 %v1936
        %2046 = vmatprep.subr.mxu0 0.0
        %2047 = vmatpush1.msra.mxu0 %v1937
        %2048 = vmatprep.subr.mxu0 0.0
        %2049 = vmatpush1.msra.mxu0 %v1938
        %2050 = vmatprep.subr.mxu0 0.0
        %2051 = vmatpush1.msra.mxu0 %v1939
        %2052 = vmatprep.subr.mxu0 0.0
        %2053 = vmatpush1.msra.mxu0 %v1940
        %2054 = vmatprep.subr.mxu0 0.0
        %2055 = vmatpush1.msra.mxu0 %v1941
        %2056 = vmatprep.subr.mxu0 0.0
        %2057 = vmatpush1.msra.mxu0 %v1942
        %2058 = vmatprep.subr.mxu0 0.0
        %2059 = vmatpush1.msra.mxu0 %v1943
        %2060 = vmatprep.subr.mxu0 0.0
        %2061 = vmatpush1.msra.mxu0 %v1944
        %2062 = vmatprep.subr.mxu0 0.0
        %2063 = vmatpush1.msra.mxu0 %v1945
        %2064 = vmatprep.subr.mxu0 0.0
        %2065 = vmatpush1.msra.mxu0 %v1946
        %2066 = vmatprep.subr.mxu0 0.0
        %2067 = vmatpush1.msra.mxu0 %v1947
        %2068 = vmatprep.subr.mxu0 0.0
        %2069 = vmatpush1.msra.mxu0 0.0
        %2070 = vmatprep.subr.mxu0 0.0
        %2071 = vmatpush1.msra.mxu0 0.0
        %2072 = vmatprep.subr.mxu0 0.0
        %2073 = vmatpush1.msra.mxu0 0.0
        %2074 = vmatprep.subr.mxu0 0.0
        %2075 = vmatpush1.msra.mxu0 0.0
        %2076 = vmatprep.subr.mxu0 0.0
        %2077 = vmatpush1.msra.mxu0 0.0
        %2078 = vmatprep.subr.mxu0 0.0
        %2079 = vmatpush1.msra.mxu0 0.0
        %2080 = vmatprep.subr.mxu0 0.0
        %2081 = vmatpush1.msra.mxu0 0.0
        %2082 = vmatprep.subr.mxu0 0.0
        %2083 = vmatpush1.msra.mxu0 0.0
        %2084 = vmatprep.subr.mxu0 0.0
        %2085 = vmatpush1.msra.mxu0 0.0
        %2086 = vmatprep.subr.mxu0 0.0
        %2087 = vmatpush1.msra.mxu0 0.0
        %2088 = vmatprep.subr.mxu0 0.0
        %2089 = vmatpush1.msra.mxu0 0.0
        %2090 = vmatprep.subr.mxu0 0.0
        %2091 = vmatpush1.msra.mxu0 0.0
        %2092 = vmatprep.subr.mxu0 0.0
        %2093 = vmatpush1.msra.mxu0 0.0
        %2094 = vmatprep.subr.mxu0 0.0
        %2095 = vmatpush1.msra.mxu0 0.0
        %2096 = vmatprep.subr.mxu0 0.0
        %2097 = vmatpush1.msra.mxu0 0.0
        %2098 = vmatprep.subr.mxu0 0.0
        %2099 = vmatpush1.msra.mxu0 0.0
        %2100 = vmatprep.mubr.f32.mxu0 0.0
        %2101 = vmatmul.mubr.f32.gmra.mrb[0].mxu0 %v1931
        %v2102 = vpop.f32.mrb[0].mxu0
        %v2103 = vadd.f32 %v2033, %v2102
        %v2104 = vpop.f32.mrb[0].mxu0
        %2105 = vdwg.mxu0
        %v2106 = vld [vmem:[#allocation2 + $0x2] sm:$0x7f]
        %s2107 = scalar_lea.vmem %s13, 256
        %v2108 = vld [vmem:[%s2107] sm:$0xff]
        %v2109 = vld [vmem:[%s2107 + $0x8] sm:$0xff]
        %v2110 = vld [vmem:[%s2107 + $0x10] sm:$0xff]
        %v2111 = vld [vmem:[%s2107 + $0x18] sm:$0xff]
        %v2112 = vld [vmem:[%s2107 + $0x20] sm:$0xff]
        %v2113 = vld [vmem:[%s2107 + $0x28] sm:$0xff]
        %v2114 = vld [vmem:[%s2107 + $0x30] sm:$0xff]
        %v2115 = vld [vmem:[%s2107 + $0x38] sm:$0xff]
        %v2116 = vld [vmem:[%s2107 + $0x40] sm:$0xff]
        %v2117 = vld [vmem:[%s2107 + $0x48] sm:$0xff]
        %v2118 = vld [vmem:[%s2107 + $0x50] sm:$0xff]
        %v2119 = vld [vmem:[%s2107 + $0x58] sm:$0xff]
        %v2120 = vld [vmem:[%s2107 + $0x60] sm:$0xff]
        %v2121 = vld [vmem:[%s2107 + $0x68] sm:$0xff]
        %v2122 = vld [vmem:[%s2107 + $0x70] sm:$0xff]
        %v2123 = vld [vmem:[%s2107 + $0x78] sm:$0xff]
        %2124 = vmatprep.subr.mxu0 0.0
        %2125 = vmatpush1.msra.mxu0 %v2108
        %2126 = vmatprep.subr.mxu0 0.0
        %2127 = vmatpush1.msra.mxu0 %v2109
        %2128 = vmatprep.subr.mxu0 0.0
        %2129 = vmatpush1.msra.mxu0 %v2110
        %2130 = vmatprep.subr.mxu0 0.0
        %2131 = vmatpush1.msra.mxu0 %v2111
        %2132 = vmatprep.subr.mxu0 0.0
        %2133 = vmatpush1.msra.mxu0 %v2112
        %2134 = vmatprep.subr.mxu0 0.0
        %2135 = vmatpush1.msra.mxu0 %v2113
        %2136 = vmatprep.subr.mxu0 0.0
        %2137 = vmatpush1.msra.mxu0 %v2114
        %2138 = vmatprep.subr.mxu0 0.0
        %2139 = vmatpush1.msra.mxu0 %v2115
        %2140 = vmatprep.subr.mxu0 0.0
        %2141 = vmatpush1.msra.mxu0 %v2116
        %2142 = vmatprep.subr.mxu0 0.0
        %2143 = vmatpush1.msra.mxu0 %v2117
        %2144 = vmatprep.subr.mxu0 0.0
        %2145 = vmatpush1.msra.mxu0 %v2118
        %2146 = vmatprep.subr.mxu0 0.0
        %2147 = vmatpush1.msra.mxu0 %v2119
        %2148 = vmatprep.subr.mxu0 0.0
        %2149 = vmatpush1.msra.mxu0 %v2120
        %2150 = vmatprep.subr.mxu0 0.0
        %2151 = vmatpush1.msra.mxu0 %v2121
        %2152 = vmatprep.subr.mxu0 0.0
        %2153 = vmatpush1.msra.mxu0 %v2122
        %2154 = vmatprep.subr.mxu0 0.0
        %2155 = vmatpush1.msra.mxu0 %v2123
        %2156 = vmatprep.subr.mxu0 0.0
        %2157 = vmatpush1.msra.mxu0 0.0
        %2158 = vmatprep.subr.mxu0 0.0
        %2159 = vmatpush1.msra.mxu0 0.0
        %2160 = vmatprep.subr.mxu0 0.0
        %2161 = vmatpush1.msra.mxu0 0.0
        %2162 = vmatprep.subr.mxu0 0.0
        %2163 = vmatpush1.msra.mxu0 0.0
        %2164 = vmatprep.subr.mxu0 0.0
        %2165 = vmatpush1.msra.mxu0 0.0
        %2166 = vmatprep.subr.mxu0 0.0
        %2167 = vmatpush1.msra.mxu0 0.0
        %2168 = vmatprep.subr.mxu0 0.0
        %2169 = vmatpush1.msra.mxu0 0.0
        %2170 = vmatprep.subr.mxu0 0.0
        %2171 = vmatpush1.msra.mxu0 0.0
        %2172 = vmatprep.subr.mxu0 0.0
        %2173 = vmatpush1.msra.mxu0 0.0
        %2174 = vmatprep.subr.mxu0 0.0
        %2175 = vmatpush1.msra.mxu0 0.0
        %2176 = vmatprep.subr.mxu0 0.0
        %2177 = vmatpush1.msra.mxu0 0.0
        %2178 = vmatprep.subr.mxu0 0.0
        %2179 = vmatpush1.msra.mxu0 0.0
        %2180 = vmatprep.subr.mxu0 0.0
        %2181 = vmatpush1.msra.mxu0 0.0
        %2182 = vmatprep.subr.mxu0 0.0
        %2183 = vmatpush1.msra.mxu0 0.0
        %2184 = vmatprep.subr.mxu0 0.0
        %2185 = vmatpush1.msra.mxu0 0.0
        %2186 = vmatprep.subr.mxu0 0.0
        %2187 = vmatpush1.msra.mxu0 0.0
        %2188 = vmatprep.mubr.f32.mxu0 0.0
        %2189 = vmatmul.mubr.f32.gmra.mrb[0].mxu0 %v2106
        %v2190 = vpop.f32.mrb[0].mxu0
        %v2191 = vadd.f32 0.0, %v2190
        %v2192 = vpop.f32.mrb[0].mxu0
        %2193 = vdwg.mxu0
        %v2194 = vadd.f32 %v2103, %v2191
        %v2195 = vld [vmem:[#allocation2 + $0x3] sm:$0x7f]
        %s2196 = scalar_lea.vmem %s13, 384
        %v2197 = vld [vmem:[%s2196] sm:$0xff]
        %v2198 = vld [vmem:[%s2196 + $0x8] sm:$0xff]
        %v2199 = vld [vmem:[%s2196 + $0x10] sm:$0xff]
        %v2200 = vld [vmem:[%s2196 + $0x18] sm:$0xff]
        %v2201 = vld [vmem:[%s2196 + $0x20] sm:$0xff]
        %v2202 = vld [vmem:[%s2196 + $0x28] sm:$0xff]
        %v2203 = vld [vmem:[%s2196 + $0x30] sm:$0xff]
        %v2204 = vld [vmem:[%s2196 + $0x38] sm:$0xff]
        %v2205 = vld [vmem:[%s2196 + $0x40] sm:$0xff]
        %v2206 = vld [vmem:[%s2196 + $0x48] sm:$0xff]
        %v2207 = vld [vmem:[%s2196 + $0x50] sm:$0xff]
        %v2208 = vld [vmem:[%s2196 + $0x58] sm:$0xff]
        %v2209 = vld [vmem:[%s2196 + $0x60] sm:$0xff]
        %v2210 = vld [vmem:[%s2196 + $0x68] sm:$0xff]
        %v2211 = vld [vmem:[%s2196 + $0x70] sm:$0xff]
        %v2212 = vld [vmem:[%s2196 + $0x78] sm:$0xff]
        %2213 = vmatprep.subr.mxu0 0.0
        %2214 = vmatpush1.msra.mxu0 %v2197
        %2215 = vmatprep.subr.mxu0 0.0
        %2216 = vmatpush1.msra.mxu0 %v2198
        %2217 = vmatprep.subr.mxu0 0.0
        %2218 = vmatpush1.msra.mxu0 %v2199
        %2219 = vmatprep.subr.mxu0 0.0
        %2220 = vmatpush1.msra.mxu0 %v2200
        %2221 = vmatprep.subr.mxu0 0.0
        %2222 = vmatpush1.msra.mxu0 %v2201
        %2223 = vmatprep.subr.mxu0 0.0
        %2224 = vmatpush1.msra.mxu0 %v2202
        %2225 = vmatprep.subr.mxu0 0.0
        %2226 = vmatpush1.msra.mxu0 %v2203
        %2227 = vmatprep.subr.mxu0 0.0
        %2228 = vmatpush1.msra.mxu0 %v2204
        %2229 = vmatprep.subr.mxu0 0.0
        %2230 = vmatpush1.msra.mxu0 %v2205
        %2231 = vmatprep.subr.mxu0 0.0
        %2232 = vmatpush1.msra.mxu0 %v2206
        %2233 = vmatprep.subr.mxu0 0.0
        %2234 = vmatpush1.msra.mxu0 %v2207
        %2235 = vmatprep.subr.mxu0 0.0
        %2236 = vmatpush1.msra.mxu0 %v2208
        %2237 = vmatprep.subr.mxu0 0.0
        %2238 = vmatpush1.msra.mxu0 %v2209
        %2239 = vmatprep.subr.mxu0 0.0
        %2240 = vmatpush1.msra.mxu0 %v2210
        %2241 = vmatprep.subr.mxu0 0.0
        %2242 = vmatpush1.msra.mxu0 %v2211
        %2243 = vmatprep.subr.mxu0 0.0
        %2244 = vmatpush1.msra.mxu0 %v2212
        %2245 = vmatprep.subr.mxu0 0.0
        %2246 = vmatpush1.msra.mxu0 0.0
        %2247 = vmatprep.subr.mxu0 0.0
        %2248 = vmatpush1.msra.mxu0 0.0
        %2249 = vmatprep.subr.mxu0 0.0
        %2250 = vmatpush1.msra.mxu0 0.0
        %2251 = vmatprep.subr.mxu0 0.0
        %2252 = vmatpush1.msra.mxu0 0.0
        %2253 = vmatprep.subr.mxu0 0.0
        %2254 = vmatpush1.msra.mxu0 0.0
        %2255 = vmatprep.subr.mxu0 0.0
        %2256 = vmatpush1.msra.mxu0 0.0
        %2257 = vmatprep.subr.mxu0 0.0
        %2258 = vmatpush1.msra.mxu0 0.0
        %2259 = vmatprep.subr.mxu0 0.0
        %2260 = vmatpush1.msra.mxu0 0.0
        %2261 = vmatprep.subr.mxu0 0.0
        %2262 = vmatpush1.msra.mxu0 0.0
        %2263 = vmatprep.subr.mxu0 0.0
        %2264 = vmatpush1.msra.mxu0 0.0
        %2265 = vmatprep.subr.mxu0 0.0
        %2266 = vmatpush1.msra.mxu0 0.0
        %2267 = vmatprep.subr.mxu0 0.0
        %2268 = vmatpush1.msra.mxu0 0.0
        %2269 = vmatprep.subr.mxu0 0.0
        %2270 = vmatpush1.msra.mxu0 0.0
        %2271 = vmatprep.subr.mxu0 0.0
        %2272 = vmatpush1.msra.mxu0 0.0
        %2273 = vmatprep.subr.mxu0 0.0
        %2274 = vmatpush1.msra.mxu0 0.0
        %2275 = vmatprep.subr.mxu0 0.0
        %2276 = vmatpush1.msra.mxu0 0.0
        %2277 = vmatprep.mubr.f32.mxu0 0.0
        %2278 = vmatmul.mubr.f32.gmra.mrb[0].mxu0 %v2195
        %v2279 = vpop.f32.mrb[0].mxu0
        %v2280 = vadd.f32 0.0, %v2279
        %v2281 = vpop.f32.mrb[0].mxu0
        %2282 = vdwg.mxu0
        %v2283 = vadd.f32 %v2194, %v2280
        %v2284 = vmul.u32 %v1349, 2
        %vm2285 = vcmp.eq.s32.totalorder %v1351, %v2284
        %v2286 = vsel %vm2285, 1.0, 0.0
        %vm2287 = vcmask 56320
        %v2289 = vsel %vm2287, %v2286, 0
        %vm2291 = vcmask 1046528
        %v2293 = vsel %vm2291, %v2283, 0
        %2295 = vmatprep.subr.mxu0 0.0
        %2296 = vmatpush1.msra.mxu0 %v2293
        %2297 = vmatprep.subr.mxu0 0.0
        %2298 = vmatpush1.msra.mxu0 0.0
        %2299 = vmatprep.subr.mxu0 0.0
        %2300 = vmatpush1.msra.mxu0 0.0
        %2301 = vmatprep.subr.mxu0 0.0
        %2302 = vmatpush1.msra.mxu0 0.0
        %2303 = vmatprep.subr.mxu0 0.0
        %2304 = vmatpush1.msra.mxu0 0.0
        %2305 = vmatprep.subr.mxu0 0.0
        %2306 = vmatpush1.msra.mxu0 0.0
        %2307 = vmatprep.subr.mxu0 0.0
        %2308 = vmatpush1.msra.mxu0 0.0
        %2309 = vmatprep.subr.mxu0 0.0
        %2310 = vmatpush1.msra.mxu0 0.0
        %2311 = vmatprep.subr.mxu0 0.0
        %2312 = vmatpush1.msra.mxu0 0.0
        %2313 = vmatprep.subr.mxu0 0.0
        %2314 = vmatpush1.msra.mxu0 0.0
        %2315 = vmatprep.subr.mxu0 0.0
        %2316 = vmatpush1.msra.mxu0 0.0
        %2317 = vmatprep.subr.mxu0 0.0
        %2318 = vmatpush1.msra.mxu0 0.0
        %2319 = vmatprep.subr.mxu0 0.0
        %2320 = vmatpush1.msra.mxu0 0.0
        %2321 = vmatprep.subr.mxu0 0.0
        %2322 = vmatpush1.msra.mxu0 0.0
        %2323 = vmatprep.subr.mxu0 0.0
        %2324 = vmatpush1.msra.mxu0 0.0
        %2325 = vmatprep.subr.mxu0 0.0
        %2326 = vmatpush1.msra.mxu0 0.0
        %2327 = vmatprep.subr.mxu0 0.0
        %2328 = vmatpush1.msra.mxu0 0.0
        %2329 = vmatprep.subr.mxu0 0.0
        %2330 = vmatpush1.msra.mxu0 0.0
        %2331 = vmatprep.subr.mxu0 0.0
        %2332 = vmatpush1.msra.mxu0 0.0
        %2333 = vmatprep.subr.mxu0 0.0
        %2334 = vmatpush1.msra.mxu0 0.0
        %2335 = vmatprep.subr.mxu0 0.0
        %2336 = vmatpush1.msra.mxu0 0.0
        %2337 = vmatprep.subr.mxu0 0.0
        %2338 = vmatpush1.msra.mxu0 0.0
        %2339 = vmatprep.subr.mxu0 0.0
        %2340 = vmatpush1.msra.mxu0 0.0
        %2341 = vmatprep.subr.mxu0 0.0
        %2342 = vmatpush1.msra.mxu0 0.0
        %2343 = vmatprep.subr.mxu0 0.0
        %2344 = vmatpush1.msra.mxu0 0.0
        %2345 = vmatprep.subr.mxu0 0.0
        %2346 = vmatpush1.msra.mxu0 0.0
        %2347 = vmatprep.subr.mxu0 0.0
        %2348 = vmatpush1.msra.mxu0 0.0
        %2349 = vmatprep.subr.mxu0 0.0
        %2350 = vmatpush1.msra.mxu0 0.0
        %2351 = vmatprep.subr.mxu0 0.0
        %2352 = vmatpush1.msra.mxu0 0.0
        %2353 = vmatprep.subr.mxu0 0.0
        %2354 = vmatpush1.msra.mxu0 0.0
        %2355 = vmatprep.subr.mxu0 0.0
        %2356 = vmatpush1.msra.mxu0 0.0
        %2357 = vmatprep.subr.mxu0 0.0
        %2358 = vmatpush1.msra.mxu0 0.0
        %2359 = vmatprep.mubr.f32.mxu0 0.0
        %2360 = vmatmul.mubr.f32.gmra.mrb[0].mxu0 %v2289
        %v2361 = vpop.f32.mrb[0].mxu0
        %v2362 = vadd.f32 0.0, %v2361
        %v2363 = vpop.f32.mrb[0].mxu0
        %2364 = vdwg.mxu0
        %v2365 = vld [vmem:[#allocation6] sm:$0xff]
        %v2366 = vld [vmem:[#allocation6 + $0x8] sm:$0xff]
        %v2367 = vld [vmem:[#allocation6 + $0x10] sm:$0xff]
        %v2368 = vld [vmem:[#allocation6 + $0x18] sm:$0xff]
        %v2369 = vld [vmem:[#allocation6 + $0x20] sm:$0xff]
        %v2370 = vld [vmem:[#allocation6 + $0x28] sm:$0xff]
        %v2371 = vld [vmem:[#allocation6 + $0x30] sm:$0xff]
        %v2372 = vld [vmem:[#allocation6 + $0x38] sm:$0xff]
        %v2373 = vld [vmem:[#allocation6 + $0x40] sm:$0xff]
        %v2374 = vld [vmem:[#allocation6 + $0x48] sm:$0xff]
        %v2375 = vld [vmem:[#allocation6 + $0x50] sm:$0xff]
        %v2376 = vld [vmem:[#allocation6 + $0x58] sm:$0xff]
        %v2377 = vld [vmem:[#allocation6 + $0x60] sm:$0xff]
        %v2378 = vld [vmem:[#allocation6 + $0x68] sm:$0xff]
        %v2379 = vld [vmem:[#allocation6 + $0x70] sm:$0xff]
        %v2380 = vld [vmem:[#allocation6 + $0x78] sm:$0xff]
        %vm2381 = vcmask 1043456
        %v2382 = vsel %vm2381, %v2362, 0.0
        %v2383 = vrot.slane %v2382, 4
        %v2384 = vadd.f32 %v2382, %v2383
        %v2385 = vrot.slane %v2384, 2
        %v2386 = vadd.f32 %v2384, %v2385
        %v2387 = vrot.slane %v2386, 1
        %v2388 = vadd.f32 %v2386, %v2387
        %2389 = vmatprep.subr.mxu0 0.0
        %2390 = vmatpush1.msra.mxu0 %v2365
        %2391 = vmatprep.subr.mxu0 0.0
        %2392 = vmatpush1.msra.mxu0 %v2366
        %2393 = vmatprep.subr.mxu0 0.0
        %2394 = vmatpush1.msra.mxu0 %v2367
        %2395 = vmatprep.subr.mxu0 0.0
        %2396 = vmatpush1.msra.mxu0 %v2368
        %2397 = vmatprep.subr.mxu0 0.0
        %2398 = vmatpush1.msra.mxu0 %v2369
        %2399 = vmatprep.subr.mxu0 0.0
        %2400 = vmatpush1.msra.mxu0 %v2370
        %2401 = vmatprep.subr.mxu0 0.0
        %2402 = vmatpush1.msra.mxu0 %v2371
        %2403 = vmatprep.subr.mxu0 0.0
        %2404 = vmatpush1.msra.mxu0 %v2372
        %2405 = vmatprep.subr.mxu0 0.0
        %2406 = vmatpush1.msra.mxu0 %v2373
        %2407 = vmatprep.subr.mxu0 0.0
        %2408 = vmatpush1.msra.mxu0 %v2374
        %2409 = vmatprep.subr.mxu0 0.0
        %2410 = vmatpush1.msra.mxu0 %v2375
        %2411 = vmatprep.subr.mxu0 0.0
        %2412 = vmatpush1.msra.mxu0 %v2376
        %2413 = vmatprep.subr.mxu0 0.0
        %2414 = vmatpush1.msra.mxu0 %v2377
        %2415 = vmatprep.subr.mxu0 0.0
        %2416 = vmatpush1.msra.mxu0 %v2378
        %2417 = vmatprep.subr.mxu0 0.0
        %2418 = vmatpush1.msra.mxu0 %v2379
        %2419 = vmatprep.subr.mxu0 0.0
        %2420 = vmatpush1.msra.mxu0 %v2380
        %2421 = vmatprep.subr.mxu0 0.0
        %2422 = vmatpush1.msra.mxu0 0.0
        %2423 = vmatprep.subr.mxu0 0.0
        %2424 = vmatpush1.msra.mxu0 0.0
        %2425 = vmatprep.subr.mxu0 0.0
        %2426 = vmatpush1.msra.mxu0 0.0
        %2427 = vmatprep.subr.mxu0 0.0
        %2428 = vmatpush1.msra.mxu0 0.0
        %2429 = vmatprep.subr.mxu0 0.0
        %2430 = vmatpush1.msra.mxu0 0.0
        %2431 = vmatprep.subr.mxu0 0.0
        %2432 = vmatpush1.msra.mxu0 0.0
        %2433 = vmatprep.subr.mxu0 0.0
        %2434 = vmatpush1.msra.mxu0 0.0
        %2435 = vmatprep.subr.mxu0 0.0
        %2436 = vmatpush1.msra.mxu0 0.0
        %2437 = vmatprep.subr.mxu0 0.0
        %2438 = vmatpush1.msra.mxu0 0.0
        %2439 = vmatprep.subr.mxu0 0.0
        %2440 = vmatpush1.msra.mxu0 0.0
        %2441 = vmatprep.subr.mxu0 0.0
        %2442 = vmatpush1.msra.mxu0 0.0
        %2443 = vmatprep.subr.mxu0 0.0
        %2444 = vmatpush1.msra.mxu0 0.0
        %2445 = vmatprep.subr.mxu0 0.0
        %2446 = vmatpush1.msra.mxu0 0.0
        %2447 = vmatprep.subr.mxu0 0.0
        %2448 = vmatpush1.msra.mxu0 0.0
        %2449 = vmatprep.subr.mxu0 0.0
        %2450 = vmatpush1.msra.mxu0 0.0
        %2451 = vmatprep.subr.mxu0 0.0
        %2452 = vmatpush1.msra.mxu0 0.0
        %2453 = vmatprep.mubr.f32.mxu0 0.0
        %2454 = vmatmul.mubr.f32.gmra.mrb[0].mxu0 %v2388
        %v2455 = vpop.f32.mrb[0].mxu0
        %v2456 = vadd.f32 0.0, %v2455
        %v2457 = vpop.f32.mrb[0].mxu0
        %2458 = vdwg.mxu0
        %v2459 = vlaneseq
        %v2460 = vshrl.u32 %v2459, 7
        %v2461 = vsub.s32 0, %v2460
        %v2462 = vrot.slane %v2456, %v2461
        %v2463 = vsub.f32 %v2362, %v2462
        %v2464 = vmul.f32 %v2463, %v2463
        %v2465 = vsel %vm2381, %v2464, 0.0
        %v2466 = vrot.slane %v2465, 4
        %v2467 = vadd.f32 %v2465, %v2466
        %v2468 = vrot.slane %v2467, 2
        %v2469 = vadd.f32 %v2467, %v2468
        %v2470 = vrot.slane %v2469, 1
        %v2471 = vadd.f32 %v2469, %v2470
        %2472 = vmatprep.subr.mxu0 0.0
        %2473 = vmatpush1.msra.mxu0 %v2365
        %2474 = vmatprep.subr.mxu0 0.0
        %2475 = vmatpush1.msra.mxu0 %v2366
        %2476 = vmatprep.subr.mxu0 0.0
        %2477 = vmatpush1.msra.mxu0 %v2367
        %2478 = vmatprep.subr.mxu0 0.0
        %2479 = vmatpush1.msra.mxu0 %v2368
        %2480 = vmatprep.subr.mxu0 0.0
        %2481 = vmatpush1.msra.mxu0 %v2369
        %2482 = vmatprep.subr.mxu0 0.0
        %2483 = vmatpush1.msra.mxu0 %v2370
        %2484 = vmatprep.subr.mxu0 0.0
        %2485 = vmatpush1.msra.mxu0 %v2371
        %2486 = vmatprep.subr.mxu0 0.0
        %2487 = vmatpush1.msra.mxu0 %v2372
        %2488 = vmatprep.subr.mxu0 0.0
        %2489 = vmatpush1.msra.mxu0 %v2373
        %2490 = vmatprep.subr.mxu0 0.0
        %2491 = vmatpush1.msra.mxu0 %v2374
        %2492 = vmatprep.subr.mxu0 0.0
        %2493 = vmatpush1.msra.mxu0 %v2375
        %2494 = vmatprep.subr.mxu0 0.0
        %2495 = vmatpush1.msra.mxu0 %v2376
        %2496 = vmatprep.subr.mxu0 0.0
        %2497 = vmatpush1.msra.mxu0 %v2377
        %2498 = vmatprep.subr.mxu0 0.0
        %2499 = vmatpush1.msra.mxu0 %v2378
        %2500 = vmatprep.subr.mxu0 0.0
        %2501 = vmatpush1.msra.mxu0 %v2379
        %2502 = vmatprep.subr.mxu0 0.0
        %2503 = vmatpush1.msra.mxu0 %v2380
        %2504 = vmatprep.subr.mxu0 0.0
        %2505 = vmatpush1.msra.mxu0 0.0
        %2506 = vmatprep.subr.mxu0 0.0
        %2507 = vmatpush1.msra.mxu0 0.0
        %2508 = vmatprep.subr.mxu0 0.0
        %2509 = vmatpush1.msra.mxu0 0.0
        %2510 = vmatprep.subr.mxu0 0.0
        %2511 = vmatpush1.msra.mxu0 0.0
        %2512 = vmatprep.subr.mxu0 0.0
        %2513 = vmatpush1.msra.mxu0 0.0
        %2514 = vmatprep.subr.mxu0 0.0
        %2515 = vmatpush1.msra.mxu0 0.0
        %2516 = vmatprep.subr.mxu0 0.0
        %2517 = vmatpush1.msra.mxu0 0.0
        %2518 = vmatprep.subr.mxu0 0.0
        %2519 = vmatpush1.msra.mxu0 0.0
        %2520 = vmatprep.subr.mxu0 0.0
        %2521 = vmatpush1.msra.mxu0 0.0
        %2522 = vmatprep.subr.mxu0 0.0
        %2523 = vmatpush1.msra.mxu0 0.0
        %2524 = vmatprep.subr.mxu0 0.0
        %2525 = vmatpush1.msra.mxu0 0.0
        %2526 = vmatprep.subr.mxu0 0.0
        %2527 = vmatpush1.msra.mxu0 0.0
        %2528 = vmatprep.subr.mxu0 0.0
        %2529 = vmatpush1.msra.mxu0 0.0
        %2530 = vmatprep.subr.mxu0 0.0
        %2531 = vmatpush1.msra.mxu0 0.0
        %2532 = vmatprep.subr.mxu0 0.0
        %2533 = vmatpush1.msra.mxu0 0.0
        %2534 = vmatprep.subr.mxu0 0.0
        %2535 = vmatpush1.msra.mxu0 0.0
        %2536 = vmatprep.mubr.f32.mxu0 0.0
        %2537 = vmatmul.mubr.f32.gmra.mrb[0].mxu0 %v2471
        %v2538 = vpop.f32.mrb[0].mxu0
        %v2539 = vadd.f32 1e-05, %v2538
        %v2540 = vpop.f32.mrb[0].mxu0
        %2541 = vdwg.mxu0
        %v2542 = vrsqrt.pop %v2539
        %v2543 = vlaneseq
        %v2544 = vshrl.u32 %v2543, 7
        %v2545 = vsub.s32 0, %v2544
        %v2546 = vrot.slane %v2542, %v2545
        %v2547 = vmul.f32 %v2463, %v2546
        %v2548 = vld [vmem:[%s17] sm:$0x1]
        %v2550 = vlaneseq
        %v2551 = vshrl.u32 %v2550, 7
        %v2552 = vsub.s32 0, %v2551
        %v2553 = vrot.slane %v2548, %v2552
        %v2555 = vmul.f32 %v2547, %v2553
        %v2556 = vld [vmem:[%s19] sm:$0x1]
        %v2558 = vlaneseq
        %v2559 = vshrl.u32 %v2558, 7
        %v2560 = vsub.s32 0, %v2559
        %v2561 = vrot.slane %v2556, %v2560
        %v2563 = vadd.f32 %v2555, %v2561
        %vm2564 = vcmp.gt.f32.partialorder %v2563, 0.0
        %v2565 = vmul.f32 %v2563, 0.01
        %v2566 = vsel %vm2564, %v2563, %v2565
        %2567 = vst [vmem:[#allocation2] sm:$0xff] 0.0
        %2568 = vst [vmem:[#allocation2 + $0x8] sm:$0xff] 0.0
        %2569 = vst [vmem:[#allocation2 + $0x1] sm:$0xf] %v2566
        %v2570 = vld [vmem:[#allocation2] sm:$0x7]
        %v2571 = vld [vmem:[%s21] sm:$0xff]
        %v2572 = vld [vmem:[%s21 + $0x8] sm:$0xff]
        %v2573 = vld [vmem:[%s21 + $0x10] sm:$0xff]
        %v2574 = vld [vmem:[%s21 + $0x18] sm:$0xff]
        %v2575 = vld [vmem:[%s21 + $0x20] sm:$0xff]
        %v2576 = vld [vmem:[%s21 + $0x28] sm:$0xff]
        %v2577 = vld [vmem:[%s21 + $0x30] sm:$0xff]
        %v2578 = vld [vmem:[%s21 + $0x38] sm:$0xff]
        %v2579 = vld [vmem:[%s21 + $0x40] sm:$0xff]
        %v2580 = vld [vmem:[%s21 + $0x48] sm:$0xff]
        %v2581 = vld [vmem:[%s21 + $0x50] sm:$0xff]
        %v2582 = vld [vmem:[%s21 + $0x58] sm:$0xff]
        %v2583 = vld [vmem:[%s21 + $0x60] sm:$0xff]
        %v2584 = vld [vmem:[%s21 + $0x68] sm:$0xff]
        %v2585 = vld [vmem:[%s21 + $0x70] sm:$0xff]
        %v2586 = vld [vmem:[%s21 + $0x78] sm:$0xff]
        %v2587 = vld [vmem:[#allocation2 + $0x1] sm:$0x7]
        %s2588 = scalar_lea.vmem %s21, 128
        %v2589 = vld [vmem:[%s2588] sm:$0xff]
        %v2590 = vld [vmem:[%s2588 + $0x8] sm:$0xff]
        %v2591 = vld [vmem:[%s2588 + $0x10] sm:$0xff]
        %v2592 = vld [vmem:[%s2588 + $0x18] sm:$0xff]
        %v2593 = vld [vmem:[%s2588 + $0x20] sm:$0xff]
        %v2594 = vld [vmem:[%s2588 + $0x28] sm:$0xff]
        %v2595 = vld [vmem:[%s2588 + $0x30] sm:$0xff]
        %v2596 = vld [vmem:[%s2588 + $0x38] sm:$0xff]
        %v2597 = vld [vmem:[%s2588 + $0x40] sm:$0xff]
        %v2598 = vld [vmem:[%s2588 + $0x48] sm:$0xff]
        %v2599 = vld [vmem:[%s2588 + $0x50] sm:$0xff]
        %v2600 = vld [vmem:[%s2588 + $0x58] sm:$0xff]
        %v2601 = vld [vmem:[%s2588 + $0x60] sm:$0xff]
        %v2602 = vld [vmem:[%s2588 + $0x68] sm:$0xff]
        %v2603 = vld [vmem:[%s2588 + $0x70] sm:$0xff]
        %v2604 = vld [vmem:[%s2588 + $0x78] sm:$0xff]
        %2605 = vmatprep.subr.mxu0 0.0
        %2606 = vmatpush1.msra.mxu0 %v2589
        %2607 = vmatprep.subr.mxu0 0.0
        %2608 = vmatpush1.msra.mxu0 %v2590
        %2609 = vmatprep.subr.mxu0 0.0
        %2610 = vmatpush1.msra.mxu0 %v2591
        %2611 = vmatprep.subr.mxu0 0.0
        %2612 = vmatpush1.msra.mxu0 %v2592
        %2613 = vmatprep.subr.mxu0 0.0
        %2614 = vmatpush1.msra.mxu0 %v2593
        %2615 = vmatprep.subr.mxu0 0.0
        %2616 = vmatpush1.msra.mxu0 %v2594
        %2617 = vmatprep.subr.mxu0 0.0
        %2618 = vmatpush1.msra.mxu0 %v2595
        %2619 = vmatprep.subr.mxu0 0.0
        %2620 = vmatpush1.msra.mxu0 %v2596
        %2621 = vmatprep.subr.mxu0 0.0
        %2622 = vmatpush1.msra.mxu0 %v2597
        %2623 = vmatprep.subr.mxu0 0.0
        %2624 = vmatpush1.msra.mxu0 %v2598
        %2625 = vmatprep.subr.mxu0 0.0
        %2626 = vmatpush1.msra.mxu0 %v2599
        %2627 = vmatprep.subr.mxu0 0.0
        %2628 = vmatpush1.msra.mxu0 %v2600
        %2629 = vmatprep.subr.mxu0 0.0
        %2630 = vmatpush1.msra.mxu0 %v2601
        %2631 = vmatprep.subr.mxu0 0.0
        %2632 = vmatpush1.msra.mxu0 %v2602
        %2633 = vmatprep.subr.mxu0 0.0
        %2634 = vmatpush1.msra.mxu0 %v2603
        %2635 = vmatprep.subr.mxu0 0.0
        %2636 = vmatpush1.msra.mxu0 %v2604
        %2637 = vmatprep.subr.mxu0 0.0
        %2638 = vmatpush1.msra.mxu0 0.0
        %2639 = vmatprep.subr.mxu0 0.0
        %2640 = vmatpush1.msra.mxu0 0.0
        %2641 = vmatprep.subr.mxu0 0.0
        %2642 = vmatpush1.msra.mxu0 0.0
        %2643 = vmatprep.subr.mxu0 0.0
        %2644 = vmatpush1.msra.mxu0 0.0
        %2645 = vmatprep.subr.mxu0 0.0
        %2646 = vmatpush1.msra.mxu0 0.0
        %2647 = vmatprep.subr.mxu0 0.0
        %2648 = vmatpush1.msra.mxu0 0.0
        %2649 = vmatprep.subr.mxu0 0.0
        %2650 = vmatpush1.msra.mxu0 0.0
        %2651 = vmatprep.subr.mxu0 0.0
        %2652 = vmatpush1.msra.mxu0 0.0
        %2653 = vmatprep.subr.mxu0 0.0
        %2654 = vmatpush1.msra.mxu0 0.0
        %2655 = vmatprep.subr.mxu0 0.0
        %2656 = vmatpush1.msra.mxu0 0.0
        %2657 = vmatprep.subr.mxu0 0.0
        %2658 = vmatpush1.msra.mxu0 0.0
        %2659 = vmatprep.subr.mxu0 0.0
        %2660 = vmatpush1.msra.mxu0 0.0
        %2661 = vmatprep.subr.mxu0 0.0
        %2662 = vmatpush1.msra.mxu0 0.0
        %2663 = vmatprep.subr.mxu0 0.0
        %2664 = vmatpush1.msra.mxu0 0.0
        %2665 = vmatprep.subr.mxu0 0.0
        %2666 = vmatpush1.msra.mxu0 0.0
        %2667 = vmatprep.subr.mxu0 0.0
        %2668 = vmatpush1.msra.mxu0 0.0
        %2669 = vmatprep.mubr.f32.mxu0 0.0
        %2670 = vmatmul.mubr.f32.gmra.mrb[0].mxu0 %v2587
        %v2671 = vpop.f32.mrb[0].mxu0
        %v2672 = vadd.f32 0.0, %v2671
        %v2673 = vpop.f32.mrb[0].mxu0
        %2674 = vdwg.mxu0
        %2675 = vmatprep.subr.mxu0 0.0
        %2676 = vmatpush1.msra.mxu0 %v2571
        %2677 = vmatprep.subr.mxu0 0.0
        %2678 = vmatpush1.msra.mxu0 %v2572
        %2679 = vmatprep.subr.mxu0 0.0
        %2680 = vmatpush1.msra.mxu0 %v2573
        %2681 = vmatprep.subr.mxu0 0.0
        %2682 = vmatpush1.msra.mxu0 %v2574
        %2683 = vmatprep.subr.mxu0 0.0
        %2684 = vmatpush1.msra.mxu0 %v2575
        %2685 = vmatprep.subr.mxu0 0.0
        %2686 = vmatpush1.msra.mxu0 %v2576
        %2687 = vmatprep.subr.mxu0 0.0
        %2688 = vmatpush1.msra.mxu0 %v2577
        %2689 = vmatprep.subr.mxu0 0.0
        %2690 = vmatpush1.msra.mxu0 %v2578
        %2691 = vmatprep.subr.mxu0 0.0
        %2692 = vmatpush1.msra.mxu0 %v2579
        %2693 = vmatprep.subr.mxu0 0.0
        %2694 = vmatpush1.msra.mxu0 %v2580
        %2695 = vmatprep.subr.mxu0 0.0
        %2696 = vmatpush1.msra.mxu0 %v2581
        %2697 = vmatprep.subr.mxu0 0.0
        %2698 = vmatpush1.msra.mxu0 %v2582
        %2699 = vmatprep.subr.mxu0 0.0
        %2700 = vmatpush1.msra.mxu0 %v2583
        %2701 = vmatprep.subr.mxu0 0.0
        %2702 = vmatpush1.msra.mxu0 %v2584
        %2703 = vmatprep.subr.mxu0 0.0
        %2704 = vmatpush1.msra.mxu0 %v2585
        %2705 = vmatprep.subr.mxu0 0.0
        %2706 = vmatpush1.msra.mxu0 %v2586
        %2707 = vmatprep.subr.mxu0 0.0
        %2708 = vmatpush1.msra.mxu0 0.0
        %2709 = vmatprep.subr.mxu0 0.0
        %2710 = vmatpush1.msra.mxu0 0.0
        %2711 = vmatprep.subr.mxu0 0.0
        %2712 = vmatpush1.msra.mxu0 0.0
        %2713 = vmatprep.subr.mxu0 0.0
        %2714 = vmatpush1.msra.mxu0 0.0
        %2715 = vmatprep.subr.mxu0 0.0
        %2716 = vmatpush1.msra.mxu0 0.0
        %2717 = vmatprep.subr.mxu0 0.0
        %2718 = vmatpush1.msra.mxu0 0.0
        %2719 = vmatprep.subr.mxu0 0.0
        %2720 = vmatpush1.msra.mxu0 0.0
        %2721 = vmatprep.subr.mxu0 0.0
        %2722 = vmatpush1.msra.mxu0 0.0
        %2723 = vmatprep.subr.mxu0 0.0
        %2724 = vmatpush1.msra.mxu0 0.0
        %2725 = vmatprep.subr.mxu0 0.0
        %2726 = vmatpush1.msra.mxu0 0.0
        %2727 = vmatprep.subr.mxu0 0.0
        %2728 = vmatpush1.msra.mxu0 0.0
        %2729 = vmatprep.subr.mxu0 0.0
        %2730 = vmatpush1.msra.mxu0 0.0
        %2731 = vmatprep.subr.mxu0 0.0
        %2732 = vmatpush1.msra.mxu0 0.0
        %2733 = vmatprep.subr.mxu0 0.0
        %2734 = vmatpush1.msra.mxu0 0.0
        %2735 = vmatprep.subr.mxu0 0.0
        %2736 = vmatpush1.msra.mxu0 0.0
        %2737 = vmatprep.subr.mxu0 0.0
        %2738 = vmatpush1.msra.mxu0 0.0
        %2739 = vmatprep.mubr.f32.mxu0 0.0
        %2740 = vmatmul.mubr.f32.gmra.mrb[0].mxu0 %v2570
        %v2741 = vpop.f32.mrb[0].mxu0
        %v2742 = vadd.f32 %v2672, %v2741
        %v2743 = vpop.f32.mrb[0].mxu0
        %2744 = vdwg.mxu0
        %v2745 = vld [vmem:[#allocation2 + $0x2] sm:$0x7]
        %s2746 = scalar_lea.vmem %s21, 256
        %v2747 = vld [vmem:[%s2746] sm:$0xff]
        %v2748 = vld [vmem:[%s2746 + $0x8] sm:$0xff]
        %v2749 = vld [vmem:[%s2746 + $0x10] sm:$0xff]
        %v2750 = vld [vmem:[%s2746 + $0x18] sm:$0xff]
        %v2751 = vld [vmem:[%s2746 + $0x20] sm:$0xff]
        %v2752 = vld [vmem:[%s2746 + $0x28] sm:$0xff]
        %v2753 = vld [vmem:[%s2746 + $0x30] sm:$0xff]
        %v2754 = vld [vmem:[%s2746 + $0x38] sm:$0xff]
        %v2755 = vld [vmem:[%s2746 + $0x40] sm:$0xff]
        %v2756 = vld [vmem:[%s2746 + $0x48] sm:$0xff]
        %v2757 = vld [vmem:[%s2746 + $0x50] sm:$0xff]
        %v2758 = vld [vmem:[%s2746 + $0x58] sm:$0xff]
        %v2759 = vld [vmem:[%s2746 + $0x60] sm:$0xff]
        %v2760 = vld [vmem:[%s2746 + $0x68] sm:$0xff]
        %v2761 = vld [vmem:[%s2746 + $0x70] sm:$0xff]
        %v2762 = vld [vmem:[%s2746 + $0x78] sm:$0xff]
        %2763 = vmatprep.subr.mxu0 0.0
        %2764 = vmatpush1.msra.mxu0 %v2747
        %2765 = vmatprep.subr.mxu0 0.0
        %2766 = vmatpush1.msra.mxu0 %v2748
        %2767 = vmatprep.subr.mxu0 0.0
        %2768 = vmatpush1.msra.mxu0 %v2749
        %2769 = vmatprep.subr.mxu0 0.0
        %2770 = vmatpush1.msra.mxu0 %v2750
        %2771 = vmatprep.subr.mxu0 0.0
        %2772 = vmatpush1.msra.mxu0 %v2751
        %2773 = vmatprep.subr.mxu0 0.0
        %2774 = vmatpush1.msra.mxu0 %v2752
        %2775 = vmatprep.subr.mxu0 0.0
        %2776 = vmatpush1.msra.mxu0 %v2753
        %2777 = vmatprep.subr.mxu0 0.0
        %2778 = vmatpush1.msra.mxu0 %v2754
        %2779 = vmatprep.subr.mxu0 0.0
        %2780 = vmatpush1.msra.mxu0 %v2755
        %2781 = vmatprep.subr.mxu0 0.0
        %2782 = vmatpush1.msra.mxu0 %v2756
        %2783 = vmatprep.subr.mxu0 0.0
        %2784 = vmatpush1.msra.mxu0 %v2757
        %2785 = vmatprep.subr.mxu0 0.0
        %2786 = vmatpush1.msra.mxu0 %v2758
        %2787 = vmatprep.subr.mxu0 0.0
        %2788 = vmatpush1.msra.mxu0 %v2759
        %2789 = vmatprep.subr.mxu0 0.0
        %2790 = vmatpush1.msra.mxu0 %v2760
        %2791 = vmatprep.subr.mxu0 0.0
        %2792 = vmatpush1.msra.mxu0 %v2761
        %2793 = vmatprep.subr.mxu0 0.0
        %2794 = vmatpush1.msra.mxu0 %v2762
        %2795 = vmatprep.subr.mxu0 0.0
        %2796 = vmatpush1.msra.mxu0 0.0
        %2797 = vmatprep.subr.mxu0 0.0
        %2798 = vmatpush1.msra.mxu0 0.0
        %2799 = vmatprep.subr.mxu0 0.0
        %2800 = vmatpush1.msra.mxu0 0.0
        %2801 = vmatprep.subr.mxu0 0.0
        %2802 = vmatpush1.msra.mxu0 0.0
        %2803 = vmatprep.subr.mxu0 0.0
        %2804 = vmatpush1.msra.mxu0 0.0
        %2805 = vmatprep.subr.mxu0 0.0
        %2806 = vmatpush1.msra.mxu0 0.0
        %2807 = vmatprep.subr.mxu0 0.0
        %2808 = vmatpush1.msra.mxu0 0.0
        %2809 = vmatprep.subr.mxu0 0.0
        %2810 = vmatpush1.msra.mxu0 0.0
        %2811 = vmatprep.subr.mxu0 0.0
        %2812 = vmatpush1.msra.mxu0 0.0
        %2813 = vmatprep.subr.mxu0 0.0
        %2814 = vmatpush1.msra.mxu0 0.0
        %2815 = vmatprep.subr.mxu0 0.0
        %2816 = vmatpush1.msra.mxu0 0.0
        %2817 = vmatprep.subr.mxu0 0.0
        %2818 = vmatpush1.msra.mxu0 0.0
        %2819 = vmatprep.subr.mxu0 0.0
        %2820 = vmatpush1.msra.mxu0 0.0
        %2821 = vmatprep.subr.mxu0 0.0
        %2822 = vmatpush1.msra.mxu0 0.0
        %2823 = vmatprep.subr.mxu0 0.0
        %2824 = vmatpush1.msra.mxu0 0.0
        %2825 = vmatprep.subr.mxu0 0.0
        %2826 = vmatpush1.msra.mxu0 0.0
        %2827 = vmatprep.mubr.f32.mxu0 0.0
        %2828 = vmatmul.mubr.f32.gmra.mrb[0].mxu0 %v2745
        %v2829 = vpop.f32.mrb[0].mxu0
        %v2830 = vadd.f32 0.0, %v2829
        %v2831 = vpop.f32.mrb[0].mxu0
        %2832 = vdwg.mxu0
        %v2833 = vadd.f32 %v2742, %v2830
        %v2834 = vld [vmem:[#allocation2 + $0x3] sm:$0x7]
        %s2835 = scalar_lea.vmem %s21, 384
        %v2836 = vld [vmem:[%s2835] sm:$0xff]
        %v2837 = vld [vmem:[%s2835 + $0x8] sm:$0xff]
        %v2838 = vld [vmem:[%s2835 + $0x10] sm:$0xff]
        %v2839 = vld [vmem:[%s2835 + $0x18] sm:$0xff]
        %v2840 = vld [vmem:[%s2835 + $0x20] sm:$0xff]
        %v2841 = vld [vmem:[%s2835 + $0x28] sm:$0xff]
        %v2842 = vld [vmem:[%s2835 + $0x30] sm:$0xff]
        %v2843 = vld [vmem:[%s2835 + $0x38] sm:$0xff]
        %v2844 = vld [vmem:[%s2835 + $0x40] sm:$0xff]
        %v2845 = vld [vmem:[%s2835 + $0x48] sm:$0xff]
        %v2846 = vld [vmem:[%s2835 + $0x50] sm:$0xff]
        %v2847 = vld [vmem:[%s2835 + $0x58] sm:$0xff]
        %v2848 = vld [vmem:[%s2835 + $0x60] sm:$0xff]
        %v2849 = vld [vmem:[%s2835 + $0x68] sm:$0xff]
        %v2850 = vld [vmem:[%s2835 + $0x70] sm:$0xff]
        %v2851 = vld [vmem:[%s2835 + $0x78] sm:$0xff]
        %2852 = vmatprep.subr.mxu0 0.0
        %2853 = vmatpush1.msra.mxu0 %v2836
        %2854 = vmatprep.subr.mxu0 0.0
        %2855 = vmatpush1.msra.mxu0 %v2837
        %2856 = vmatprep.subr.mxu0 0.0
        %2857 = vmatpush1.msra.mxu0 %v2838
        %2858 = vmatprep.subr.mxu0 0.0
        %2859 = vmatpush1.msra.mxu0 %v2839
        %2860 = vmatprep.subr.mxu0 0.0
        %2861 = vmatpush1.msra.mxu0 %v2840
        %2862 = vmatprep.subr.mxu0 0.0
        %2863 = vmatpush1.msra.mxu0 %v2841
        %2864 = vmatprep.subr.mxu0 0.0
        %2865 = vmatpush1.msra.mxu0 %v2842
        %2866 = vmatprep.subr.mxu0 0.0
        %2867 = vmatpush1.msra.mxu0 %v2843
        %2868 = vmatprep.subr.mxu0 0.0
        %2869 = vmatpush1.msra.mxu0 %v2844
        %2870 = vmatprep.subr.mxu0 0.0
        %2871 = vmatpush1.msra.mxu0 %v2845
        %2872 = vmatprep.subr.mxu0 0.0
        %2873 = vmatpush1.msra.mxu0 %v2846
        %2874 = vmatprep.subr.mxu0 0.0
        %2875 = vmatpush1.msra.mxu0 %v2847
        %2876 = vmatprep.subr.mxu0 0.0
        %2877 = vmatpush1.msra.mxu0 %v2848
        %2878 = vmatprep.subr.mxu0 0.0
        %2879 = vmatpush1.msra.mxu0 %v2849
        %2880 = vmatprep.subr.mxu0 0.0
        %2881 = vmatpush1.msra.mxu0 %v2850
        %2882 = vmatprep.subr.mxu0 0.0
        %2883 = vmatpush1.msra.mxu0 %v2851
        %2884 = vmatprep.subr.mxu0 0.0
        %2885 = vmatpush1.msra.mxu0 0.0
        %2886 = vmatprep.subr.mxu0 0.0
        %2887 = vmatpush1.msra.mxu0 0.0
        %2888 = vmatprep.subr.mxu0 0.0
        %2889 = vmatpush1.msra.mxu0 0.0
        %2890 = vmatprep.subr.mxu0 0.0
        %2891 = vmatpush1.msra.mxu0 0.0
        %2892 = vmatprep.subr.mxu0 0.0
        %2893 = vmatpush1.msra.mxu0 0.0
        %2894 = vmatprep.subr.mxu0 0.0
        %2895 = vmatpush1.msra.mxu0 0.0
        %2896 = vmatprep.subr.mxu0 0.0
        %2897 = vmatpush1.msra.mxu0 0.0
        %2898 = vmatprep.subr.mxu0 0.0
        %2899 = vmatpush1.msra.mxu0 0.0
        %2900 = vmatprep.subr.mxu0 0.0
        %2901 = vmatpush1.msra.mxu0 0.0
        %2902 = vmatprep.subr.mxu0 0.0
        %2903 = vmatpush1.msra.mxu0 0.0
        %2904 = vmatprep.subr.mxu0 0.0
        %2905 = vmatpush1.msra.mxu0 0.0
        %2906 = vmatprep.subr.mxu0 0.0
        %2907 = vmatpush1.msra.mxu0 0.0
        %2908 = vmatprep.subr.mxu0 0.0
        %2909 = vmatpush1.msra.mxu0 0.0
        %2910 = vmatprep.subr.mxu0 0.0
        %2911 = vmatpush1.msra.mxu0 0.0
        %2912 = vmatprep.subr.mxu0 0.0
        %2913 = vmatpush1.msra.mxu0 0.0
        %2914 = vmatprep.subr.mxu0 0.0
        %2915 = vmatpush1.msra.mxu0 0.0
        %2916 = vmatprep.mubr.f32.mxu0 0.0
        %2917 = vmatmul.mubr.f32.gmra.mrb[0].mxu0 %v2834
        %v2918 = vpop.f32.mrb[0].mxu0
        %v2919 = vadd.f32 0.0, %v2918
        %v2920 = vpop.f32.mrb[0].mxu0
        %2921 = vdwg.mxu0
        %v2922 = vadd.f32 %v2833, %v2919
        %vm2923 = vcmask 23552
        %v2924 = vsel %vm2923, %v2286, 0
        %vm2926 = vcmask 1042432
        %v2928 = vsel %vm2926, %v2922, 0
        %2930 = vmatprep.subr.mxu0 0.0
        %2931 = vmatpush1.msra.mxu0 %v2928
        %2932 = vmatprep.subr.mxu0 0.0
        %2933 = vmatpush1.msra.mxu0 0.0
        %2934 = vmatprep.subr.mxu0 0.0
        %2935 = vmatpush1.msra.mxu0 0.0
        %2936 = vmatprep.subr.mxu0 0.0
        %2937 = vmatpush1.msra.mxu0 0.0
        %2938 = vmatprep.subr.mxu0 0.0
        %2939 = vmatpush1.msra.mxu0 0.0
        %2940 = vmatprep.subr.mxu0 0.0
        %2941 = vmatpush1.msra.mxu0 0.0
        %2942 = vmatprep.subr.mxu0 0.0
        %2943 = vmatpush1.msra.mxu0 0.0
        %2944 = vmatprep.subr.mxu0 0.0
        %2945 = vmatpush1.msra.mxu0 0.0
        %2946 = vmatprep.subr.mxu0 0.0
        %2947 = vmatpush1.msra.mxu0 0.0
        %2948 = vmatprep.subr.mxu0 0.0
        %2949 = vmatpush1.msra.mxu0 0.0
        %2950 = vmatprep.subr.mxu0 0.0
        %2951 = vmatpush1.msra.mxu0 0.0
        %2952 = vmatprep.subr.mxu0 0.0
        %2953 = vmatpush1.msra.mxu0 0.0
        %2954 = vmatprep.subr.mxu0 0.0
        %2955 = vmatpush1.msra.mxu0 0.0
        %2956 = vmatprep.subr.mxu0 0.0
        %2957 = vmatpush1.msra.mxu0 0.0
        %2958 = vmatprep.subr.mxu0 0.0
        %2959 = vmatpush1.msra.mxu0 0.0
        %2960 = vmatprep.subr.mxu0 0.0
        %2961 = vmatpush1.msra.mxu0 0.0
        %2962 = vmatprep.subr.mxu0 0.0
        %2963 = vmatpush1.msra.mxu0 0.0
        %2964 = vmatprep.subr.mxu0 0.0
        %2965 = vmatpush1.msra.mxu0 0.0
        %2966 = vmatprep.subr.mxu0 0.0
        %2967 = vmatpush1.msra.mxu0 0.0
        %2968 = vmatprep.subr.mxu0 0.0
        %2969 = vmatpush1.msra.mxu0 0.0
        %2970 = vmatprep.subr.mxu0 0.0
        %2971 = vmatpush1.msra.mxu0 0.0
        %2972 = vmatprep.subr.mxu0 0.0
        %2973 = vmatpush1.msra.mxu0 0.0
        %2974 = vmatprep.subr.mxu0 0.0
        %2975 = vmatpush1.msra.mxu0 0.0
        %2976 = vmatprep.subr.mxu0 0.0
        %2977 = vmatpush1.msra.mxu0 0.0
        %2978 = vmatprep.subr.mxu0 0.0
        %2979 = vmatpush1.msra.mxu0 0.0
        %2980 = vmatprep.subr.mxu0 0.0
        %2981 = vmatpush1.msra.mxu0 0.0
        %2982 = vmatprep.subr.mxu0 0.0
        %2983 = vmatpush1.msra.mxu0 0.0
        %2984 = vmatprep.subr.mxu0 0.0
        %2985 = vmatpush1.msra.mxu0 0.0
        %2986 = vmatprep.subr.mxu0 0.0
        %2987 = vmatpush1.msra.mxu0 0.0
        %2988 = vmatprep.subr.mxu0 0.0
        %2989 = vmatpush1.msra.mxu0 0.0
        %2990 = vmatprep.subr.mxu0 0.0
        %2991 = vmatpush1.msra.mxu0 0.0
        %2992 = vmatprep.subr.mxu0 0.0
        %2993 = vmatpush1.msra.mxu0 0.0
        %2994 = vmatprep.mubr.f32.mxu0 0.0
        %2995 = vmatmul.mubr.f32.gmra.mrb[0].mxu0 %v2924
        %v2996 = vpop.f32.mrb[0].mxu0
        %v2997 = vadd.f32 0.0, %v2996
        %v2998 = vpop.f32.mrb[0].mxu0
        %2999 = vdwg.mxu0
        %v3000 = vld [vmem:[#allocation8] sm:$0xff]
        %v3001 = vld [vmem:[#allocation8 + $0x8] sm:$0xff]
        %v3002 = vld [vmem:[#allocation8 + $0x10] sm:$0xff]
        %v3003 = vld [vmem:[#allocation8 + $0x18] sm:$0xff]
        %v3004 = vld [vmem:[#allocation8 + $0x20] sm:$0xff]
        %v3005 = vld [vmem:[#allocation8 + $0x28] sm:$0xff]
        %v3006 = vld [vmem:[#allocation8 + $0x30] sm:$0xff]
        %v3007 = vld [vmem:[#allocation8 + $0x38] sm:$0xff]
        %v3008 = vld [vmem:[#allocation8 + $0x40] sm:$0xff]
        %v3009 = vld [vmem:[#allocation8 + $0x48] sm:$0xff]
        %v3010 = vld [vmem:[#allocation8 + $0x50] sm:$0xff]
        %v3011 = vld [vmem:[#allocation8 + $0x58] sm:$0xff]
        %v3012 = vld [vmem:[#allocation8 + $0x60] sm:$0xff]
        %v3013 = vld [vmem:[#allocation8 + $0x68] sm:$0xff]
        %v3014 = vld [vmem:[#allocation8 + $0x70] sm:$0xff]
        %v3015 = vld [vmem:[#allocation8 + $0x78] sm:$0xff]
        %vm3016 = vcmask 1041408
        %v3017 = vsel %vm3016, %v2997, 0.0
        %v3018 = vrot.slane %v3017, 4
        %v3019 = vadd.f32 %v3017, %v3018
        %v3020 = vrot.slane %v3019, 2
        %v3021 = vadd.f32 %v3019, %v3020
        %v3022 = vrot.slane %v3021, 1
        %v3023 = vadd.f32 %v3021, %v3022
        %3024 = vmatprep.subr.mxu0 0.0
        %3025 = vmatpush1.msra.mxu0 %v3000
        %3026 = vmatprep.subr.mxu0 0.0
        %3027 = vmatpush1.msra.mxu0 %v3001
        %3028 = vmatprep.subr.mxu0 0.0
        %3029 = vmatpush1.msra.mxu0 %v3002
        %3030 = vmatprep.subr.mxu0 0.0
        %3031 = vmatpush1.msra.mxu0 %v3003
        %3032 = vmatprep.subr.mxu0 0.0
        %3033 = vmatpush1.msra.mxu0 %v3004
        %3034 = vmatprep.subr.mxu0 0.0
        %3035 = vmatpush1.msra.mxu0 %v3005
        %3036 = vmatprep.subr.mxu0 0.0
        %3037 = vmatpush1.msra.mxu0 %v3006
        %3038 = vmatprep.subr.mxu0 0.0
        %3039 = vmatpush1.msra.mxu0 %v3007
        %3040 = vmatprep.subr.mxu0 0.0
        %3041 = vmatpush1.msra.mxu0 %v3008
        %3042 = vmatprep.subr.mxu0 0.0
        %3043 = vmatpush1.msra.mxu0 %v3009
        %3044 = vmatprep.subr.mxu0 0.0
        %3045 = vmatpush1.msra.mxu0 %v3010
        %3046 = vmatprep.subr.mxu0 0.0
        %3047 = vmatpush1.msra.mxu0 %v3011
        %3048 = vmatprep.subr.mxu0 0.0
        %3049 = vmatpush1.msra.mxu0 %v3012
        %3050 = vmatprep.subr.mxu0 0.0
        %3051 = vmatpush1.msra.mxu0 %v3013
        %3052 = vmatprep.subr.mxu0 0.0
        %3053 = vmatpush1.msra.mxu0 %v3014
        %3054 = vmatprep.subr.mxu0 0.0
        %3055 = vmatpush1.msra.mxu0 %v3015
        %3056 = vmatprep.subr.mxu0 0.0
        %3057 = vmatpush1.msra.mxu0 0.0
        %3058 = vmatprep.subr.mxu0 0.0
        %3059 = vmatpush1.msra.mxu0 0.0
        %3060 = vmatprep.subr.mxu0 0.0
        %3061 = vmatpush1.msra.mxu0 0.0
        %3062 = vmatprep.subr.mxu0 0.0
        %3063 = vmatpush1.msra.mxu0 0.0
        %3064 = vmatprep.subr.mxu0 0.0
        %3065 = vmatpush1.msra.mxu0 0.0
        %3066 = vmatprep.subr.mxu0 0.0
        %3067 = vmatpush1.msra.mxu0 0.0
        %3068 = vmatprep.subr.mxu0 0.0
        %3069 = vmatpush1.msra.mxu0 0.0
        %3070 = vmatprep.subr.mxu0 0.0
        %3071 = vmatpush1.msra.mxu0 0.0
        %3072 = vmatprep.subr.mxu0 0.0
        %3073 = vmatpush1.msra.mxu0 0.0
        %3074 = vmatprep.subr.mxu0 0.0
        %3075 = vmatpush1.msra.mxu0 0.0
        %3076 = vmatprep.subr.mxu0 0.0
        %3077 = vmatpush1.msra.mxu0 0.0
        %3078 = vmatprep.subr.mxu0 0.0
        %3079 = vmatpush1.msra.mxu0 0.0
        %3080 = vmatprep.subr.mxu0 0.0
        %3081 = vmatpush1.msra.mxu0 0.0
        %3082 = vmatprep.subr.mxu0 0.0
        %3083 = vmatpush1.msra.mxu0 0.0
        %3084 = vmatprep.subr.mxu0 0.0
        %3085 = vmatpush1.msra.mxu0 0.0
        %3086 = vmatprep.subr.mxu0 0.0
        %3087 = vmatpush1.msra.mxu0 0.0
        %3088 = vmatprep.mubr.f32.mxu0 0.0
        %3089 = vmatmul.mubr.f32.gmra.mrb[0].mxu0 %v3023
        %v3090 = vpop.f32.mrb[0].mxu0
        %v3091 = vadd.f32 0.0, %v3090
        %v3092 = vpop.f32.mrb[0].mxu0
        %3093 = vdwg.mxu0
        %v3094 = vlaneseq
        %v3095 = vshrl.u32 %v3094, 7
        %v3096 = vsub.s32 0, %v3095
        %v3097 = vrot.slane %v3091, %v3096
        %v3098 = vsub.f32 %v2997, %v3097
        %v3099 = vmul.f32 %v3098, %v3098
        %v3100 = vsel %vm3016, %v3099, 0.0
        %v3101 = vrot.slane %v3100, 4
        %v3102 = vadd.f32 %v3100, %v3101
        %v3103 = vrot.slane %v3102, 2
        %v3104 = vadd.f32 %v3102, %v3103
        %v3105 = vrot.slane %v3104, 1
        %v3106 = vadd.f32 %v3104, %v3105
        %3107 = vmatprep.subr.mxu0 0.0
        %3108 = vmatpush1.msra.mxu0 %v3000
        %3109 = vmatprep.subr.mxu0 0.0
        %3110 = vmatpush1.msra.mxu0 %v3001
        %3111 = vmatprep.subr.mxu0 0.0
        %3112 = vmatpush1.msra.mxu0 %v3002
        %3113 = vmatprep.subr.mxu0 0.0
        %3114 = vmatpush1.msra.mxu0 %v3003
        %3115 = vmatprep.subr.mxu0 0.0
        %3116 = vmatpush1.msra.mxu0 %v3004
        %3117 = vmatprep.subr.mxu0 0.0
        %3118 = vmatpush1.msra.mxu0 %v3005
        %3119 = vmatprep.subr.mxu0 0.0
        %3120 = vmatpush1.msra.mxu0 %v3006
        %3121 = vmatprep.subr.mxu0 0.0
        %3122 = vmatpush1.msra.mxu0 %v3007
        %3123 = vmatprep.subr.mxu0 0.0
        %3124 = vmatpush1.msra.mxu0 %v3008
        %3125 = vmatprep.subr.mxu0 0.0
        %3126 = vmatpush1.msra.mxu0 %v3009
        %3127 = vmatprep.subr.mxu0 0.0
        %3128 = vmatpush1.msra.mxu0 %v3010
        %3129 = vmatprep.subr.mxu0 0.0
        %3130 = vmatpush1.msra.mxu0 %v3011
        %3131 = vmatprep.subr.mxu0 0.0
        %3132 = vmatpush1.msra.mxu0 %v3012
        %3133 = vmatprep.subr.mxu0 0.0
        %3134 = vmatpush1.msra.mxu0 %v3013
        %3135 = vmatprep.subr.mxu0 0.0
        %3136 = vmatpush1.msra.mxu0 %v3014
        %3137 = vmatprep.subr.mxu0 0.0
        %3138 = vmatpush1.msra.mxu0 %v3015
        %3139 = vmatprep.subr.mxu0 0.0
        %3140 = vmatpush1.msra.mxu0 0.0
        %3141 = vmatprep.subr.mxu0 0.0
        %3142 = vmatpush1.msra.mxu0 0.0
        %3143 = vmatprep.subr.mxu0 0.0
        %3144 = vmatpush1.msra.mxu0 0.0
        %3145 = vmatprep.subr.mxu0 0.0
        %3146 = vmatpush1.msra.mxu0 0.0
        %3147 = vmatprep.subr.mxu0 0.0
        %3148 = vmatpush1.msra.mxu0 0.0
        %3149 = vmatprep.subr.mxu0 0.0
        %3150 = vmatpush1.msra.mxu0 0.0
        %3151 = vmatprep.subr.mxu0 0.0
        %3152 = vmatpush1.msra.mxu0 0.0
        %3153 = vmatprep.subr.mxu0 0.0
        %3154 = vmatpush1.msra.mxu0 0.0
        %3155 = vmatprep.subr.mxu0 0.0
        %3156 = vmatpush1.msra.mxu0 0.0
        %3157 = vmatprep.subr.mxu0 0.0
        %3158 = vmatpush1.msra.mxu0 0.0
        %3159 = vmatprep.subr.mxu0 0.0
        %3160 = vmatpush1.msra.mxu0 0.0
        %3161 = vmatprep.subr.mxu0 0.0
        %3162 = vmatpush1.msra.mxu0 0.0
        %3163 = vmatprep.subr.mxu0 0.0
        %3164 = vmatpush1.msra.mxu0 0.0
        %3165 = vmatprep.subr.mxu0 0.0
        %3166 = vmatpush1.msra.mxu0 0.0
        %3167 = vmatprep.subr.mxu0 0.0
        %3168 = vmatpush1.msra.mxu0 0.0
        %3169 = vmatprep.subr.mxu0 0.0
        %3170 = vmatpush1.msra.mxu0 0.0
        %3171 = vmatprep.mubr.f32.mxu0 0.0
        %3172 = vmatmul.mubr.f32.gmra.mrb[0].mxu0 %v3106
        %v3173 = vpop.f32.mrb[0].mxu0
        %v3174 = vadd.f32 1e-05, %v3173
        %v3175 = vpop.f32.mrb[0].mxu0
        %3176 = vdwg.mxu0
        %v3177 = vrsqrt.pop %v3174
        %v3178 = vlaneseq
        %v3179 = vshrl.u32 %v3178, 7
        %v3180 = vsub.s32 0, %v3179
        %v3181 = vrot.slane %v3177, %v3180
        %v3182 = vmul.f32 %v3098, %v3181
        %v3183 = vld [vmem:[%s25] sm:$0x1]
        %v3185 = vlaneseq
        %v3186 = vshrl.u32 %v3185, 7
        %v3187 = vsub.s32 0, %v3186
        %v3188 = vrot.slane %v3183, %v3187
        %v3190 = vmul.f32 %v3182, %v3188
        %v3191 = vld [vmem:[%s27] sm:$0x1]
        %v3193 = vlaneseq
        %v3194 = vshrl.u32 %v3193, 7
        %v3195 = vsub.s32 0, %v3194
        %v3196 = vrot.slane %v3191, %v3195
        %v3198 = vadd.f32 %v3190, %v3196
        %vm3199 = vcmp.gt.f32.partialorder %v3198, 0.0
        %v3200 = vmul.f32 %v3198, 0.01
        %v3201 = vsel %vm3199, %v3198, %v3200
        %3202 = vst [vmem:[#allocation2] sm:$0xff] 0.0
        %3203 = vst [vmem:[#allocation2 + $0x8] sm:$0xff] 0.0
        %3204 = vst [vmem:[#allocation2 + $0x1] sm:$0x3] %v3201
        %v3205 = vld [vmem:[#allocation2] sm:$0x3]
        %v3206 = vld [vmem:[#allocation9] sm:$0xff]
        %v3207 = vld [vmem:[#allocation9 + $0x8] sm:$0xff]
        %v3208 = vld [vmem:[#allocation9 + $0x10] sm:$0xff]
        %v3209 = vld [vmem:[#allocation9 + $0x18] sm:$0xff]
        %v3210 = vld [vmem:[#allocation9 + $0x20] sm:$0xff]
        %v3211 = vld [vmem:[#allocation9 + $0x28] sm:$0xff]
        %v3212 = vld [vmem:[#allocation9 + $0x30] sm:$0xff]
        %v3213 = vld [vmem:[#allocation9 + $0x38] sm:$0xff]
        %v3214 = vld [vmem:[#allocation9 + $0x40] sm:$0xff]
        %v3215 = vld [vmem:[#allocation9 + $0x48] sm:$0xff]
        %v3216 = vld [vmem:[#allocation9 + $0x50] sm:$0xff]
        %v3217 = vld [vmem:[#allocation9 + $0x58] sm:$0xff]
        %v3218 = vld [vmem:[#allocation9 + $0x60] sm:$0xff]
        %v3219 = vld [vmem:[#allocation9 + $0x68] sm:$0xff]
        %v3220 = vld [vmem:[#allocation9 + $0x70] sm:$0xff]
        %v3221 = vld [vmem:[#allocation9 + $0x78] sm:$0xff]
        %v3222 = vld [vmem:[#allocation2 + $0x1] sm:$0x3]
        %s3223 = scalar_lea.vmem [#allocation9], 128
        %v3224 = vld [vmem:[%s3223] sm:$0xff]
        %v3225 = vld [vmem:[%s3223 + $0x8] sm:$0xff]
        %v3226 = vld [vmem:[%s3223 + $0x10] sm:$0xff]
        %v3227 = vld [vmem:[%s3223 + $0x18] sm:$0xff]
        %v3228 = vld [vmem:[%s3223 + $0x20] sm:$0xff]
        %v3229 = vld [vmem:[%s3223 + $0x28] sm:$0xff]
        %v3230 = vld [vmem:[%s3223 + $0x30] sm:$0xff]
        %v3231 = vld [vmem:[%s3223 + $0x38] sm:$0xff]
        %v3232 = vld [vmem:[%s3223 + $0x40] sm:$0xff]
        %v3233 = vld [vmem:[%s3223 + $0x48] sm:$0xff]
        %v3234 = vld [vmem:[%s3223 + $0x50] sm:$0xff]
        %v3235 = vld [vmem:[%s3223 + $0x58] sm:$0xff]
        %v3236 = vld [vmem:[%s3223 + $0x60] sm:$0xff]
        %v3237 = vld [vmem:[%s3223 + $0x68] sm:$0xff]
        %v3238 = vld [vmem:[%s3223 + $0x70] sm:$0xff]
        %v3239 = vld [vmem:[%s3223 + $0x78] sm:$0xff]
        %3240 = vmatprep.subr.mxu0 0.0
        %3241 = vmatpush1.msra.mxu0 %v3224
        %3242 = vmatprep.subr.mxu0 0.0
        %3243 = vmatpush1.msra.mxu0 %v3225
        %3244 = vmatprep.subr.mxu0 0.0
        %3245 = vmatpush1.msra.mxu0 %v3226
        %3246 = vmatprep.subr.mxu0 0.0
        %3247 = vmatpush1.msra.mxu0 %v3227
        %3248 = vmatprep.subr.mxu0 0.0
        %3249 = vmatpush1.msra.mxu0 %v3228
        %3250 = vmatprep.subr.mxu0 0.0
        %3251 = vmatpush1.msra.mxu0 %v3229
        %3252 = vmatprep.subr.mxu0 0.0
        %3253 = vmatpush1.msra.mxu0 %v3230
        %3254 = vmatprep.subr.mxu0 0.0
        %3255 = vmatpush1.msra.mxu0 %v3231
        %3256 = vmatprep.subr.mxu0 0.0
        %3257 = vmatpush1.msra.mxu0 %v3232
        %3258 = vmatprep.subr.mxu0 0.0
        %3259 = vmatpush1.msra.mxu0 %v3233
        %3260 = vmatprep.subr.mxu0 0.0
        %3261 = vmatpush1.msra.mxu0 %v3234
        %3262 = vmatprep.subr.mxu0 0.0
        %3263 = vmatpush1.msra.mxu0 %v3235
        %3264 = vmatprep.subr.mxu0 0.0
        %3265 = vmatpush1.msra.mxu0 %v3236
        %3266 = vmatprep.subr.mxu0 0.0
        %3267 = vmatpush1.msra.mxu0 %v3237
        %3268 = vmatprep.subr.mxu0 0.0
        %3269 = vmatpush1.msra.mxu0 %v3238
        %3270 = vmatprep.subr.mxu0 0.0
        %3271 = vmatpush1.msra.mxu0 %v3239
        %3272 = vmatprep.subr.mxu0 0.0
        %3273 = vmatpush1.msra.mxu0 0.0
        %3274 = vmatprep.subr.mxu0 0.0
        %3275 = vmatpush1.msra.mxu0 0.0
        %3276 = vmatprep.subr.mxu0 0.0
        %3277 = vmatpush1.msra.mxu0 0.0
        %3278 = vmatprep.subr.mxu0 0.0
        %3279 = vmatpush1.msra.mxu0 0.0
        %3280 = vmatprep.subr.mxu0 0.0
        %3281 = vmatpush1.msra.mxu0 0.0
        %3282 = vmatprep.subr.mxu0 0.0
        %3283 = vmatpush1.msra.mxu0 0.0
        %3284 = vmatprep.subr.mxu0 0.0
        %3285 = vmatpush1.msra.mxu0 0.0
        %3286 = vmatprep.subr.mxu0 0.0
        %3287 = vmatpush1.msra.mxu0 0.0
        %3288 = vmatprep.subr.mxu0 0.0
        %3289 = vmatpush1.msra.mxu0 0.0
        %3290 = vmatprep.subr.mxu0 0.0
        %3291 = vmatpush1.msra.mxu0 0.0
        %3292 = vmatprep.subr.mxu0 0.0
        %3293 = vmatpush1.msra.mxu0 0.0
        %3294 = vmatprep.subr.mxu0 0.0
        %3295 = vmatpush1.msra.mxu0 0.0
        %3296 = vmatprep.subr.mxu0 0.0
        %3297 = vmatpush1.msra.mxu0 0.0
        %3298 = vmatprep.subr.mxu0 0.0
        %3299 = vmatpush1.msra.mxu0 0.0
        %3300 = vmatprep.subr.mxu0 0.0
        %3301 = vmatpush1.msra.mxu0 0.0
        %3302 = vmatprep.subr.mxu0 0.0
        %3303 = vmatpush1.msra.mxu0 0.0
        %3304 = vmatprep.mubr.f32.mxu0 0.0
        %3305 = vmatmul.mubr.f32.gmra.mrb[0].mxu0 %v3222
        %v3306 = vpop.f32.mrb[0].mxu0
        %v3307 = vadd.f32 0.0, %v3306
        %v3308 = vpop.f32.mrb[0].mxu0
        %3309 = vdwg.mxu0
        %3310 = vmatprep.subr.mxu0 0.0
        %3311 = vmatpush1.msra.mxu0 %v3206
        %3312 = vmatprep.subr.mxu0 0.0
        %3313 = vmatpush1.msra.mxu0 %v3207
        %3314 = vmatprep.subr.mxu0 0.0
        %3315 = vmatpush1.msra.mxu0 %v3208
        %3316 = vmatprep.subr.mxu0 0.0
        %3317 = vmatpush1.msra.mxu0 %v3209
        %3318 = vmatprep.subr.mxu0 0.0
        %3319 = vmatpush1.msra.mxu0 %v3210
        %3320 = vmatprep.subr.mxu0 0.0
        %3321 = vmatpush1.msra.mxu0 %v3211
        %3322 = vmatprep.subr.mxu0 0.0
        %3323 = vmatpush1.msra.mxu0 %v3212
        %3324 = vmatprep.subr.mxu0 0.0
        %3325 = vmatpush1.msra.mxu0 %v3213
        %3326 = vmatprep.subr.mxu0 0.0
        %3327 = vmatpush1.msra.mxu0 %v3214
        %3328 = vmatprep.subr.mxu0 0.0
        %3329 = vmatpush1.msra.mxu0 %v3215
        %3330 = vmatprep.subr.mxu0 0.0
        %3331 = vmatpush1.msra.mxu0 %v3216
        %3332 = vmatprep.subr.mxu0 0.0
        %3333 = vmatpush1.msra.mxu0 %v3217
        %3334 = vmatprep.subr.mxu0 0.0
        %3335 = vmatpush1.msra.mxu0 %v3218
        %3336 = vmatprep.subr.mxu0 0.0
        %3337 = vmatpush1.msra.mxu0 %v3219
        %3338 = vmatprep.subr.mxu0 0.0
        %3339 = vmatpush1.msra.mxu0 %v3220
        %3340 = vmatprep.subr.mxu0 0.0
        %3341 = vmatpush1.msra.mxu0 %v3221
        %3342 = vmatprep.subr.mxu0 0.0
        %3343 = vmatpush1.msra.mxu0 0.0
        %3344 = vmatprep.subr.mxu0 0.0
        %3345 = vmatpush1.msra.mxu0 0.0
        %3346 = vmatprep.subr.mxu0 0.0
        %3347 = vmatpush1.msra.mxu0 0.0
        %3348 = vmatprep.subr.mxu0 0.0
        %3349 = vmatpush1.msra.mxu0 0.0
        %3350 = vmatprep.subr.mxu0 0.0
        %3351 = vmatpush1.msra.mxu0 0.0
        %3352 = vmatprep.subr.mxu0 0.0
        %3353 = vmatpush1.msra.mxu0 0.0
        %3354 = vmatprep.subr.mxu0 0.0
        %3355 = vmatpush1.msra.mxu0 0.0
        %3356 = vmatprep.subr.mxu0 0.0
        %3357 = vmatpush1.msra.mxu0 0.0
        %3358 = vmatprep.subr.mxu0 0.0
        %3359 = vmatpush1.msra.mxu0 0.0
        %3360 = vmatprep.subr.mxu0 0.0
        %3361 = vmatpush1.msra.mxu0 0.0
        %3362 = vmatprep.subr.mxu0 0.0
        %3363 = vmatpush1.msra.mxu0 0.0
        %3364 = vmatprep.subr.mxu0 0.0
        %3365 = vmatpush1.msra.mxu0 0.0
        %3366 = vmatprep.subr.mxu0 0.0
        %3367 = vmatpush1.msra.mxu0 0.0
        %3368 = vmatprep.subr.mxu0 0.0
        %3369 = vmatpush1.msra.mxu0 0.0
        %3370 = vmatprep.subr.mxu0 0.0
        %3371 = vmatpush1.msra.mxu0 0.0
        %3372 = vmatprep.subr.mxu0 0.0
        %3373 = vmatpush1.msra.mxu0 0.0
        %3374 = vmatprep.mubr.f32.mxu0 0.0
        %3375 = vmatmul.mubr.f32.gmra.mrb[0].mxu0 %v3205
        %v3376 = vpop.f32.mrb[0].mxu0
        %v3377 = vadd.f32 %v3307, %v3376
        %v3378 = vpop.f32.mrb[0].mxu0
        %3379 = vdwg.mxu0
        %v3380 = vld [vmem:[#allocation2 + $0x2] sm:$0x3]
        %s3381 = scalar_lea.vmem [#allocation9], 256
        %v3382 = vld [vmem:[%s3381] sm:$0xff]
        %v3383 = vld [vmem:[%s3381 + $0x8] sm:$0xff]
        %v3384 = vld [vmem:[%s3381 + $0x10] sm:$0xff]
        %v3385 = vld [vmem:[%s3381 + $0x18] sm:$0xff]
        %v3386 = vld [vmem:[%s3381 + $0x20] sm:$0xff]
        %v3387 = vld [vmem:[%s3381 + $0x28] sm:$0xff]
        %v3388 = vld [vmem:[%s3381 + $0x30] sm:$0xff]
        %v3389 = vld [vmem:[%s3381 + $0x38] sm:$0xff]
        %v3390 = vld [vmem:[%s3381 + $0x40] sm:$0xff]
        %v3391 = vld [vmem:[%s3381 + $0x48] sm:$0xff]
        %v3392 = vld [vmem:[%s3381 + $0x50] sm:$0xff]
        %v3393 = vld [vmem:[%s3381 + $0x58] sm:$0xff]
        %v3394 = vld [vmem:[%s3381 + $0x60] sm:$0xff]
        %v3395 = vld [vmem:[%s3381 + $0x68] sm:$0xff]
        %v3396 = vld [vmem:[%s3381 + $0x70] sm:$0xff]
        %v3397 = vld [vmem:[%s3381 + $0x78] sm:$0xff]
        %3398 = vmatprep.subr.mxu0 0.0
        %3399 = vmatpush1.msra.mxu0 %v3382
        %3400 = vmatprep.subr.mxu0 0.0
        %3401 = vmatpush1.msra.mxu0 %v3383
        %3402 = vmatprep.subr.mxu0 0.0
        %3403 = vmatpush1.msra.mxu0 %v3384
        %3404 = vmatprep.subr.mxu0 0.0
        %3405 = vmatpush1.msra.mxu0 %v3385
        %3406 = vmatprep.subr.mxu0 0.0
        %3407 = vmatpush1.msra.mxu0 %v3386
        %3408 = vmatprep.subr.mxu0 0.0
        %3409 = vmatpush1.msra.mxu0 %v3387
        %3410 = vmatprep.subr.mxu0 0.0
        %3411 = vmatpush1.msra.mxu0 %v3388
        %3412 = vmatprep.subr.mxu0 0.0
        %3413 = vmatpush1.msra.mxu0 %v3389
        %3414 = vmatprep.subr.mxu0 0.0
        %3415 = vmatpush1.msra.mxu0 %v3390
        %3416 = vmatprep.subr.mxu0 0.0
        %3417 = vmatpush1.msra.mxu0 %v3391
        %3418 = vmatprep.subr.mxu0 0.0
        %3419 = vmatpush1.msra.mxu0 %v3392
        %3420 = vmatprep.subr.mxu0 0.0
        %3421 = vmatpush1.msra.mxu0 %v3393
        %3422 = vmatprep.subr.mxu0 0.0
        %3423 = vmatpush1.msra.mxu0 %v3394
        %3424 = vmatprep.subr.mxu0 0.0
        %3425 = vmatpush1.msra.mxu0 %v3395
        %3426 = vmatprep.subr.mxu0 0.0
        %3427 = vmatpush1.msra.mxu0 %v3396
        %3428 = vmatprep.subr.mxu0 0.0
        %3429 = vmatpush1.msra.mxu0 %v3397
        %3430 = vmatprep.subr.mxu0 0.0
        %3431 = vmatpush1.msra.mxu0 0.0
        %3432 = vmatprep.subr.mxu0 0.0
        %3433 = vmatpush1.msra.mxu0 0.0
        %3434 = vmatprep.subr.mxu0 0.0
        %3435 = vmatpush1.msra.mxu0 0.0
        %3436 = vmatprep.subr.mxu0 0.0
        %3437 = vmatpush1.msra.mxu0 0.0
        %3438 = vmatprep.subr.mxu0 0.0
        %3439 = vmatpush1.msra.mxu0 0.0
        %3440 = vmatprep.subr.mxu0 0.0
        %3441 = vmatpush1.msra.mxu0 0.0
        %3442 = vmatprep.subr.mxu0 0.0
        %3443 = vmatpush1.msra.mxu0 0.0
        %3444 = vmatprep.subr.mxu0 0.0
        %3445 = vmatpush1.msra.mxu0 0.0
        %3446 = vmatprep.subr.mxu0 0.0
        %3447 = vmatpush1.msra.mxu0 0.0
        %3448 = vmatprep.subr.mxu0 0.0
        %3449 = vmatpush1.msra.mxu0 0.0
        %3450 = vmatprep.subr.mxu0 0.0
        %3451 = vmatpush1.msra.mxu0 0.0
        %3452 = vmatprep.subr.mxu0 0.0
        %3453 = vmatpush1.msra.mxu0 0.0
        %3454 = vmatprep.subr.mxu0 0.0
        %3455 = vmatpush1.msra.mxu0 0.0
        %3456 = vmatprep.subr.mxu0 0.0
        %3457 = vmatpush1.msra.mxu0 0.0
        %3458 = vmatprep.subr.mxu0 0.0
        %3459 = vmatpush1.msra.mxu0 0.0
        %3460 = vmatprep.subr.mxu0 0.0
        %3461 = vmatpush1.msra.mxu0 0.0
        %3462 = vmatprep.mubr.f32.mxu0 0.0
        %3463 = vmatmul.mubr.f32.gmra.mrb[0].mxu0 %v3380
        %v3464 = vpop.f32.mrb[0].mxu0
        %v3465 = vadd.f32 0.0, %v3464
        %v3466 = vpop.f32.mrb[0].mxu0
        %3467 = vdwg.mxu0
        %v3468 = vadd.f32 %v3377, %v3465
        %v3469 = vld [vmem:[#allocation8] sm:$0xff]
        %v3470 = vld [vmem:[#allocation8 + $0x8] sm:$0xff]
        %v3471 = vld [vmem:[#allocation8 + $0x10] sm:$0xff]
        %v3472 = vld [vmem:[#allocation8 + $0x18] sm:$0xff]
        %v3473 = vld [vmem:[#allocation8 + $0x20] sm:$0xff]
        %v3474 = vld [vmem:[#allocation8 + $0x28] sm:$0xff]
        %v3475 = vld [vmem:[#allocation8 + $0x30] sm:$0xff]
        %v3476 = vld [vmem:[#allocation8 + $0x38] sm:$0xff]
        %v3477 = vld [vmem:[#allocation8 + $0x40] sm:$0xff]
        %v3478 = vld [vmem:[#allocation8 + $0x48] sm:$0xff]
        %v3479 = vld [vmem:[#allocation8 + $0x50] sm:$0xff]
        %v3480 = vld [vmem:[#allocation8 + $0x58] sm:$0xff]
        %v3481 = vld [vmem:[#allocation8 + $0x60] sm:$0xff]
        %v3482 = vld [vmem:[#allocation8 + $0x68] sm:$0xff]
        %v3483 = vld [vmem:[#allocation8 + $0x70] sm:$0xff]
        %v3484 = vld [vmem:[#allocation8 + $0x78] sm:$0xff]
        %v3485 = vsel %vm3016, %v3468, 0.0
        %v3486 = vrot.slane %v3485, 4
        %v3487 = vadd.f32 %v3485, %v3486
        %v3488 = vrot.slane %v3487, 2
        %v3489 = vadd.f32 %v3487, %v3488
        %v3490 = vrot.slane %v3489, 1
        %v3491 = vadd.f32 %v3489, %v3490
        %3492 = vmatprep.subr.mxu0 0.0
        %3493 = vmatpush1.msra.mxu0 %v3469
        %3494 = vmatprep.subr.mxu0 0.0
        %3495 = vmatpush1.msra.mxu0 %v3470
        %3496 = vmatprep.subr.mxu0 0.0
        %3497 = vmatpush1.msra.mxu0 %v3471
        %3498 = vmatprep.subr.mxu0 0.0
        %3499 = vmatpush1.msra.mxu0 %v3472
        %3500 = vmatprep.subr.mxu0 0.0
        %3501 = vmatpush1.msra.mxu0 %v3473
        %3502 = vmatprep.subr.mxu0 0.0
        %3503 = vmatpush1.msra.mxu0 %v3474
        %3504 = vmatprep.subr.mxu0 0.0
        %3505 = vmatpush1.msra.mxu0 %v3475
        %3506 = vmatprep.subr.mxu0 0.0
        %3507 = vmatpush1.msra.mxu0 %v3476
        %3508 = vmatprep.subr.mxu0 0.0
        %3509 = vmatpush1.msra.mxu0 %v3477
        %3510 = vmatprep.subr.mxu0 0.0
        %3511 = vmatpush1.msra.mxu0 %v3478
        %3512 = vmatprep.subr.mxu0 0.0
        %3513 = vmatpush1.msra.mxu0 %v3479
        %3514 = vmatprep.subr.mxu0 0.0
        %3515 = vmatpush1.msra.mxu0 %v3480
        %3516 = vmatprep.subr.mxu0 0.0
        %3517 = vmatpush1.msra.mxu0 %v3481
        %3518 = vmatprep.subr.mxu0 0.0
        %3519 = vmatpush1.msra.mxu0 %v3482
        %3520 = vmatprep.subr.mxu0 0.0
        %3521 = vmatpush1.msra.mxu0 %v3483
        %3522 = vmatprep.subr.mxu0 0.0
        %3523 = vmatpush1.msra.mxu0 %v3484
        %3524 = vmatprep.subr.mxu0 0.0
        %3525 = vmatpush1.msra.mxu0 0.0
        %3526 = vmatprep.subr.mxu0 0.0
        %3527 = vmatpush1.msra.mxu0 0.0
        %3528 = vmatprep.subr.mxu0 0.0
        %3529 = vmatpush1.msra.mxu0 0.0
        %3530 = vmatprep.subr.mxu0 0.0
        %3531 = vmatpush1.msra.mxu0 0.0
        %3532 = vmatprep.subr.mxu0 0.0
        %3533 = vmatpush1.msra.mxu0 0.0
        %3534 = vmatprep.subr.mxu0 0.0
        %3535 = vmatpush1.msra.mxu0 0.0
        %3536 = vmatprep.subr.mxu0 0.0
        %3537 = vmatpush1.msra.mxu0 0.0
        %3538 = vmatprep.subr.mxu0 0.0
        %3539 = vmatpush1.msra.mxu0 0.0
        %3540 = vmatprep.subr.mxu0 0.0
        %3541 = vmatpush1.msra.mxu0 0.0
        %3542 = vmatprep.subr.mxu0 0.0
        %3543 = vmatpush1.msra.mxu0 0.0
        %3544 = vmatprep.subr.mxu0 0.0
        %3545 = vmatpush1.msra.mxu0 0.0
        %3546 = vmatprep.subr.mxu0 0.0
        %3547 = vmatpush1.msra.mxu0 0.0
        %3548 = vmatprep.subr.mxu0 0.0
        %3549 = vmatpush1.msra.mxu0 0.0
        %3550 = vmatprep.subr.mxu0 0.0
        %3551 = vmatpush1.msra.mxu0 0.0
        %3552 = vmatprep.subr.mxu0 0.0
        %3553 = vmatpush1.msra.mxu0 0.0
        %3554 = vmatprep.subr.mxu0 0.0
        %3555 = vmatpush1.msra.mxu0 0.0
        %3556 = vmatprep.mubr.f32.mxu0 0.0
        %3557 = vmatmul.mubr.f32.gmra.mrb[0].mxu0 %v3491
        %v3558 = vpop.f32.mrb[0].mxu0
        %v3559 = vadd.f32 0.0, %v3558
        %v3560 = vpop.f32.mrb[0].mxu0
        %3561 = vdwg.mxu0
        %v3562 = vlaneseq
        %v3563 = vshrl.u32 %v3562, 7
        %v3564 = vsub.s32 0, %v3563
        %v3565 = vrot.slane %v3559, %v3564
        %v3566 = vsub.f32 %v3468, %v3565
        %v3567 = vmul.f32 %v3566, %v3566
        %v3568 = vsel %vm3016, %v3567, 0.0
        %v3569 = vrot.slane %v3568, 4
        %v3570 = vadd.f32 %v3568, %v3569
        %v3571 = vrot.slane %v3570, 2
        %v3572 = vadd.f32 %v3570, %v3571
        %v3573 = vrot.slane %v3572, 1
        %v3574 = vadd.f32 %v3572, %v3573
        %3575 = vmatprep.subr.mxu0 0.0
        %3576 = vmatpush1.msra.mxu0 %v3469
        %3577 = vmatprep.subr.mxu0 0.0
        %3578 = vmatpush1.msra.mxu0 %v3470
        %3579 = vmatprep.subr.mxu0 0.0
        %3580 = vmatpush1.msra.mxu0 %v3471
        %3581 = vmatprep.subr.mxu0 0.0
        %3582 = vmatpush1.msra.mxu0 %v3472
        %3583 = vmatprep.subr.mxu0 0.0
        %3584 = vmatpush1.msra.mxu0 %v3473
        %3585 = vmatprep.subr.mxu0 0.0
        %3586 = vmatpush1.msra.mxu0 %v3474
        %3587 = vmatprep.subr.mxu0 0.0
        %3588 = vmatpush1.msra.mxu0 %v3475
        %3589 = vmatprep.subr.mxu0 0.0
        %3590 = vmatpush1.msra.mxu0 %v3476
        %3591 = vmatprep.subr.mxu0 0.0
        %3592 = vmatpush1.msra.mxu0 %v3477
        %3593 = vmatprep.subr.mxu0 0.0
        %3594 = vmatpush1.msra.mxu0 %v3478
        %3595 = vmatprep.subr.mxu0 0.0
        %3596 = vmatpush1.msra.mxu0 %v3479
        %3597 = vmatprep.subr.mxu0 0.0
        %3598 = vmatpush1.msra.mxu0 %v3480
        %3599 = vmatprep.subr.mxu0 0.0
        %3600 = vmatpush1.msra.mxu0 %v3481
        %3601 = vmatprep.subr.mxu0 0.0
        %3602 = vmatpush1.msra.mxu0 %v3482
        %3603 = vmatprep.subr.mxu0 0.0
        %3604 = vmatpush1.msra.mxu0 %v3483
        %3605 = vmatprep.subr.mxu0 0.0
        %3606 = vmatpush1.msra.mxu0 %v3484
        %3607 = vmatprep.subr.mxu0 0.0
        %3608 = vmatpush1.msra.mxu0 0.0
        %3609 = vmatprep.subr.mxu0 0.0
        %3610 = vmatpush1.msra.mxu0 0.0
        %3611 = vmatprep.subr.mxu0 0.0
        %3612 = vmatpush1.msra.mxu0 0.0
        %3613 = vmatprep.subr.mxu0 0.0
        %3614 = vmatpush1.msra.mxu0 0.0
        %3615 = vmatprep.subr.mxu0 0.0
        %3616 = vmatpush1.msra.mxu0 0.0
        %3617 = vmatprep.subr.mxu0 0.0
        %3618 = vmatpush1.msra.mxu0 0.0
        %3619 = vmatprep.subr.mxu0 0.0
        %3620 = vmatpush1.msra.mxu0 0.0
        %3621 = vmatprep.subr.mxu0 0.0
        %3622 = vmatpush1.msra.mxu0 0.0
        %3623 = vmatprep.subr.mxu0 0.0
        %3624 = vmatpush1.msra.mxu0 0.0
        %3625 = vmatprep.subr.mxu0 0.0
        %3626 = vmatpush1.msra.mxu0 0.0
        %3627 = vmatprep.subr.mxu0 0.0
        %3628 = vmatpush1.msra.mxu0 0.0
        %3629 = vmatprep.subr.mxu0 0.0
        %3630 = vmatpush1.msra.mxu0 0.0
        %3631 = vmatprep.subr.mxu0 0.0
        %3632 = vmatpush1.msra.mxu0 0.0
        %3633 = vmatprep.subr.mxu0 0.0
        %3634 = vmatpush1.msra.mxu0 0.0
        %3635 = vmatprep.subr.mxu0 0.0
        %3636 = vmatpush1.msra.mxu0 0.0
        %3637 = vmatprep.subr.mxu0 0.0
        %3638 = vmatpush1.msra.mxu0 0.0
        %3639 = vmatprep.mubr.f32.mxu0 0.0
        %3640 = vmatmul.mubr.f32.gmra.mrb[0].mxu0 %v3574
        %v3641 = vpop.f32.mrb[0].mxu0
        %v3642 = vadd.f32 1e-05, %v3641
        %v3643 = vpop.f32.mrb[0].mxu0
        %3644 = vdwg.mxu0
        %v3645 = vrsqrt.pop %v3642
        %v3646 = vlaneseq
        %v3647 = vshrl.u32 %v3646, 7
        %v3648 = vsub.s32 0, %v3647
        %v3649 = vrot.slane %v3645, %v3648
        %v3650 = vmul.f32 %v3566, %v3649
        %v3651 = vld [vmem:[%s31] sm:$0x1]
        %v3653 = vlaneseq
        %v3654 = vshrl.u32 %v3653, 7
        %v3655 = vsub.s32 0, %v3654
        %v3656 = vrot.slane %v3651, %v3655
        %v3658 = vmul.f32 %v3650, %v3656
        %v3659 = vld [vmem:[%s33] sm:$0x1]
        %v3661 = vlaneseq
        %v3662 = vshrl.u32 %v3661, 7
        %v3663 = vsub.s32 0, %v3662
        %v3664 = vrot.slane %v3659, %v3663
        %v3666 = vadd.f32 %v3658, %v3664
        %vm3667 = vcmp.gt.f32.partialorder %v3666, 0.0
        %v3668 = vmul.f32 %v3666, 0.01
        %v3669 = vsel %vm3667, %v3666, %v3668
        %3670 = vst [vmem:[#allocation2] sm:$0xff] 0.0
        %3671 = vst [vmem:[#allocation2 + $0x8] sm:$0xff] 0.0
        %3672 = vst [vmem:[#allocation2 + $0x1] sm:$0x3] %v3669
        %v3673 = vld [vmem:[#allocation2] sm:$0x3]
        %v3674 = vld [vmem:[#allocation11] sm:$0xff]
        %v3675 = vld [vmem:[#allocation11 + $0x8] sm:$0xff]
        %v3676 = vld [vmem:[#allocation11 + $0x10] sm:$0xff]
        %v3677 = vld [vmem:[#allocation11 + $0x18] sm:$0xff]
        %v3678 = vld [vmem:[#allocation11 + $0x20] sm:$0xff]
        %v3679 = vld [vmem:[#allocation11 + $0x28] sm:$0xff]
        %v3680 = vld [vmem:[#allocation11 + $0x30] sm:$0xff]
        %v3681 = vld [vmem:[#allocation11 + $0x38] sm:$0xff]
        %v3682 = vld [vmem:[#allocation11 + $0x40] sm:$0xff]
        %v3683 = vld [vmem:[#allocation11 + $0x48] sm:$0xff]
        %v3684 = vld [vmem:[#allocation11 + $0x50] sm:$0xff]
        %v3685 = vld [vmem:[#allocation11 + $0x58] sm:$0xff]
        %v3686 = vld [vmem:[#allocation11 + $0x60] sm:$0xff]
        %v3687 = vld [vmem:[#allocation11 + $0x68] sm:$0xff]
        %v3688 = vld [vmem:[#allocation11 + $0x70] sm:$0xff]
        %v3689 = vld [vmem:[#allocation11 + $0x78] sm:$0xff]
        %v3690 = vld [vmem:[#allocation2 + $0x1] sm:$0x3]
        %s3691 = scalar_lea.vmem [#allocation11], 128
        %v3692 = vld [vmem:[%s3691] sm:$0xff]
        %v3693 = vld [vmem:[%s3691 + $0x8] sm:$0xff]
        %v3694 = vld [vmem:[%s3691 + $0x10] sm:$0xff]
        %v3695 = vld [vmem:[%s3691 + $0x18] sm:$0xff]
        %v3696 = vld [vmem:[%s3691 + $0x20] sm:$0xff]
        %v3697 = vld [vmem:[%s3691 + $0x28] sm:$0xff]
        %v3698 = vld [vmem:[%s3691 + $0x30] sm:$0xff]
        %v3699 = vld [vmem:[%s3691 + $0x38] sm:$0xff]
        %v3700 = vld [vmem:[%s3691 + $0x40] sm:$0xff]
        %v3701 = vld [vmem:[%s3691 + $0x48] sm:$0xff]
        %v3702 = vld [vmem:[%s3691 + $0x50] sm:$0xff]
        %v3703 = vld [vmem:[%s3691 + $0x58] sm:$0xff]
        %v3704 = vld [vmem:[%s3691 + $0x60] sm:$0xff]
        %v3705 = vld [vmem:[%s3691 + $0x68] sm:$0xff]
        %v3706 = vld [vmem:[%s3691 + $0x70] sm:$0xff]
        %v3707 = vld [vmem:[%s3691 + $0x78] sm:$0xff]
        %3708 = vmatprep.subr.mxu0 0.0
        %3709 = vmatpush1.msra.mxu0 %v3692
        %3710 = vmatprep.subr.mxu0 0.0
        %3711 = vmatpush1.msra.mxu0 %v3693
        %3712 = vmatprep.subr.mxu0 0.0
        %3713 = vmatpush1.msra.mxu0 %v3694
        %3714 = vmatprep.subr.mxu0 0.0
        %3715 = vmatpush1.msra.mxu0 %v3695
        %3716 = vmatprep.subr.mxu0 0.0
        %3717 = vmatpush1.msra.mxu0 %v3696
        %3718 = vmatprep.subr.mxu0 0.0
        %3719 = vmatpush1.msra.mxu0 %v3697
        %3720 = vmatprep.subr.mxu0 0.0
        %3721 = vmatpush1.msra.mxu0 %v3698
        %3722 = vmatprep.subr.mxu0 0.0
        %3723 = vmatpush1.msra.mxu0 %v3699
        %3724 = vmatprep.subr.mxu0 0.0
        %3725 = vmatpush1.msra.mxu0 %v3700
        %3726 = vmatprep.subr.mxu0 0.0
        %3727 = vmatpush1.msra.mxu0 %v3701
        %3728 = vmatprep.subr.mxu0 0.0
        %3729 = vmatpush1.msra.mxu0 %v3702
        %3730 = vmatprep.subr.mxu0 0.0
        %3731 = vmatpush1.msra.mxu0 %v3703
        %3732 = vmatprep.subr.mxu0 0.0
        %3733 = vmatpush1.msra.mxu0 %v3704
        %3734 = vmatprep.subr.mxu0 0.0
        %3735 = vmatpush1.msra.mxu0 %v3705
        %3736 = vmatprep.subr.mxu0 0.0
        %3737 = vmatpush1.msra.mxu0 %v3706
        %3738 = vmatprep.subr.mxu0 0.0
        %3739 = vmatpush1.msra.mxu0 %v3707
        %3740 = vmatprep.subr.mxu0 0.0
        %3741 = vmatpush1.msra.mxu0 0.0
        %3742 = vmatprep.subr.mxu0 0.0
        %3743 = vmatpush1.msra.mxu0 0.0
        %3744 = vmatprep.subr.mxu0 0.0
        %3745 = vmatpush1.msra.mxu0 0.0
        %3746 = vmatprep.subr.mxu0 0.0
        %3747 = vmatpush1.msra.mxu0 0.0
        %3748 = vmatprep.subr.mxu0 0.0
        %3749 = vmatpush1.msra.mxu0 0.0
        %3750 = vmatprep.subr.mxu0 0.0
        %3751 = vmatpush1.msra.mxu0 0.0
        %3752 = vmatprep.subr.mxu0 0.0
        %3753 = vmatpush1.msra.mxu0 0.0
        %3754 = vmatprep.subr.mxu0 0.0
        %3755 = vmatpush1.msra.mxu0 0.0
        %3756 = vmatprep.subr.mxu0 0.0
        %3757 = vmatpush1.msra.mxu0 0.0
        %3758 = vmatprep.subr.mxu0 0.0
        %3759 = vmatpush1.msra.mxu0 0.0
        %3760 = vmatprep.subr.mxu0 0.0
        %3761 = vmatpush1.msra.mxu0 0.0
        %3762 = vmatprep.subr.mxu0 0.0
        %3763 = vmatpush1.msra.mxu0 0.0
        %3764 = vmatprep.subr.mxu0 0.0
        %3765 = vmatpush1.msra.mxu0 0.0
        %3766 = vmatprep.subr.mxu0 0.0
        %3767 = vmatpush1.msra.mxu0 0.0
        %3768 = vmatprep.subr.mxu0 0.0
        %3769 = vmatpush1.msra.mxu0 0.0
        %3770 = vmatprep.subr.mxu0 0.0
        %3771 = vmatpush1.msra.mxu0 0.0
        %3772 = vmatprep.mubr.f32.mxu0 0.0
        %3773 = vmatmul.mubr.f32.gmra.mrb[0].mxu0 %v3690
        %v3774 = vpop.f32.mrb[0].mxu0
        %v3775 = vadd.f32 0.0, %v3774
        %v3776 = vpop.f32.mrb[0].mxu0
        %3777 = vdwg.mxu0
        %3778 = vmatprep.subr.mxu0 0.0
        %3779 = vmatpush1.msra.mxu0 %v3674
        %3780 = vmatprep.subr.mxu0 0.0
        %3781 = vmatpush1.msra.mxu0 %v3675
        %3782 = vmatprep.subr.mxu0 0.0
        %3783 = vmatpush1.msra.mxu0 %v3676
        %3784 = vmatprep.subr.mxu0 0.0
        %3785 = vmatpush1.msra.mxu0 %v3677
        %3786 = vmatprep.subr.mxu0 0.0
        %3787 = vmatpush1.msra.mxu0 %v3678
        %3788 = vmatprep.subr.mxu0 0.0
        %3789 = vmatpush1.msra.mxu0 %v3679
        %3790 = vmatprep.subr.mxu0 0.0
        %3791 = vmatpush1.msra.mxu0 %v3680
        %3792 = vmatprep.subr.mxu0 0.0
        %3793 = vmatpush1.msra.mxu0 %v3681
        %3794 = vmatprep.subr.mxu0 0.0
        %3795 = vmatpush1.msra.mxu0 %v3682
        %3796 = vmatprep.subr.mxu0 0.0
        %3797 = vmatpush1.msra.mxu0 %v3683
        %3798 = vmatprep.subr.mxu0 0.0
        %3799 = vmatpush1.msra.mxu0 %v3684
        %3800 = vmatprep.subr.mxu0 0.0
        %3801 = vmatpush1.msra.mxu0 %v3685
        %3802 = vmatprep.subr.mxu0 0.0
        %3803 = vmatpush1.msra.mxu0 %v3686
        %3804 = vmatprep.subr.mxu0 0.0
        %3805 = vmatpush1.msra.mxu0 %v3687
        %3806 = vmatprep.subr.mxu0 0.0
        %3807 = vmatpush1.msra.mxu0 %v3688
        %3808 = vmatprep.subr.mxu0 0.0
        %3809 = vmatpush1.msra.mxu0 %v3689
        %3810 = vmatprep.subr.mxu0 0.0
        %3811 = vmatpush1.msra.mxu0 0.0
        %3812 = vmatprep.subr.mxu0 0.0
        %3813 = vmatpush1.msra.mxu0 0.0
        %3814 = vmatprep.subr.mxu0 0.0
        %3815 = vmatpush1.msra.mxu0 0.0
        %3816 = vmatprep.subr.mxu0 0.0
        %3817 = vmatpush1.msra.mxu0 0.0
        %3818 = vmatprep.subr.mxu0 0.0
        %3819 = vmatpush1.msra.mxu0 0.0
        %3820 = vmatprep.subr.mxu0 0.0
        %3821 = vmatpush1.msra.mxu0 0.0
        %3822 = vmatprep.subr.mxu0 0.0
        %3823 = vmatpush1.msra.mxu0 0.0
        %3824 = vmatprep.subr.mxu0 0.0
        %3825 = vmatpush1.msra.mxu0 0.0
        %3826 = vmatprep.subr.mxu0 0.0
        %3827 = vmatpush1.msra.mxu0 0.0
        %3828 = vmatprep.subr.mxu0 0.0
        %3829 = vmatpush1.msra.mxu0 0.0
        %3830 = vmatprep.subr.mxu0 0.0
        %3831 = vmatpush1.msra.mxu0 0.0
        %3832 = vmatprep.subr.mxu0 0.0
        %3833 = vmatpush1.msra.mxu0 0.0
        %3834 = vmatprep.subr.mxu0 0.0
        %3835 = vmatpush1.msra.mxu0 0.0
        %3836 = vmatprep.subr.mxu0 0.0
        %3837 = vmatpush1.msra.mxu0 0.0
        %3838 = vmatprep.subr.mxu0 0.0
        %3839 = vmatpush1.msra.mxu0 0.0
        %3840 = vmatprep.subr.mxu0 0.0
        %3841 = vmatpush1.msra.mxu0 0.0
        %3842 = vmatprep.mubr.f32.mxu0 0.0
        %3843 = vmatmul.mubr.f32.gmra.mrb[0].mxu0 %v3673
        %v3844 = vpop.f32.mrb[0].mxu0
        %v3845 = vadd.f32 %v3775, %v3844
        %v3846 = vpop.f32.mrb[0].mxu0
        %3847 = vdwg.mxu0
        %v3848 = vld [vmem:[#allocation2 + $0x2] sm:$0x3]
        %s3849 = scalar_lea.vmem [#allocation11], 256
        %v3850 = vld [vmem:[%s3849] sm:$0xff]
        %v3851 = vld [vmem:[%s3849 + $0x8] sm:$0xff]
        %v3852 = vld [vmem:[%s3849 + $0x10] sm:$0xff]
        %v3853 = vld [vmem:[%s3849 + $0x18] sm:$0xff]
        %v3854 = vld [vmem:[%s3849 + $0x20] sm:$0xff]
        %v3855 = vld [vmem:[%s3849 + $0x28] sm:$0xff]
        %v3856 = vld [vmem:[%s3849 + $0x30] sm:$0xff]
        %v3857 = vld [vmem:[%s3849 + $0x38] sm:$0xff]
        %v3858 = vld [vmem:[%s3849 + $0x40] sm:$0xff]
        %v3859 = vld [vmem:[%s3849 + $0x48] sm:$0xff]
        %v3860 = vld [vmem:[%s3849 + $0x50] sm:$0xff]
        %v3861 = vld [vmem:[%s3849 + $0x58] sm:$0xff]
        %v3862 = vld [vmem:[%s3849 + $0x60] sm:$0xff]
        %v3863 = vld [vmem:[%s3849 + $0x68] sm:$0xff]
        %v3864 = vld [vmem:[%s3849 + $0x70] sm:$0xff]
        %v3865 = vld [vmem:[%s3849 + $0x78] sm:$0xff]
        %3866 = vmatprep.subr.mxu0 0.0
        %3867 = vmatpush1.msra.mxu0 %v3850
        %3868 = vmatprep.subr.mxu0 0.0
        %3869 = vmatpush1.msra.mxu0 %v3851
        %3870 = vmatprep.subr.mxu0 0.0
        %3871 = vmatpush1.msra.mxu0 %v3852
        %3872 = vmatprep.subr.mxu0 0.0
        %3873 = vmatpush1.msra.mxu0 %v3853
        %3874 = vmatprep.subr.mxu0 0.0
        %3875 = vmatpush1.msra.mxu0 %v3854
        %3876 = vmatprep.subr.mxu0 0.0
        %3877 = vmatpush1.msra.mxu0 %v3855
        %3878 = vmatprep.subr.mxu0 0.0
        %3879 = vmatpush1.msra.mxu0 %v3856
        %3880 = vmatprep.subr.mxu0 0.0
        %3881 = vmatpush1.msra.mxu0 %v3857
        %3882 = vmatprep.subr.mxu0 0.0
        %3883 = vmatpush1.msra.mxu0 %v3858
        %3884 = vmatprep.subr.mxu0 0.0
        %3885 = vmatpush1.msra.mxu0 %v3859
        %3886 = vmatprep.subr.mxu0 0.0
        %3887 = vmatpush1.msra.mxu0 %v3860
        %3888 = vmatprep.subr.mxu0 0.0
        %3889 = vmatpush1.msra.mxu0 %v3861
        %3890 = vmatprep.subr.mxu0 0.0
        %3891 = vmatpush1.msra.mxu0 %v3862
        %3892 = vmatprep.subr.mxu0 0.0
        %3893 = vmatpush1.msra.mxu0 %v3863
        %3894 = vmatprep.subr.mxu0 0.0
        %3895 = vmatpush1.msra.mxu0 %v3864
        %3896 = vmatprep.subr.mxu0 0.0
        %3897 = vmatpush1.msra.mxu0 %v3865
        %3898 = vmatprep.subr.mxu0 0.0
        %3899 = vmatpush1.msra.mxu0 0.0
        %3900 = vmatprep.subr.mxu0 0.0
        %3901 = vmatpush1.msra.mxu0 0.0
        %3902 = vmatprep.subr.mxu0 0.0
        %3903 = vmatpush1.msra.mxu0 0.0
        %3904 = vmatprep.subr.mxu0 0.0
        %3905 = vmatpush1.msra.mxu0 0.0
        %3906 = vmatprep.subr.mxu0 0.0
        %3907 = vmatpush1.msra.mxu0 0.0
        %3908 = vmatprep.subr.mxu0 0.0
        %3909 = vmatpush1.msra.mxu0 0.0
        %3910 = vmatprep.subr.mxu0 0.0
        %3911 = vmatpush1.msra.mxu0 0.0
        %3912 = vmatprep.subr.mxu0 0.0
        %3913 = vmatpush1.msra.mxu0 0.0
        %3914 = vmatprep.subr.mxu0 0.0
        %3915 = vmatpush1.msra.mxu0 0.0
        %3916 = vmatprep.subr.mxu0 0.0
        %3917 = vmatpush1.msra.mxu0 0.0
        %3918 = vmatprep.subr.mxu0 0.0
        %3919 = vmatpush1.msra.mxu0 0.0
        %3920 = vmatprep.subr.mxu0 0.0
        %3921 = vmatpush1.msra.mxu0 0.0
        %3922 = vmatprep.subr.mxu0 0.0
        %3923 = vmatpush1.msra.mxu0 0.0
        %3924 = vmatprep.subr.mxu0 0.0
        %3925 = vmatpush1.msra.mxu0 0.0
        %3926 = vmatprep.subr.mxu0 0.0
        %3927 = vmatpush1.msra.mxu0 0.0
        %3928 = vmatprep.subr.mxu0 0.0
        %3929 = vmatpush1.msra.mxu0 0.0
        %3930 = vmatprep.mubr.f32.mxu0 0.0
        %3931 = vmatmul.mubr.f32.gmra.mrb[0].mxu0 %v3848
        %v3932 = vpop.f32.mrb[0].mxu0
        %v3933 = vadd.f32 0.0, %v3932
        %v3934 = vpop.f32.mrb[0].mxu0
        %3935 = vdwg.mxu0
        %v3936 = vadd.f32 %v3845, %v3933
        %v3937 = vld [vmem:[#allocation8] sm:$0xff]
        %v3938 = vld [vmem:[#allocation8 + $0x8] sm:$0xff]
        %v3939 = vld [vmem:[#allocation8 + $0x10] sm:$0xff]
        %v3940 = vld [vmem:[#allocation8 + $0x18] sm:$0xff]
        %v3941 = vld [vmem:[#allocation8 + $0x20] sm:$0xff]
        %v3942 = vld [vmem:[#allocation8 + $0x28] sm:$0xff]
        %v3943 = vld [vmem:[#allocation8 + $0x30] sm:$0xff]
        %v3944 = vld [vmem:[#allocation8 + $0x38] sm:$0xff]
        %v3945 = vld [vmem:[#allocation8 + $0x40] sm:$0xff]
        %v3946 = vld [vmem:[#allocation8 + $0x48] sm:$0xff]
        %v3947 = vld [vmem:[#allocation8 + $0x50] sm:$0xff]
        %v3948 = vld [vmem:[#allocation8 + $0x58] sm:$0xff]
        %v3949 = vld [vmem:[#allocation8 + $0x60] sm:$0xff]
        %v3950 = vld [vmem:[#allocation8 + $0x68] sm:$0xff]
        %v3951 = vld [vmem:[#allocation8 + $0x70] sm:$0xff]
        %v3952 = vld [vmem:[#allocation8 + $0x78] sm:$0xff]
        %v3953 = vsel %vm3016, %v3936, 0.0
        %v3954 = vrot.slane %v3953, 4
        %v3955 = vadd.f32 %v3953, %v3954
        %v3956 = vrot.slane %v3955, 2
        %v3957 = vadd.f32 %v3955, %v3956
        %v3958 = vrot.slane %v3957, 1
        %v3959 = vadd.f32 %v3957, %v3958
        %3960 = vmatprep.subr.mxu0 0.0
        %3961 = vmatpush1.msra.mxu0 %v3937
        %3962 = vmatprep.subr.mxu0 0.0
        %3963 = vmatpush1.msra.mxu0 %v3938
        %3964 = vmatprep.subr.mxu0 0.0
        %3965 = vmatpush1.msra.mxu0 %v3939
        %3966 = vmatprep.subr.mxu0 0.0
        %3967 = vmatpush1.msra.mxu0 %v3940
        %3968 = vmatprep.subr.mxu0 0.0
        %3969 = vmatpush1.msra.mxu0 %v3941
        %3970 = vmatprep.subr.mxu0 0.0
        %3971 = vmatpush1.msra.mxu0 %v3942
        %3972 = vmatprep.subr.mxu0 0.0
        %3973 = vmatpush1.msra.mxu0 %v3943
        %3974 = vmatprep.subr.mxu0 0.0
        %3975 = vmatpush1.msra.mxu0 %v3944
        %3976 = vmatprep.subr.mxu0 0.0
        %3977 = vmatpush1.msra.mxu0 %v3945
        %3978 = vmatprep.subr.mxu0 0.0
        %3979 = vmatpush1.msra.mxu0 %v3946
        %3980 = vmatprep.subr.mxu0 0.0
        %3981 = vmatpush1.msra.mxu0 %v3947
        %3982 = vmatprep.subr.mxu0 0.0
        %3983 = vmatpush1.msra.mxu0 %v3948
        %3984 = vmatprep.subr.mxu0 0.0
        %3985 = vmatpush1.msra.mxu0 %v3949
        %3986 = vmatprep.subr.mxu0 0.0
        %3987 = vmatpush1.msra.mxu0 %v3950
        %3988 = vmatprep.subr.mxu0 0.0
        %3989 = vmatpush1.msra.mxu0 %v3951
        %3990 = vmatprep.subr.mxu0 0.0
        %3991 = vmatpush1.msra.mxu0 %v3952
        %3992 = vmatprep.subr.mxu0 0.0
        %3993 = vmatpush1.msra.mxu0 0.0
        %3994 = vmatprep.subr.mxu0 0.0
        %3995 = vmatpush1.msra.mxu0 0.0
        %3996 = vmatprep.subr.mxu0 0.0
        %3997 = vmatpush1.msra.mxu0 0.0
        %3998 = vmatprep.subr.mxu0 0.0
        %3999 = vmatpush1.msra.mxu0 0.0
        %4000 = vmatprep.subr.mxu0 0.0
        %4001 = vmatpush1.msra.mxu0 0.0
        %4002 = vmatprep.subr.mxu0 0.0
        %4003 = vmatpush1.msra.mxu0 0.0
        %4004 = vmatprep.subr.mxu0 0.0
        %4005 = vmatpush1.msra.mxu0 0.0
        %4006 = vmatprep.subr.mxu0 0.0
        %4007 = vmatpush1.msra.mxu0 0.0
        %4008 = vmatprep.subr.mxu0 0.0
        %4009 = vmatpush1.msra.mxu0 0.0
        %4010 = vmatprep.subr.mxu0 0.0
        %4011 = vmatpush1.msra.mxu0 0.0
        %4012 = vmatprep.subr.mxu0 0.0
        %4013 = vmatpush1.msra.mxu0 0.0
        %4014 = vmatprep.subr.mxu0 0.0
        %4015 = vmatpush1.msra.mxu0 0.0
        %4016 = vmatprep.subr.mxu0 0.0
        %4017 = vmatpush1.msra.mxu0 0.0
        %4018 = vmatprep.subr.mxu0 0.0
        %4019 = vmatpush1.msra.mxu0 0.0
        %4020 = vmatprep.subr.mxu0 0.0
        %4021 = vmatpush1.msra.mxu0 0.0
        %4022 = vmatprep.subr.mxu0 0.0
        %4023 = vmatpush1.msra.mxu0 0.0
        %4024 = vmatprep.mubr.f32.mxu0 0.0
        %4025 = vmatmul.mubr.f32.gmra.mrb[0].mxu0 %v3959
        %v4026 = vpop.f32.mrb[0].mxu0
        %v4027 = vadd.f32 0.0, %v4026
        %v4028 = vpop.f32.mrb[0].mxu0
        %4029 = vdwg.mxu0
        %v4030 = vlaneseq
        %v4031 = vshrl.u32 %v4030, 7
        %v4032 = vsub.s32 0, %v4031
        %v4033 = vrot.slane %v4027, %v4032
        %v4034 = vsub.f32 %v3936, %v4033
        %v4035 = vmul.f32 %v4034, %v4034
        %v4036 = vsel %vm3016, %v4035, 0.0
        %v4037 = vrot.slane %v4036, 4
        %v4038 = vadd.f32 %v4036, %v4037
        %v4039 = vrot.slane %v4038, 2
        %v4040 = vadd.f32 %v4038, %v4039
        %v4041 = vrot.slane %v4040, 1
        %v4042 = vadd.f32 %v4040, %v4041
        %4043 = vmatprep.subr.mxu0 0.0
        %4044 = vmatpush1.msra.mxu0 %v3937
        %4045 = vmatprep.subr.mxu0 0.0
        %4046 = vmatpush1.msra.mxu0 %v3938
        %4047 = vmatprep.subr.mxu0 0.0
        %4048 = vmatpush1.msra.mxu0 %v3939
        %4049 = vmatprep.subr.mxu0 0.0
        %4050 = vmatpush1.msra.mxu0 %v3940
        %4051 = vmatprep.subr.mxu0 0.0
        %4052 = vmatpush1.msra.mxu0 %v3941
        %4053 = vmatprep.subr.mxu0 0.0
        %4054 = vmatpush1.msra.mxu0 %v3942
        %4055 = vmatprep.subr.mxu0 0.0
        %4056 = vmatpush1.msra.mxu0 %v3943
        %4057 = vmatprep.subr.mxu0 0.0
        %4058 = vmatpush1.msra.mxu0 %v3944
        %4059 = vmatprep.subr.mxu0 0.0
        %4060 = vmatpush1.msra.mxu0 %v3945
        %4061 = vmatprep.subr.mxu0 0.0
        %4062 = vmatpush1.msra.mxu0 %v3946
        %4063 = vmatprep.subr.mxu0 0.0
        %4064 = vmatpush1.msra.mxu0 %v3947
        %4065 = vmatprep.subr.mxu0 0.0
        %4066 = vmatpush1.msra.mxu0 %v3948
        %4067 = vmatprep.subr.mxu0 0.0
        %4068 = vmatpush1.msra.mxu0 %v3949
        %4069 = vmatprep.subr.mxu0 0.0
        %4070 = vmatpush1.msra.mxu0 %v3950
        %4071 = vmatprep.subr.mxu0 0.0
        %4072 = vmatpush1.msra.mxu0 %v3951
        %4073 = vmatprep.subr.mxu0 0.0
        %4074 = vmatpush1.msra.mxu0 %v3952
        %4075 = vmatprep.subr.mxu0 0.0
        %4076 = vmatpush1.msra.mxu0 0.0
        %4077 = vmatprep.subr.mxu0 0.0
        %4078 = vmatpush1.msra.mxu0 0.0
        %4079 = vmatprep.subr.mxu0 0.0
        %4080 = vmatpush1.msra.mxu0 0.0
        %4081 = vmatprep.subr.mxu0 0.0
        %4082 = vmatpush1.msra.mxu0 0.0
        %4083 = vmatprep.subr.mxu0 0.0
        %4084 = vmatpush1.msra.mxu0 0.0
        %4085 = vmatprep.subr.mxu0 0.0
        %4086 = vmatpush1.msra.mxu0 0.0
        %4087 = vmatprep.subr.mxu0 0.0
        %4088 = vmatpush1.msra.mxu0 0.0
        %4089 = vmatprep.subr.mxu0 0.0
        %4090 = vmatpush1.msra.mxu0 0.0
        %4091 = vmatprep.subr.mxu0 0.0
        %4092 = vmatpush1.msra.mxu0 0.0
        %4093 = vmatprep.subr.mxu0 0.0
        %4094 = vmatpush1.msra.mxu0 0.0
        %4095 = vmatprep.subr.mxu0 0.0
        %4096 = vmatpush1.msra.mxu0 0.0
        %4097 = vmatprep.subr.mxu0 0.0
        %4098 = vmatpush1.msra.mxu0 0.0
        %4099 = vmatprep.subr.mxu0 0.0
        %4100 = vmatpush1.msra.mxu0 0.0
        %4101 = vmatprep.subr.mxu0 0.0
        %4102 = vmatpush1.msra.mxu0 0.0
        %4103 = vmatprep.subr.mxu0 0.0
        %4104 = vmatpush1.msra.mxu0 0.0
        %4105 = vmatprep.subr.mxu0 0.0
        %4106 = vmatpush1.msra.mxu0 0.0
        %4107 = vmatprep.mubr.f32.mxu0 0.0
        %4108 = vmatmul.mubr.f32.gmra.mrb[0].mxu0 %v4042
        %v4109 = vpop.f32.mrb[0].mxu0
        %v4110 = vadd.f32 1e-05, %v4109
        %v4111 = vpop.f32.mrb[0].mxu0
        %4112 = vdwg.mxu0
        %v4113 = vrsqrt.pop %v4110
        %v4114 = vlaneseq
        %v4115 = vshrl.u32 %v4114, 7
        %v4116 = vsub.s32 0, %v4115
        %v4117 = vrot.slane %v4113, %v4116
        %v4118 = vmul.f32 %v4034, %v4117
        %v4119 = vld [vmem:[%s37] sm:$0x1]
        %v4121 = vlaneseq
        %v4122 = vshrl.u32 %v4121, 7
        %v4123 = vsub.s32 0, %v4122
        %v4124 = vrot.slane %v4119, %v4123
        %v4126 = vmul.f32 %v4118, %v4124
        %v4127 = vld [vmem:[#allocation12] sm:$0x1]
        %v4129 = vlaneseq
        %v4130 = vshrl.u32 %v4129, 7
        %v4131 = vsub.s32 0, %v4130
        %v4132 = vrot.slane %v4127, %v4131
        %v4134 = vadd.f32 %v4126, %v4132
        %v4135 = vadd.f32 %v3201, %v4134
        %4136 = vst [vmem:[#allocation2] sm:$0xff] 0.0
        %4137 = vst [vmem:[#allocation2 + $0x8] sm:$0xff] 0.0
        %4138 = vst [vmem:[#allocation2 + $0x1] sm:$0x3] %v4135
        %v4139 = vld [vmem:[#allocation2] sm:$0x3]
        %v4140 = vld [vmem:[#allocation14] sm:$0xff]
        %v4141 = vld [vmem:[#allocation14 + $0x8] sm:$0xff]
        %v4142 = vld [vmem:[#allocation14 + $0x10] sm:$0xff]
        %v4143 = vld [vmem:[#allocation14 + $0x18] sm:$0xff]
        %v4144 = vld [vmem:[#allocation14 + $0x20] sm:$0xff]
        %v4145 = vld [vmem:[#allocation14 + $0x28] sm:$0xff]
        %v4146 = vld [vmem:[#allocation14 + $0x30] sm:$0xff]
        %v4147 = vld [vmem:[#allocation14 + $0x38] sm:$0xff]
        %v4148 = vld [vmem:[#allocation14 + $0x40] sm:$0xff]
        %v4149 = vld [vmem:[#allocation14 + $0x48] sm:$0xff]
        %v4150 = vld [vmem:[#allocation14 + $0x50] sm:$0xff]
        %v4151 = vld [vmem:[#allocation14 + $0x58] sm:$0xff]
        %v4152 = vld [vmem:[#allocation14 + $0x60] sm:$0xff]
        %v4153 = vld [vmem:[#allocation14 + $0x68] sm:$0xff]
        %v4154 = vld [vmem:[#allocation14 + $0x70] sm:$0xff]
        %v4155 = vld [vmem:[#allocation14 + $0x78] sm:$0xff]
        %v4156 = vld [vmem:[#allocation2 + $0x1] sm:$0x3]
        %s4157 = scalar_lea.vmem [#allocation14], 128
        %v4158 = vld [vmem:[%s4157] sm:$0xff]
        %v4159 = vld [vmem:[%s4157 + $0x8] sm:$0xff]
        %v4160 = vld [vmem:[%s4157 + $0x10] sm:$0xff]
        %v4161 = vld [vmem:[%s4157 + $0x18] sm:$0xff]
        %v4162 = vld [vmem:[%s4157 + $0x20] sm:$0xff]
        %v4163 = vld [vmem:[%s4157 + $0x28] sm:$0xff]
        %v4164 = vld [vmem:[%s4157 + $0x30] sm:$0xff]
        %v4165 = vld [vmem:[%s4157 + $0x38] sm:$0xff]
        %v4166 = vld [vmem:[%s4157 + $0x40] sm:$0xff]
        %v4167 = vld [vmem:[%s4157 + $0x48] sm:$0xff]
        %v4168 = vld [vmem:[%s4157 + $0x50] sm:$0xff]
        %v4169 = vld [vmem:[%s4157 + $0x58] sm:$0xff]
        %v4170 = vld [vmem:[%s4157 + $0x60] sm:$0xff]
        %v4171 = vld [vmem:[%s4157 + $0x68] sm:$0xff]
        %v4172 = vld [vmem:[%s4157 + $0x70] sm:$0xff]
        %v4173 = vld [vmem:[%s4157 + $0x78] sm:$0xff]
        %4174 = vmatprep.subr.mxu0 0.0
        %4175 = vmatpush1.msra.mxu0 %v4158
        %4176 = vmatprep.subr.mxu0 0.0
        %4177 = vmatpush1.msra.mxu0 %v4159
        %4178 = vmatprep.subr.mxu0 0.0
        %4179 = vmatpush1.msra.mxu0 %v4160
        %4180 = vmatprep.subr.mxu0 0.0
        %4181 = vmatpush1.msra.mxu0 %v4161
        %4182 = vmatprep.subr.mxu0 0.0
        %4183 = vmatpush1.msra.mxu0 %v4162
        %4184 = vmatprep.subr.mxu0 0.0
        %4185 = vmatpush1.msra.mxu0 %v4163
        %4186 = vmatprep.subr.mxu0 0.0
        %4187 = vmatpush1.msra.mxu0 %v4164
        %4188 = vmatprep.subr.mxu0 0.0
        %4189 = vmatpush1.msra.mxu0 %v4165
        %4190 = vmatprep.subr.mxu0 0.0
        %4191 = vmatpush1.msra.mxu0 %v4166
        %4192 = vmatprep.subr.mxu0 0.0
        %4193 = vmatpush1.msra.mxu0 %v4167
        %4194 = vmatprep.subr.mxu0 0.0
        %4195 = vmatpush1.msra.mxu0 %v4168
        %4196 = vmatprep.subr.mxu0 0.0
        %4197 = vmatpush1.msra.mxu0 %v4169
        %4198 = vmatprep.subr.mxu0 0.0
        %4199 = vmatpush1.msra.mxu0 %v4170
        %4200 = vmatprep.subr.mxu0 0.0
        %4201 = vmatpush1.msra.mxu0 %v4171
        %4202 = vmatprep.subr.mxu0 0.0
        %4203 = vmatpush1.msra.mxu0 %v4172
        %4204 = vmatprep.subr.mxu0 0.0
        %4205 = vmatpush1.msra.mxu0 %v4173
        %4206 = vmatprep.subr.mxu0 0.0
        %4207 = vmatpush1.msra.mxu0 0.0
        %4208 = vmatprep.subr.mxu0 0.0
        %4209 = vmatpush1.msra.mxu0 0.0
        %4210 = vmatprep.subr.mxu0 0.0
        %4211 = vmatpush1.msra.mxu0 0.0
        %4212 = vmatprep.subr.mxu0 0.0
        %4213 = vmatpush1.msra.mxu0 0.0
        %4214 = vmatprep.subr.mxu0 0.0
        %4215 = vmatpush1.msra.mxu0 0.0
        %4216 = vmatprep.subr.mxu0 0.0
        %4217 = vmatpush1.msra.mxu0 0.0
        %4218 = vmatprep.subr.mxu0 0.0
        %4219 = vmatpush1.msra.mxu0 0.0
        %4220 = vmatprep.subr.mxu0 0.0
        %4221 = vmatpush1.msra.mxu0 0.0
        %4222 = vmatprep.subr.mxu0 0.0
        %4223 = vmatpush1.msra.mxu0 0.0
        %4224 = vmatprep.subr.mxu0 0.0
        %4225 = vmatpush1.msra.mxu0 0.0
        %4226 = vmatprep.subr.mxu0 0.0
        %4227 = vmatpush1.msra.mxu0 0.0
        %4228 = vmatprep.subr.mxu0 0.0
        %4229 = vmatpush1.msra.mxu0 0.0
        %4230 = vmatprep.subr.mxu0 0.0
        %4231 = vmatpush1.msra.mxu0 0.0
        %4232 = vmatprep.subr.mxu0 0.0
        %4233 = vmatpush1.msra.mxu0 0.0
        %4234 = vmatprep.subr.mxu0 0.0
        %4235 = vmatpush1.msra.mxu0 0.0
        %4236 = vmatprep.subr.mxu0 0.0
        %4237 = vmatpush1.msra.mxu0 0.0
        %4238 = vmatprep.mubr.f32.mxu0 0.0
        %4239 = vmatmul.mubr.f32.gmra.mrb[0].mxu0 %v4156
        %v4240 = vpop.f32.mrb[0].mxu0
        %v4241 = vadd.f32 0.0, %v4240
        %v4242 = vpop.f32.mrb[0].mxu0
        %4243 = vdwg.mxu0
        %4244 = vmatprep.subr.mxu0 0.0
        %4245 = vmatpush1.msra.mxu0 %v4140
        %4246 = vmatprep.subr.mxu0 0.0
        %4247 = vmatpush1.msra.mxu0 %v4141
        %4248 = vmatprep.subr.mxu0 0.0
        %4249 = vmatpush1.msra.mxu0 %v4142
        %4250 = vmatprep.subr.mxu0 0.0
        %4251 = vmatpush1.msra.mxu0 %v4143
        %4252 = vmatprep.subr.mxu0 0.0
        %4253 = vmatpush1.msra.mxu0 %v4144
        %4254 = vmatprep.subr.mxu0 0.0
        %4255 = vmatpush1.msra.mxu0 %v4145
        %4256 = vmatprep.subr.mxu0 0.0
        %4257 = vmatpush1.msra.mxu0 %v4146
        %4258 = vmatprep.subr.mxu0 0.0
        %4259 = vmatpush1.msra.mxu0 %v4147
        %4260 = vmatprep.subr.mxu0 0.0
        %4261 = vmatpush1.msra.mxu0 %v4148
        %4262 = vmatprep.subr.mxu0 0.0
        %4263 = vmatpush1.msra.mxu0 %v4149
        %4264 = vmatprep.subr.mxu0 0.0
        %4265 = vmatpush1.msra.mxu0 %v4150
        %4266 = vmatprep.subr.mxu0 0.0
        %4267 = vmatpush1.msra.mxu0 %v4151
        %4268 = vmatprep.subr.mxu0 0.0
        %4269 = vmatpush1.msra.mxu0 %v4152
        %4270 = vmatprep.subr.mxu0 0.0
        %4271 = vmatpush1.msra.mxu0 %v4153
        %4272 = vmatprep.subr.mxu0 0.0
        %4273 = vmatpush1.msra.mxu0 %v4154
        %4274 = vmatprep.subr.mxu0 0.0
        %4275 = vmatpush1.msra.mxu0 %v4155
        %4276 = vmatprep.subr.mxu0 0.0
        %4277 = vmatpush1.msra.mxu0 0.0
        %4278 = vmatprep.subr.mxu0 0.0
        %4279 = vmatpush1.msra.mxu0 0.0
        %4280 = vmatprep.subr.mxu0 0.0
        %4281 = vmatpush1.msra.mxu0 0.0
        %4282 = vmatprep.subr.mxu0 0.0
        %4283 = vmatpush1.msra.mxu0 0.0
        %4284 = vmatprep.subr.mxu0 0.0
        %4285 = vmatpush1.msra.mxu0 0.0
        %4286 = vmatprep.subr.mxu0 0.0
        %4287 = vmatpush1.msra.mxu0 0.0
        %4288 = vmatprep.subr.mxu0 0.0
        %4289 = vmatpush1.msra.mxu0 0.0
        %4290 = vmatprep.subr.mxu0 0.0
        %4291 = vmatpush1.msra.mxu0 0.0
        %4292 = vmatprep.subr.mxu0 0.0
        %4293 = vmatpush1.msra.mxu0 0.0
        %4294 = vmatprep.subr.mxu0 0.0
        %4295 = vmatpush1.msra.mxu0 0.0
        %4296 = vmatprep.subr.mxu0 0.0
        %4297 = vmatpush1.msra.mxu0 0.0
        %4298 = vmatprep.subr.mxu0 0.0
        %4299 = vmatpush1.msra.mxu0 0.0
        %4300 = vmatprep.subr.mxu0 0.0
        %4301 = vmatpush1.msra.mxu0 0.0
        %4302 = vmatprep.subr.mxu0 0.0
        %4303 = vmatpush1.msra.mxu0 0.0
        %4304 = vmatprep.subr.mxu0 0.0
        %4305 = vmatpush1.msra.mxu0 0.0
        %4306 = vmatprep.subr.mxu0 0.0
        %4307 = vmatpush1.msra.mxu0 0.0
        %4308 = vmatprep.mubr.f32.mxu0 0.0
        %4309 = vmatmul.mubr.f32.gmra.mrb[0].mxu0 %v4139
        %v4310 = vpop.f32.mrb[0].mxu0
        %v4311 = vadd.f32 %v4241, %v4310
        %v4312 = vpop.f32.mrb[0].mxu0
        %4313 = vdwg.mxu0
        %v4314 = vld [vmem:[#allocation2 + $0x2] sm:$0x3]
        %s4315 = scalar_lea.vmem [#allocation14], 256
        %v4316 = vld [vmem:[%s4315] sm:$0xff]
        %v4317 = vld [vmem:[%s4315 + $0x8] sm:$0xff]
        %v4318 = vld [vmem:[%s4315 + $0x10] sm:$0xff]
        %v4319 = vld [vmem:[%s4315 + $0x18] sm:$0xff]
        %v4320 = vld [vmem:[%s4315 + $0x20] sm:$0xff]
        %v4321 = vld [vmem:[%s4315 + $0x28] sm:$0xff]
        %v4322 = vld [vmem:[%s4315 + $0x30] sm:$0xff]
        %v4323 = vld [vmem:[%s4315 + $0x38] sm:$0xff]
        %v4324 = vld [vmem:[%s4315 + $0x40] sm:$0xff]
        %v4325 = vld [vmem:[%s4315 + $0x48] sm:$0xff]
        %v4326 = vld [vmem:[%s4315 + $0x50] sm:$0xff]
        %v4327 = vld [vmem:[%s4315 + $0x58] sm:$0xff]
        %v4328 = vld [vmem:[%s4315 + $0x60] sm:$0xff]
        %v4329 = vld [vmem:[%s4315 + $0x68] sm:$0xff]
        %v4330 = vld [vmem:[%s4315 + $0x70] sm:$0xff]
        %v4331 = vld [vmem:[%s4315 + $0x78] sm:$0xff]
        %4332 = vmatprep.subr.mxu0 0.0
        %4333 = vmatpush1.msra.mxu0 %v4316
        %4334 = vmatprep.subr.mxu0 0.0
        %4335 = vmatpush1.msra.mxu0 %v4317
        %4336 = vmatprep.subr.mxu0 0.0
        %4337 = vmatpush1.msra.mxu0 %v4318
        %4338 = vmatprep.subr.mxu0 0.0
        %4339 = vmatpush1.msra.mxu0 %v4319
        %4340 = vmatprep.subr.mxu0 0.0
        %4341 = vmatpush1.msra.mxu0 %v4320
        %4342 = vmatprep.subr.mxu0 0.0
        %4343 = vmatpush1.msra.mxu0 %v4321
        %4344 = vmatprep.subr.mxu0 0.0
        %4345 = vmatpush1.msra.mxu0 %v4322
        %4346 = vmatprep.subr.mxu0 0.0
        %4347 = vmatpush1.msra.mxu0 %v4323
        %4348 = vmatprep.subr.mxu0 0.0
        %4349 = vmatpush1.msra.mxu0 %v4324
        %4350 = vmatprep.subr.mxu0 0.0
        %4351 = vmatpush1.msra.mxu0 %v4325
        %4352 = vmatprep.subr.mxu0 0.0
        %4353 = vmatpush1.msra.mxu0 %v4326
        %4354 = vmatprep.subr.mxu0 0.0
        %4355 = vmatpush1.msra.mxu0 %v4327
        %4356 = vmatprep.subr.mxu0 0.0
        %4357 = vmatpush1.msra.mxu0 %v4328
        %4358 = vmatprep.subr.mxu0 0.0
        %4359 = vmatpush1.msra.mxu0 %v4329
        %4360 = vmatprep.subr.mxu0 0.0
        %4361 = vmatpush1.msra.mxu0 %v4330
        %4362 = vmatprep.subr.mxu0 0.0
        %4363 = vmatpush1.msra.mxu0 %v4331
        %4364 = vmatprep.subr.mxu0 0.0
        %4365 = vmatpush1.msra.mxu0 0.0
        %4366 = vmatprep.subr.mxu0 0.0
        %4367 = vmatpush1.msra.mxu0 0.0
        %4368 = vmatprep.subr.mxu0 0.0
        %4369 = vmatpush1.msra.mxu0 0.0
        %4370 = vmatprep.subr.mxu0 0.0
        %4371 = vmatpush1.msra.mxu0 0.0
        %4372 = vmatprep.subr.mxu0 0.0
        %4373 = vmatpush1.msra.mxu0 0.0
        %4374 = vmatprep.subr.mxu0 0.0
        %4375 = vmatpush1.msra.mxu0 0.0
        %4376 = vmatprep.subr.mxu0 0.0
        %4377 = vmatpush1.msra.mxu0 0.0
        %4378 = vmatprep.subr.mxu0 0.0
        %4379 = vmatpush1.msra.mxu0 0.0
        %4380 = vmatprep.subr.mxu0 0.0
        %4381 = vmatpush1.msra.mxu0 0.0
        %4382 = vmatprep.subr.mxu0 0.0
        %4383 = vmatpush1.msra.mxu0 0.0
        %4384 = vmatprep.subr.mxu0 0.0
        %4385 = vmatpush1.msra.mxu0 0.0
        %4386 = vmatprep.subr.mxu0 0.0
        %4387 = vmatpush1.msra.mxu0 0.0
        %4388 = vmatprep.subr.mxu0 0.0
        %4389 = vmatpush1.msra.mxu0 0.0
        %4390 = vmatprep.subr.mxu0 0.0
        %4391 = vmatpush1.msra.mxu0 0.0
        %4392 = vmatprep.subr.mxu0 0.0
        %4393 = vmatpush1.msra.mxu0 0.0
        %4394 = vmatprep.subr.mxu0 0.0
        %4395 = vmatpush1.msra.mxu0 0.0
        %4396 = vmatprep.mubr.f32.mxu0 0.0
        %4397 = vmatmul.mubr.f32.gmra.mrb[0].mxu0 %v4314
        %v4398 = vpop.f32.mrb[0].mxu0
        %v4399 = vadd.f32 0.0, %v4398
        %v4400 = vpop.f32.mrb[0].mxu0
        %4401 = vdwg.mxu0
        %v4402 = vadd.f32 %v4311, %v4399
        %v4403 = vld [vmem:[#allocation8] sm:$0xff]
        %v4404 = vld [vmem:[#allocation8 + $0x8] sm:$0xff]
        %v4405 = vld [vmem:[#allocation8 + $0x10] sm:$0xff]
        %v4406 = vld [vmem:[#allocation8 + $0x18] sm:$0xff]
        %v4407 = vld [vmem:[#allocation8 + $0x20] sm:$0xff]
        %v4408 = vld [vmem:[#allocation8 + $0x28] sm:$0xff]
        %v4409 = vld [vmem:[#allocation8 + $0x30] sm:$0xff]
        %v4410 = vld [vmem:[#allocation8 + $0x38] sm:$0xff]
        %v4411 = vld [vmem:[#allocation8 + $0x40] sm:$0xff]
        %v4412 = vld [vmem:[#allocation8 + $0x48] sm:$0xff]
        %v4413 = vld [vmem:[#allocation8 + $0x50] sm:$0xff]
        %v4414 = vld [vmem:[#allocation8 + $0x58] sm:$0xff]
        %v4415 = vld [vmem:[#allocation8 + $0x60] sm:$0xff]
        %v4416 = vld [vmem:[#allocation8 + $0x68] sm:$0xff]
        %v4417 = vld [vmem:[#allocation8 + $0x70] sm:$0xff]
        %v4418 = vld [vmem:[#allocation8 + $0x78] sm:$0xff]
        %v4419 = vsel %vm3016, %v4402, 0.0
        %v4420 = vrot.slane %v4419, 4
        %v4421 = vadd.f32 %v4419, %v4420
        %v4422 = vrot.slane %v4421, 2
        %v4423 = vadd.f32 %v4421, %v4422
        %v4424 = vrot.slane %v4423, 1
        %v4425 = vadd.f32 %v4423, %v4424
        %4426 = vmatprep.subr.mxu0 0.0
        %4427 = vmatpush1.msra.mxu0 %v4403
        %4428 = vmatprep.subr.mxu0 0.0
        %4429 = vmatpush1.msra.mxu0 %v4404
        %4430 = vmatprep.subr.mxu0 0.0
        %4431 = vmatpush1.msra.mxu0 %v4405
        %4432 = vmatprep.subr.mxu0 0.0
        %4433 = vmatpush1.msra.mxu0 %v4406
        %4434 = vmatprep.subr.mxu0 0.0
        %4435 = vmatpush1.msra.mxu0 %v4407
        %4436 = vmatprep.subr.mxu0 0.0
        %4437 = vmatpush1.msra.mxu0 %v4408
        %4438 = vmatprep.subr.mxu0 0.0
        %4439 = vmatpush1.msra.mxu0 %v4409
        %4440 = vmatprep.subr.mxu0 0.0
        %4441 = vmatpush1.msra.mxu0 %v4410
        %4442 = vmatprep.subr.mxu0 0.0
        %4443 = vmatpush1.msra.mxu0 %v4411
        %4444 = vmatprep.subr.mxu0 0.0
        %4445 = vmatpush1.msra.mxu0 %v4412
        %4446 = vmatprep.subr.mxu0 0.0
        %4447 = vmatpush1.msra.mxu0 %v4413
        %4448 = vmatprep.subr.mxu0 0.0
        %4449 = vmatpush1.msra.mxu0 %v4414
        %4450 = vmatprep.subr.mxu0 0.0
        %4451 = vmatpush1.msra.mxu0 %v4415
        %4452 = vmatprep.subr.mxu0 0.0
        %4453 = vmatpush1.msra.mxu0 %v4416
        %4454 = vmatprep.subr.mxu0 0.0
        %4455 = vmatpush1.msra.mxu0 %v4417
        %4456 = vmatprep.subr.mxu0 0.0
        %4457 = vmatpush1.msra.mxu0 %v4418
        %4458 = vmatprep.subr.mxu0 0.0
        %4459 = vmatpush1.msra.mxu0 0.0
        %4460 = vmatprep.subr.mxu0 0.0
        %4461 = vmatpush1.msra.mxu0 0.0
        %4462 = vmatprep.subr.mxu0 0.0
        %4463 = vmatpush1.msra.mxu0 0.0
        %4464 = vmatprep.subr.mxu0 0.0
        %4465 = vmatpush1.msra.mxu0 0.0
        %4466 = vmatprep.subr.mxu0 0.0
        %4467 = vmatpush1.msra.mxu0 0.0
        %4468 = vmatprep.subr.mxu0 0.0
        %4469 = vmatpush1.msra.mxu0 0.0
        %4470 = vmatprep.subr.mxu0 0.0
        %4471 = vmatpush1.msra.mxu0 0.0
        %4472 = vmatprep.subr.mxu0 0.0
        %4473 = vmatpush1.msra.mxu0 0.0
        %4474 = vmatprep.subr.mxu0 0.0
        %4475 = vmatpush1.msra.mxu0 0.0
        %4476 = vmatprep.subr.mxu0 0.0
        %4477 = vmatpush1.msra.mxu0 0.0
        %4478 = vmatprep.subr.mxu0 0.0
        %4479 = vmatpush1.msra.mxu0 0.0
        %4480 = vmatprep.subr.mxu0 0.0
        %4481 = vmatpush1.msra.mxu0 0.0
        %4482 = vmatprep.subr.mxu0 0.0
        %4483 = vmatpush1.msra.mxu0 0.0
        %4484 = vmatprep.subr.mxu0 0.0
        %4485 = vmatpush1.msra.mxu0 0.0
        %4486 = vmatprep.subr.mxu0 0.0
        %4487 = vmatpush1.msra.mxu0 0.0
        %4488 = vmatprep.subr.mxu0 0.0
        %4489 = vmatpush1.msra.mxu0 0.0
        %4490 = vmatprep.mubr.f32.mxu0 0.0
        %4491 = vmatmul.mubr.f32.gmra.mrb[0].mxu0 %v4425
        %v4492 = vpop.f32.mrb[0].mxu0
        %v4493 = vadd.f32 0.0, %v4492
        %v4494 = vpop.f32.mrb[0].mxu0
        %4495 = vdwg.mxu0
        %v4496 = vlaneseq
        %v4497 = vshrl.u32 %v4496, 7
        %v4498 = vsub.s32 0, %v4497
        %v4499 = vrot.slane %v4493, %v4498
        %v4500 = vsub.f32 %v4402, %v4499
        %v4501 = vmul.f32 %v4500, %v4500
        %v4502 = vsel %vm3016, %v4501, 0.0
        %v4503 = vrot.slane %v4502, 4
        %v4504 = vadd.f32 %v4502, %v4503
        %v4505 = vrot.slane %v4504, 2
        %v4506 = vadd.f32 %v4504, %v4505
        %v4507 = vrot.slane %v4506, 1
        %v4508 = vadd.f32 %v4506, %v4507
        %4509 = vmatprep.subr.mxu0 0.0
        %4510 = vmatpush1.msra.mxu0 %v4403
        %4511 = vmatprep.subr.mxu0 0.0
        %4512 = vmatpush1.msra.mxu0 %v4404
        %4513 = vmatprep.subr.mxu0 0.0
        %4514 = vmatpush1.msra.mxu0 %v4405
        %4515 = vmatprep.subr.mxu0 0.0
        %4516 = vmatpush1.msra.mxu0 %v4406
        %4517 = vmatprep.subr.mxu0 0.0
        %4518 = vmatpush1.msra.mxu0 %v4407
        %4519 = vmatprep.subr.mxu0 0.0
        %4520 = vmatpush1.msra.mxu0 %v4408
        %4521 = vmatprep.subr.mxu0 0.0
        %4522 = vmatpush1.msra.mxu0 %v4409
        %4523 = vmatprep.subr.mxu0 0.0
        %4524 = vmatpush1.msra.mxu0 %v4410
        %4525 = vmatprep.subr.mxu0 0.0
        %4526 = vmatpush1.msra.mxu0 %v4411
        %4527 = vmatprep.subr.mxu0 0.0
        %4528 = vmatpush1.msra.mxu0 %v4412
        %4529 = vmatprep.subr.mxu0 0.0
        %4530 = vmatpush1.msra.mxu0 %v4413
        %4531 = vmatprep.subr.mxu0 0.0
        %4532 = vmatpush1.msra.mxu0 %v4414
        %4533 = vmatprep.subr.mxu0 0.0
        %4534 = vmatpush1.msra.mxu0 %v4415
        %4535 = vmatprep.subr.mxu0 0.0
        %4536 = vmatpush1.msra.mxu0 %v4416
        %4537 = vmatprep.subr.mxu0 0.0
        %4538 = vmatpush1.msra.mxu0 %v4417
        %4539 = vmatprep.subr.mxu0 0.0
        %4540 = vmatpush1.msra.mxu0 %v4418
        %4541 = vmatprep.subr.mxu0 0.0
        %4542 = vmatpush1.msra.mxu0 0.0
        %4543 = vmatprep.subr.mxu0 0.0
        %4544 = vmatpush1.msra.mxu0 0.0
        %4545 = vmatprep.subr.mxu0 0.0
        %4546 = vmatpush1.msra.mxu0 0.0
        %4547 = vmatprep.subr.mxu0 0.0
        %4548 = vmatpush1.msra.mxu0 0.0
        %4549 = vmatprep.subr.mxu0 0.0
        %4550 = vmatpush1.msra.mxu0 0.0
        %4551 = vmatprep.subr.mxu0 0.0
        %4552 = vmatpush1.msra.mxu0 0.0
        %4553 = vmatprep.subr.mxu0 0.0
        %4554 = vmatpush1.msra.mxu0 0.0
        %4555 = vmatprep.subr.mxu0 0.0
        %4556 = vmatpush1.msra.mxu0 0.0
        %4557 = vmatprep.subr.mxu0 0.0
        %4558 = vmatpush1.msra.mxu0 0.0
        %4559 = vmatprep.subr.mxu0 0.0
        %4560 = vmatpush1.msra.mxu0 0.0
        %4561 = vmatprep.subr.mxu0 0.0
        %4562 = vmatpush1.msra.mxu0 0.0
        %4563 = vmatprep.subr.mxu0 0.0
        %4564 = vmatpush1.msra.mxu0 0.0
        %4565 = vmatprep.subr.mxu0 0.0
        %4566 = vmatpush1.msra.mxu0 0.0
        %4567 = vmatprep.subr.mxu0 0.0
        %4568 = vmatpush1.msra.mxu0 0.0
        %4569 = vmatprep.subr.mxu0 0.0
        %4570 = vmatpush1.msra.mxu0 0.0
        %4571 = vmatprep.subr.mxu0 0.0
        %4572 = vmatpush1.msra.mxu0 0.0
        %4573 = vmatprep.mubr.f32.mxu0 0.0
        %4574 = vmatmul.mubr.f32.gmra.mrb[0].mxu0 %v4508
        %v4575 = vpop.f32.mrb[0].mxu0
        %v4576 = vadd.f32 1e-05, %v4575
        %v4577 = vpop.f32.mrb[0].mxu0
        %4578 = vdwg.mxu0
        %v4579 = vrsqrt.pop %v4576
        %v4580 = vlaneseq
        %v4581 = vshrl.u32 %v4580, 7
        %v4582 = vsub.s32 0, %v4581
        %v4583 = vrot.slane %v4579, %v4582
        %v4584 = vmul.f32 %v4500, %v4583
        %v4585 = vld [vmem:[#allocation15] sm:$0x1]
        %v4587 = vlaneseq
        %v4588 = vshrl.u32 %v4587, 7
        %v4589 = vsub.s32 0, %v4588
        %v4590 = vrot.slane %v4585, %v4589
        %v4592 = vmul.f32 %v4584, %v4590
        %v4593 = vld [vmem:[#allocation17] sm:$0x1]
        %v4595 = vlaneseq
        %v4596 = vshrl.u32 %v4595, 7
        %v4597 = vsub.s32 0, %v4596
        %v4598 = vrot.slane %v4593, %v4597
        %v4600 = vadd.f32 %v4592, %v4598
        %vm4601 = vcmp.gt.f32.partialorder %v4600, 0.0
        %v4602 = vmul.f32 %v4600, 0.01
        %v4603 = vsel %vm4601, %v4600, %v4602
        %4604 = vst [vmem:[#allocation2] sm:$0xff] 0.0
        %4605 = vst [vmem:[#allocation2 + $0x8] sm:$0xff] 0.0
        %4606 = vst [vmem:[#allocation2 + $0x1] sm:$0x3] %v4603
        %v4607 = vld [vmem:[#allocation2] sm:$0x3]
        %v4608 = vld [vmem:[#allocation18] sm:$0xff]
        %v4609 = vld [vmem:[#allocation18 + $0x8] sm:$0xff]
        %v4610 = vld [vmem:[#allocation18 + $0x10] sm:$0xff]
        %v4611 = vld [vmem:[#allocation18 + $0x18] sm:$0xff]
        %v4612 = vld [vmem:[#allocation18 + $0x20] sm:$0xff]
        %v4613 = vld [vmem:[#allocation18 + $0x28] sm:$0xff]
        %v4614 = vld [vmem:[#allocation18 + $0x30] sm:$0xff]
        %v4615 = vld [vmem:[#allocation18 + $0x38] sm:$0xff]
        %v4616 = vld [vmem:[#allocation18 + $0x40] sm:$0xff]
        %v4617 = vld [vmem:[#allocation18 + $0x48] sm:$0xff]
        %v4618 = vld [vmem:[#allocation18 + $0x50] sm:$0xff]
        %v4619 = vld [vmem:[#allocation18 + $0x58] sm:$0xff]
        %v4620 = vld [vmem:[#allocation18 + $0x60] sm:$0xff]
        %v4621 = vld [vmem:[#allocation18 + $0x68] sm:$0xff]
        %v4622 = vld [vmem:[#allocation18 + $0x70] sm:$0xff]
        %v4623 = vld [vmem:[#allocation18 + $0x78] sm:$0xff]
        %v4624 = vld [vmem:[#allocation2 + $0x1] sm:$0x3]
        %s4625 = scalar_lea.vmem [#allocation18], 128
        %v4626 = vld [vmem:[%s4625] sm:$0xff]
        %v4627 = vld [vmem:[%s4625 + $0x8] sm:$0xff]
        %v4628 = vld [vmem:[%s4625 + $0x10] sm:$0xff]
        %v4629 = vld [vmem:[%s4625 + $0x18] sm:$0xff]
        %v4630 = vld [vmem:[%s4625 + $0x20] sm:$0xff]
        %v4631 = vld [vmem:[%s4625 + $0x28] sm:$0xff]
        %v4632 = vld [vmem:[%s4625 + $0x30] sm:$0xff]
        %v4633 = vld [vmem:[%s4625 + $0x38] sm:$0xff]
        %v4634 = vld [vmem:[%s4625 + $0x40] sm:$0xff]
        %v4635 = vld [vmem:[%s4625 + $0x48] sm:$0xff]
        %v4636 = vld [vmem:[%s4625 + $0x50] sm:$0xff]
        %v4637 = vld [vmem:[%s4625 + $0x58] sm:$0xff]
        %v4638 = vld [vmem:[%s4625 + $0x60] sm:$0xff]
        %v4639 = vld [vmem:[%s4625 + $0x68] sm:$0xff]
        %v4640 = vld [vmem:[%s4625 + $0x70] sm:$0xff]
        %v4641 = vld [vmem:[%s4625 + $0x78] sm:$0xff]
        %4642 = vmatprep.subr.mxu0 0.0
        %4643 = vmatpush1.msra.mxu0 %v4626
        %4644 = vmatprep.subr.mxu0 0.0
        %4645 = vmatpush1.msra.mxu0 %v4627
        %4646 = vmatprep.subr.mxu0 0.0
        %4647 = vmatpush1.msra.mxu0 %v4628
        %4648 = vmatprep.subr.mxu0 0.0
        %4649 = vmatpush1.msra.mxu0 %v4629
        %4650 = vmatprep.subr.mxu0 0.0
        %4651 = vmatpush1.msra.mxu0 %v4630
        %4652 = vmatprep.subr.mxu0 0.0
        %4653 = vmatpush1.msra.mxu0 %v4631
        %4654 = vmatprep.subr.mxu0 0.0
        %4655 = vmatpush1.msra.mxu0 %v4632
        %4656 = vmatprep.subr.mxu0 0.0
        %4657 = vmatpush1.msra.mxu0 %v4633
        %4658 = vmatprep.subr.mxu0 0.0
        %4659 = vmatpush1.msra.mxu0 %v4634
        %4660 = vmatprep.subr.mxu0 0.0
        %4661 = vmatpush1.msra.mxu0 %v4635
        %4662 = vmatprep.subr.mxu0 0.0
        %4663 = vmatpush1.msra.mxu0 %v4636
        %4664 = vmatprep.subr.mxu0 0.0
        %4665 = vmatpush1.msra.mxu0 %v4637
        %4666 = vmatprep.subr.mxu0 0.0
        %4667 = vmatpush1.msra.mxu0 %v4638
        %4668 = vmatprep.subr.mxu0 0.0
        %4669 = vmatpush1.msra.mxu0 %v4639
        %4670 = vmatprep.subr.mxu0 0.0
        %4671 = vmatpush1.msra.mxu0 %v4640
        %4672 = vmatprep.subr.mxu0 0.0
        %4673 = vmatpush1.msra.mxu0 %v4641
        %4674 = vmatprep.subr.mxu0 0.0
        %4675 = vmatpush1.msra.mxu0 0.0
        %4676 = vmatprep.subr.mxu0 0.0
        %4677 = vmatpush1.msra.mxu0 0.0
        %4678 = vmatprep.subr.mxu0 0.0
        %4679 = vmatpush1.msra.mxu0 0.0
        %4680 = vmatprep.subr.mxu0 0.0
        %4681 = vmatpush1.msra.mxu0 0.0
        %4682 = vmatprep.subr.mxu0 0.0
        %4683 = vmatpush1.msra.mxu0 0.0
        %4684 = vmatprep.subr.mxu0 0.0
        %4685 = vmatpush1.msra.mxu0 0.0
        %4686 = vmatprep.subr.mxu0 0.0
        %4687 = vmatpush1.msra.mxu0 0.0
        %4688 = vmatprep.subr.mxu0 0.0
        %4689 = vmatpush1.msra.mxu0 0.0
        %4690 = vmatprep.subr.mxu0 0.0
        %4691 = vmatpush1.msra.mxu0 0.0
        %4692 = vmatprep.subr.mxu0 0.0
        %4693 = vmatpush1.msra.mxu0 0.0
        %4694 = vmatprep.subr.mxu0 0.0
        %4695 = vmatpush1.msra.mxu0 0.0
        %4696 = vmatprep.subr.mxu0 0.0
        %4697 = vmatpush1.msra.mxu0 0.0
        %4698 = vmatprep.subr.mxu0 0.0
        %4699 = vmatpush1.msra.mxu0 0.0
        %4700 = vmatprep.subr.mxu0 0.0
        %4701 = vmatpush1.msra.mxu0 0.0
        %4702 = vmatprep.subr.mxu0 0.0
        %4703 = vmatpush1.msra.mxu0 0.0
        %4704 = vmatprep.subr.mxu0 0.0
        %4705 = vmatpush1.msra.mxu0 0.0
        %4706 = vmatprep.mubr.f32.mxu0 0.0
        %4707 = vmatmul.mubr.f32.gmra.mrb[0].mxu0 %v4624
        %v4708 = vpop.f32.mrb[0].mxu0
        %v4709 = vadd.f32 0.0, %v4708
        %v4710 = vpop.f32.mrb[0].mxu0
        %4711 = vdwg.mxu0
        %4712 = vmatprep.subr.mxu0 0.0
        %4713 = vmatpush1.msra.mxu0 %v4608
        %4714 = vmatprep.subr.mxu0 0.0
        %4715 = vmatpush1.msra.mxu0 %v4609
        %4716 = vmatprep.subr.mxu0 0.0
        %4717 = vmatpush1.msra.mxu0 %v4610
        %4718 = vmatprep.subr.mxu0 0.0
        %4719 = vmatpush1.msra.mxu0 %v4611
        %4720 = vmatprep.subr.mxu0 0.0
        %4721 = vmatpush1.msra.mxu0 %v4612
        %4722 = vmatprep.subr.mxu0 0.0
        %4723 = vmatpush1.msra.mxu0 %v4613
        %4724 = vmatprep.subr.mxu0 0.0
        %4725 = vmatpush1.msra.mxu0 %v4614
        %4726 = vmatprep.subr.mxu0 0.0
        %4727 = vmatpush1.msra.mxu0 %v4615
        %4728 = vmatprep.subr.mxu0 0.0
        %4729 = vmatpush1.msra.mxu0 %v4616
        %4730 = vmatprep.subr.mxu0 0.0
        %4731 = vmatpush1.msra.mxu0 %v4617
        %4732 = vmatprep.subr.mxu0 0.0
        %4733 = vmatpush1.msra.mxu0 %v4618
        %4734 = vmatprep.subr.mxu0 0.0
        %4735 = vmatpush1.msra.mxu0 %v4619
        %4736 = vmatprep.subr.mxu0 0.0
        %4737 = vmatpush1.msra.mxu0 %v4620
        %4738 = vmatprep.subr.mxu0 0.0
        %4739 = vmatpush1.msra.mxu0 %v4621
        %4740 = vmatprep.subr.mxu0 0.0
        %4741 = vmatpush1.msra.mxu0 %v4622
        %4742 = vmatprep.subr.mxu0 0.0
        %4743 = vmatpush1.msra.mxu0 %v4623
        %4744 = vmatprep.subr.mxu0 0.0
        %4745 = vmatpush1.msra.mxu0 0.0
        %4746 = vmatprep.subr.mxu0 0.0
        %4747 = vmatpush1.msra.mxu0 0.0
        %4748 = vmatprep.subr.mxu0 0.0
        %4749 = vmatpush1.msra.mxu0 0.0
        %4750 = vmatprep.subr.mxu0 0.0
        %4751 = vmatpush1.msra.mxu0 0.0
        %4752 = vmatprep.subr.mxu0 0.0
        %4753 = vmatpush1.msra.mxu0 0.0
        %4754 = vmatprep.subr.mxu0 0.0
        %4755 = vmatpush1.msra.mxu0 0.0
        %4756 = vmatprep.subr.mxu0 0.0
        %4757 = vmatpush1.msra.mxu0 0.0
        %4758 = vmatprep.subr.mxu0 0.0
        %4759 = vmatpush1.msra.mxu0 0.0
        %4760 = vmatprep.subr.mxu0 0.0
        %4761 = vmatpush1.msra.mxu0 0.0
        %4762 = vmatprep.subr.mxu0 0.0
        %4763 = vmatpush1.msra.mxu0 0.0
        %4764 = vmatprep.subr.mxu0 0.0
        %4765 = vmatpush1.msra.mxu0 0.0
        %4766 = vmatprep.subr.mxu0 0.0
        %4767 = vmatpush1.msra.mxu0 0.0
        %4768 = vmatprep.subr.mxu0 0.0
        %4769 = vmatpush1.msra.mxu0 0.0
        %4770 = vmatprep.subr.mxu0 0.0
        %4771 = vmatpush1.msra.mxu0 0.0
        %4772 = vmatprep.subr.mxu0 0.0
        %4773 = vmatpush1.msra.mxu0 0.0
        %4774 = vmatprep.subr.mxu0 0.0
        %4775 = vmatpush1.msra.mxu0 0.0
        %4776 = vmatprep.mubr.f32.mxu0 0.0
        %4777 = vmatmul.mubr.f32.gmra.mrb[0].mxu0 %v4607
        %v4778 = vpop.f32.mrb[0].mxu0
        %v4779 = vadd.f32 %v4709, %v4778
        %v4780 = vpop.f32.mrb[0].mxu0
        %4781 = vdwg.mxu0
        %v4782 = vld [vmem:[#allocation2 + $0x2] sm:$0x3]
        %s4783 = scalar_lea.vmem [#allocation18], 256
        %v4784 = vld [vmem:[%s4783] sm:$0xff]
        %v4785 = vld [vmem:[%s4783 + $0x8] sm:$0xff]
        %v4786 = vld [vmem:[%s4783 + $0x10] sm:$0xff]
        %v4787 = vld [vmem:[%s4783 + $0x18] sm:$0xff]
        %v4788 = vld [vmem:[%s4783 + $0x20] sm:$0xff]
        %v4789 = vld [vmem:[%s4783 + $0x28] sm:$0xff]
        %v4790 = vld [vmem:[%s4783 + $0x30] sm:$0xff]
        %v4791 = vld [vmem:[%s4783 + $0x38] sm:$0xff]
        %v4792 = vld [vmem:[%s4783 + $0x40] sm:$0xff]
        %v4793 = vld [vmem:[%s4783 + $0x48] sm:$0xff]
        %v4794 = vld [vmem:[%s4783 + $0x50] sm:$0xff]
        %v4795 = vld [vmem:[%s4783 + $0x58] sm:$0xff]
        %v4796 = vld [vmem:[%s4783 + $0x60] sm:$0xff]
        %v4797 = vld [vmem:[%s4783 + $0x68] sm:$0xff]
        %v4798 = vld [vmem:[%s4783 + $0x70] sm:$0xff]
        %v4799 = vld [vmem:[%s4783 + $0x78] sm:$0xff]
        %4800 = vmatprep.subr.mxu0 0.0
        %4801 = vmatpush1.msra.mxu0 %v4784
        %4802 = vmatprep.subr.mxu0 0.0
        %4803 = vmatpush1.msra.mxu0 %v4785
        %4804 = vmatprep.subr.mxu0 0.0
        %4805 = vmatpush1.msra.mxu0 %v4786
        %4806 = vmatprep.subr.mxu0 0.0
        %4807 = vmatpush1.msra.mxu0 %v4787
        %4808 = vmatprep.subr.mxu0 0.0
        %4809 = vmatpush1.msra.mxu0 %v4788
        %4810 = vmatprep.subr.mxu0 0.0
        %4811 = vmatpush1.msra.mxu0 %v4789
        %4812 = vmatprep.subr.mxu0 0.0
        %4813 = vmatpush1.msra.mxu0 %v4790
        %4814 = vmatprep.subr.mxu0 0.0
        %4815 = vmatpush1.msra.mxu0 %v4791
        %4816 = vmatprep.subr.mxu0 0.0
        %4817 = vmatpush1.msra.mxu0 %v4792
        %4818 = vmatprep.subr.mxu0 0.0
        %4819 = vmatpush1.msra.mxu0 %v4793
        %4820 = vmatprep.subr.mxu0 0.0
        %4821 = vmatpush1.msra.mxu0 %v4794
        %4822 = vmatprep.subr.mxu0 0.0
        %4823 = vmatpush1.msra.mxu0 %v4795
        %4824 = vmatprep.subr.mxu0 0.0
        %4825 = vmatpush1.msra.mxu0 %v4796
        %4826 = vmatprep.subr.mxu0 0.0
        %4827 = vmatpush1.msra.mxu0 %v4797
        %4828 = vmatprep.subr.mxu0 0.0
        %4829 = vmatpush1.msra.mxu0 %v4798
        %4830 = vmatprep.subr.mxu0 0.0
        %4831 = vmatpush1.msra.mxu0 %v4799
        %4832 = vmatprep.subr.mxu0 0.0
        %4833 = vmatpush1.msra.mxu0 0.0
        %4834 = vmatprep.subr.mxu0 0.0
        %4835 = vmatpush1.msra.mxu0 0.0
        %4836 = vmatprep.subr.mxu0 0.0
        %4837 = vmatpush1.msra.mxu0 0.0
        %4838 = vmatprep.subr.mxu0 0.0
        %4839 = vmatpush1.msra.mxu0 0.0
        %4840 = vmatprep.subr.mxu0 0.0
        %4841 = vmatpush1.msra.mxu0 0.0
        %4842 = vmatprep.subr.mxu0 0.0
        %4843 = vmatpush1.msra.mxu0 0.0
        %4844 = vmatprep.subr.mxu0 0.0
        %4845 = vmatpush1.msra.mxu0 0.0
        %4846 = vmatprep.subr.mxu0 0.0
        %4847 = vmatpush1.msra.mxu0 0.0
        %4848 = vmatprep.subr.mxu0 0.0
        %4849 = vmatpush1.msra.mxu0 0.0
        %4850 = vmatprep.subr.mxu0 0.0
        %4851 = vmatpush1.msra.mxu0 0.0
        %4852 = vmatprep.subr.mxu0 0.0
        %4853 = vmatpush1.msra.mxu0 0.0
        %4854 = vmatprep.subr.mxu0 0.0
        %4855 = vmatpush1.msra.mxu0 0.0
        %4856 = vmatprep.subr.mxu0 0.0
        %4857 = vmatpush1.msra.mxu0 0.0
        %4858 = vmatprep.subr.mxu0 0.0
        %4859 = vmatpush1.msra.mxu0 0.0
        %4860 = vmatprep.subr.mxu0 0.0
        %4861 = vmatpush1.msra.mxu0 0.0
        %4862 = vmatprep.subr.mxu0 0.0
        %4863 = vmatpush1.msra.mxu0 0.0
        %4864 = vmatprep.mubr.f32.mxu0 0.0
        %4865 = vmatmul.mubr.f32.gmra.mrb[0].mxu0 %v4782
        %v4866 = vpop.f32.mrb[0].mxu0
        %v4867 = vadd.f32 0.0, %v4866
        %v4868 = vpop.f32.mrb[0].mxu0
        %4869 = vdwg.mxu0
        %v4870 = vadd.f32 %v4779, %v4867
        %v4871 = vld [vmem:[#allocation8] sm:$0xff]
        %v4872 = vld [vmem:[#allocation8 + $0x8] sm:$0xff]
        %v4873 = vld [vmem:[#allocation8 + $0x10] sm:$0xff]
        %v4874 = vld [vmem:[#allocation8 + $0x18] sm:$0xff]
        %v4875 = vld [vmem:[#allocation8 + $0x20] sm:$0xff]
        %v4876 = vld [vmem:[#allocation8 + $0x28] sm:$0xff]
        %v4877 = vld [vmem:[#allocation8 + $0x30] sm:$0xff]
        %v4878 = vld [vmem:[#allocation8 + $0x38] sm:$0xff]
        %v4879 = vld [vmem:[#allocation8 + $0x40] sm:$0xff]
        %v4880 = vld [vmem:[#allocation8 + $0x48] sm:$0xff]
        %v4881 = vld [vmem:[#allocation8 + $0x50] sm:$0xff]
        %v4882 = vld [vmem:[#allocation8 + $0x58] sm:$0xff]
        %v4883 = vld [vmem:[#allocation8 + $0x60] sm:$0xff]
        %v4884 = vld [vmem:[#allocation8 + $0x68] sm:$0xff]
        %v4885 = vld [vmem:[#allocation8 + $0x70] sm:$0xff]
        %v4886 = vld [vmem:[#allocation8 + $0x78] sm:$0xff]
        %v4887 = vsel %vm3016, %v4870, 0.0
        %v4888 = vrot.slane %v4887, 4
        %v4889 = vadd.f32 %v4887, %v4888
        %v4890 = vrot.slane %v4889, 2
        %v4891 = vadd.f32 %v4889, %v4890
        %v4892 = vrot.slane %v4891, 1
        %v4893 = vadd.f32 %v4891, %v4892
        %4894 = vmatprep.subr.mxu0 0.0
        %4895 = vmatpush1.msra.mxu0 %v4871
        %4896 = vmatprep.subr.mxu0 0.0
        %4897 = vmatpush1.msra.mxu0 %v4872
        %4898 = vmatprep.subr.mxu0 0.0
        %4899 = vmatpush1.msra.mxu0 %v4873
        %4900 = vmatprep.subr.mxu0 0.0
        %4901 = vmatpush1.msra.mxu0 %v4874
        %4902 = vmatprep.subr.mxu0 0.0
        %4903 = vmatpush1.msra.mxu0 %v4875
        %4904 = vmatprep.subr.mxu0 0.0
        %4905 = vmatpush1.msra.mxu0 %v4876
        %4906 = vmatprep.subr.mxu0 0.0
        %4907 = vmatpush1.msra.mxu0 %v4877
        %4908 = vmatprep.subr.mxu0 0.0
        %4909 = vmatpush1.msra.mxu0 %v4878
        %4910 = vmatprep.subr.mxu0 0.0
        %4911 = vmatpush1.msra.mxu0 %v4879
        %4912 = vmatprep.subr.mxu0 0.0
        %4913 = vmatpush1.msra.mxu0 %v4880
        %4914 = vmatprep.subr.mxu0 0.0
        %4915 = vmatpush1.msra.mxu0 %v4881
        %4916 = vmatprep.subr.mxu0 0.0
        %4917 = vmatpush1.msra.mxu0 %v4882
        %4918 = vmatprep.subr.mxu0 0.0
        %4919 = vmatpush1.msra.mxu0 %v4883
        %4920 = vmatprep.subr.mxu0 0.0
        %4921 = vmatpush1.msra.mxu0 %v4884
        %4922 = vmatprep.subr.mxu0 0.0
        %4923 = vmatpush1.msra.mxu0 %v4885
        %4924 = vmatprep.subr.mxu0 0.0
        %4925 = vmatpush1.msra.mxu0 %v4886
        %4926 = vmatprep.subr.mxu0 0.0
        %4927 = vmatpush1.msra.mxu0 0.0
        %4928 = vmatprep.subr.mxu0 0.0
        %4929 = vmatpush1.msra.mxu0 0.0
        %4930 = vmatprep.subr.mxu0 0.0
        %4931 = vmatpush1.msra.mxu0 0.0
        %4932 = vmatprep.subr.mxu0 0.0
        %4933 = vmatpush1.msra.mxu0 0.0
        %4934 = vmatprep.subr.mxu0 0.0
        %4935 = vmatpush1.msra.mxu0 0.0
        %4936 = vmatprep.subr.mxu0 0.0
        %4937 = vmatpush1.msra.mxu0 0.0
        %4938 = vmatprep.subr.mxu0 0.0
        %4939 = vmatpush1.msra.mxu0 0.0
        %4940 = vmatprep.subr.mxu0 0.0
        %4941 = vmatpush1.msra.mxu0 0.0
        %4942 = vmatprep.subr.mxu0 0.0
        %4943 = vmatpush1.msra.mxu0 0.0
        %4944 = vmatprep.subr.mxu0 0.0
        %4945 = vmatpush1.msra.mxu0 0.0
        %4946 = vmatprep.subr.mxu0 0.0
        %4947 = vmatpush1.msra.mxu0 0.0
        %4948 = vmatprep.subr.mxu0 0.0
        %4949 = vmatpush1.msra.mxu0 0.0
        %4950 = vmatprep.subr.mxu0 0.0
        %4951 = vmatpush1.msra.mxu0 0.0
        %4952 = vmatprep.subr.mxu0 0.0
        %4953 = vmatpush1.msra.mxu0 0.0
        %4954 = vmatprep.subr.mxu0 0.0
        %4955 = vmatpush1.msra.mxu0 0.0
        %4956 = vmatprep.subr.mxu0 0.0
        %4957 = vmatpush1.msra.mxu0 0.0
        %4958 = vmatprep.mubr.f32.mxu0 0.0
        %4959 = vmatmul.mubr.f32.gmra.mrb[0].mxu0 %v4893
        %v4960 = vpop.f32.mrb[0].mxu0
        %v4961 = vadd.f32 0.0, %v4960
        %v4962 = vpop.f32.mrb[0].mxu0
        %4963 = vdwg.mxu0
        %v4964 = vlaneseq
        %v4965 = vshrl.u32 %v4964, 7
        %v4966 = vsub.s32 0, %v4965
        %v4967 = vrot.slane %v4961, %v4966
        %v4968 = vsub.f32 %v4870, %v4967
        %v4969 = vmul.f32 %v4968, %v4968
        %v4970 = vsel %vm3016, %v4969, 0.0
        %v4971 = vrot.slane %v4970, 4
        %v4972 = vadd.f32 %v4970, %v4971
        %v4973 = vrot.slane %v4972, 2
        %v4974 = vadd.f32 %v4972, %v4973
        %v4975 = vrot.slane %v4974, 1
        %v4976 = vadd.f32 %v4974, %v4975
        %4977 = vmatprep.subr.mxu0 0.0
        %4978 = vmatpush1.msra.mxu0 %v4871
        %4979 = vmatprep.subr.mxu0 0.0
        %4980 = vmatpush1.msra.mxu0 %v4872
        %4981 = vmatprep.subr.mxu0 0.0
        %4982 = vmatpush1.msra.mxu0 %v4873
        %4983 = vmatprep.subr.mxu0 0.0
        %4984 = vmatpush1.msra.mxu0 %v4874
        %4985 = vmatprep.subr.mxu0 0.0
        %4986 = vmatpush1.msra.mxu0 %v4875
        %4987 = vmatprep.subr.mxu0 0.0
        %4988 = vmatpush1.msra.mxu0 %v4876
        %4989 = vmatprep.subr.mxu0 0.0
        %4990 = vmatpush1.msra.mxu0 %v4877
        %4991 = vmatprep.subr.mxu0 0.0
        %4992 = vmatpush1.msra.mxu0 %v4878
        %4993 = vmatprep.subr.mxu0 0.0
        %4994 = vmatpush1.msra.mxu0 %v4879
        %4995 = vmatprep.subr.mxu0 0.0
        %4996 = vmatpush1.msra.mxu0 %v4880
        %4997 = vmatprep.subr.mxu0 0.0
        %4998 = vmatpush1.msra.mxu0 %v4881
        %4999 = vmatprep.subr.mxu0 0.0
        %5000 = vmatpush1.msra.mxu0 %v4882
        %5001 = vmatprep.subr.mxu0 0.0
        %5002 = vmatpush1.msra.mxu0 %v4883
        %5003 = vmatprep.subr.mxu0 0.0
        %5004 = vmatpush1.msra.mxu0 %v4884
        %5005 = vmatprep.subr.mxu0 0.0
        %5006 = vmatpush1.msra.mxu0 %v4885
        %5007 = vmatprep.subr.mxu0 0.0
        %5008 = vmatpush1.msra.mxu0 %v4886
        %5009 = vmatprep.subr.mxu0 0.0
        %5010 = vmatpush1.msra.mxu0 0.0
        %5011 = vmatprep.subr.mxu0 0.0
        %5012 = vmatpush1.msra.mxu0 0.0
        %5013 = vmatprep.subr.mxu0 0.0
        %5014 = vmatpush1.msra.mxu0 0.0
        %5015 = vmatprep.subr.mxu0 0.0
        %5016 = vmatpush1.msra.mxu0 0.0
        %5017 = vmatprep.subr.mxu0 0.0
        %5018 = vmatpush1.msra.mxu0 0.0
        %5019 = vmatprep.subr.mxu0 0.0
        %5020 = vmatpush1.msra.mxu0 0.0
        %5021 = vmatprep.subr.mxu0 0.0
        %5022 = vmatpush1.msra.mxu0 0.0
        %5023 = vmatprep.subr.mxu0 0.0
        %5024 = vmatpush1.msra.mxu0 0.0
        %5025 = vmatprep.subr.mxu0 0.0
        %5026 = vmatpush1.msra.mxu0 0.0
        %5027 = vmatprep.subr.mxu0 0.0
        %5028 = vmatpush1.msra.mxu0 0.0
        %5029 = vmatprep.subr.mxu0 0.0
        %5030 = vmatpush1.msra.mxu0 0.0
        %5031 = vmatprep.subr.mxu0 0.0
        %5032 = vmatpush1.msra.mxu0 0.0
        %5033 = vmatprep.subr.mxu0 0.0
        %5034 = vmatpush1.msra.mxu0 0.0
        %5035 = vmatprep.subr.mxu0 0.0
        %5036 = vmatpush1.msra.mxu0 0.0
        %5037 = vmatprep.subr.mxu0 0.0
        %5038 = vmatpush1.msra.mxu0 0.0
        %5039 = vmatprep.subr.mxu0 0.0
        %5040 = vmatpush1.msra.mxu0 0.0
        %5041 = vmatprep.mubr.f32.mxu0 0.0
        %5042 = vmatmul.mubr.f32.gmra.mrb[0].mxu0 %v4976
        %v5043 = vpop.f32.mrb[0].mxu0
        %v5044 = vadd.f32 1e-05, %v5043
        %v5045 = vpop.f32.mrb[0].mxu0
        %5046 = vdwg.mxu0
        %v5047 = vrsqrt.pop %v5044
        %v5048 = vlaneseq
        %v5049 = vshrl.u32 %v5048, 7
        %v5050 = vsub.s32 0, %v5049
        %v5051 = vrot.slane %v5047, %v5050
        %v5052 = vmul.f32 %v4968, %v5051
        %v5053 = vld [vmem:[#allocation20] sm:$0x1]
        %v5055 = vlaneseq
        %v5056 = vshrl.u32 %v5055, 7
        %v5057 = vsub.s32 0, %v5056
        %v5058 = vrot.slane %v5053, %v5057
        %v5060 = vmul.f32 %v5052, %v5058
        %v5061 = vld [vmem:[#allocation21] sm:$0x1]
        %v5063 = vlaneseq
        %v5064 = vshrl.u32 %v5063, 7
        %v5065 = vsub.s32 0, %v5064
        %v5066 = vrot.slane %v5061, %v5065
        %v5068 = vadd.f32 %v5060, %v5066
        %v5069 = vadd.f32 %v4135, %v5068
        %5070 = vst [vmem:[#allocation2] sm:$0xff] 0.0
        %5071 = vst [vmem:[#allocation2 + $0x8] sm:$0xff] 0.0
        %5072 = vst [vmem:[#allocation2 + $0x1] sm:$0x3] %v5069
        %v5073 = vld [vmem:[#allocation2] sm:$0x3]
        %v5074 = vld [vmem:[#allocation23] sm:$0xff]
        %v5075 = vld [vmem:[#allocation23 + $0x8] sm:$0xff]
        %v5076 = vld [vmem:[#allocation23 + $0x10] sm:$0xff]
        %v5077 = vld [vmem:[#allocation23 + $0x18] sm:$0xff]
        %v5078 = vld [vmem:[#allocation23 + $0x20] sm:$0xff]
        %v5079 = vld [vmem:[#allocation23 + $0x28] sm:$0xff]
        %v5080 = vld [vmem:[#allocation23 + $0x30] sm:$0xff]
        %v5081 = vld [vmem:[#allocation23 + $0x38] sm:$0xff]
        %v5082 = vld [vmem:[#allocation23 + $0x40] sm:$0xff]
        %v5083 = vld [vmem:[#allocation23 + $0x48] sm:$0xff]
        %v5084 = vld [vmem:[#allocation23 + $0x50] sm:$0xff]
        %v5085 = vld [vmem:[#allocation23 + $0x58] sm:$0xff]
        %v5086 = vld [vmem:[#allocation23 + $0x60] sm:$0xff]
        %v5087 = vld [vmem:[#allocation23 + $0x68] sm:$0xff]
        %v5088 = vld [vmem:[#allocation23 + $0x70] sm:$0xff]
        %v5089 = vld [vmem:[#allocation23 + $0x78] sm:$0xff]
        %v5090 = vld [vmem:[#allocation2 + $0x1] sm:$0x3]
        %s5091 = scalar_lea.vmem [#allocation23], 128
        %v5092 = vld [vmem:[%s5091] sm:$0xff]
        %v5093 = vld [vmem:[%s5091 + $0x8] sm:$0xff]
        %v5094 = vld [vmem:[%s5091 + $0x10] sm:$0xff]
        %v5095 = vld [vmem:[%s5091 + $0x18] sm:$0xff]
        %v5096 = vld [vmem:[%s5091 + $0x20] sm:$0xff]
        %v5097 = vld [vmem:[%s5091 + $0x28] sm:$0xff]
        %v5098 = vld [vmem:[%s5091 + $0x30] sm:$0xff]
        %v5099 = vld [vmem:[%s5091 + $0x38] sm:$0xff]
        %v5100 = vld [vmem:[%s5091 + $0x40] sm:$0xff]
        %v5101 = vld [vmem:[%s5091 + $0x48] sm:$0xff]
        %v5102 = vld [vmem:[%s5091 + $0x50] sm:$0xff]
        %v5103 = vld [vmem:[%s5091 + $0x58] sm:$0xff]
        %v5104 = vld [vmem:[%s5091 + $0x60] sm:$0xff]
        %v5105 = vld [vmem:[%s5091 + $0x68] sm:$0xff]
        %v5106 = vld [vmem:[%s5091 + $0x70] sm:$0xff]
        %v5107 = vld [vmem:[%s5091 + $0x78] sm:$0xff]
        %5108 = vmatprep.subr.mxu0 0.0
        %5109 = vmatpush1.msra.mxu0 %v5092
        %5110 = vmatprep.subr.mxu0 0.0
        %5111 = vmatpush1.msra.mxu0 %v5093
        %5112 = vmatprep.subr.mxu0 0.0
        %5113 = vmatpush1.msra.mxu0 %v5094
        %5114 = vmatprep.subr.mxu0 0.0
        %5115 = vmatpush1.msra.mxu0 %v5095
        %5116 = vmatprep.subr.mxu0 0.0
        %5117 = vmatpush1.msra.mxu0 %v5096
        %5118 = vmatprep.subr.mxu0 0.0
        %5119 = vmatpush1.msra.mxu0 %v5097
        %5120 = vmatprep.subr.mxu0 0.0
        %5121 = vmatpush1.msra.mxu0 %v5098
        %5122 = vmatprep.subr.mxu0 0.0
        %5123 = vmatpush1.msra.mxu0 %v5099
        %5124 = vmatprep.subr.mxu0 0.0
        %5125 = vmatpush1.msra.mxu0 %v5100
        %5126 = vmatprep.subr.mxu0 0.0
        %5127 = vmatpush1.msra.mxu0 %v5101
        %5128 = vmatprep.subr.mxu0 0.0
        %5129 = vmatpush1.msra.mxu0 %v5102
        %5130 = vmatprep.subr.mxu0 0.0
        %5131 = vmatpush1.msra.mxu0 %v5103
        %5132 = vmatprep.subr.mxu0 0.0
        %5133 = vmatpush1.msra.mxu0 %v5104
        %5134 = vmatprep.subr.mxu0 0.0
        %5135 = vmatpush1.msra.mxu0 %v5105
        %5136 = vmatprep.subr.mxu0 0.0
        %5137 = vmatpush1.msra.mxu0 %v5106
        %5138 = vmatprep.subr.mxu0 0.0
        %5139 = vmatpush1.msra.mxu0 %v5107
        %5140 = vmatprep.subr.mxu0 0.0
        %5141 = vmatpush1.msra.mxu0 0.0
        %5142 = vmatprep.subr.mxu0 0.0
        %5143 = vmatpush1.msra.mxu0 0.0
        %5144 = vmatprep.subr.mxu0 0.0
        %5145 = vmatpush1.msra.mxu0 0.0
        %5146 = vmatprep.subr.mxu0 0.0
        %5147 = vmatpush1.msra.mxu0 0.0
        %5148 = vmatprep.subr.mxu0 0.0
        %5149 = vmatpush1.msra.mxu0 0.0
        %5150 = vmatprep.subr.mxu0 0.0
        %5151 = vmatpush1.msra.mxu0 0.0
        %5152 = vmatprep.subr.mxu0 0.0
        %5153 = vmatpush1.msra.mxu0 0.0
        %5154 = vmatprep.subr.mxu0 0.0
        %5155 = vmatpush1.msra.mxu0 0.0
        %5156 = vmatprep.subr.mxu0 0.0
        %5157 = vmatpush1.msra.mxu0 0.0
        %5158 = vmatprep.subr.mxu0 0.0
        %5159 = vmatpush1.msra.mxu0 0.0
        %5160 = vmatprep.subr.mxu0 0.0
        %5161 = vmatpush1.msra.mxu0 0.0
        %5162 = vmatprep.subr.mxu0 0.0
        %5163 = vmatpush1.msra.mxu0 0.0
        %5164 = vmatprep.subr.mxu0 0.0
        %5165 = vmatpush1.msra.mxu0 0.0
        %5166 = vmatprep.subr.mxu0 0.0
        %5167 = vmatpush1.msra.mxu0 0.0
        %5168 = vmatprep.subr.mxu0 0.0
        %5169 = vmatpush1.msra.mxu0 0.0
        %5170 = vmatprep.subr.mxu0 0.0
        %5171 = vmatpush1.msra.mxu0 0.0
        %5172 = vmatprep.mubr.f32.mxu0 0.0
        %5173 = vmatmul.mubr.f32.gmra.mrb[0].mxu0 %v5090
        %v5174 = vpop.f32.mrb[0].mxu0
        %v5175 = vadd.f32 0.0, %v5174
        %v5176 = vpop.f32.mrb[0].mxu0
        %5177 = vdwg.mxu0
        %5178 = vmatprep.subr.mxu0 0.0
        %5179 = vmatpush1.msra.mxu0 %v5074
        %5180 = vmatprep.subr.mxu0 0.0
        %5181 = vmatpush1.msra.mxu0 %v5075
        %5182 = vmatprep.subr.mxu0 0.0
        %5183 = vmatpush1.msra.mxu0 %v5076
        %5184 = vmatprep.subr.mxu0 0.0
        %5185 = vmatpush1.msra.mxu0 %v5077
        %5186 = vmatprep.subr.mxu0 0.0
        %5187 = vmatpush1.msra.mxu0 %v5078
        %5188 = vmatprep.subr.mxu0 0.0
        %5189 = vmatpush1.msra.mxu0 %v5079
        %5190 = vmatprep.subr.mxu0 0.0
        %5191 = vmatpush1.msra.mxu0 %v5080
        %5192 = vmatprep.subr.mxu0 0.0
        %5193 = vmatpush1.msra.mxu0 %v5081
        %5194 = vmatprep.subr.mxu0 0.0
        %5195 = vmatpush1.msra.mxu0 %v5082
        %5196 = vmatprep.subr.mxu0 0.0
        %5197 = vmatpush1.msra.mxu0 %v5083
        %5198 = vmatprep.subr.mxu0 0.0
        %5199 = vmatpush1.msra.mxu0 %v5084
        %5200 = vmatprep.subr.mxu0 0.0
        %5201 = vmatpush1.msra.mxu0 %v5085
        %5202 = vmatprep.subr.mxu0 0.0
        %5203 = vmatpush1.msra.mxu0 %v5086
        %5204 = vmatprep.subr.mxu0 0.0
        %5205 = vmatpush1.msra.mxu0 %v5087
        %5206 = vmatprep.subr.mxu0 0.0
        %5207 = vmatpush1.msra.mxu0 %v5088
        %5208 = vmatprep.subr.mxu0 0.0
        %5209 = vmatpush1.msra.mxu0 %v5089
        %5210 = vmatprep.subr.mxu0 0.0
        %5211 = vmatpush1.msra.mxu0 0.0
        %5212 = vmatprep.subr.mxu0 0.0
        %5213 = vmatpush1.msra.mxu0 0.0
        %5214 = vmatprep.subr.mxu0 0.0
        %5215 = vmatpush1.msra.mxu0 0.0
        %5216 = vmatprep.subr.mxu0 0.0
        %5217 = vmatpush1.msra.mxu0 0.0
        %5218 = vmatprep.subr.mxu0 0.0
        %5219 = vmatpush1.msra.mxu0 0.0
        %5220 = vmatprep.subr.mxu0 0.0
        %5221 = vmatpush1.msra.mxu0 0.0
        %5222 = vmatprep.subr.mxu0 0.0
        %5223 = vmatpush1.msra.mxu0 0.0
        %5224 = vmatprep.subr.mxu0 0.0
        %5225 = vmatpush1.msra.mxu0 0.0
        %5226 = vmatprep.subr.mxu0 0.0
        %5227 = vmatpush1.msra.mxu0 0.0
        %5228 = vmatprep.subr.mxu0 0.0
        %5229 = vmatpush1.msra.mxu0 0.0
        %5230 = vmatprep.subr.mxu0 0.0
        %5231 = vmatpush1.msra.mxu0 0.0
        %5232 = vmatprep.subr.mxu0 0.0
        %5233 = vmatpush1.msra.mxu0 0.0
        %5234 = vmatprep.subr.mxu0 0.0
        %5235 = vmatpush1.msra.mxu0 0.0
        %5236 = vmatprep.subr.mxu0 0.0
        %5237 = vmatpush1.msra.mxu0 0.0
        %5238 = vmatprep.subr.mxu0 0.0
        %5239 = vmatpush1.msra.mxu0 0.0
        %5240 = vmatprep.subr.mxu0 0.0
        %5241 = vmatpush1.msra.mxu0 0.0
        %5242 = vmatprep.mubr.f32.mxu0 0.0
        %5243 = vmatmul.mubr.f32.gmra.mrb[0].mxu0 %v5073
        %v5244 = vpop.f32.mrb[0].mxu0
        %v5245 = vadd.f32 %v5175, %v5244
        %v5246 = vpop.f32.mrb[0].mxu0
        %5247 = vdwg.mxu0
        %s5248 = scalar_lea.vmem [#allocation23], 256
        %v5249 = vld [vmem:[%s5248] sm:$0xff]
        %v5250 = vld [vmem:[%s5248 + $0x8] sm:$0xff]
        %v5251 = vld [vmem:[%s5248 + $0x10] sm:$0xff]
        %v5252 = vld [vmem:[%s5248 + $0x18] sm:$0xff]
        %v5253 = vld [vmem:[%s5248 + $0x20] sm:$0xff]
        %v5254 = vld [vmem:[%s5248 + $0x28] sm:$0xff]
        %v5255 = vld [vmem:[%s5248 + $0x30] sm:$0xff]
        %v5256 = vld [vmem:[%s5248 + $0x38] sm:$0xff]
        %v5257 = vld [vmem:[%s5248 + $0x40] sm:$0xff]
        %v5258 = vld [vmem:[%s5248 + $0x48] sm:$0xff]
        %v5259 = vld [vmem:[%s5248 + $0x50] sm:$0xff]
        %v5260 = vld [vmem:[%s5248 + $0x58] sm:$0xff]
        %v5261 = vld [vmem:[%s5248 + $0x60] sm:$0xff]
        %v5262 = vld [vmem:[%s5248 + $0x68] sm:$0xff]
        %v5263 = vld [vmem:[%s5248 + $0x70] sm:$0xff]
        %v5264 = vld [vmem:[%s5248 + $0x78] sm:$0xff]
        %v5265 = vld [vmem:[#allocation2 + $0x2] sm:$0x3]
        %s5266 = scalar_lea.vmem [#allocation23], 384
        %v5267 = vld [vmem:[%s5266] sm:$0xff]
        %v5268 = vld [vmem:[%s5266 + $0x8] sm:$0xff]
        %v5269 = vld [vmem:[%s5266 + $0x10] sm:$0xff]
        %v5270 = vld [vmem:[%s5266 + $0x18] sm:$0xff]
        %v5271 = vld [vmem:[%s5266 + $0x20] sm:$0xff]
        %v5272 = vld [vmem:[%s5266 + $0x28] sm:$0xff]
        %v5273 = vld [vmem:[%s5266 + $0x30] sm:$0xff]
        %v5274 = vld [vmem:[%s5266 + $0x38] sm:$0xff]
        %v5275 = vld [vmem:[%s5266 + $0x40] sm:$0xff]
        %v5276 = vld [vmem:[%s5266 + $0x48] sm:$0xff]
        %v5277 = vld [vmem:[%s5266 + $0x50] sm:$0xff]
        %v5278 = vld [vmem:[%s5266 + $0x58] sm:$0xff]
        %v5279 = vld [vmem:[%s5266 + $0x60] sm:$0xff]
        %v5280 = vld [vmem:[%s5266 + $0x68] sm:$0xff]
        %v5281 = vld [vmem:[%s5266 + $0x70] sm:$0xff]
        %v5282 = vld [vmem:[%s5266 + $0x78] sm:$0xff]
        %5283 = vmatprep.subr.mxu0 0.0
        %5284 = vmatpush1.msra.mxu0 %v5267
        %5285 = vmatprep.subr.mxu0 0.0
        %5286 = vmatpush1.msra.mxu0 %v5268
        %5287 = vmatprep.subr.mxu0 0.0
        %5288 = vmatpush1.msra.mxu0 %v5269
        %5289 = vmatprep.subr.mxu0 0.0
        %5290 = vmatpush1.msra.mxu0 %v5270
        %5291 = vmatprep.subr.mxu0 0.0
        %5292 = vmatpush1.msra.mxu0 %v5271
        %5293 = vmatprep.subr.mxu0 0.0
        %5294 = vmatpush1.msra.mxu0 %v5272
        %5295 = vmatprep.subr.mxu0 0.0
        %5296 = vmatpush1.msra.mxu0 %v5273
        %5297 = vmatprep.subr.mxu0 0.0
        %5298 = vmatpush1.msra.mxu0 %v5274
        %5299 = vmatprep.subr.mxu0 0.0
        %5300 = vmatpush1.msra.mxu0 %v5275
        %5301 = vmatprep.subr.mxu0 0.0
        %5302 = vmatpush1.msra.mxu0 %v5276
        %5303 = vmatprep.subr.mxu0 0.0
        %5304 = vmatpush1.msra.mxu0 %v5277
        %5305 = vmatprep.subr.mxu0 0.0
        %5306 = vmatpush1.msra.mxu0 %v5278
        %5307 = vmatprep.subr.mxu0 0.0
        %5308 = vmatpush1.msra.mxu0 %v5279
        %5309 = vmatprep.subr.mxu0 0.0
        %5310 = vmatpush1.msra.mxu0 %v5280
        %5311 = vmatprep.subr.mxu0 0.0
        %5312 = vmatpush1.msra.mxu0 %v5281
        %5313 = vmatprep.subr.mxu0 0.0
        %5314 = vmatpush1.msra.mxu0 %v5282
        %5315 = vmatprep.subr.mxu0 0.0
        %5316 = vmatpush1.msra.mxu0 0.0
        %5317 = vmatprep.subr.mxu0 0.0
        %5318 = vmatpush1.msra.mxu0 0.0
        %5319 = vmatprep.subr.mxu0 0.0
        %5320 = vmatpush1.msra.mxu0 0.0
        %5321 = vmatprep.subr.mxu0 0.0
        %5322 = vmatpush1.msra.mxu0 0.0
        %5323 = vmatprep.subr.mxu0 0.0
        %5324 = vmatpush1.msra.mxu0 0.0
        %5325 = vmatprep.subr.mxu0 0.0
        %5326 = vmatpush1.msra.mxu0 0.0
        %5327 = vmatprep.subr.mxu0 0.0
        %5328 = vmatpush1.msra.mxu0 0.0
        %5329 = vmatprep.subr.mxu0 0.0
        %5330 = vmatpush1.msra.mxu0 0.0
        %5331 = vmatprep.subr.mxu0 0.0
        %5332 = vmatpush1.msra.mxu0 0.0
        %5333 = vmatprep.subr.mxu0 0.0
        %5334 = vmatpush1.msra.mxu0 0.0
        %5335 = vmatprep.subr.mxu0 0.0
        %5336 = vmatpush1.msra.mxu0 0.0
        %5337 = vmatprep.subr.mxu0 0.0
        %5338 = vmatpush1.msra.mxu0 0.0
        %5339 = vmatprep.subr.mxu0 0.0
        %5340 = vmatpush1.msra.mxu0 0.0
        %5341 = vmatprep.subr.mxu0 0.0
        %5342 = vmatpush1.msra.mxu0 0.0
        %5343 = vmatprep.subr.mxu0 0.0
        %5344 = vmatpush1.msra.mxu0 0.0
        %5345 = vmatprep.subr.mxu0 0.0
        %5346 = vmatpush1.msra.mxu0 0.0
        %5347 = vmatprep.mubr.f32.mxu0 0.0
        %5348 = vmatmul.mubr.f32.gmra.mrb[0].mxu0 %v5265
        %v5349 = vpop.f32.mrb[0].mxu0
        %v5350 = vadd.f32 0.0, %v5349
        %v5351 = vpop.f32.mrb[0].mxu0
        %5352 = vdwg.mxu0
        %5353 = vmatprep.subr.mxu0 0.0
        %5354 = vmatpush1.msra.mxu0 %v5249
        %5355 = vmatprep.subr.mxu0 0.0
        %5356 = vmatpush1.msra.mxu0 %v5250
        %5357 = vmatprep.subr.mxu0 0.0
        %5358 = vmatpush1.msra.mxu0 %v5251
        %5359 = vmatprep.subr.mxu0 0.0
        %5360 = vmatpush1.msra.mxu0 %v5252
        %5361 = vmatprep.subr.mxu0 0.0
        %5362 = vmatpush1.msra.mxu0 %v5253
        %5363 = vmatprep.subr.mxu0 0.0
        %5364 = vmatpush1.msra.mxu0 %v5254
        %5365 = vmatprep.subr.mxu0 0.0
        %5366 = vmatpush1.msra.mxu0 %v5255
        %5367 = vmatprep.subr.mxu0 0.0
        %5368 = vmatpush1.msra.mxu0 %v5256
        %5369 = vmatprep.subr.mxu0 0.0
        %5370 = vmatpush1.msra.mxu0 %v5257
        %5371 = vmatprep.subr.mxu0 0.0
        %5372 = vmatpush1.msra.mxu0 %v5258
        %5373 = vmatprep.subr.mxu0 0.0
        %5374 = vmatpush1.msra.mxu0 %v5259
        %5375 = vmatprep.subr.mxu0 0.0
        %5376 = vmatpush1.msra.mxu0 %v5260
        %5377 = vmatprep.subr.mxu0 0.0
        %5378 = vmatpush1.msra.mxu0 %v5261
        %5379 = vmatprep.subr.mxu0 0.0
        %5380 = vmatpush1.msra.mxu0 %v5262
        %5381 = vmatprep.subr.mxu0 0.0
        %5382 = vmatpush1.msra.mxu0 %v5263
        %5383 = vmatprep.subr.mxu0 0.0
        %5384 = vmatpush1.msra.mxu0 %v5264
        %5385 = vmatprep.subr.mxu0 0.0
        %5386 = vmatpush1.msra.mxu0 0.0
        %5387 = vmatprep.subr.mxu0 0.0
        %5388 = vmatpush1.msra.mxu0 0.0
        %5389 = vmatprep.subr.mxu0 0.0
        %5390 = vmatpush1.msra.mxu0 0.0
        %5391 = vmatprep.subr.mxu0 0.0
        %5392 = vmatpush1.msra.mxu0 0.0
        %5393 = vmatprep.subr.mxu0 0.0
        %5394 = vmatpush1.msra.mxu0 0.0
        %5395 = vmatprep.subr.mxu0 0.0
        %5396 = vmatpush1.msra.mxu0 0.0
        %5397 = vmatprep.subr.mxu0 0.0
        %5398 = vmatpush1.msra.mxu0 0.0
        %5399 = vmatprep.subr.mxu0 0.0
        %5400 = vmatpush1.msra.mxu0 0.0
        %5401 = vmatprep.subr.mxu0 0.0
        %5402 = vmatpush1.msra.mxu0 0.0
        %5403 = vmatprep.subr.mxu0 0.0
        %5404 = vmatpush1.msra.mxu0 0.0
        %5405 = vmatprep.subr.mxu0 0.0
        %5406 = vmatpush1.msra.mxu0 0.0
        %5407 = vmatprep.subr.mxu0 0.0
        %5408 = vmatpush1.msra.mxu0 0.0
        %5409 = vmatprep.subr.mxu0 0.0
        %5410 = vmatpush1.msra.mxu0 0.0
        %5411 = vmatprep.subr.mxu0 0.0
        %5412 = vmatpush1.msra.mxu0 0.0
        %5413 = vmatprep.subr.mxu0 0.0
        %5414 = vmatpush1.msra.mxu0 0.0
        %5415 = vmatprep.subr.mxu0 0.0
        %5416 = vmatpush1.msra.mxu0 0.0
        %5417 = vmatprep.mubr.f32.mxu0 0.0
        %5418 = vmatmul.mubr.f32.gmra.mrb[0].mxu0 %v5090
        %v5419 = vpop.f32.mrb[0].mxu0
        %v5420 = vadd.f32 %v5350, %v5419
        %v5421 = vpop.f32.mrb[0].mxu0
        %5422 = vdwg.mxu0
        %v5423 = vmul.u32 %v1351, 2
        %vm5424 = vcmp.eq.s32.totalorder %v1349, %v5423
        %v5425 = vsel %vm5424, 1.0, 0.0
        %v5426 = vadd.s32 %v5423, 1
        %vm5427 = vcmp.eq.s32.totalorder %v1349, %v5426
        %v5428 = vsel %vm5427, 1.0, 0.0
        %vm5429 = vcmask 15360
        %v5431 = vsel %vm5429, %v5428, 0
        %v5434 = vsel %vm3016, %v5420, 0
        %5436 = vmatprep.subr.mxu0 0.0
        %5437 = vmatpush1.msra.mxu0 %v5434
        %5438 = vmatprep.subr.mxu0 0.0
        %5439 = vmatpush1.msra.mxu0 0.0
        %5440 = vmatprep.subr.mxu0 0.0
        %5441 = vmatpush1.msra.mxu0 0.0
        %5442 = vmatprep.subr.mxu0 0.0
        %5443 = vmatpush1.msra.mxu0 0.0
        %5444 = vmatprep.subr.mxu0 0.0
        %5445 = vmatpush1.msra.mxu0 0.0
        %5446 = vmatprep.subr.mxu0 0.0
        %5447 = vmatpush1.msra.mxu0 0.0
        %5448 = vmatprep.subr.mxu0 0.0
        %5449 = vmatpush1.msra.mxu0 0.0
        %5450 = vmatprep.subr.mxu0 0.0
        %5451 = vmatpush1.msra.mxu0 0.0
        %5452 = vmatprep.subr.mxu0 0.0
        %5453 = vmatpush1.msra.mxu0 0.0
        %5454 = vmatprep.subr.mxu0 0.0
        %5455 = vmatpush1.msra.mxu0 0.0
        %5456 = vmatprep.subr.mxu0 0.0
        %5457 = vmatpush1.msra.mxu0 0.0
        %5458 = vmatprep.subr.mxu0 0.0
        %5459 = vmatpush1.msra.mxu0 0.0
        %5460 = vmatprep.subr.mxu0 0.0
        %5461 = vmatpush1.msra.mxu0 0.0
        %5462 = vmatprep.subr.mxu0 0.0
        %5463 = vmatpush1.msra.mxu0 0.0
        %5464 = vmatprep.subr.mxu0 0.0
        %5465 = vmatpush1.msra.mxu0 0.0
        %5466 = vmatprep.subr.mxu0 0.0
        %5467 = vmatpush1.msra.mxu0 0.0
        %5468 = vmatprep.subr.mxu0 0.0
        %5469 = vmatpush1.msra.mxu0 0.0
        %5470 = vmatprep.subr.mxu0 0.0
        %5471 = vmatpush1.msra.mxu0 0.0
        %5472 = vmatprep.subr.mxu0 0.0
        %5473 = vmatpush1.msra.mxu0 0.0
        %5474 = vmatprep.subr.mxu0 0.0
        %5475 = vmatpush1.msra.mxu0 0.0
        %5476 = vmatprep.subr.mxu0 0.0
        %5477 = vmatpush1.msra.mxu0 0.0
        %5478 = vmatprep.subr.mxu0 0.0
        %5479 = vmatpush1.msra.mxu0 0.0
        %5480 = vmatprep.subr.mxu0 0.0
        %5481 = vmatpush1.msra.mxu0 0.0
        %5482 = vmatprep.subr.mxu0 0.0
        %5483 = vmatpush1.msra.mxu0 0.0
        %5484 = vmatprep.subr.mxu0 0.0
        %5485 = vmatpush1.msra.mxu0 0.0
        %5486 = vmatprep.subr.mxu0 0.0
        %5487 = vmatpush1.msra.mxu0 0.0
        %5488 = vmatprep.subr.mxu0 0.0
        %5489 = vmatpush1.msra.mxu0 0.0
        %5490 = vmatprep.subr.mxu0 0.0
        %5491 = vmatpush1.msra.mxu0 0.0
        %5492 = vmatprep.subr.mxu0 0.0
        %5493 = vmatpush1.msra.mxu0 0.0
        %5494 = vmatprep.subr.mxu0 0.0
        %5495 = vmatpush1.msra.mxu0 0.0
        %5496 = vmatprep.subr.mxu0 0.0
        %5497 = vmatpush1.msra.mxu0 0.0
        %5498 = vmatprep.subr.mxu0 0.0
        %5499 = vmatpush1.msra.mxu0 0.0
        %5500 = vmatprep.mubr.f32.mxu0 0.0
        %5501 = vmatmul.mubr.f32.gmra.mrb[0].mxu0 %v5431
        %v5502 = vpop.f32.mrb[0].mxu0
        %v5503 = vadd.f32 0.0, %v5502
        %v5504 = vpop.f32.mrb[0].mxu0
        %5505 = vdwg.mxu0
        %v5507 = vsel %vm5429, %v5425, 0
        %v5510 = vsel %vm3016, %v5245, 0
        %5512 = vmatprep.subr.mxu0 0.0
        %5513 = vmatpush1.msra.mxu0 %v5510
        %5514 = vmatprep.subr.mxu0 0.0
        %5515 = vmatpush1.msra.mxu0 0.0
        %5516 = vmatprep.subr.mxu0 0.0
        %5517 = vmatpush1.msra.mxu0 0.0
        %5518 = vmatprep.subr.mxu0 0.0
        %5519 = vmatpush1.msra.mxu0 0.0
        %5520 = vmatprep.subr.mxu0 0.0
        %5521 = vmatpush1.msra.mxu0 0.0
        %5522 = vmatprep.subr.mxu0 0.0
        %5523 = vmatpush1.msra.mxu0 0.0
        %5524 = vmatprep.subr.mxu0 0.0
        %5525 = vmatpush1.msra.mxu0 0.0
        %5526 = vmatprep.subr.mxu0 0.0
        %5527 = vmatpush1.msra.mxu0 0.0
        %5528 = vmatprep.subr.mxu0 0.0
        %5529 = vmatpush1.msra.mxu0 0.0
        %5530 = vmatprep.subr.mxu0 0.0
        %5531 = vmatpush1.msra.mxu0 0.0
        %5532 = vmatprep.subr.mxu0 0.0
        %5533 = vmatpush1.msra.mxu0 0.0
        %5534 = vmatprep.subr.mxu0 0.0
        %5535 = vmatpush1.msra.mxu0 0.0
        %5536 = vmatprep.subr.mxu0 0.0
        %5537 = vmatpush1.msra.mxu0 0.0
        %5538 = vmatprep.subr.mxu0 0.0
        %5539 = vmatpush1.msra.mxu0 0.0
        %5540 = vmatprep.subr.mxu0 0.0
        %5541 = vmatpush1.msra.mxu0 0.0
        %5542 = vmatprep.subr.mxu0 0.0
        %5543 = vmatpush1.msra.mxu0 0.0
        %5544 = vmatprep.subr.mxu0 0.0
        %5545 = vmatpush1.msra.mxu0 0.0
        %5546 = vmatprep.subr.mxu0 0.0
        %5547 = vmatpush1.msra.mxu0 0.0
        %5548 = vmatprep.subr.mxu0 0.0
        %5549 = vmatpush1.msra.mxu0 0.0
        %5550 = vmatprep.subr.mxu0 0.0
        %5551 = vmatpush1.msra.mxu0 0.0
        %5552 = vmatprep.subr.mxu0 0.0
        %5553 = vmatpush1.msra.mxu0 0.0
        %5554 = vmatprep.subr.mxu0 0.0
        %5555 = vmatpush1.msra.mxu0 0.0
        %5556 = vmatprep.subr.mxu0 0.0
        %5557 = vmatpush1.msra.mxu0 0.0
        %5558 = vmatprep.subr.mxu0 0.0
        %5559 = vmatpush1.msra.mxu0 0.0
        %5560 = vmatprep.subr.mxu0 0.0
        %5561 = vmatpush1.msra.mxu0 0.0
        %5562 = vmatprep.subr.mxu0 0.0
        %5563 = vmatpush1.msra.mxu0 0.0
        %5564 = vmatprep.subr.mxu0 0.0
        %5565 = vmatpush1.msra.mxu0 0.0
        %5566 = vmatprep.subr.mxu0 0.0
        %5567 = vmatpush1.msra.mxu0 0.0
        %5568 = vmatprep.subr.mxu0 0.0
        %5569 = vmatpush1.msra.mxu0 0.0
        %5570 = vmatprep.subr.mxu0 0.0
        %5571 = vmatpush1.msra.mxu0 0.0
        %5572 = vmatprep.subr.mxu0 0.0
        %5573 = vmatpush1.msra.mxu0 0.0
        %5574 = vmatprep.subr.mxu0 0.0
        %5575 = vmatpush1.msra.mxu0 0.0
        %5576 = vmatprep.mubr.f32.mxu0 0.0
        %5577 = vmatmul.mubr.f32.gmra.mrb[0].mxu0 %v5507
        %v5578 = vpop.f32.mrb[0].mxu0
        %v5579 = vadd.f32 %v5503, %v5578
        %v5580 = vpop.f32.mrb[0].mxu0
        %5581 = vdwg.mxu0
        %v5582 = vld [vmem:[#allocation6] sm:$0xff]
        %v5583 = vld [vmem:[#allocation6 + $0x8] sm:$0xff]
        %v5584 = vld [vmem:[#allocation6 + $0x10] sm:$0xff]
        %v5585 = vld [vmem:[#allocation6 + $0x18] sm:$0xff]
        %v5586 = vld [vmem:[#allocation6 + $0x20] sm:$0xff]
        %v5587 = vld [vmem:[#allocation6 + $0x28] sm:$0xff]
        %v5588 = vld [vmem:[#allocation6 + $0x30] sm:$0xff]
        %v5589 = vld [vmem:[#allocation6 + $0x38] sm:$0xff]
        %v5590 = vld [vmem:[#allocation6 + $0x40] sm:$0xff]
        %v5591 = vld [vmem:[#allocation6 + $0x48] sm:$0xff]
        %v5592 = vld [vmem:[#allocation6 + $0x50] sm:$0xff]
        %v5593 = vld [vmem:[#allocation6 + $0x58] sm:$0xff]
        %v5594 = vld [vmem:[#allocation6 + $0x60] sm:$0xff]
        %v5595 = vld [vmem:[#allocation6 + $0x68] sm:$0xff]
        %v5596 = vld [vmem:[#allocation6 + $0x70] sm:$0xff]
        %v5597 = vld [vmem:[#allocation6 + $0x78] sm:$0xff]
        %v5598 = vsel %vm2381, %v5579, 0.0
        %v5599 = vrot.slane %v5598, 4
        %v5600 = vadd.f32 %v5598, %v5599
        %v5601 = vrot.slane %v5600, 2
        %v5602 = vadd.f32 %v5600, %v5601
        %v5603 = vrot.slane %v5602, 1
        %v5604 = vadd.f32 %v5602, %v5603
        %5605 = vmatprep.subr.mxu0 0.0
        %5606 = vmatpush1.msra.mxu0 %v5582
        %5607 = vmatprep.subr.mxu0 0.0
        %5608 = vmatpush1.msra.mxu0 %v5583
        %5609 = vmatprep.subr.mxu0 0.0
        %5610 = vmatpush1.msra.mxu0 %v5584
        %5611 = vmatprep.subr.mxu0 0.0
        %5612 = vmatpush1.msra.mxu0 %v5585
        %5613 = vmatprep.subr.mxu0 0.0
        %5614 = vmatpush1.msra.mxu0 %v5586
        %5615 = vmatprep.subr.mxu0 0.0
        %5616 = vmatpush1.msra.mxu0 %v5587
        %5617 = vmatprep.subr.mxu0 0.0
        %5618 = vmatpush1.msra.mxu0 %v5588
        %5619 = vmatprep.subr.mxu0 0.0
        %5620 = vmatpush1.msra.mxu0 %v5589
        %5621 = vmatprep.subr.mxu0 0.0
        %5622 = vmatpush1.msra.mxu0 %v5590
        %5623 = vmatprep.subr.mxu0 0.0
        %5624 = vmatpush1.msra.mxu0 %v5591
        %5625 = vmatprep.subr.mxu0 0.0
        %5626 = vmatpush1.msra.mxu0 %v5592
        %5627 = vmatprep.subr.mxu0 0.0
        %5628 = vmatpush1.msra.mxu0 %v5593
        %5629 = vmatprep.subr.mxu0 0.0
        %5630 = vmatpush1.msra.mxu0 %v5594
        %5631 = vmatprep.subr.mxu0 0.0
        %5632 = vmatpush1.msra.mxu0 %v5595
        %5633 = vmatprep.subr.mxu0 0.0
        %5634 = vmatpush1.msra.mxu0 %v5596
        %5635 = vmatprep.subr.mxu0 0.0
        %5636 = vmatpush1.msra.mxu0 %v5597
        %5637 = vmatprep.subr.mxu0 0.0
        %5638 = vmatpush1.msra.mxu0 0.0
        %5639 = vmatprep.subr.mxu0 0.0
        %5640 = vmatpush1.msra.mxu0 0.0
        %5641 = vmatprep.subr.mxu0 0.0
        %5642 = vmatpush1.msra.mxu0 0.0
        %5643 = vmatprep.subr.mxu0 0.0
        %5644 = vmatpush1.msra.mxu0 0.0
        %5645 = vmatprep.subr.mxu0 0.0
        %5646 = vmatpush1.msra.mxu0 0.0
        %5647 = vmatprep.subr.mxu0 0.0
        %5648 = vmatpush1.msra.mxu0 0.0
        %5649 = vmatprep.subr.mxu0 0.0
        %5650 = vmatpush1.msra.mxu0 0.0
        %5651 = vmatprep.subr.mxu0 0.0
        %5652 = vmatpush1.msra.mxu0 0.0
        %5653 = vmatprep.subr.mxu0 0.0
        %5654 = vmatpush1.msra.mxu0 0.0
        %5655 = vmatprep.subr.mxu0 0.0
        %5656 = vmatpush1.msra.mxu0 0.0
        %5657 = vmatprep.subr.mxu0 0.0
        %5658 = vmatpush1.msra.mxu0 0.0
        %5659 = vmatprep.subr.mxu0 0.0
        %5660 = vmatpush1.msra.mxu0 0.0
        %5661 = vmatprep.subr.mxu0 0.0
        %5662 = vmatpush1.msra.mxu0 0.0
        %5663 = vmatprep.subr.mxu0 0.0
        %5664 = vmatpush1.msra.mxu0 0.0
        %5665 = vmatprep.subr.mxu0 0.0
        %5666 = vmatpush1.msra.mxu0 0.0
        %5667 = vmatprep.subr.mxu0 0.0
        %5668 = vmatpush1.msra.mxu0 0.0
        %5669 = vmatprep.mubr.f32.mxu0 0.0
        %5670 = vmatmul.mubr.f32.gmra.mrb[0].mxu0 %v5604
        %v5671 = vpop.f32.mrb[0].mxu0
        %v5672 = vadd.f32 0.0, %v5671
        %v5673 = vpop.f32.mrb[0].mxu0
        %5674 = vdwg.mxu0
        %v5675 = vlaneseq
        %v5676 = vshrl.u32 %v5675, 7
        %v5677 = vsub.s32 0, %v5676
        %v5678 = vrot.slane %v5672, %v5677
        %v5679 = vsub.f32 %v5579, %v5678
        %v5680 = vmul.f32 %v5679, %v5679
        %v5681 = vsel %vm2381, %v5680, 0.0
        %v5682 = vrot.slane %v5681, 4
        %v5683 = vadd.f32 %v5681, %v5682
        %v5684 = vrot.slane %v5683, 2
        %v5685 = vadd.f32 %v5683, %v5684
        %v5686 = vrot.slane %v5685, 1
        %v5687 = vadd.f32 %v5685, %v5686
        %5688 = vmatprep.subr.mxu0 0.0
        %5689 = vmatpush1.msra.mxu0 %v5582
        %5690 = vmatprep.subr.mxu0 0.0
        %5691 = vmatpush1.msra.mxu0 %v5583
        %5692 = vmatprep.subr.mxu0 0.0
        %5693 = vmatpush1.msra.mxu0 %v5584
        %5694 = vmatprep.subr.mxu0 0.0
        %5695 = vmatpush1.msra.mxu0 %v5585
        %5696 = vmatprep.subr.mxu0 0.0
        %5697 = vmatpush1.msra.mxu0 %v5586
        %5698 = vmatprep.subr.mxu0 0.0
        %5699 = vmatpush1.msra.mxu0 %v5587
        %5700 = vmatprep.subr.mxu0 0.0
        %5701 = vmatpush1.msra.mxu0 %v5588
        %5702 = vmatprep.subr.mxu0 0.0
        %5703 = vmatpush1.msra.mxu0 %v5589
        %5704 = vmatprep.subr.mxu0 0.0
        %5705 = vmatpush1.msra.mxu0 %v5590
        %5706 = vmatprep.subr.mxu0 0.0
        %5707 = vmatpush1.msra.mxu0 %v5591
        %5708 = vmatprep.subr.mxu0 0.0
        %5709 = vmatpush1.msra.mxu0 %v5592
        %5710 = vmatprep.subr.mxu0 0.0
        %5711 = vmatpush1.msra.mxu0 %v5593
        %5712 = vmatprep.subr.mxu0 0.0
        %5713 = vmatpush1.msra.mxu0 %v5594
        %5714 = vmatprep.subr.mxu0 0.0
        %5715 = vmatpush1.msra.mxu0 %v5595
        %5716 = vmatprep.subr.mxu0 0.0
        %5717 = vmatpush1.msra.mxu0 %v5596
        %5718 = vmatprep.subr.mxu0 0.0
        %5719 = vmatpush1.msra.mxu0 %v5597
        %5720 = vmatprep.subr.mxu0 0.0
        %5721 = vmatpush1.msra.mxu0 0.0
        %5722 = vmatprep.subr.mxu0 0.0
        %5723 = vmatpush1.msra.mxu0 0.0
        %5724 = vmatprep.subr.mxu0 0.0
        %5725 = vmatpush1.msra.mxu0 0.0
        %5726 = vmatprep.subr.mxu0 0.0
        %5727 = vmatpush1.msra.mxu0 0.0
        %5728 = vmatprep.subr.mxu0 0.0
        %5729 = vmatpush1.msra.mxu0 0.0
        %5730 = vmatprep.subr.mxu0 0.0
        %5731 = vmatpush1.msra.mxu0 0.0
        %5732 = vmatprep.subr.mxu0 0.0
        %5733 = vmatpush1.msra.mxu0 0.0
        %5734 = vmatprep.subr.mxu0 0.0
        %5735 = vmatpush1.msra.mxu0 0.0
        %5736 = vmatprep.subr.mxu0 0.0
        %5737 = vmatpush1.msra.mxu0 0.0
        %5738 = vmatprep.subr.mxu0 0.0
        %5739 = vmatpush1.msra.mxu0 0.0
        %5740 = vmatprep.subr.mxu0 0.0
        %5741 = vmatpush1.msra.mxu0 0.0
        %5742 = vmatprep.subr.mxu0 0.0
        %5743 = vmatpush1.msra.mxu0 0.0
        %5744 = vmatprep.subr.mxu0 0.0
        %5745 = vmatpush1.msra.mxu0 0.0
        %5746 = vmatprep.subr.mxu0 0.0
        %5747 = vmatpush1.msra.mxu0 0.0
        %5748 = vmatprep.subr.mxu0 0.0
        %5749 = vmatpush1.msra.mxu0 0.0
        %5750 = vmatprep.subr.mxu0 0.0
        %5751 = vmatpush1.msra.mxu0 0.0
        %5752 = vmatprep.mubr.f32.mxu0 0.0
        %5753 = vmatmul.mubr.f32.gmra.mrb[0].mxu0 %v5687
        %v5754 = vpop.f32.mrb[0].mxu0
        %v5755 = vadd.f32 1e-05, %v5754
        %v5756 = vpop.f32.mrb[0].mxu0
        %5757 = vdwg.mxu0
        %v5758 = vrsqrt.pop %v5755
        %v5759 = vlaneseq
        %v5760 = vshrl.u32 %v5759, 7
        %v5761 = vsub.s32 0, %v5760
        %v5762 = vrot.slane %v5758, %v5761
        %v5763 = vmul.f32 %v5679, %v5762
        %v5764 = vld [vmem:[#allocation24] sm:$0x1]
        %v5766 = vlaneseq
        %v5767 = vshrl.u32 %v5766, 7
        %v5768 = vsub.s32 0, %v5767
        %v5769 = vrot.slane %v5764, %v5768
        %v5771 = vmul.f32 %v5763, %v5769
        %v5772 = vld [vmem:[#allocation26] sm:$0x1]
        %v5774 = vlaneseq
        %v5775 = vshrl.u32 %v5774, 7
        %v5776 = vsub.s32 0, %v5775
        %v5777 = vrot.slane %v5772, %v5776
        %v5779 = vadd.f32 %v5771, %v5777
        %vm5780 = vcmp.gt.f32.partialorder %v5779, 0.0
        %v5781 = vmul.f32 %v5779, 0.01
        %v5782 = vsel %vm5780, %v5779, %v5781
        %5783 = vst [vmem:[#allocation2] sm:$0xff] 0.0
        %5784 = vst [vmem:[#allocation2 + $0x8] sm:$0xff] 0.0
        %5785 = vst [vmem:[#allocation2 + $0x1] sm:$0xf] %v5782
        %v5786 = vld [vmem:[#allocation2] sm:$0xf]
        %v5787 = vld [vmem:[#allocation27] sm:$0xff]
        %v5788 = vld [vmem:[#allocation27 + $0x8] sm:$0xff]
        %v5789 = vld [vmem:[#allocation27 + $0x10] sm:$0xff]
        %v5790 = vld [vmem:[#allocation27 + $0x18] sm:$0xff]
        %v5791 = vld [vmem:[#allocation27 + $0x20] sm:$0xff]
        %v5792 = vld [vmem:[#allocation27 + $0x28] sm:$0xff]
        %v5793 = vld [vmem:[#allocation27 + $0x30] sm:$0xff]
        %v5794 = vld [vmem:[#allocation27 + $0x38] sm:$0xff]
        %v5795 = vld [vmem:[#allocation27 + $0x40] sm:$0xff]
        %v5796 = vld [vmem:[#allocation27 + $0x48] sm:$0xff]
        %v5797 = vld [vmem:[#allocation27 + $0x50] sm:$0xff]
        %v5798 = vld [vmem:[#allocation27 + $0x58] sm:$0xff]
        %v5799 = vld [vmem:[#allocation27 + $0x60] sm:$0xff]
        %v5800 = vld [vmem:[#allocation27 + $0x68] sm:$0xff]
        %v5801 = vld [vmem:[#allocation27 + $0x70] sm:$0xff]
        %v5802 = vld [vmem:[#allocation27 + $0x78] sm:$0xff]
        %v5803 = vld [vmem:[#allocation2 + $0x1] sm:$0xf]
        %s5804 = scalar_lea.vmem [#allocation27], 128
        %v5805 = vld [vmem:[%s5804] sm:$0xff]
        %v5806 = vld [vmem:[%s5804 + $0x8] sm:$0xff]
        %v5807 = vld [vmem:[%s5804 + $0x10] sm:$0xff]
        %v5808 = vld [vmem:[%s5804 + $0x18] sm:$0xff]
        %v5809 = vld [vmem:[%s5804 + $0x20] sm:$0xff]
        %v5810 = vld [vmem:[%s5804 + $0x28] sm:$0xff]
        %v5811 = vld [vmem:[%s5804 + $0x30] sm:$0xff]
        %v5812 = vld [vmem:[%s5804 + $0x38] sm:$0xff]
        %v5813 = vld [vmem:[%s5804 + $0x40] sm:$0xff]
        %v5814 = vld [vmem:[%s5804 + $0x48] sm:$0xff]
        %v5815 = vld [vmem:[%s5804 + $0x50] sm:$0xff]
        %v5816 = vld [vmem:[%s5804 + $0x58] sm:$0xff]
        %v5817 = vld [vmem:[%s5804 + $0x60] sm:$0xff]
        %v5818 = vld [vmem:[%s5804 + $0x68] sm:$0xff]
        %v5819 = vld [vmem:[%s5804 + $0x70] sm:$0xff]
        %v5820 = vld [vmem:[%s5804 + $0x78] sm:$0xff]
        %5821 = vmatprep.subr.mxu0 0.0
        %5822 = vmatpush1.msra.mxu0 %v5805
        %5823 = vmatprep.subr.mxu0 0.0
        %5824 = vmatpush1.msra.mxu0 %v5806
        %5825 = vmatprep.subr.mxu0 0.0
        %5826 = vmatpush1.msra.mxu0 %v5807
        %5827 = vmatprep.subr.mxu0 0.0
        %5828 = vmatpush1.msra.mxu0 %v5808
        %5829 = vmatprep.subr.mxu0 0.0
        %5830 = vmatpush1.msra.mxu0 %v5809
        %5831 = vmatprep.subr.mxu0 0.0
        %5832 = vmatpush1.msra.mxu0 %v5810
        %5833 = vmatprep.subr.mxu0 0.0
        %5834 = vmatpush1.msra.mxu0 %v5811
        %5835 = vmatprep.subr.mxu0 0.0
        %5836 = vmatpush1.msra.mxu0 %v5812
        %5837 = vmatprep.subr.mxu0 0.0
        %5838 = vmatpush1.msra.mxu0 %v5813
        %5839 = vmatprep.subr.mxu0 0.0
        %5840 = vmatpush1.msra.mxu0 %v5814
        %5841 = vmatprep.subr.mxu0 0.0
        %5842 = vmatpush1.msra.mxu0 %v5815
        %5843 = vmatprep.subr.mxu0 0.0
        %5844 = vmatpush1.msra.mxu0 %v5816
        %5845 = vmatprep.subr.mxu0 0.0
        %5846 = vmatpush1.msra.mxu0 %v5817
        %5847 = vmatprep.subr.mxu0 0.0
        %5848 = vmatpush1.msra.mxu0 %v5818
        %5849 = vmatprep.subr.mxu0 0.0
        %5850 = vmatpush1.msra.mxu0 %v5819
        %5851 = vmatprep.subr.mxu0 0.0
        %5852 = vmatpush1.msra.mxu0 %v5820
        %5853 = vmatprep.subr.mxu0 0.0
        %5854 = vmatpush1.msra.mxu0 0.0
        %5855 = vmatprep.subr.mxu0 0.0
        %5856 = vmatpush1.msra.mxu0 0.0
        %5857 = vmatprep.subr.mxu0 0.0
        %5858 = vmatpush1.msra.mxu0 0.0
        %5859 = vmatprep.subr.mxu0 0.0
        %5860 = vmatpush1.msra.mxu0 0.0
        %5861 = vmatprep.subr.mxu0 0.0
        %5862 = vmatpush1.msra.mxu0 0.0
        %5863 = vmatprep.subr.mxu0 0.0
        %5864 = vmatpush1.msra.mxu0 0.0
        %5865 = vmatprep.subr.mxu0 0.0
        %5866 = vmatpush1.msra.mxu0 0.0
        %5867 = vmatprep.subr.mxu0 0.0
        %5868 = vmatpush1.msra.mxu0 0.0
        %5869 = vmatprep.subr.mxu0 0.0
        %5870 = vmatpush1.msra.mxu0 0.0
        %5871 = vmatprep.subr.mxu0 0.0
        %5872 = vmatpush1.msra.mxu0 0.0
        %5873 = vmatprep.subr.mxu0 0.0
        %5874 = vmatpush1.msra.mxu0 0.0
        %5875 = vmatprep.subr.mxu0 0.0
        %5876 = vmatpush1.msra.mxu0 0.0
        %5877 = vmatprep.subr.mxu0 0.0
        %5878 = vmatpush1.msra.mxu0 0.0
        %5879 = vmatprep.subr.mxu0 0.0
        %5880 = vmatpush1.msra.mxu0 0.0
        %5881 = vmatprep.subr.mxu0 0.0
        %5882 = vmatpush1.msra.mxu0 0.0
        %5883 = vmatprep.subr.mxu0 0.0
        %5884 = vmatpush1.msra.mxu0 0.0
        %5885 = vmatprep.mubr.f32.mxu0 0.0
        %5886 = vmatmul.mubr.f32.gmra.mrb[0].mxu0 %v5803
        %v5887 = vpop.f32.mrb[0].mxu0
        %v5888 = vadd.f32 0.0, %v5887
        %v5889 = vpop.f32.mrb[0].mxu0
        %5890 = vdwg.mxu0
        %5891 = vmatprep.subr.mxu0 0.0
        %5892 = vmatpush1.msra.mxu0 %v5787
        %5893 = vmatprep.subr.mxu0 0.0
        %5894 = vmatpush1.msra.mxu0 %v5788
        %5895 = vmatprep.subr.mxu0 0.0
        %5896 = vmatpush1.msra.mxu0 %v5789
        %5897 = vmatprep.subr.mxu0 0.0
        %5898 = vmatpush1.msra.mxu0 %v5790
        %5899 = vmatprep.subr.mxu0 0.0
        %5900 = vmatpush1.msra.mxu0 %v5791
        %5901 = vmatprep.subr.mxu0 0.0
        %5902 = vmatpush1.msra.mxu0 %v5792
        %5903 = vmatprep.subr.mxu0 0.0
        %5904 = vmatpush1.msra.mxu0 %v5793
        %5905 = vmatprep.subr.mxu0 0.0
        %5906 = vmatpush1.msra.mxu0 %v5794
        %5907 = vmatprep.subr.mxu0 0.0
        %5908 = vmatpush1.msra.mxu0 %v5795
        %5909 = vmatprep.subr.mxu0 0.0
        %5910 = vmatpush1.msra.mxu0 %v5796
        %5911 = vmatprep.subr.mxu0 0.0
        %5912 = vmatpush1.msra.mxu0 %v5797
        %5913 = vmatprep.subr.mxu0 0.0
        %5914 = vmatpush1.msra.mxu0 %v5798
        %5915 = vmatprep.subr.mxu0 0.0
        %5916 = vmatpush1.msra.mxu0 %v5799
        %5917 = vmatprep.subr.mxu0 0.0
        %5918 = vmatpush1.msra.mxu0 %v5800
        %5919 = vmatprep.subr.mxu0 0.0
        %5920 = vmatpush1.msra.mxu0 %v5801
        %5921 = vmatprep.subr.mxu0 0.0
        %5922 = vmatpush1.msra.mxu0 %v5802
        %5923 = vmatprep.subr.mxu0 0.0
        %5924 = vmatpush1.msra.mxu0 0.0
        %5925 = vmatprep.subr.mxu0 0.0
        %5926 = vmatpush1.msra.mxu0 0.0
        %5927 = vmatprep.subr.mxu0 0.0
        %5928 = vmatpush1.msra.mxu0 0.0
        %5929 = vmatprep.subr.mxu0 0.0
        %5930 = vmatpush1.msra.mxu0 0.0
        %5931 = vmatprep.subr.mxu0 0.0
        %5932 = vmatpush1.msra.mxu0 0.0
        %5933 = vmatprep.subr.mxu0 0.0
        %5934 = vmatpush1.msra.mxu0 0.0
        %5935 = vmatprep.subr.mxu0 0.0
        %5936 = vmatpush1.msra.mxu0 0.0
        %5937 = vmatprep.subr.mxu0 0.0
        %5938 = vmatpush1.msra.mxu0 0.0
        %5939 = vmatprep.subr.mxu0 0.0
        %5940 = vmatpush1.msra.mxu0 0.0
        %5941 = vmatprep.subr.mxu0 0.0
        %5942 = vmatpush1.msra.mxu0 0.0
        %5943 = vmatprep.subr.mxu0 0.0
        %5944 = vmatpush1.msra.mxu0 0.0
        %5945 = vmatprep.subr.mxu0 0.0
        %5946 = vmatpush1.msra.mxu0 0.0
        %5947 = vmatprep.subr.mxu0 0.0
        %5948 = vmatpush1.msra.mxu0 0.0
        %5949 = vmatprep.subr.mxu0 0.0
        %5950 = vmatpush1.msra.mxu0 0.0
        %5951 = vmatprep.subr.mxu0 0.0
        %5952 = vmatpush1.msra.mxu0 0.0
        %5953 = vmatprep.subr.mxu0 0.0
        %5954 = vmatpush1.msra.mxu0 0.0
        %5955 = vmatprep.mubr.f32.mxu0 0.0
        %5956 = vmatmul.mubr.f32.gmra.mrb[0].mxu0 %v5786
        %v5957 = vpop.f32.mrb[0].mxu0
        %v5958 = vadd.f32 %v5888, %v5957
        %v5959 = vpop.f32.mrb[0].mxu0
        %5960 = vdwg.mxu0
        %s5961 = scalar_lea.vmem [#allocation27], 256
        %v5962 = vld [vmem:[%s5961] sm:$0xff]
        %v5963 = vld [vmem:[%s5961 + $0x8] sm:$0xff]
        %v5964 = vld [vmem:[%s5961 + $0x10] sm:$0xff]
        %v5965 = vld [vmem:[%s5961 + $0x18] sm:$0xff]
        %v5966 = vld [vmem:[%s5961 + $0x20] sm:$0xff]
        %v5967 = vld [vmem:[%s5961 + $0x28] sm:$0xff]
        %v5968 = vld [vmem:[%s5961 + $0x30] sm:$0xff]
        %v5969 = vld [vmem:[%s5961 + $0x38] sm:$0xff]
        %v5970 = vld [vmem:[%s5961 + $0x40] sm:$0xff]
        %v5971 = vld [vmem:[%s5961 + $0x48] sm:$0xff]
        %v5972 = vld [vmem:[%s5961 + $0x50] sm:$0xff]
        %v5973 = vld [vmem:[%s5961 + $0x58] sm:$0xff]
        %v5974 = vld [vmem:[%s5961 + $0x60] sm:$0xff]
        %v5975 = vld [vmem:[%s5961 + $0x68] sm:$0xff]
        %v5976 = vld [vmem:[%s5961 + $0x70] sm:$0xff]
        %v5977 = vld [vmem:[%s5961 + $0x78] sm:$0xff]
        %v5978 = vld [vmem:[#allocation2 + $0x2] sm:$0xf]
        %s5979 = scalar_lea.vmem [#allocation27], 384
        %v5980 = vld [vmem:[%s5979] sm:$0xff]
        %v5981 = vld [vmem:[%s5979 + $0x8] sm:$0xff]
        %v5982 = vld [vmem:[%s5979 + $0x10] sm:$0xff]
        %v5983 = vld [vmem:[%s5979 + $0x18] sm:$0xff]
        %v5984 = vld [vmem:[%s5979 + $0x20] sm:$0xff]
        %v5985 = vld [vmem:[%s5979 + $0x28] sm:$0xff]
        %v5986 = vld [vmem:[%s5979 + $0x30] sm:$0xff]
        %v5987 = vld [vmem:[%s5979 + $0x38] sm:$0xff]
        %v5988 = vld [vmem:[%s5979 + $0x40] sm:$0xff]
        %v5989 = vld [vmem:[%s5979 + $0x48] sm:$0xff]
        %v5990 = vld [vmem:[%s5979 + $0x50] sm:$0xff]
        %v5991 = vld [vmem:[%s5979 + $0x58] sm:$0xff]
        %v5992 = vld [vmem:[%s5979 + $0x60] sm:$0xff]
        %v5993 = vld [vmem:[%s5979 + $0x68] sm:$0xff]
        %v5994 = vld [vmem:[%s5979 + $0x70] sm:$0xff]
        %v5995 = vld [vmem:[%s5979 + $0x78] sm:$0xff]
        %5996 = vmatprep.subr.mxu0 0.0
        %5997 = vmatpush1.msra.mxu0 %v5980
        %5998 = vmatprep.subr.mxu0 0.0
        %5999 = vmatpush1.msra.mxu0 %v5981
        %6000 = vmatprep.subr.mxu0 0.0
        %6001 = vmatpush1.msra.mxu0 %v5982
        %6002 = vmatprep.subr.mxu0 0.0
        %6003 = vmatpush1.msra.mxu0 %v5983
        %6004 = vmatprep.subr.mxu0 0.0
        %6005 = vmatpush1.msra.mxu0 %v5984
        %6006 = vmatprep.subr.mxu0 0.0
        %6007 = vmatpush1.msra.mxu0 %v5985
        %6008 = vmatprep.subr.mxu0 0.0
        %6009 = vmatpush1.msra.mxu0 %v5986
        %6010 = vmatprep.subr.mxu0 0.0
        %6011 = vmatpush1.msra.mxu0 %v5987
        %6012 = vmatprep.subr.mxu0 0.0
        %6013 = vmatpush1.msra.mxu0 %v5988
        %6014 = vmatprep.subr.mxu0 0.0
        %6015 = vmatpush1.msra.mxu0 %v5989
        %6016 = vmatprep.subr.mxu0 0.0
        %6017 = vmatpush1.msra.mxu0 %v5990
        %6018 = vmatprep.subr.mxu0 0.0
        %6019 = vmatpush1.msra.mxu0 %v5991
        %6020 = vmatprep.subr.mxu0 0.0
        %6021 = vmatpush1.msra.mxu0 %v5992
        %6022 = vmatprep.subr.mxu0 0.0
        %6023 = vmatpush1.msra.mxu0 %v5993
        %6024 = vmatprep.subr.mxu0 0.0
        %6025 = vmatpush1.msra.mxu0 %v5994
        %6026 = vmatprep.subr.mxu0 0.0
        %6027 = vmatpush1.msra.mxu0 %v5995
        %6028 = vmatprep.subr.mxu0 0.0
        %6029 = vmatpush1.msra.mxu0 0.0
        %6030 = vmatprep.subr.mxu0 0.0
        %6031 = vmatpush1.msra.mxu0 0.0
        %6032 = vmatprep.subr.mxu0 0.0
        %6033 = vmatpush1.msra.mxu0 0.0
        %6034 = vmatprep.subr.mxu0 0.0
        %6035 = vmatpush1.msra.mxu0 0.0
        %6036 = vmatprep.subr.mxu0 0.0
        %6037 = vmatpush1.msra.mxu0 0.0
        %6038 = vmatprep.subr.mxu0 0.0
        %6039 = vmatpush1.msra.mxu0 0.0
        %6040 = vmatprep.subr.mxu0 0.0
        %6041 = vmatpush1.msra.mxu0 0.0
        %6042 = vmatprep.subr.mxu0 0.0
        %6043 = vmatpush1.msra.mxu0 0.0
        %6044 = vmatprep.subr.mxu0 0.0
        %6045 = vmatpush1.msra.mxu0 0.0
        %6046 = vmatprep.subr.mxu0 0.0
        %6047 = vmatpush1.msra.mxu0 0.0
        %6048 = vmatprep.subr.mxu0 0.0
        %6049 = vmatpush1.msra.mxu0 0.0
        %6050 = vmatprep.subr.mxu0 0.0
        %6051 = vmatpush1.msra.mxu0 0.0
        %6052 = vmatprep.subr.mxu0 0.0
        %6053 = vmatpush1.msra.mxu0 0.0
        %6054 = vmatprep.subr.mxu0 0.0
        %6055 = vmatpush1.msra.mxu0 0.0
        %6056 = vmatprep.subr.mxu0 0.0
        %6057 = vmatpush1.msra.mxu0 0.0
        %6058 = vmatprep.subr.mxu0 0.0
        %6059 = vmatpush1.msra.mxu0 0.0
        %6060 = vmatprep.mubr.f32.mxu0 0.0
        %6061 = vmatmul.mubr.f32.gmra.mrb[0].mxu0 %v5978
        %v6062 = vpop.f32.mrb[0].mxu0
        %v6063 = vadd.f32 0.0, %v6062
        %v6064 = vpop.f32.mrb[0].mxu0
        %6065 = vdwg.mxu0
        %6066 = vmatprep.subr.mxu0 0.0
        %6067 = vmatpush1.msra.mxu0 %v5962
        %6068 = vmatprep.subr.mxu0 0.0
        %6069 = vmatpush1.msra.mxu0 %v5963
        %6070 = vmatprep.subr.mxu0 0.0
        %6071 = vmatpush1.msra.mxu0 %v5964
        %6072 = vmatprep.subr.mxu0 0.0
        %6073 = vmatpush1.msra.mxu0 %v5965
        %6074 = vmatprep.subr.mxu0 0.0
        %6075 = vmatpush1.msra.mxu0 %v5966
        %6076 = vmatprep.subr.mxu0 0.0
        %6077 = vmatpush1.msra.mxu0 %v5967
        %6078 = vmatprep.subr.mxu0 0.0
        %6079 = vmatpush1.msra.mxu0 %v5968
        %6080 = vmatprep.subr.mxu0 0.0
        %6081 = vmatpush1.msra.mxu0 %v5969
        %6082 = vmatprep.subr.mxu0 0.0
        %6083 = vmatpush1.msra.mxu0 %v5970
        %6084 = vmatprep.subr.mxu0 0.0
        %6085 = vmatpush1.msra.mxu0 %v5971
        %6086 = vmatprep.subr.mxu0 0.0
        %6087 = vmatpush1.msra.mxu0 %v5972
        %6088 = vmatprep.subr.mxu0 0.0
        %6089 = vmatpush1.msra.mxu0 %v5973
        %6090 = vmatprep.subr.mxu0 0.0
        %6091 = vmatpush1.msra.mxu0 %v5974
        %6092 = vmatprep.subr.mxu0 0.0
        %6093 = vmatpush1.msra.mxu0 %v5975
        %6094 = vmatprep.subr.mxu0 0.0
        %6095 = vmatpush1.msra.mxu0 %v5976
        %6096 = vmatprep.subr.mxu0 0.0
        %6097 = vmatpush1.msra.mxu0 %v5977
        %6098 = vmatprep.subr.mxu0 0.0
        %6099 = vmatpush1.msra.mxu0 0.0
        %6100 = vmatprep.subr.mxu0 0.0
        %6101 = vmatpush1.msra.mxu0 0.0
        %6102 = vmatprep.subr.mxu0 0.0
        %6103 = vmatpush1.msra.mxu0 0.0
        %6104 = vmatprep.subr.mxu0 0.0
        %6105 = vmatpush1.msra.mxu0 0.0
        %6106 = vmatprep.subr.mxu0 0.0
        %6107 = vmatpush1.msra.mxu0 0.0
        %6108 = vmatprep.subr.mxu0 0.0
        %6109 = vmatpush1.msra.mxu0 0.0
        %6110 = vmatprep.subr.mxu0 0.0
        %6111 = vmatpush1.msra.mxu0 0.0
        %6112 = vmatprep.subr.mxu0 0.0
        %6113 = vmatpush1.msra.mxu0 0.0
        %6114 = vmatprep.subr.mxu0 0.0
        %6115 = vmatpush1.msra.mxu0 0.0
        %6116 = vmatprep.subr.mxu0 0.0
        %6117 = vmatpush1.msra.mxu0 0.0
        %6118 = vmatprep.subr.mxu0 0.0
        %6119 = vmatpush1.msra.mxu0 0.0
        %6120 = vmatprep.subr.mxu0 0.0
        %6121 = vmatpush1.msra.mxu0 0.0
        %6122 = vmatprep.subr.mxu0 0.0
        %6123 = vmatpush1.msra.mxu0 0.0
        %6124 = vmatprep.subr.mxu0 0.0
        %6125 = vmatpush1.msra.mxu0 0.0
        %6126 = vmatprep.subr.mxu0 0.0
        %6127 = vmatpush1.msra.mxu0 0.0
        %6128 = vmatprep.subr.mxu0 0.0
        %6129 = vmatpush1.msra.mxu0 0.0
        %6130 = vmatprep.mubr.f32.mxu0 0.0
        %6131 = vmatmul.mubr.f32.gmra.mrb[0].mxu0 %v5803
        %v6132 = vpop.f32.mrb[0].mxu0
        %v6133 = vadd.f32 %v6063, %v6132
        %v6134 = vpop.f32.mrb[0].mxu0
        %6135 = vdwg.mxu0
        %vm6136 = vcmask 31744
        %v6137 = vsel %vm6136, %v5428, 0
        %v6140 = vsel %vm2381, %v6133, 0
        %6142 = vmatprep.subr.mxu0 0.0
        %6143 = vmatpush1.msra.mxu0 %v6140
        %6144 = vmatprep.subr.mxu0 0.0
        %6145 = vmatpush1.msra.mxu0 0.0
        %6146 = vmatprep.subr.mxu0 0.0
        %6147 = vmatpush1.msra.mxu0 0.0
        %6148 = vmatprep.subr.mxu0 0.0
        %6149 = vmatpush1.msra.mxu0 0.0
        %6150 = vmatprep.subr.mxu0 0.0
        %6151 = vmatpush1.msra.mxu0 0.0
        %6152 = vmatprep.subr.mxu0 0.0
        %6153 = vmatpush1.msra.mxu0 0.0
        %6154 = vmatprep.subr.mxu0 0.0
        %6155 = vmatpush1.msra.mxu0 0.0
        %6156 = vmatprep.subr.mxu0 0.0
        %6157 = vmatpush1.msra.mxu0 0.0
        %6158 = vmatprep.subr.mxu0 0.0
        %6159 = vmatpush1.msra.mxu0 0.0
        %6160 = vmatprep.subr.mxu0 0.0
        %6161 = vmatpush1.msra.mxu0 0.0
        %6162 = vmatprep.subr.mxu0 0.0
        %6163 = vmatpush1.msra.mxu0 0.0
        %6164 = vmatprep.subr.mxu0 0.0
        %6165 = vmatpush1.msra.mxu0 0.0
        %6166 = vmatprep.subr.mxu0 0.0
        %6167 = vmatpush1.msra.mxu0 0.0
        %6168 = vmatprep.subr.mxu0 0.0
        %6169 = vmatpush1.msra.mxu0 0.0
        %6170 = vmatprep.subr.mxu0 0.0
        %6171 = vmatpush1.msra.mxu0 0.0
        %6172 = vmatprep.subr.mxu0 0.0
        %6173 = vmatpush1.msra.mxu0 0.0
        %6174 = vmatprep.subr.mxu0 0.0
        %6175 = vmatpush1.msra.mxu0 0.0
        %6176 = vmatprep.subr.mxu0 0.0
        %6177 = vmatpush1.msra.mxu0 0.0
        %6178 = vmatprep.subr.mxu0 0.0
        %6179 = vmatpush1.msra.mxu0 0.0
        %6180 = vmatprep.subr.mxu0 0.0
        %6181 = vmatpush1.msra.mxu0 0.0
        %6182 = vmatprep.subr.mxu0 0.0
        %6183 = vmatpush1.msra.mxu0 0.0
        %6184 = vmatprep.subr.mxu0 0.0
        %6185 = vmatpush1.msra.mxu0 0.0
        %6186 = vmatprep.subr.mxu0 0.0
        %6187 = vmatpush1.msra.mxu0 0.0
        %6188 = vmatprep.subr.mxu0 0.0
        %6189 = vmatpush1.msra.mxu0 0.0
        %6190 = vmatprep.subr.mxu0 0.0
        %6191 = vmatpush1.msra.mxu0 0.0
        %6192 = vmatprep.subr.mxu0 0.0
        %6193 = vmatpush1.msra.mxu0 0.0
        %6194 = vmatprep.subr.mxu0 0.0
        %6195 = vmatpush1.msra.mxu0 0.0
        %6196 = vmatprep.subr.mxu0 0.0
        %6197 = vmatpush1.msra.mxu0 0.0
        %6198 = vmatprep.subr.mxu0 0.0
        %6199 = vmatpush1.msra.mxu0 0.0
        %6200 = vmatprep.subr.mxu0 0.0
        %6201 = vmatpush1.msra.mxu0 0.0
        %6202 = vmatprep.subr.mxu0 0.0
        %6203 = vmatpush1.msra.mxu0 0.0
        %6204 = vmatprep.subr.mxu0 0.0
        %6205 = vmatpush1.msra.mxu0 0.0
        %6206 = vmatprep.mubr.f32.mxu0 0.0
        %6207 = vmatmul.mubr.f32.gmra.mrb[0].mxu0 %v6137
        %v6208 = vpop.f32.mrb[0].mxu0
        %v6209 = vadd.f32 0.0, %v6208
        %v6210 = vpop.f32.mrb[0].mxu0
        %6211 = vdwg.mxu0
        %v6212 = vsel %vm6136, %v5425, 0
        %v6215 = vsel %vm2381, %v5958, 0
        %6217 = vmatprep.subr.mxu0 0.0
        %6218 = vmatpush1.msra.mxu0 %v6215
        %6219 = vmatprep.subr.mxu0 0.0
        %6220 = vmatpush1.msra.mxu0 0.0
        %6221 = vmatprep.subr.mxu0 0.0
        %6222 = vmatpush1.msra.mxu0 0.0
        %6223 = vmatprep.subr.mxu0 0.0
        %6224 = vmatpush1.msra.mxu0 0.0
        %6225 = vmatprep.subr.mxu0 0.0
        %6226 = vmatpush1.msra.mxu0 0.0
        %6227 = vmatprep.subr.mxu0 0.0
        %6228 = vmatpush1.msra.mxu0 0.0
        %6229 = vmatprep.subr.mxu0 0.0
        %6230 = vmatpush1.msra.mxu0 0.0
        %6231 = vmatprep.subr.mxu0 0.0
        %6232 = vmatpush1.msra.mxu0 0.0
        %6233 = vmatprep.subr.mxu0 0.0
        %6234 = vmatpush1.msra.mxu0 0.0
        %6235 = vmatprep.subr.mxu0 0.0
        %6236 = vmatpush1.msra.mxu0 0.0
        %6237 = vmatprep.subr.mxu0 0.0
        %6238 = vmatpush1.msra.mxu0 0.0
        %6239 = vmatprep.subr.mxu0 0.0
        %6240 = vmatpush1.msra.mxu0 0.0
        %6241 = vmatprep.subr.mxu0 0.0
        %6242 = vmatpush1.msra.mxu0 0.0
        %6243 = vmatprep.subr.mxu0 0.0
        %6244 = vmatpush1.msra.mxu0 0.0
        %6245 = vmatprep.subr.mxu0 0.0
        %6246 = vmatpush1.msra.mxu0 0.0
        %6247 = vmatprep.subr.mxu0 0.0
        %6248 = vmatpush1.msra.mxu0 0.0
        %6249 = vmatprep.subr.mxu0 0.0
        %6250 = vmatpush1.msra.mxu0 0.0
        %6251 = vmatprep.subr.mxu0 0.0
        %6252 = vmatpush1.msra.mxu0 0.0
        %6253 = vmatprep.subr.mxu0 0.0
        %6254 = vmatpush1.msra.mxu0 0.0
        %6255 = vmatprep.subr.mxu0 0.0
        %6256 = vmatpush1.msra.mxu0 0.0
        %6257 = vmatprep.subr.mxu0 0.0
        %6258 = vmatpush1.msra.mxu0 0.0
        %6259 = vmatprep.subr.mxu0 0.0
        %6260 = vmatpush1.msra.mxu0 0.0
        %6261 = vmatprep.subr.mxu0 0.0
        %6262 = vmatpush1.msra.mxu0 0.0
        %6263 = vmatprep.subr.mxu0 0.0
        %6264 = vmatpush1.msra.mxu0 0.0
        %6265 = vmatprep.subr.mxu0 0.0
        %6266 = vmatpush1.msra.mxu0 0.0
        %6267 = vmatprep.subr.mxu0 0.0
        %6268 = vmatpush1.msra.mxu0 0.0
        %6269 = vmatprep.subr.mxu0 0.0
        %6270 = vmatpush1.msra.mxu0 0.0
        %6271 = vmatprep.subr.mxu0 0.0
        %6272 = vmatpush1.msra.mxu0 0.0
        %6273 = vmatprep.subr.mxu0 0.0
        %6274 = vmatpush1.msra.mxu0 0.0
        %6275 = vmatprep.subr.mxu0 0.0
        %6276 = vmatpush1.msra.mxu0 0.0
        %6277 = vmatprep.subr.mxu0 0.0
        %6278 = vmatpush1.msra.mxu0 0.0
        %6279 = vmatprep.subr.mxu0 0.0
        %6280 = vmatpush1.msra.mxu0 0.0
        %6281 = vmatprep.mubr.f32.mxu0 0.0
        %6282 = vmatmul.mubr.f32.gmra.mrb[0].mxu0 %v6212
        %v6283 = vpop.f32.mrb[0].mxu0
        %v6284 = vadd.f32 %v6209, %v6283
        %v6285 = vpop.f32.mrb[0].mxu0
        %6286 = vdwg.mxu0
        %v6287 = vld [vmem:[#allocation3] sm:$0xff]
        %v6288 = vld [vmem:[#allocation3 + $0x8] sm:$0xff]
        %v6289 = vld [vmem:[#allocation3 + $0x10] sm:$0xff]
        %v6290 = vld [vmem:[#allocation3 + $0x18] sm:$0xff]
        %v6291 = vld [vmem:[#allocation3 + $0x20] sm:$0xff]
        %v6292 = vld [vmem:[#allocation3 + $0x28] sm:$0xff]
        %v6293 = vld [vmem:[#allocation3 + $0x30] sm:$0xff]
        %v6294 = vld [vmem:[#allocation3 + $0x38] sm:$0xff]
        %v6295 = vld [vmem:[#allocation3 + $0x40] sm:$0xff]
        %v6296 = vld [vmem:[#allocation3 + $0x48] sm:$0xff]
        %v6297 = vld [vmem:[#allocation3 + $0x50] sm:$0xff]
        %v6298 = vld [vmem:[#allocation3 + $0x58] sm:$0xff]
        %v6299 = vld [vmem:[#allocation3 + $0x60] sm:$0xff]
        %v6300 = vld [vmem:[#allocation3 + $0x68] sm:$0xff]
        %v6301 = vld [vmem:[#allocation3 + $0x70] sm:$0xff]
        %v6302 = vld [vmem:[#allocation3 + $0x78] sm:$0xff]
        %v6303 = vrot.slane %v6284, 4
        %v6304 = vadd.f32 %v6284, %v6303
        %v6305 = vrot.slane %v6304, 2
        %v6306 = vadd.f32 %v6304, %v6305
        %v6307 = vrot.slane %v6306, 1
        %v6308 = vadd.f32 %v6306, %v6307
        %6309 = vmatprep.subr.mxu0 0.0
        %6310 = vmatpush1.msra.mxu0 %v6287
        %6311 = vmatprep.subr.mxu0 0.0
        %6312 = vmatpush1.msra.mxu0 %v6288
        %6313 = vmatprep.subr.mxu0 0.0
        %6314 = vmatpush1.msra.mxu0 %v6289
        %6315 = vmatprep.subr.mxu0 0.0
        %6316 = vmatpush1.msra.mxu0 %v6290
        %6317 = vmatprep.subr.mxu0 0.0
        %6318 = vmatpush1.msra.mxu0 %v6291
        %6319 = vmatprep.subr.mxu0 0.0
        %6320 = vmatpush1.msra.mxu0 %v6292
        %6321 = vmatprep.subr.mxu0 0.0
        %6322 = vmatpush1.msra.mxu0 %v6293
        %6323 = vmatprep.subr.mxu0 0.0
        %6324 = vmatpush1.msra.mxu0 %v6294
        %6325 = vmatprep.subr.mxu0 0.0
        %6326 = vmatpush1.msra.mxu0 %v6295
        %6327 = vmatprep.subr.mxu0 0.0
        %6328 = vmatpush1.msra.mxu0 %v6296
        %6329 = vmatprep.subr.mxu0 0.0
        %6330 = vmatpush1.msra.mxu0 %v6297
        %6331 = vmatprep.subr.mxu0 0.0
        %6332 = vmatpush1.msra.mxu0 %v6298
        %6333 = vmatprep.subr.mxu0 0.0
        %6334 = vmatpush1.msra.mxu0 %v6299
        %6335 = vmatprep.subr.mxu0 0.0
        %6336 = vmatpush1.msra.mxu0 %v6300
        %6337 = vmatprep.subr.mxu0 0.0
        %6338 = vmatpush1.msra.mxu0 %v6301
        %6339 = vmatprep.subr.mxu0 0.0
        %6340 = vmatpush1.msra.mxu0 %v6302
        %6341 = vmatprep.subr.mxu0 0.0
        %6342 = vmatpush1.msra.mxu0 0.0
        %6343 = vmatprep.subr.mxu0 0.0
        %6344 = vmatpush1.msra.mxu0 0.0
        %6345 = vmatprep.subr.mxu0 0.0
        %6346 = vmatpush1.msra.mxu0 0.0
        %6347 = vmatprep.subr.mxu0 0.0
        %6348 = vmatpush1.msra.mxu0 0.0
        %6349 = vmatprep.subr.mxu0 0.0
        %6350 = vmatpush1.msra.mxu0 0.0
        %6351 = vmatprep.subr.mxu0 0.0
        %6352 = vmatpush1.msra.mxu0 0.0
        %6353 = vmatprep.subr.mxu0 0.0
        %6354 = vmatpush1.msra.mxu0 0.0
        %6355 = vmatprep.subr.mxu0 0.0
        %6356 = vmatpush1.msra.mxu0 0.0
        %6357 = vmatprep.subr.mxu0 0.0
        %6358 = vmatpush1.msra.mxu0 0.0
        %6359 = vmatprep.subr.mxu0 0.0
        %6360 = vmatpush1.msra.mxu0 0.0
        %6361 = vmatprep.subr.mxu0 0.0
        %6362 = vmatpush1.msra.mxu0 0.0
        %6363 = vmatprep.subr.mxu0 0.0
        %6364 = vmatpush1.msra.mxu0 0.0
        %6365 = vmatprep.subr.mxu0 0.0
        %6366 = vmatpush1.msra.mxu0 0.0
        %6367 = vmatprep.subr.mxu0 0.0
        %6368 = vmatpush1.msra.mxu0 0.0
        %6369 = vmatprep.subr.mxu0 0.0
        %6370 = vmatpush1.msra.mxu0 0.0
        %6371 = vmatprep.subr.mxu0 0.0
        %6372 = vmatpush1.msra.mxu0 0.0
        %6373 = vmatprep.mubr.f32.mxu0 0.0
        %6374 = vmatmul.mubr.f32.gmra.mrb[0].mxu0 %v6308
        %v6375 = vpop.f32.mrb[0].mxu0
        %v6376 = vadd.f32 0.0, %v6375
        %v6377 = vpop.f32.mrb[0].mxu0
        %6378 = vdwg.mxu0
        %v6379 = vlaneseq
        %v6380 = vshrl.u32 %v6379, 7
        %v6381 = vsub.s32 0, %v6380
        %v6382 = vrot.slane %v6376, %v6381
        %v6383 = vsub.f32 %v6284, %v6382
        %v6384 = vmul.f32 %v6383, %v6383
        %v6385 = vrot.slane %v6384, 4
        %v6386 = vadd.f32 %v6384, %v6385
        %v6387 = vrot.slane %v6386, 2
        %v6388 = vadd.f32 %v6386, %v6387
        %v6389 = vrot.slane %v6388, 1
        %v6390 = vadd.f32 %v6388, %v6389
        %6391 = vmatprep.subr.mxu0 0.0
        %6392 = vmatpush1.msra.mxu0 %v6287
        %6393 = vmatprep.subr.mxu0 0.0
        %6394 = vmatpush1.msra.mxu0 %v6288
        %6395 = vmatprep.subr.mxu0 0.0
        %6396 = vmatpush1.msra.mxu0 %v6289
        %6397 = vmatprep.subr.mxu0 0.0
        %6398 = vmatpush1.msra.mxu0 %v6290
        %6399 = vmatprep.subr.mxu0 0.0
        %6400 = vmatpush1.msra.mxu0 %v6291
        %6401 = vmatprep.subr.mxu0 0.0
        %6402 = vmatpush1.msra.mxu0 %v6292
        %6403 = vmatprep.subr.mxu0 0.0
        %6404 = vmatpush1.msra.mxu0 %v6293
        %6405 = vmatprep.subr.mxu0 0.0
        %6406 = vmatpush1.msra.mxu0 %v6294
        %6407 = vmatprep.subr.mxu0 0.0
        %6408 = vmatpush1.msra.mxu0 %v6295
        %6409 = vmatprep.subr.mxu0 0.0
        %6410 = vmatpush1.msra.mxu0 %v6296
        %6411 = vmatprep.subr.mxu0 0.0
        %6412 = vmatpush1.msra.mxu0 %v6297
        %6413 = vmatprep.subr.mxu0 0.0
        %6414 = vmatpush1.msra.mxu0 %v6298
        %6415 = vmatprep.subr.mxu0 0.0
        %6416 = vmatpush1.msra.mxu0 %v6299
        %6417 = vmatprep.subr.mxu0 0.0
        %6418 = vmatpush1.msra.mxu0 %v6300
        %6419 = vmatprep.subr.mxu0 0.0
        %6420 = vmatpush1.msra.mxu0 %v6301
        %6421 = vmatprep.subr.mxu0 0.0
        %6422 = vmatpush1.msra.mxu0 %v6302
        %6423 = vmatprep.subr.mxu0 0.0
        %6424 = vmatpush1.msra.mxu0 0.0
        %6425 = vmatprep.subr.mxu0 0.0
        %6426 = vmatpush1.msra.mxu0 0.0
        %6427 = vmatprep.subr.mxu0 0.0
        %6428 = vmatpush1.msra.mxu0 0.0
        %6429 = vmatprep.subr.mxu0 0.0
        %6430 = vmatpush1.msra.mxu0 0.0
        %6431 = vmatprep.subr.mxu0 0.0
        %6432 = vmatpush1.msra.mxu0 0.0
        %6433 = vmatprep.subr.mxu0 0.0
        %6434 = vmatpush1.msra.mxu0 0.0
        %6435 = vmatprep.subr.mxu0 0.0
        %6436 = vmatpush1.msra.mxu0 0.0
        %6437 = vmatprep.subr.mxu0 0.0
        %6438 = vmatpush1.msra.mxu0 0.0
        %6439 = vmatprep.subr.mxu0 0.0
        %6440 = vmatpush1.msra.mxu0 0.0
        %6441 = vmatprep.subr.mxu0 0.0
        %6442 = vmatpush1.msra.mxu0 0.0
        %6443 = vmatprep.subr.mxu0 0.0
        %6444 = vmatpush1.msra.mxu0 0.0
        %6445 = vmatprep.subr.mxu0 0.0
        %6446 = vmatpush1.msra.mxu0 0.0
        %6447 = vmatprep.subr.mxu0 0.0
        %6448 = vmatpush1.msra.mxu0 0.0
        %6449 = vmatprep.subr.mxu0 0.0
        %6450 = vmatpush1.msra.mxu0 0.0
        %6451 = vmatprep.subr.mxu0 0.0
        %6452 = vmatpush1.msra.mxu0 0.0
        %6453 = vmatprep.subr.mxu0 0.0
        %6454 = vmatpush1.msra.mxu0 0.0
        %6455 = vmatprep.mubr.f32.mxu0 0.0
        %6456 = vmatmul.mubr.f32.gmra.mrb[0].mxu0 %v6390
        %v6457 = vpop.f32.mrb[0].mxu0
        %v6458 = vadd.f32 1e-05, %v6457
        %v6459 = vpop.f32.mrb[0].mxu0
        %6460 = vdwg.mxu0
        %v6461 = vrsqrt.pop %v6458
        %v6462 = vlaneseq
        %v6463 = vshrl.u32 %v6462, 7
        %v6464 = vsub.s32 0, %v6463
        %v6465 = vrot.slane %v6461, %v6464
        %v6466 = vmul.f32 %v6383, %v6465
        %v6467 = vld [vmem:[#allocation29] sm:$0x1]
        %v6469 = vlaneseq
        %v6470 = vshrl.u32 %v6469, 7
        %v6471 = vsub.s32 0, %v6470
        %v6472 = vrot.slane %v6467, %v6471
        %v6474 = vmul.f32 %v6466, %v6472
        %v6475 = vld [vmem:[#allocation30] sm:$0x1]
        %v6477 = vlaneseq
        %v6478 = vshrl.u32 %v6477, 7
        %v6479 = vsub.s32 0, %v6478
        %v6480 = vrot.slane %v6475, %v6479
        %v6482 = vadd.f32 %v6474, %v6480
        %vm6483 = vcmp.gt.f32.partialorder %v6482, 0.0
        %v6484 = vmul.f32 %v6482, 0.01
        %v6485 = vsel %vm6483, %v6482, %v6484
        %6486 = vst [vmem:[#allocation2] sm:$0xff] 0.0
        %6487 = vst [vmem:[#allocation2 + $0x8] sm:$0xff] 0.0
        %6488 = vst [vmem:[#allocation2 + $0x3] sm:$0xff] %v6485
        %v6489 = vld [vmem:[#allocation2] sm:$0xff]
        %v6490 = vld [vmem:[%s65] sm:$0xff]
        %v6491 = vld [vmem:[%s65 + $0x8] sm:$0xff]
        %v6492 = vld [vmem:[%s65 + $0x10] sm:$0xff]
        %v6493 = vld [vmem:[%s65 + $0x18] sm:$0xff]
        %v6494 = vld [vmem:[%s65 + $0x20] sm:$0xff]
        %v6495 = vld [vmem:[%s65 + $0x28] sm:$0xff]
        %v6496 = vld [vmem:[%s65 + $0x30] sm:$0xff]
        %v6497 = vld [vmem:[%s65 + $0x38] sm:$0xff]
        %v6498 = vld [vmem:[%s65 + $0x40] sm:$0xff]
        %v6499 = vld [vmem:[%s65 + $0x48] sm:$0xff]
        %v6500 = vld [vmem:[%s65 + $0x50] sm:$0xff]
        %v6501 = vld [vmem:[%s65 + $0x58] sm:$0xff]
        %v6502 = vld [vmem:[%s65 + $0x60] sm:$0xff]
        %v6503 = vld [vmem:[%s65 + $0x68] sm:$0xff]
        %v6504 = vld [vmem:[%s65 + $0x70] sm:$0xff]
        %v6505 = vld [vmem:[%s65 + $0x78] sm:$0xff]
        %v6506 = vld [vmem:[#allocation2 + $0x1] sm:$0xff]
        %s6507 = scalar_lea.vmem %s65, 128
        %v6508 = vld [vmem:[%s6507] sm:$0xff]
        %v6509 = vld [vmem:[%s6507 + $0x8] sm:$0xff]
        %v6510 = vld [vmem:[%s6507 + $0x10] sm:$0xff]
        %v6511 = vld [vmem:[%s6507 + $0x18] sm:$0xff]
        %v6512 = vld [vmem:[%s6507 + $0x20] sm:$0xff]
        %v6513 = vld [vmem:[%s6507 + $0x28] sm:$0xff]
        %v6514 = vld [vmem:[%s6507 + $0x30] sm:$0xff]
        %v6515 = vld [vmem:[%s6507 + $0x38] sm:$0xff]
        %v6516 = vld [vmem:[%s6507 + $0x40] sm:$0xff]
        %v6517 = vld [vmem:[%s6507 + $0x48] sm:$0xff]
        %v6518 = vld [vmem:[%s6507 + $0x50] sm:$0xff]
        %v6519 = vld [vmem:[%s6507 + $0x58] sm:$0xff]
        %v6520 = vld [vmem:[%s6507 + $0x60] sm:$0xff]
        %v6521 = vld [vmem:[%s6507 + $0x68] sm:$0xff]
        %v6522 = vld [vmem:[%s6507 + $0x70] sm:$0xff]
        %v6523 = vld [vmem:[%s6507 + $0x78] sm:$0xff]
        %6524 = vmatprep.subr.mxu0 0.0
        %6525 = vmatpush1.msra.mxu0 %v6508
        %6526 = vmatprep.subr.mxu0 0.0
        %6527 = vmatpush1.msra.mxu0 %v6509
        %6528 = vmatprep.subr.mxu0 0.0
        %6529 = vmatpush1.msra.mxu0 %v6510
        %6530 = vmatprep.subr.mxu0 0.0
        %6531 = vmatpush1.msra.mxu0 %v6511
        %6532 = vmatprep.subr.mxu0 0.0
        %6533 = vmatpush1.msra.mxu0 %v6512
        %6534 = vmatprep.subr.mxu0 0.0
        %6535 = vmatpush1.msra.mxu0 %v6513
        %6536 = vmatprep.subr.mxu0 0.0
        %6537 = vmatpush1.msra.mxu0 %v6514
        %6538 = vmatprep.subr.mxu0 0.0
        %6539 = vmatpush1.msra.mxu0 %v6515
        %6540 = vmatprep.subr.mxu0 0.0
        %6541 = vmatpush1.msra.mxu0 %v6516
        %6542 = vmatprep.subr.mxu0 0.0
        %6543 = vmatpush1.msra.mxu0 %v6517
        %6544 = vmatprep.subr.mxu0 0.0
        %6545 = vmatpush1.msra.mxu0 %v6518
        %6546 = vmatprep.subr.mxu0 0.0
        %6547 = vmatpush1.msra.mxu0 %v6519
        %6548 = vmatprep.subr.mxu0 0.0
        %6549 = vmatpush1.msra.mxu0 %v6520
        %6550 = vmatprep.subr.mxu0 0.0
        %6551 = vmatpush1.msra.mxu0 %v6521
        %6552 = vmatprep.subr.mxu0 0.0
        %6553 = vmatpush1.msra.mxu0 %v6522
        %6554 = vmatprep.subr.mxu0 0.0
        %6555 = vmatpush1.msra.mxu0 %v6523
        %6556 = vmatprep.subr.mxu0 0.0
        %6557 = vmatpush1.msra.mxu0 0.0
        %6558 = vmatprep.subr.mxu0 0.0
        %6559 = vmatpush1.msra.mxu0 0.0
        %6560 = vmatprep.subr.mxu0 0.0
        %6561 = vmatpush1.msra.mxu0 0.0
        %6562 = vmatprep.subr.mxu0 0.0
        %6563 = vmatpush1.msra.mxu0 0.0
        %6564 = vmatprep.subr.mxu0 0.0
        %6565 = vmatpush1.msra.mxu0 0.0
        %6566 = vmatprep.subr.mxu0 0.0
        %6567 = vmatpush1.msra.mxu0 0.0
        %6568 = vmatprep.subr.mxu0 0.0
        %6569 = vmatpush1.msra.mxu0 0.0
        %6570 = vmatprep.subr.mxu0 0.0
        %6571 = vmatpush1.msra.mxu0 0.0
        %6572 = vmatprep.subr.mxu0 0.0
        %6573 = vmatpush1.msra.mxu0 0.0
        %6574 = vmatprep.subr.mxu0 0.0
        %6575 = vmatpush1.msra.mxu0 0.0
        %6576 = vmatprep.subr.mxu0 0.0
        %6577 = vmatpush1.msra.mxu0 0.0
        %6578 = vmatprep.subr.mxu0 0.0
        %6579 = vmatpush1.msra.mxu0 0.0
        %6580 = vmatprep.subr.mxu0 0.0
        %6581 = vmatpush1.msra.mxu0 0.0
        %6582 = vmatprep.subr.mxu0 0.0
        %6583 = vmatpush1.msra.mxu0 0.0
        %6584 = vmatprep.subr.mxu0 0.0
        %6585 = vmatpush1.msra.mxu0 0.0
        %6586 = vmatprep.subr.mxu0 0.0
        %6587 = vmatpush1.msra.mxu0 0.0
        %6588 = vmatprep.mubr.f32.mxu0 0.0
        %6589 = vmatmul.mubr.f32.gmra.mrb[0].mxu0 %v6506
        %v6590 = vpop.f32.mrb[0].mxu0
        %v6591 = vadd.f32 0.0, %v6590
        %v6592 = vpop.f32.mrb[0].mxu0
        %6593 = vdwg.mxu0
        %6594 = vmatprep.subr.mxu0 0.0
        %6595 = vmatpush1.msra.mxu0 %v6490
        %6596 = vmatprep.subr.mxu0 0.0
        %6597 = vmatpush1.msra.mxu0 %v6491
        %6598 = vmatprep.subr.mxu0 0.0
        %6599 = vmatpush1.msra.mxu0 %v6492
        %6600 = vmatprep.subr.mxu0 0.0
        %6601 = vmatpush1.msra.mxu0 %v6493
        %6602 = vmatprep.subr.mxu0 0.0
        %6603 = vmatpush1.msra.mxu0 %v6494
        %6604 = vmatprep.subr.mxu0 0.0
        %6605 = vmatpush1.msra.mxu0 %v6495
        %6606 = vmatprep.subr.mxu0 0.0
        %6607 = vmatpush1.msra.mxu0 %v6496
        %6608 = vmatprep.subr.mxu0 0.0
        %6609 = vmatpush1.msra.mxu0 %v6497
        %6610 = vmatprep.subr.mxu0 0.0
        %6611 = vmatpush1.msra.mxu0 %v6498
        %6612 = vmatprep.subr.mxu0 0.0
        %6613 = vmatpush1.msra.mxu0 %v6499
        %6614 = vmatprep.subr.mxu0 0.0
        %6615 = vmatpush1.msra.mxu0 %v6500
        %6616 = vmatprep.subr.mxu0 0.0
        %6617 = vmatpush1.msra.mxu0 %v6501
        %6618 = vmatprep.subr.mxu0 0.0
        %6619 = vmatpush1.msra.mxu0 %v6502
        %6620 = vmatprep.subr.mxu0 0.0
        %6621 = vmatpush1.msra.mxu0 %v6503
        %6622 = vmatprep.subr.mxu0 0.0
        %6623 = vmatpush1.msra.mxu0 %v6504
        %6624 = vmatprep.subr.mxu0 0.0
        %6625 = vmatpush1.msra.mxu0 %v6505
        %6626 = vmatprep.subr.mxu0 0.0
        %6627 = vmatpush1.msra.mxu0 0.0
        %6628 = vmatprep.subr.mxu0 0.0
        %6629 = vmatpush1.msra.mxu0 0.0
        %6630 = vmatprep.subr.mxu0 0.0
        %6631 = vmatpush1.msra.mxu0 0.0
        %6632 = vmatprep.subr.mxu0 0.0
        %6633 = vmatpush1.msra.mxu0 0.0
        %6634 = vmatprep.subr.mxu0 0.0
        %6635 = vmatpush1.msra.mxu0 0.0
        %6636 = vmatprep.subr.mxu0 0.0
        %6637 = vmatpush1.msra.mxu0 0.0
        %6638 = vmatprep.subr.mxu0 0.0
        %6639 = vmatpush1.msra.mxu0 0.0
        %6640 = vmatprep.subr.mxu0 0.0
        %6641 = vmatpush1.msra.mxu0 0.0
        %6642 = vmatprep.subr.mxu0 0.0
        %6643 = vmatpush1.msra.mxu0 0.0
        %6644 = vmatprep.subr.mxu0 0.0
        %6645 = vmatpush1.msra.mxu0 0.0
        %6646 = vmatprep.subr.mxu0 0.0
        %6647 = vmatpush1.msra.mxu0 0.0
        %6648 = vmatprep.subr.mxu0 0.0
        %6649 = vmatpush1.msra.mxu0 0.0
        %6650 = vmatprep.subr.mxu0 0.0
        %6651 = vmatpush1.msra.mxu0 0.0
        %6652 = vmatprep.subr.mxu0 0.0
        %6653 = vmatpush1.msra.mxu0 0.0
        %6654 = vmatprep.subr.mxu0 0.0
        %6655 = vmatpush1.msra.mxu0 0.0
        %6656 = vmatprep.subr.mxu0 0.0
        %6657 = vmatpush1.msra.mxu0 0.0
        %6658 = vmatprep.mubr.f32.mxu0 0.0
        %6659 = vmatmul.mubr.f32.gmra.mrb[0].mxu0 %v6489
        %v6660 = vpop.f32.mrb[0].mxu0
        %v6661 = vadd.f32 %v6591, %v6660
        %v6662 = vpop.f32.mrb[0].mxu0
        %6663 = vdwg.mxu0
        %v6664 = vld [vmem:[#allocation2 + $0x2] sm:$0xff]
        %s6665 = scalar_lea.vmem %s65, 256
        %v6666 = vld [vmem:[%s6665] sm:$0xff]
        %v6667 = vld [vmem:[%s6665 + $0x8] sm:$0xff]
        %v6668 = vld [vmem:[%s6665 + $0x10] sm:$0xff]
        %v6669 = vld [vmem:[%s6665 + $0x18] sm:$0xff]
        %v6670 = vld [vmem:[%s6665 + $0x20] sm:$0xff]
        %v6671 = vld [vmem:[%s6665 + $0x28] sm:$0xff]
        %v6672 = vld [vmem:[%s6665 + $0x30] sm:$0xff]
        %v6673 = vld [vmem:[%s6665 + $0x38] sm:$0xff]
        %v6674 = vld [vmem:[%s6665 + $0x40] sm:$0xff]
        %v6675 = vld [vmem:[%s6665 + $0x48] sm:$0xff]
        %v6676 = vld [vmem:[%s6665 + $0x50] sm:$0xff]
        %v6677 = vld [vmem:[%s6665 + $0x58] sm:$0xff]
        %v6678 = vld [vmem:[%s6665 + $0x60] sm:$0xff]
        %v6679 = vld [vmem:[%s6665 + $0x68] sm:$0xff]
        %v6680 = vld [vmem:[%s6665 + $0x70] sm:$0xff]
        %v6681 = vld [vmem:[%s6665 + $0x78] sm:$0xff]
        %6682 = vmatprep.subr.mxu0 0.0
        %6683 = vmatpush1.msra.mxu0 %v6666
        %6684 = vmatprep.subr.mxu0 0.0
        %6685 = vmatpush1.msra.mxu0 %v6667
        %6686 = vmatprep.subr.mxu0 0.0
        %6687 = vmatpush1.msra.mxu0 %v6668
        %6688 = vmatprep.subr.mxu0 0.0
        %6689 = vmatpush1.msra.mxu0 %v6669
        %6690 = vmatprep.subr.mxu0 0.0
        %6691 = vmatpush1.msra.mxu0 %v6670
        %6692 = vmatprep.subr.mxu0 0.0
        %6693 = vmatpush1.msra.mxu0 %v6671
        %6694 = vmatprep.subr.mxu0 0.0
        %6695 = vmatpush1.msra.mxu0 %v6672
        %6696 = vmatprep.subr.mxu0 0.0
        %6697 = vmatpush1.msra.mxu0 %v6673
        %6698 = vmatprep.subr.mxu0 0.0
        %6699 = vmatpush1.msra.mxu0 %v6674
        %6700 = vmatprep.subr.mxu0 0.0
        %6701 = vmatpush1.msra.mxu0 %v6675
        %6702 = vmatprep.subr.mxu0 0.0
        %6703 = vmatpush1.msra.mxu0 %v6676
        %6704 = vmatprep.subr.mxu0 0.0
        %6705 = vmatpush1.msra.mxu0 %v6677
        %6706 = vmatprep.subr.mxu0 0.0
        %6707 = vmatpush1.msra.mxu0 %v6678
        %6708 = vmatprep.subr.mxu0 0.0
        %6709 = vmatpush1.msra.mxu0 %v6679
        %6710 = vmatprep.subr.mxu0 0.0
        %6711 = vmatpush1.msra.mxu0 %v6680
        %6712 = vmatprep.subr.mxu0 0.0
        %6713 = vmatpush1.msra.mxu0 %v6681
        %6714 = vmatprep.subr.mxu0 0.0
        %6715 = vmatpush1.msra.mxu0 0.0
        %6716 = vmatprep.subr.mxu0 0.0
        %6717 = vmatpush1.msra.mxu0 0.0
        %6718 = vmatprep.subr.mxu0 0.0
        %6719 = vmatpush1.msra.mxu0 0.0
        %6720 = vmatprep.subr.mxu0 0.0
        %6721 = vmatpush1.msra.mxu0 0.0
        %6722 = vmatprep.subr.mxu0 0.0
        %6723 = vmatpush1.msra.mxu0 0.0
        %6724 = vmatprep.subr.mxu0 0.0
        %6725 = vmatpush1.msra.mxu0 0.0
        %6726 = vmatprep.subr.mxu0 0.0
        %6727 = vmatpush1.msra.mxu0 0.0
        %6728 = vmatprep.subr.mxu0 0.0
        %6729 = vmatpush1.msra.mxu0 0.0
        %6730 = vmatprep.subr.mxu0 0.0
        %6731 = vmatpush1.msra.mxu0 0.0
        %6732 = vmatprep.subr.mxu0 0.0
        %6733 = vmatpush1.msra.mxu0 0.0
        %6734 = vmatprep.subr.mxu0 0.0
        %6735 = vmatpush1.msra.mxu0 0.0
        %6736 = vmatprep.subr.mxu0 0.0
        %6737 = vmatpush1.msra.mxu0 0.0
        %6738 = vmatprep.subr.mxu0 0.0
        %6739 = vmatpush1.msra.mxu0 0.0
        %6740 = vmatprep.subr.mxu0 0.0
        %6741 = vmatpush1.msra.mxu0 0.0
        %6742 = vmatprep.subr.mxu0 0.0
        %6743 = vmatpush1.msra.mxu0 0.0
        %6744 = vmatprep.subr.mxu0 0.0
        %6745 = vmatpush1.msra.mxu0 0.0
        %6746 = vmatprep.mubr.f32.mxu0 0.0
        %6747 = vmatmul.mubr.f32.gmra.mrb[0].mxu0 %v6664
        %v6748 = vpop.f32.mrb[0].mxu0
        %v6749 = vadd.f32 0.0, %v6748
        %v6750 = vpop.f32.mrb[0].mxu0
        %6751 = vdwg.mxu0
        %v6752 = vadd.f32 %v6661, %v6749
        %v6753 = vld [vmem:[#allocation2 + $0x3] sm:$0xff]
        %s6754 = scalar_lea.vmem %s65, 384
        %v6755 = vld [vmem:[%s6754] sm:$0xff]
        %v6756 = vld [vmem:[%s6754 + $0x8] sm:$0xff]
        %v6757 = vld [vmem:[%s6754 + $0x10] sm:$0xff]
        %v6758 = vld [vmem:[%s6754 + $0x18] sm:$0xff]
        %v6759 = vld [vmem:[%s6754 + $0x20] sm:$0xff]
        %v6760 = vld [vmem:[%s6754 + $0x28] sm:$0xff]
        %v6761 = vld [vmem:[%s6754 + $0x30] sm:$0xff]
        %v6762 = vld [vmem:[%s6754 + $0x38] sm:$0xff]
        %v6763 = vld [vmem:[%s6754 + $0x40] sm:$0xff]
        %v6764 = vld [vmem:[%s6754 + $0x48] sm:$0xff]
        %v6765 = vld [vmem:[%s6754 + $0x50] sm:$0xff]
        %v6766 = vld [vmem:[%s6754 + $0x58] sm:$0xff]
        %v6767 = vld [vmem:[%s6754 + $0x60] sm:$0xff]
        %v6768 = vld [vmem:[%s6754 + $0x68] sm:$0xff]
        %v6769 = vld [vmem:[%s6754 + $0x70] sm:$0xff]
        %v6770 = vld [vmem:[%s6754 + $0x78] sm:$0xff]
        %6771 = vmatprep.subr.mxu0 0.0
        %6772 = vmatpush1.msra.mxu0 %v6755
        %6773 = vmatprep.subr.mxu0 0.0
        %6774 = vmatpush1.msra.mxu0 %v6756
        %6775 = vmatprep.subr.mxu0 0.0
        %6776 = vmatpush1.msra.mxu0 %v6757
        %6777 = vmatprep.subr.mxu0 0.0
        %6778 = vmatpush1.msra.mxu0 %v6758
        %6779 = vmatprep.subr.mxu0 0.0
        %6780 = vmatpush1.msra.mxu0 %v6759
        %6781 = vmatprep.subr.mxu0 0.0
        %6782 = vmatpush1.msra.mxu0 %v6760
        %6783 = vmatprep.subr.mxu0 0.0
        %6784 = vmatpush1.msra.mxu0 %v6761
        %6785 = vmatprep.subr.mxu0 0.0
        %6786 = vmatpush1.msra.mxu0 %v6762
        %6787 = vmatprep.subr.mxu0 0.0
        %6788 = vmatpush1.msra.mxu0 %v6763
        %6789 = vmatprep.subr.mxu0 0.0
        %6790 = vmatpush1.msra.mxu0 %v6764
        %6791 = vmatprep.subr.mxu0 0.0
        %6792 = vmatpush1.msra.mxu0 %v6765
        %6793 = vmatprep.subr.mxu0 0.0
        %6794 = vmatpush1.msra.mxu0 %v6766
        %6795 = vmatprep.subr.mxu0 0.0
        %6796 = vmatpush1.msra.mxu0 %v6767
        %6797 = vmatprep.subr.mxu0 0.0
        %6798 = vmatpush1.msra.mxu0 %v6768
        %6799 = vmatprep.subr.mxu0 0.0
        %6800 = vmatpush1.msra.mxu0 %v6769
        %6801 = vmatprep.subr.mxu0 0.0
        %6802 = vmatpush1.msra.mxu0 %v6770
        %6803 = vmatprep.subr.mxu0 0.0
        %6804 = vmatpush1.msra.mxu0 0.0
        %6805 = vmatprep.subr.mxu0 0.0
        %6806 = vmatpush1.msra.mxu0 0.0
        %6807 = vmatprep.subr.mxu0 0.0
        %6808 = vmatpush1.msra.mxu0 0.0
        %6809 = vmatprep.subr.mxu0 0.0
        %6810 = vmatpush1.msra.mxu0 0.0
        %6811 = vmatprep.subr.mxu0 0.0
        %6812 = vmatpush1.msra.mxu0 0.0
        %6813 = vmatprep.subr.mxu0 0.0
        %6814 = vmatpush1.msra.mxu0 0.0
        %6815 = vmatprep.subr.mxu0 0.0
        %6816 = vmatpush1.msra.mxu0 0.0
        %6817 = vmatprep.subr.mxu0 0.0
        %6818 = vmatpush1.msra.mxu0 0.0
        %6819 = vmatprep.subr.mxu0 0.0
        %6820 = vmatpush1.msra.mxu0 0.0
        %6821 = vmatprep.subr.mxu0 0.0
        %6822 = vmatpush1.msra.mxu0 0.0
        %6823 = vmatprep.subr.mxu0 0.0
        %6824 = vmatpush1.msra.mxu0 0.0
        %6825 = vmatprep.subr.mxu0 0.0
        %6826 = vmatpush1.msra.mxu0 0.0
        %6827 = vmatprep.subr.mxu0 0.0
        %6828 = vmatpush1.msra.mxu0 0.0
        %6829 = vmatprep.subr.mxu0 0.0
        %6830 = vmatpush1.msra.mxu0 0.0
        %6831 = vmatprep.subr.mxu0 0.0
        %6832 = vmatpush1.msra.mxu0 0.0
        %6833 = vmatprep.subr.mxu0 0.0
        %6834 = vmatpush1.msra.mxu0 0.0
        %6835 = vmatprep.mubr.f32.mxu0 0.0
        %6836 = vmatmul.mubr.f32.gmra.mrb[0].mxu0 %v6753
        %v6837 = vpop.f32.mrb[0].mxu0
        %v6838 = vadd.f32 0.0, %v6837
        %v6839 = vpop.f32.mrb[0].mxu0
        %6840 = vdwg.mxu0
        %v6841 = vadd.f32 %v6752, %v6838
        %v6842 = vld [vmem:[#allocation2 + $0x4] sm:$0xff]
        %s6843 = scalar_lea.vmem %s65, 512
        %v6844 = vld [vmem:[%s6843] sm:$0xff]
        %v6845 = vld [vmem:[%s6843 + $0x8] sm:$0xff]
        %v6846 = vld [vmem:[%s6843 + $0x10] sm:$0xff]
        %v6847 = vld [vmem:[%s6843 + $0x18] sm:$0xff]
        %v6848 = vld [vmem:[%s6843 + $0x20] sm:$0xff]
        %v6849 = vld [vmem:[%s6843 + $0x28] sm:$0xff]
        %v6850 = vld [vmem:[%s6843 + $0x30] sm:$0xff]
        %v6851 = vld [vmem:[%s6843 + $0x38] sm:$0xff]
        %v6852 = vld [vmem:[%s6843 + $0x40] sm:$0xff]
        %v6853 = vld [vmem:[%s6843 + $0x48] sm:$0xff]
        %v6854 = vld [vmem:[%s6843 + $0x50] sm:$0xff]
        %v6855 = vld [vmem:[%s6843 + $0x58] sm:$0xff]
        %v6856 = vld [vmem:[%s6843 + $0x60] sm:$0xff]
        %v6857 = vld [vmem:[%s6843 + $0x68] sm:$0xff]
        %v6858 = vld [vmem:[%s6843 + $0x70] sm:$0xff]
        %v6859 = vld [vmem:[%s6843 + $0x78] sm:$0xff]
        %6860 = vmatprep.subr.mxu0 0.0
        %6861 = vmatpush1.msra.mxu0 %v6844
        %6862 = vmatprep.subr.mxu0 0.0
        %6863 = vmatpush1.msra.mxu0 %v6845
        %6864 = vmatprep.subr.mxu0 0.0
        %6865 = vmatpush1.msra.mxu0 %v6846
        %6866 = vmatprep.subr.mxu0 0.0
        %6867 = vmatpush1.msra.mxu0 %v6847
        %6868 = vmatprep.subr.mxu0 0.0
        %6869 = vmatpush1.msra.mxu0 %v6848
        %6870 = vmatprep.subr.mxu0 0.0
        %6871 = vmatpush1.msra.mxu0 %v6849
        %6872 = vmatprep.subr.mxu0 0.0
        %6873 = vmatpush1.msra.mxu0 %v6850
        %6874 = vmatprep.subr.mxu0 0.0
        %6875 = vmatpush1.msra.mxu0 %v6851
        %6876 = vmatprep.subr.mxu0 0.0
        %6877 = vmatpush1.msra.mxu0 %v6852
        %6878 = vmatprep.subr.mxu0 0.0
        %6879 = vmatpush1.msra.mxu0 %v6853
        %6880 = vmatprep.subr.mxu0 0.0
        %6881 = vmatpush1.msra.mxu0 %v6854
        %6882 = vmatprep.subr.mxu0 0.0
        %6883 = vmatpush1.msra.mxu0 %v6855
        %6884 = vmatprep.subr.mxu0 0.0
        %6885 = vmatpush1.msra.mxu0 %v6856
        %6886 = vmatprep.subr.mxu0 0.0
        %6887 = vmatpush1.msra.mxu0 %v6857
        %6888 = vmatprep.subr.mxu0 0.0
        %6889 = vmatpush1.msra.mxu0 %v6858
        %6890 = vmatprep.subr.mxu0 0.0
        %6891 = vmatpush1.msra.mxu0 %v6859
        %6892 = vmatprep.subr.mxu0 0.0
        %6893 = vmatpush1.msra.mxu0 0.0
        %6894 = vmatprep.subr.mxu0 0.0
        %6895 = vmatpush1.msra.mxu0 0.0
        %6896 = vmatprep.subr.mxu0 0.0
        %6897 = vmatpush1.msra.mxu0 0.0
        %6898 = vmatprep.subr.mxu0 0.0
        %6899 = vmatpush1.msra.mxu0 0.0
        %6900 = vmatprep.subr.mxu0 0.0
        %6901 = vmatpush1.msra.mxu0 0.0
        %6902 = vmatprep.subr.mxu0 0.0
        %6903 = vmatpush1.msra.mxu0 0.0
        %6904 = vmatprep.subr.mxu0 0.0
        %6905 = vmatpush1.msra.mxu0 0.0
        %6906 = vmatprep.subr.mxu0 0.0
        %6907 = vmatpush1.msra.mxu0 0.0
        %6908 = vmatprep.subr.mxu0 0.0
        %6909 = vmatpush1.msra.mxu0 0.0
        %6910 = vmatprep.subr.mxu0 0.0
        %6911 = vmatpush1.msra.mxu0 0.0
        %6912 = vmatprep.subr.mxu0 0.0
        %6913 = vmatpush1.msra.mxu0 0.0
        %6914 = vmatprep.subr.mxu0 0.0
        %6915 = vmatpush1.msra.mxu0 0.0
        %6916 = vmatprep.subr.mxu0 0.0
        %6917 = vmatpush1.msra.mxu0 0.0
        %6918 = vmatprep.subr.mxu0 0.0
        %6919 = vmatpush1.msra.mxu0 0.0
        %6920 = vmatprep.subr.mxu0 0.0
        %6921 = vmatpush1.msra.mxu0 0.0
        %6922 = vmatprep.subr.mxu0 0.0
        %6923 = vmatpush1.msra.mxu0 0.0
        %6924 = vmatprep.mubr.f32.mxu0 0.0
        %6925 = vmatmul.mubr.f32.gmra.mrb[0].mxu0 %v6842
        %v6926 = vpop.f32.mrb[0].mxu0
        %v6927 = vadd.f32 0.0, %v6926
        %v6928 = vpop.f32.mrb[0].mxu0
        %6929 = vdwg.mxu0
        %v6930 = vadd.f32 %v6841, %v6927
        %v6931 = vld [vmem:[#allocation2 + $0x5] sm:$0xff]
        %s6932 = scalar_lea.vmem %s65, 640
        %v6933 = vld [vmem:[%s6932] sm:$0xff]
        %v6934 = vld [vmem:[%s6932 + $0x8] sm:$0xff]
        %v6935 = vld [vmem:[%s6932 + $0x10] sm:$0xff]
        %v6936 = vld [vmem:[%s6932 + $0x18] sm:$0xff]
        %v6937 = vld [vmem:[%s6932 + $0x20] sm:$0xff]
        %v6938 = vld [vmem:[%s6932 + $0x28] sm:$0xff]
        %v6939 = vld [vmem:[%s6932 + $0x30] sm:$0xff]
        %v6940 = vld [vmem:[%s6932 + $0x38] sm:$0xff]
        %v6941 = vld [vmem:[%s6932 + $0x40] sm:$0xff]
        %v6942 = vld [vmem:[%s6932 + $0x48] sm:$0xff]
        %v6943 = vld [vmem:[%s6932 + $0x50] sm:$0xff]
        %v6944 = vld [vmem:[%s6932 + $0x58] sm:$0xff]
        %v6945 = vld [vmem:[%s6932 + $0x60] sm:$0xff]
        %v6946 = vld [vmem:[%s6932 + $0x68] sm:$0xff]
        %v6947 = vld [vmem:[%s6932 + $0x70] sm:$0xff]
        %v6948 = vld [vmem:[%s6932 + $0x78] sm:$0xff]
        %6949 = vmatprep.subr.mxu0 0.0
        %6950 = vmatpush1.msra.mxu0 %v6933
        %6951 = vmatprep.subr.mxu0 0.0
        %6952 = vmatpush1.msra.mxu0 %v6934
        %6953 = vmatprep.subr.mxu0 0.0
        %6954 = vmatpush1.msra.mxu0 %v6935
        %6955 = vmatprep.subr.mxu0 0.0
        %6956 = vmatpush1.msra.mxu0 %v6936
        %6957 = vmatprep.subr.mxu0 0.0
        %6958 = vmatpush1.msra.mxu0 %v6937
        %6959 = vmatprep.subr.mxu0 0.0
        %6960 = vmatpush1.msra.mxu0 %v6938
        %6961 = vmatprep.subr.mxu0 0.0
        %6962 = vmatpush1.msra.mxu0 %v6939
        %6963 = vmatprep.subr.mxu0 0.0
        %6964 = vmatpush1.msra.mxu0 %v6940
        %6965 = vmatprep.subr.mxu0 0.0
        %6966 = vmatpush1.msra.mxu0 %v6941
        %6967 = vmatprep.subr.mxu0 0.0
        %6968 = vmatpush1.msra.mxu0 %v6942
        %6969 = vmatprep.subr.mxu0 0.0
        %6970 = vmatpush1.msra.mxu0 %v6943
        %6971 = vmatprep.subr.mxu0 0.0
        %6972 = vmatpush1.msra.mxu0 %v6944
        %6973 = vmatprep.subr.mxu0 0.0
        %6974 = vmatpush1.msra.mxu0 %v6945
        %6975 = vmatprep.subr.mxu0 0.0
        %6976 = vmatpush1.msra.mxu0 %v6946
        %6977 = vmatprep.subr.mxu0 0.0
        %6978 = vmatpush1.msra.mxu0 %v6947
        %6979 = vmatprep.subr.mxu0 0.0
        %6980 = vmatpush1.msra.mxu0 %v6948
        %6981 = vmatprep.subr.mxu0 0.0
        %6982 = vmatpush1.msra.mxu0 0.0
        %6983 = vmatprep.subr.mxu0 0.0
        %6984 = vmatpush1.msra.mxu0 0.0
        %6985 = vmatprep.subr.mxu0 0.0
        %6986 = vmatpush1.msra.mxu0 0.0
        %6987 = vmatprep.subr.mxu0 0.0
        %6988 = vmatpush1.msra.mxu0 0.0
        %6989 = vmatprep.subr.mxu0 0.0
        %6990 = vmatpush1.msra.mxu0 0.0
        %6991 = vmatprep.subr.mxu0 0.0
        %6992 = vmatpush1.msra.mxu0 0.0
        %6993 = vmatprep.subr.mxu0 0.0
        %6994 = vmatpush1.msra.mxu0 0.0
        %6995 = vmatprep.subr.mxu0 0.0
        %6996 = vmatpush1.msra.mxu0 0.0
        %6997 = vmatprep.subr.mxu0 0.0
        %6998 = vmatpush1.msra.mxu0 0.0
        %6999 = vmatprep.subr.mxu0 0.0
        %7000 = vmatpush1.msra.mxu0 0.0
        %7001 = vmatprep.subr.mxu0 0.0
        %7002 = vmatpush1.msra.mxu0 0.0
        %7003 = vmatprep.subr.mxu0 0.0
        %7004 = vmatpush1.msra.mxu0 0.0
        %7005 = vmatprep.subr.mxu0 0.0
        %7006 = vmatpush1.msra.mxu0 0.0
        %7007 = vmatprep.subr.mxu0 0.0
        %7008 = vmatpush1.msra.mxu0 0.0
        %7009 = vmatprep.subr.mxu0 0.0
        %7010 = vmatpush1.msra.mxu0 0.0
        %7011 = vmatprep.subr.mxu0 0.0
        %7012 = vmatpush1.msra.mxu0 0.0
        %7013 = vmatprep.mubr.f32.mxu0 0.0
        %7014 = vmatmul.mubr.f32.gmra.mrb[0].mxu0 %v6931
        %v7015 = vpop.f32.mrb[0].mxu0
        %v7016 = vadd.f32 0.0, %v7015
        %v7017 = vpop.f32.mrb[0].mxu0
        %7018 = vdwg.mxu0
        %v7019 = vadd.f32 %v6930, %v7016
        %v7020 = vld [vmem:[#allocation2 + $0x6] sm:$0xff]
        %s7021 = scalar_lea.vmem %s65, 768
        %v7022 = vld [vmem:[%s7021] sm:$0xff]
        %v7023 = vld [vmem:[%s7021 + $0x8] sm:$0xff]
        %v7024 = vld [vmem:[%s7021 + $0x10] sm:$0xff]
        %v7025 = vld [vmem:[%s7021 + $0x18] sm:$0xff]
        %v7026 = vld [vmem:[%s7021 + $0x20] sm:$0xff]
        %v7027 = vld [vmem:[%s7021 + $0x28] sm:$0xff]
        %v7028 = vld [vmem:[%s7021 + $0x30] sm:$0xff]
        %v7029 = vld [vmem:[%s7021 + $0x38] sm:$0xff]
        %v7030 = vld [vmem:[%s7021 + $0x40] sm:$0xff]
        %v7031 = vld [vmem:[%s7021 + $0x48] sm:$0xff]
        %v7032 = vld [vmem:[%s7021 + $0x50] sm:$0xff]
        %v7033 = vld [vmem:[%s7021 + $0x58] sm:$0xff]
        %v7034 = vld [vmem:[%s7021 + $0x60] sm:$0xff]
        %v7035 = vld [vmem:[%s7021 + $0x68] sm:$0xff]
        %v7036 = vld [vmem:[%s7021 + $0x70] sm:$0xff]
        %v7037 = vld [vmem:[%s7021 + $0x78] sm:$0xff]
        %7038 = vmatprep.subr.mxu0 0.0
        %7039 = vmatpush1.msra.mxu0 %v7022
        %7040 = vmatprep.subr.mxu0 0.0
        %7041 = vmatpush1.msra.mxu0 %v7023
        %7042 = vmatprep.subr.mxu0 0.0
        %7043 = vmatpush1.msra.mxu0 %v7024
        %7044 = vmatprep.subr.mxu0 0.0
        %7045 = vmatpush1.msra.mxu0 %v7025
        %7046 = vmatprep.subr.mxu0 0.0
        %7047 = vmatpush1.msra.mxu0 %v7026
        %7048 = vmatprep.subr.mxu0 0.0
        %7049 = vmatpush1.msra.mxu0 %v7027
        %7050 = vmatprep.subr.mxu0 0.0
        %7051 = vmatpush1.msra.mxu0 %v7028
        %7052 = vmatprep.subr.mxu0 0.0
        %7053 = vmatpush1.msra.mxu0 %v7029
        %7054 = vmatprep.subr.mxu0 0.0
        %7055 = vmatpush1.msra.mxu0 %v7030
        %7056 = vmatprep.subr.mxu0 0.0
        %7057 = vmatpush1.msra.mxu0 %v7031
        %7058 = vmatprep.subr.mxu0 0.0
        %7059 = vmatpush1.msra.mxu0 %v7032
        %7060 = vmatprep.subr.mxu0 0.0
        %7061 = vmatpush1.msra.mxu0 %v7033
        %7062 = vmatprep.subr.mxu0 0.0
        %7063 = vmatpush1.msra.mxu0 %v7034
        %7064 = vmatprep.subr.mxu0 0.0
        %7065 = vmatpush1.msra.mxu0 %v7035
        %7066 = vmatprep.subr.mxu0 0.0
        %7067 = vmatpush1.msra.mxu0 %v7036
        %7068 = vmatprep.subr.mxu0 0.0
        %7069 = vmatpush1.msra.mxu0 %v7037
        %7070 = vmatprep.subr.mxu0 0.0
        %7071 = vmatpush1.msra.mxu0 0.0
        %7072 = vmatprep.subr.mxu0 0.0
        %7073 = vmatpush1.msra.mxu0 0.0
        %7074 = vmatprep.subr.mxu0 0.0
        %7075 = vmatpush1.msra.mxu0 0.0
        %7076 = vmatprep.subr.mxu0 0.0
        %7077 = vmatpush1.msra.mxu0 0.0
        %7078 = vmatprep.subr.mxu0 0.0
        %7079 = vmatpush1.msra.mxu0 0.0
        %7080 = vmatprep.subr.mxu0 0.0
        %7081 = vmatpush1.msra.mxu0 0.0
        %7082 = vmatprep.subr.mxu0 0.0
        %7083 = vmatpush1.msra.mxu0 0.0
        %7084 = vmatprep.subr.mxu0 0.0
        %7085 = vmatpush1.msra.mxu0 0.0
        %7086 = vmatprep.subr.mxu0 0.0
        %7087 = vmatpush1.msra.mxu0 0.0
        %7088 = vmatprep.subr.mxu0 0.0
        %7089 = vmatpush1.msra.mxu0 0.0
        %7090 = vmatprep.subr.mxu0 0.0
        %7091 = vmatpush1.msra.mxu0 0.0
        %7092 = vmatprep.subr.mxu0 0.0
        %7093 = vmatpush1.msra.mxu0 0.0
        %7094 = vmatprep.subr.mxu0 0.0
        %7095 = vmatpush1.msra.mxu0 0.0
        %7096 = vmatprep.subr.mxu0 0.0
        %7097 = vmatpush1.msra.mxu0 0.0
        %7098 = vmatprep.subr.mxu0 0.0
        %7099 = vmatpush1.msra.mxu0 0.0
        %7100 = vmatprep.subr.mxu0 0.0
        %7101 = vmatpush1.msra.mxu0 0.0
        %7102 = vmatprep.mubr.f32.mxu0 0.0
        %7103 = vmatmul.mubr.f32.gmra.mrb[0].mxu0 %v7020
        %v7104 = vpop.f32.mrb[0].mxu0
        %v7105 = vadd.f32 0.0, %v7104
        %v7106 = vpop.f32.mrb[0].mxu0
        %7107 = vdwg.mxu0
        %v7108 = vadd.f32 %v7019, %v7105
        %7109 = vst.msk [vmem:[%s1262] sm:$0xff] %vm1274, %v7108
        %s7110 = sand.u32 %s802, 1
        %s7111 = scalar_lea.sflag [#allocation5], %s7110
        %s7112 = sand.u32 %s802, 1
        %s7113 = smul.addr %s7112, 8
        %s7114 = scalar_lea.vmem [#allocation32], %s7113
        // Predicated region
        $region225: #{generator_forward.1} parent=151 // pred_check
          %p7115 = pneg %p812
        $region226: #{generator_forward.1} parent=151 // pred_check_branch
          %7117 = sbr.rel (%p7115) target = $region228
        $region227: #{generator_forward.1} parent=151 // pred_region
          %s7119 = ssub.s32 128, 128
          %7120 = vsyncadd %s7111, %s7119
          %s7121 = smul.addr %s91, 128
          %s7122 = scalar_lea.hbm %s67, %s7121
          %s7124 = sshll.u32 %s7114, 4
          %s7125 = int_to_ptr.vmem [resolvable:$true] %s7124
          %7127 = dma.vmem_to_hbm [thread:$0]  %s7125, 128, %s7122, %s7111
        $region228: #{generator_forward.1} parent=151 // pred_fallthru
          _
      $region152: #{generator_forward.1} parent=5 // pred_fallthru
        _
      %p7128 = scmp.le.s32.totalorder 2, %s86
      // Predicated region
      $region229: #{generator_forward.1} parent=5 // pred_check
        %p7129 = pneg %p7128
      $region230: #{generator_forward.1} parent=5 // pred_check_branch
        %7131 = sbr.rel (%p7129) target = $region232
      $region231: #{generator_forward.1} parent=5 // pred_region
        %s7132 = ssub.s32 %s86, 2
        // Predicated region
        $region233: #{generator_forward.1} parent=231 // pred_check
          %p7133 = pneg %p818
        $region234: #{generator_forward.1} parent=231 // pred_check_branch
          %7135 = sbr.rel (%p7133) target = $region236
        $region235: #{generator_forward.1} parent=231 // pred_region
          %s7136 = sand.u32 %s803, 1
          %s7137 = scalar_lea.sflag [#allocation5], %s7136
          %s7138 = sand.u32 %s803, 1
          %s7139 = smul.addr %s7138, 8
          %s7140 = scalar_lea.vmem [#allocation32], %s7139
          %7141 = dma.done %s7137, 128
        $region236: #{generator_forward.1} parent=231 // pred_fallthru
          _
      $region232: #{generator_forward.1} parent=5 // pred_fallthru
        _
    $region6: #{generator_forward.1} parent=1 // loop_footer
      %s90 = sadd.s32 1, %s86
    $region7: #{generator_forward.1} parent=1 // loop_footer_branch
      %85 = sbr.rel target = $region3
    $region8: #{generator_forward.1} parent=1 // loop_exit
      _
    %7142 = vsyncpa [#allocation4], 1
    %s7143 = scalar_lea.sflag [#allocation4], 1
    %7144 = vsyncpa %s7143, 1
    %7145 = vsyncpa [#allocation7], 1
    %7146 = vsyncpa [#allocation10], 1
    %7147 = vsyncpa [#allocation13], 1
    %7148 = vsyncpa [#allocation16], 1
    %7149 = vsyncpa [#allocation19], 1
    %7150 = vsyncpa [#allocation22], 1
    %7151 = vsyncpa [#allocation25], 1
    %7152 = vsyncpa [#allocation28], 1
    %7153 = vsyncpa [#allocation31], 1
    %7154 = vsyncpa [#allocation5], 1
    %s7155 = scalar_lea.sflag [#allocation5], 1
    %7156 = vsyncpa %s7155, 1

</llo_original>
